<compile_context>
chip_gen: v7x
topology: tpu7x:2x2x1
jax: 0.10.0
libtpu: 0.0.40
codegen_flags: <defaults>
</compile_context>

<pallas_src>
import math

import numpy as np

import jax
import jax.numpy as jnp
from jax.experimental import pallas as pl
from jax.experimental.pallas import tpu as pltpu


# ----------------------------------------------------------------------------
# Fused forward kernel (one grid step = one image)
# ----------------------------------------------------------------------------
def _fused_forward_kernel(
    x_ref,                                  # (1, Cin*H, W) f32, rows = (c, y)
    l1_ref, s1_ref, b1_ref,                 # conv1 (stride 2)
    l2_ref, s2_ref, b2_ref,                 # conv2 (stride 2)
    l3_ref, s3_ref, b3_ref,                 # conv3 (stride 1)
    p1y_ref, p1x_ref,                       # avgpool 2x2
    l4_ref, s4_ref, b4_ref,                 # conv4 (stride 1)
    p2y_ref, p2x_ref,                       # avgpool 2x2
    v1_ref, fb1_ref,                        # fc1 (flatten order folded in)
    w2_ref, fb2_ref,                        # fc2
    w3_ref, fb3_ref,                        # fc3
    o_ref,                                  # (1, 1, 512) f32
):
    f32 = jnp.float32
    bf16 = jnp.bfloat16

    def conv(a, l_ref, s_ref, b_ref):
        # a: (H, W*Cin) bf16, lanes ordered (x, cin) x-major.
        ho = l_ref.shape[1]
        n_out = s_ref.shape[-1]
        acc = jnp.zeros((ho, n_out), f32)
        for ky in range(3):
            t = jnp.dot(l_ref[ky], a, preferred_element_type=f32).astype(bf16)
            acc = acc + jnp.dot(t, s_ref[ky], preferred_element_type=f32)
        return jnp.maximum(acc + b_ref[...], 0.0).astype(bf16)

    def pool(a, py_ref, pxk_ref):
        t = jnp.dot(py_ref[...], a, preferred_element_type=f32).astype(bf16)
        return jnp.dot(t, pxk_ref[...], preferred_element_type=f32).astype(bf16)

    def elu(x):
        return jnp.where(x > 0.0, x, jnp.exp(jnp.minimum(x, 0.0)) - 1.0)

    # ---- conv1: NCHW handled directly (rows = (c, y), lanes = x) -------------
    h_in = l1_ref.shape[2]
    cin = x_ref.shape[1] // h_in
    a0 = x_ref[0].astype(bf16)                              # (Cin*H, W)
    ho1 = l1_ref.shape[1]
    n1 = s1_ref.shape[-1]
    acc = jnp.zeros((ho1, n1), f32)
    for ky in range(3):
        lk = l1_ref[ky]                                     # (Ho1, H)
        for c in range(cin):
            ac = a0[c * h_in:(c + 1) * h_in, :]             # (H, W)
            t = jnp.dot(lk, ac, preferred_element_type=f32).astype(bf16)
            acc = acc + jnp.dot(t, s1_ref[ky, c], preferred_element_type=f32)
    z = jnp.maximum(acc + b1_ref[...], 0.0).astype(bf16)    # (Ho1, Wo1*32)

    # ---- remaining conv / pool stack (all VMEM-resident) ---------------------
    z = conv(z, l2_ref, s2_ref, b2_ref)                     # (Ho2, Wo2*32)
    z = conv(z, l3_ref, s3_ref, b3_ref)                     # (Ho3, Wo3*64)
    z = pool(z, p1y_ref, p1x_ref)
    z = conv(z, l4_ref, s4_ref, b4_ref)
    z = pool(z, p2y_ref, p2x_ref)                           # (Hf, Wf*64)

    # ---- fused FC head: Linear+ELU, Linear+ELU, Linear -----------------------
    hf = v1_ref.shape[0]
    acc = fb1_ref[...].astype(f32)                          # (1, 512)
    for y in range(hf):
        acc = acc + jnp.dot(z[y:y + 1, :], v1_ref[y], preferred_element_type=f32)
    h1 = elu(acc).astype(bf16)
    h2 = elu(jnp.dot(h1, w2_ref[...], preferred_element_type=f32)
             + fb2_ref[...]).astype(bf16)
    out = jnp.dot(h2, w3_ref[...], preferred_element_type=f32) + fb3_ref[...]
    o_ref[0] = out.astype(o_ref.dtype)


# ----------------------------------------------------------------------------
# Weight-side constant builders (run once at init, pure numpy)
# ----------------------------------------------------------------------------
def _tap_gather(out_size, in_size, stride, k):
    """G[o, i] = 1 iff i == o*stride + k - 1 (3x3 kernel, padding=1)."""
    g = np.zeros((out_size, in_size), np.float32)
    for o in range(out_size):
        i = o * stride + k - 1
        if 0 <= i < in_size:
            g[o, i] = 1.0
    return g


def _conv_out(n, stride):
    return (n + 2 - 3) // stride + 1


def _build_conv_consts(w, b, H, W, stride):
    """Generic conv layer; input lanes are (x, cin) x-major."""
    w_np = np.asarray(w)
    b_np = np.asarray(b)
    cout, cin = w_np.shape[0], w_np.shape[1]
    Ho, Wo = _conv_out(H, stride), _conv_out(W, stride)
    L = np.stack([_tap_gather(Ho, H, stride, ky) for ky in range(3)])      # (3,Ho,H)
    S = np.zeros((3, W * cin, Wo * cout), np.float32)
    for ky in range(3):
        for kx in range(3):
            gx = _tap_gather(Wo, W, stride, kx)                            # (Wo,W)
            S[ky] += np.kron(gx.T, w_np[:, :, ky, kx].T)                   # (W*cin, Wo*cout)
    brow = np.tile(b_np, Wo)[None, :]                                      # (1, Wo*cout)
    return L, S, brow, Ho, Wo


def _build_conv1_consts(w, b, H, W, stride):
    """First conv; input rows are (cin, y) (pure reshape of NCHW), lanes are x."""
    w_np = np.asarray(w)
    b_np = np.asarray(b)
    cout, cin = w_np.shape[0], w_np.shape[1]
    Ho, Wo = _conv_out(H, stride), _conv_out(W, stride)
    L = np.stack([_tap_gather(Ho, H, stride, ky) for ky in range(3)])      # (3,Ho,H)
    S = np.zeros((3, cin, W, Wo * cout), np.float32)
    for ky in range(3):
        for c in range(cin):
            for kx in range(3):
                gx = _tap_gather(Wo, W, stride, kx)                        # (Wo,W)
                S[ky, c] += np.kron(gx.T, w_np[:, c, ky, kx][None, :])     # (W, Wo*cout)
    brow = np.tile(b_np, Wo)[None, :]
    return L, S, brow, Ho, Wo


def _build_pool_consts(H, W, C):
    Ho, Wo = H // 2, W // 2
    Py = np.zeros((Ho, H), np.float32)
    Px = np.zeros((Wo, W), np.float32)
    for o in range(Ho):
        Py[o, 2 * o] = 0.5
        Py[o, 2 * o + 1] = 0.5
    for o in range(Wo):
        Px[o, 2 * o] = 0.5
        Px[o, 2 * o + 1] = 0.5
    PxK = np.kron(Px.T, np.eye(C, dtype=np.float32))                       # (W*C, Wo*C)
    return Py, PxK, Ho, Wo


# ----------------------------------------------------------------------------
# Parameter init (xavier_uniform weights + zero bias, mirrors the PyTorch init)
# ----------------------------------------------------------------------------
def init_params(input_shape, key):
    Cin, H, W = input_shape
    assert H % 16 == 0 and W % 16 == 0, "model assumes spatial dims divisible by 16"
    ks = jax.random.split(key, 7)

    def xavier(k, shape, fan_in, fan_out):
        bound = math.sqrt(6.0 / (fan_in + fan_out))
        return jax.random.uniform(k, shape, jnp.float32, -bound, bound)

    raw = {
        "w1": xavier(ks[0], (32, Cin, 3, 3), Cin * 9, 32 * 9),
        "b1": jnp.zeros((32,), jnp.float32),
        "w2": xavier(ks[1], (32, 32, 3, 3), 32 * 9, 32 * 9),
        "b2": jnp.zeros((32,), jnp.float32),
        "w3": xavier(ks[2], (64, 32, 3, 3), 32 * 9, 64 * 9),
        "b3": jnp.zeros((64,), jnp.float32),
        "w4": xavier(ks[3], (64, 64, 3, 3), 64 * 9, 64 * 9),
        "b4": jnp.zeros((64,), jnp.float32),
    }
    fc_size = (H // 16) * (W // 16)
    raw["fw1"] = xavier(ks[4], (512, 64 * fc_size), 64 * fc_size, 512)
    raw["fb1"] = jnp.zeros((512,), jnp.float32)
    raw["fw2"] = xavier(ks[5], (512, 512), 512, 512)
    raw["fb2"] = jnp.zeros((512,), jnp.float32)
    raw["fw3"] = xavier(ks[6], (512, 512), 512, 512)
    raw["fb3"] = jnp.zeros((512,), jnp.float32)

    bf16 = jnp.bfloat16
    f32 = jnp.float32
    consts = []

    L1, S1, B1, h, w = _build_conv1_consts(raw["w1"], raw["b1"], H, W, 2)
    consts += [jnp.asarray(L1, bf16), jnp.asarray(S1, bf16), jnp.asarray(B1, f32)]

    L2, S2, B2, h, w = _build_conv_consts(raw["w2"], raw["b2"], h, w, 2)
    consts += [jnp.asarray(L2, bf16), jnp.asarray(S2, bf16), jnp.asarray(B2, f32)]

    L3, S3, B3, h, w = _build_conv_consts(raw["w3"], raw["b3"], h, w, 1)
    consts += [jnp.asarray(L3, bf16), jnp.asarray(S3, bf16), jnp.asarray(B3, f32)]

    P1y, P1x, h, w = _build_pool_consts(h, w, 64)
    consts += [jnp.asarray(P1y, bf16), jnp.asarray(P1x, bf16)]

    L4, S4, B4, h, w = _build_conv_consts(raw["w4"], raw["b4"], h, w, 1)
    consts += [jnp.asarray(L4, bf16), jnp.asarray(S4, bf16), jnp.asarray(B4, f32)]

    P2y, P2x, h, w = _build_pool_consts(h, w, 64)
    consts += [jnp.asarray(P2y, bf16), jnp.asarray(P2x, bf16)]

    Hf, Wf = h, w
    assert Hf * Wf == fc_size
    # Fold the PyTorch (C, H, W) flatten order into the fc1 weight.
    V1 = (np.asarray(raw["fw1"]).reshape(512, 64, Hf, Wf)
          .transpose(2, 3, 1, 0).reshape(Hf, Wf * 64, 512))
    consts += [jnp.asarray(V1, bf16), jnp.asarray(raw["fb1"]).reshape(1, 512)]
    consts += [jnp.asarray(raw["fw2"]).T.astype(bf16),
               jnp.asarray(raw["fb2"]).reshape(1, 512)]
    consts += [jnp.asarray(raw["fw3"]).T.astype(bf16),
               jnp.asarray(raw["fb3"]).reshape(1, 512)]

    return {"consts": tuple(consts)}, raw


# ----------------------------------------------------------------------------
# Forward pass: one fused pallas_call, grid over batch ("parallel" for v7x)
# ----------------------------------------------------------------------------
def _const_spec(a):
    zero = (0,) * a.ndim
    return pl.BlockSpec(a.shape, lambda b, _z=zero: _z)


@jax.jit
def forward(params, state):
    B, Cin, H, W = state.shape
    consts = params["consts"]
    x2 = state.reshape(B, Cin * H, W).astype(jnp.float32)   # free row-major reshape

    in_specs = [pl.BlockSpec((1, Cin * H, W), lambda b: (b, 0, 0))]
    in_specs += [_const_spec(c) for c in consts]

    out = pl.pallas_call(
        _fused_forward_kernel,
        out_shape=jax.ShapeDtypeStruct((B, 1, 512), jnp.float32),
        grid=(B,),
        in_specs=in_specs,
        out_specs=pl.BlockSpec((1, 1, 512), lambda b: (b, 0, 0)),
        compiler_params=pltpu.CompilerParams(dimension_semantics=("parallel",)),
    )(x2, *consts)
    return out.reshape(B, 512)


# ----------------------------------------------------------------------------
# Pure-JAX reference (for a correctness sanity check)
# ----------------------------------------------------------------------------
@jax.jit
def reference_forward(raw, state):
    x = state.astype(jnp.float32)

    def conv(x, w, b, stride):
        y = jax.lax.conv_general_dilated(
            x, w, window_strides=(stride, stride), padding=((1, 1), (1, 1)),
            dimension_numbers=("NCHW", "OIHW", "NCHW"))
        return jax.nn.relu(y + b[None, :, None, None])

    x = conv(x, raw["w1"], raw["b1"], 2)
    x = conv(x, raw["w2"], raw["b2"], 2)
    x = conv(x, raw["w3"], raw["b3"], 1)
    B, C, H, W = x.shape
    x = x.reshape(B, C, H // 2, 2, W // 2, 2).mean(axis=(3, 5))
    x = conv(x, raw["w4"], raw["b4"], 1)
    B, C, H, W = x.shape
    x = x.reshape(B, C, H // 2, 2, W // 2, 2).mean(axis=(3, 5))
    x = x.reshape(B, -1)
    x = jax.nn.elu(x @ raw["fw1"].T + raw["fb1"])
    x = jax.nn.elu(x @ raw["fw2"].T + raw["fb2"])
    return x @ raw["fw3"].T + raw["fb3"]


# ----------------------------------------------------------------------------
if __name__ == "__main__":
    input_shape = (4, 16, 16)   # (C, H, W) -> fc_size = 1
    batch = 2

    key = jax.random.PRNGKey(0)
    k_param, k_input = jax.random.split(key)
    params, raw = init_params(input_shape, k_param)
    state = jax.random.normal(k_input, (batch,) + input_shape, jnp.float32)

    out = jax.block_until_ready(forward(params, state))
    assert out.shape == (batch, 512), out.shape
    assert bool(jnp.all(jnp.isfinite(out)))

    ref = jax.block_until_ready(reference_forward(raw, state))
    err = float(jnp.max(jnp.abs(out - ref)))
    assert err < 0.2, f"kernel/reference mismatch: max abs err {err}"

    print("KERNEL_OK")
</pallas_src>

<mosaic_0001>
module attributes {stable_mosaic.version = 11 : i64} {
  func.func @_fused_forward_kernel(%arg0: i32, %arg1: memref<1x64x16xf32, #tpu.memory_space<vmem>>, %arg2: memref<3x8x16xbf16, #tpu.memory_space<vmem>>, %arg3: memref<3x4x16x256xbf16, #tpu.memory_space<vmem>>, %arg4: memref<1x256xf32, #tpu.memory_space<vmem>>, %arg5: memref<3x4x8xbf16, #tpu.memory_space<vmem>>, %arg6: memref<3x256x128xbf16, #tpu.memory_space<vmem>>, %arg7: memref<1x128xf32, #tpu.memory_space<vmem>>, %arg8: memref<3x4x4xbf16, #tpu.memory_space<vmem>>, %arg9: memref<3x128x256xbf16, #tpu.memory_space<vmem>>, %arg10: memref<1x256xf32, #tpu.memory_space<vmem>>, %arg11: memref<2x4xbf16, #tpu.memory_space<vmem>>, %arg12: memref<256x128xbf16, #tpu.memory_space<vmem>>, %arg13: memref<3x2x2xbf16, #tpu.memory_space<vmem>>, %arg14: memref<3x128x128xbf16, #tpu.memory_space<vmem>>, %arg15: memref<1x128xf32, #tpu.memory_space<vmem>>, %arg16: memref<1x2xbf16, #tpu.memory_space<vmem>>, %arg17: memref<128x64xbf16, #tpu.memory_space<vmem>>, %arg18: memref<1x64x512xbf16, #tpu.memory_space<vmem>>, %arg19: memref<1x512xf32, #tpu.memory_space<vmem>>, %arg20: memref<512x512xbf16, #tpu.memory_space<vmem>>, %arg21: memref<1x512xf32, #tpu.memory_space<vmem>>, %arg22: memref<512x512xbf16, #tpu.memory_space<vmem>>, %arg23: memref<1x512xf32, #tpu.memory_space<vmem>>, %arg24: memref<1x1x512xf32, #tpu.memory_space<vmem>>) attributes {dimension_semantics = [#tpu.dimension_semantics<parallel>], iteration_bounds = array<i64: 2>, scalar_prefetch = 0 : i64, scratch_operands = 0 : i64, tpu.core_type = #tpu.core_type<tc>, window_params = [{transform_indices = @transform_0, window_bounds = array<i64: 1, 64, 16>}, {pipeline_mode = #tpu.pipeline_mode<synchronous>, transform_indices = @transform_1, window_bounds = array<i64: 3, 8, 16>}, {pipeline_mode = #tpu.pipeline_mode<synchronous>, transform_indices = @transform_2, window_bounds = array<i64: 3, 4, 16, 256>}, {pipeline_mode = #tpu.pipeline_mode<synchronous>, transform_indices = @transform_3, window_bounds = array<i64: 1, 256>}, {pipeline_mode = #tpu.pipeline_mode<synchronous>, transform_indices = @transform_4, window_bounds = array<i64: 3, 4, 8>}, {pipeline_mode = #tpu.pipeline_mode<synchronous>, transform_indices = @transform_5, window_bounds = array<i64: 3, 256, 128>}, {pipeline_mode = #tpu.pipeline_mode<synchronous>, transform_indices = @transform_6, window_bounds = array<i64: 1, 128>}, {pipeline_mode = #tpu.pipeline_mode<synchronous>, transform_indices = @transform_7, window_bounds = array<i64: 3, 4, 4>}, {pipeline_mode = #tpu.pipeline_mode<synchronous>, transform_indices = @transform_8, window_bounds = array<i64: 3, 128, 256>}, {pipeline_mode = #tpu.pipeline_mode<synchronous>, transform_indices = @transform_9, window_bounds = array<i64: 1, 256>}, {pipeline_mode = #tpu.pipeline_mode<synchronous>, transform_indices = @transform_10, window_bounds = array<i64: 2, 4>}, {pipeline_mode = #tpu.pipeline_mode<synchronous>, transform_indices = @transform_11, window_bounds = array<i64: 256, 128>}, {pipeline_mode = #tpu.pipeline_mode<synchronous>, transform_indices = @transform_12, window_bounds = array<i64: 3, 2, 2>}, {pipeline_mode = #tpu.pipeline_mode<synchronous>, transform_indices = @transform_13, window_bounds = array<i64: 3, 128, 128>}, {pipeline_mode = #tpu.pipeline_mode<synchronous>, transform_indices = @transform_14, window_bounds = array<i64: 1, 128>}, {pipeline_mode = #tpu.pipeline_mode<synchronous>, transform_indices = @transform_15, window_bounds = array<i64: 1, 2>}, {pipeline_mode = #tpu.pipeline_mode<synchronous>, transform_indices = @transform_16, window_bounds = array<i64: 128, 64>}, {pipeline_mode = #tpu.pipeline_mode<synchronous>, transform_indices = @transform_17, window_bounds = array<i64: 1, 64, 512>}, {pipeline_mode = #tpu.pipeline_mode<synchronous>, transform_indices = @transform_18, window_bounds = array<i64: 1, 512>}, {pipeline_mode = #tpu.pipeline_mode<synchronous>, transform_indices = @transform_19, window_bounds = array<i64: 512, 512>}, {pipeline_mode = #tpu.pipeline_mode<synchronous>, transform_indices = @transform_20, window_bounds = array<i64: 1, 512>}, {pipeline_mode = #tpu.pipeline_mode<synchronous>, transform_indices = @transform_21, window_bounds = array<i64: 512, 512>}, {pipeline_mode = #tpu.pipeline_mode<synchronous>, transform_indices = @transform_22, window_bounds = array<i64: 1, 512>}, {transform_indices = @transform_23, window_bounds = array<i64: 1, 1, 512>}]} {
    %c0 = arith.constant 0 : index
    %c0_0 = arith.constant 0 : index
    %c0_1 = arith.constant 0 : index
    %0 = vector.load %arg1[%c0, %c0_0, %c0_1] : memref<1x64x16xf32, #tpu.memory_space<vmem>>, vector<1x64x16xf32>
    %1 = vector.shape_cast %0 : vector<1x64x16xf32> to vector<64x16xf32>
    %2 = arith.truncf %1 : vector<64x16xf32> to vector<64x16xbf16>
    %cst = arith.constant 0.000000e+00 : f32
    %3 = vector.broadcast %cst : f32 to vector<8x256xf32>
    %c0_2 = arith.constant 0 : index
    %c0_3 = arith.constant 0 : index
    %c0_4 = arith.constant 0 : index
    %4 = vector.load %arg2[%c0_2, %c0_3, %c0_4] : memref<3x8x16xbf16, #tpu.memory_space<vmem>>, vector<1x8x16xbf16>
    %5 = vector.shape_cast %4 : vector<1x8x16xbf16> to vector<8x16xbf16>
    %6 = vector.extract_strided_slice %2 {offsets = [0, 0], sizes = [16, 16], strides = [1, 1]} : vector<64x16xbf16> to vector<16x16xbf16>
    %cst_5 = arith.constant dense<0.000000e+00> : vector<8x16xf32>
    %7 = tpu.matmul %5, %6, %cst_5 {dimension_numbers = #tpu.dot_dimension_numbers<[1], [0], [0], [1], [0, 0, 1, 1], [], []>} : vector<8x16xbf16>, vector<16x16xbf16>, vector<8x16xf32> -> vector<8x16xf32>
    %8 = arith.truncf %7 : vector<8x16xf32> to vector<8x16xbf16>
    %c0_6 = arith.constant 0 : index
    %c0_7 = arith.constant 0 : index
    %c0_8 = arith.constant 0 : index
    %c0_9 = arith.constant 0 : index
    %9 = vector.load %arg3[%c0_6, %c0_7, %c0_8, %c0_9] : memref<3x4x16x256xbf16, #tpu.memory_space<vmem>>, vector<1x1x16x256xbf16>
    %10 = vector.shape_cast %9 : vector<1x1x16x256xbf16> to vector<16x256xbf16>
    %cst_10 = arith.constant dense<0.000000e+00> : vector<8x256xf32>
    %11 = tpu.matmul %8, %10, %cst_10 {dimension_numbers = #tpu.dot_dimension_numbers<[1], [0], [0], [1], [0, 0, 1, 1], [], []>} : vector<8x16xbf16>, vector<16x256xbf16>, vector<8x256xf32> -> vector<8x256xf32>
    %12 = arith.addf %3, %11 : vector<8x256xf32>
    %13 = vector.extract_strided_slice %2 {offsets = [16, 0], sizes = [16, 16], strides = [1, 1]} : vector<64x16xbf16> to vector<16x16xbf16>
    %cst_11 = arith.constant dense<0.000000e+00> : vector<8x16xf32>
    %14 = tpu.matmul %5, %13, %cst_11 {dimension_numbers = #tpu.dot_dimension_numbers<[1], [0], [0], [1], [0, 0, 1, 1], [], []>} : vector<8x16xbf16>, vector<16x16xbf16>, vector<8x16xf32> -> vector<8x16xf32>
    %15 = arith.truncf %14 : vector<8x16xf32> to vector<8x16xbf16>
    %c0_12 = arith.constant 0 : index
    %c1 = arith.constant 1 : index
    %c0_13 = arith.constant 0 : index
    %c0_14 = arith.constant 0 : index
    %16 = vector.load %arg3[%c0_12, %c1, %c0_13, %c0_14] : memref<3x4x16x256xbf16, #tpu.memory_space<vmem>>, vector<1x1x16x256xbf16>
    %17 = vector.shape_cast %16 : vector<1x1x16x256xbf16> to vector<16x256xbf16>
    %cst_15 = arith.constant dense<0.000000e+00> : vector<8x256xf32>
    %18 = tpu.matmul %15, %17, %cst_15 {dimension_numbers = #tpu.dot_dimension_numbers<[1], [0], [0], [1], [0, 0, 1, 1], [], []>} : vector<8x16xbf16>, vector<16x256xbf16>, vector<8x256xf32> -> vector<8x256xf32>
    %19 = arith.addf %12, %18 : vector<8x256xf32>
    %20 = vector.extract_strided_slice %2 {offsets = [32, 0], sizes = [16, 16], strides = [1, 1]} : vector<64x16xbf16> to vector<16x16xbf16>
    %cst_16 = arith.constant dense<0.000000e+00> : vector<8x16xf32>
    %21 = tpu.matmul %5, %20, %cst_16 {dimension_numbers = #tpu.dot_dimension_numbers<[1], [0], [0], [1], [0, 0, 1, 1], [], []>} : vector<8x16xbf16>, vector<16x16xbf16>, vector<8x16xf32> -> vector<8x16xf32>
    %22 = arith.truncf %21 : vector<8x16xf32> to vector<8x16xbf16>
    %c0_17 = arith.constant 0 : index
    %c2 = arith.constant 2 : index
    %c0_18 = arith.constant 0 : index
    %c0_19 = arith.constant 0 : index
    %23 = vector.load %arg3[%c0_17, %c2, %c0_18, %c0_19] : memref<3x4x16x256xbf16, #tpu.memory_space<vmem>>, vector<1x1x16x256xbf16>
    %24 = vector.shape_cast %23 : vector<1x1x16x256xbf16> to vector<16x256xbf16>
    %cst_20 = arith.constant dense<0.000000e+00> : vector<8x256xf32>
    %25 = tpu.matmul %22, %24, %cst_20 {dimension_numbers = #tpu.dot_dimension_numbers<[1], [0], [0], [1], [0, 0, 1, 1], [], []>} : vector<8x16xbf16>, vector<16x256xbf16>, vector<8x256xf32> -> vector<8x256xf32>
    %26 = arith.addf %19, %25 : vector<8x256xf32>
    %27 = vector.extract_strided_slice %2 {offsets = [48, 0], sizes = [16, 16], strides = [1, 1]} : vector<64x16xbf16> to vector<16x16xbf16>
    %cst_21 = arith.constant dense<0.000000e+00> : vector<8x16xf32>
    %28 = tpu.matmul %5, %27, %cst_21 {dimension_numbers = #tpu.dot_dimension_numbers<[1], [0], [0], [1], [0, 0, 1, 1], [], []>} : vector<8x16xbf16>, vector<16x16xbf16>, vector<8x16xf32> -> vector<8x16xf32>
    %29 = arith.truncf %28 : vector<8x16xf32> to vector<8x16xbf16>
    %c0_22 = arith.constant 0 : index
    %c3 = arith.constant 3 : index
    %c0_23 = arith.constant 0 : index
    %c0_24 = arith.constant 0 : index
    %30 = vector.load %arg3[%c0_22, %c3, %c0_23, %c0_24] : memref<3x4x16x256xbf16, #tpu.memory_space<vmem>>, vector<1x1x16x256xbf16>
    %31 = vector.shape_cast %30 : vector<1x1x16x256xbf16> to vector<16x256xbf16>
    %cst_25 = arith.constant dense<0.000000e+00> : vector<8x256xf32>
    %32 = tpu.matmul %29, %31, %cst_25 {dimension_numbers = #tpu.dot_dimension_numbers<[1], [0], [0], [1], [0, 0, 1, 1], [], []>} : vector<8x16xbf16>, vector<16x256xbf16>, vector<8x256xf32> -> vector<8x256xf32>
    %33 = arith.addf %26, %32 : vector<8x256xf32>
    %c1_26 = arith.constant 1 : index
    %c0_27 = arith.constant 0 : index
    %c0_28 = arith.constant 0 : index
    %34 = vector.load %arg2[%c1_26, %c0_27, %c0_28] : memref<3x8x16xbf16, #tpu.memory_space<vmem>>, vector<1x8x16xbf16>
    %35 = vector.shape_cast %34 : vector<1x8x16xbf16> to vector<8x16xbf16>
    %36 = vector.extract_strided_slice %2 {offsets = [0, 0], sizes = [16, 16], strides = [1, 1]} : vector<64x16xbf16> to vector<16x16xbf16>
    %cst_29 = arith.constant dense<0.000000e+00> : vector<8x16xf32>
    %37 = tpu.matmul %35, %36, %cst_29 {dimension_numbers = #tpu.dot_dimension_numbers<[1], [0], [0], [1], [0, 0, 1, 1], [], []>} : vector<8x16xbf16>, vector<16x16xbf16>, vector<8x16xf32> -> vector<8x16xf32>
    %38 = arith.truncf %37 : vector<8x16xf32> to vector<8x16xbf16>
    %c1_30 = arith.constant 1 : index
    %c0_31 = arith.constant 0 : index
    %c0_32 = arith.constant 0 : index
    %c0_33 = arith.constant 0 : index
    %39 = vector.load %arg3[%c1_30, %c0_31, %c0_32, %c0_33] : memref<3x4x16x256xbf16, #tpu.memory_space<vmem>>, vector<1x1x16x256xbf16>
    %40 = vector.shape_cast %39 : vector<1x1x16x256xbf16> to vector<16x256xbf16>
    %cst_34 = arith.constant dense<0.000000e+00> : vector<8x256xf32>
    %41 = tpu.matmul %38, %40, %cst_34 {dimension_numbers = #tpu.dot_dimension_numbers<[1], [0], [0], [1], [0, 0, 1, 1], [], []>} : vector<8x16xbf16>, vector<16x256xbf16>, vector<8x256xf32> -> vector<8x256xf32>
    %42 = arith.addf %33, %41 : vector<8x256xf32>
    %43 = vector.extract_strided_slice %2 {offsets = [16, 0], sizes = [16, 16], strides = [1, 1]} : vector<64x16xbf16> to vector<16x16xbf16>
    %cst_35 = arith.constant dense<0.000000e+00> : vector<8x16xf32>
    %44 = tpu.matmul %35, %43, %cst_35 {dimension_numbers = #tpu.dot_dimension_numbers<[1], [0], [0], [1], [0, 0, 1, 1], [], []>} : vector<8x16xbf16>, vector<16x16xbf16>, vector<8x16xf32> -> vector<8x16xf32>
    %45 = arith.truncf %44 : vector<8x16xf32> to vector<8x16xbf16>
    %c1_36 = arith.constant 1 : index
    %c1_37 = arith.constant 1 : index
    %c0_38 = arith.constant 0 : index
    %c0_39 = arith.constant 0 : index
    %46 = vector.load %arg3[%c1_36, %c1_37, %c0_38, %c0_39] : memref<3x4x16x256xbf16, #tpu.memory_space<vmem>>, vector<1x1x16x256xbf16>
    %47 = vector.shape_cast %46 : vector<1x1x16x256xbf16> to vector<16x256xbf16>
    %cst_40 = arith.constant dense<0.000000e+00> : vector<8x256xf32>
    %48 = tpu.matmul %45, %47, %cst_40 {dimension_numbers = #tpu.dot_dimension_numbers<[1], [0], [0], [1], [0, 0, 1, 1], [], []>} : vector<8x16xbf16>, vector<16x256xbf16>, vector<8x256xf32> -> vector<8x256xf32>
    %49 = arith.addf %42, %48 : vector<8x256xf32>
    %50 = vector.extract_strided_slice %2 {offsets = [32, 0], sizes = [16, 16], strides = [1, 1]} : vector<64x16xbf16> to vector<16x16xbf16>
    %cst_41 = arith.constant dense<0.000000e+00> : vector<8x16xf32>
    %51 = tpu.matmul %35, %50, %cst_41 {dimension_numbers = #tpu.dot_dimension_numbers<[1], [0], [0], [1], [0, 0, 1, 1], [], []>} : vector<8x16xbf16>, vector<16x16xbf16>, vector<8x16xf32> -> vector<8x16xf32>
    %52 = arith.truncf %51 : vector<8x16xf32> to vector<8x16xbf16>
    %c1_42 = arith.constant 1 : index
    %c2_43 = arith.constant 2 : index
    %c0_44 = arith.constant 0 : index
    %c0_45 = arith.constant 0 : index
    %53 = vector.load %arg3[%c1_42, %c2_43, %c0_44, %c0_45] : memref<3x4x16x256xbf16, #tpu.memory_space<vmem>>, vector<1x1x16x256xbf16>
    %54 = vector.shape_cast %53 : vector<1x1x16x256xbf16> to vector<16x256xbf16>
    %cst_46 = arith.constant dense<0.000000e+00> : vector<8x256xf32>
    %55 = tpu.matmul %52, %54, %cst_46 {dimension_numbers = #tpu.dot_dimension_numbers<[1], [0], [0], [1], [0, 0, 1, 1], [], []>} : vector<8x16xbf16>, vector<16x256xbf16>, vector<8x256xf32> -> vector<8x256xf32>
    %56 = arith.addf %49, %55 : vector<8x256xf32>
    %57 = vector.extract_strided_slice %2 {offsets = [48, 0], sizes = [16, 16], strides = [1, 1]} : vector<64x16xbf16> to vector<16x16xbf16>
    %cst_47 = arith.constant dense<0.000000e+00> : vector<8x16xf32>
    %58 = tpu.matmul %35, %57, %cst_47 {dimension_numbers = #tpu.dot_dimension_numbers<[1], [0], [0], [1], [0, 0, 1, 1], [], []>} : vector<8x16xbf16>, vector<16x16xbf16>, vector<8x16xf32> -> vector<8x16xf32>
    %59 = arith.truncf %58 : vector<8x16xf32> to vector<8x16xbf16>
    %c1_48 = arith.constant 1 : index
    %c3_49 = arith.constant 3 : index
    %c0_50 = arith.constant 0 : index
    %c0_51 = arith.constant 0 : index
    %60 = vector.load %arg3[%c1_48, %c3_49, %c0_50, %c0_51] : memref<3x4x16x256xbf16, #tpu.memory_space<vmem>>, vector<1x1x16x256xbf16>
    %61 = vector.shape_cast %60 : vector<1x1x16x256xbf16> to vector<16x256xbf16>
    %cst_52 = arith.constant dense<0.000000e+00> : vector<8x256xf32>
    %62 = tpu.matmul %59, %61, %cst_52 {dimension_numbers = #tpu.dot_dimension_numbers<[1], [0], [0], [1], [0, 0, 1, 1], [], []>} : vector<8x16xbf16>, vector<16x256xbf16>, vector<8x256xf32> -> vector<8x256xf32>
    %63 = arith.addf %56, %62 : vector<8x256xf32>
    %c2_53 = arith.constant 2 : index
    %c0_54 = arith.constant 0 : index
    %c0_55 = arith.constant 0 : index
    %64 = vector.load %arg2[%c2_53, %c0_54, %c0_55] : memref<3x8x16xbf16, #tpu.memory_space<vmem>>, vector<1x8x16xbf16>
    %65 = vector.shape_cast %64 : vector<1x8x16xbf16> to vector<8x16xbf16>
    %66 = vector.extract_strided_slice %2 {offsets = [0, 0], sizes = [16, 16], strides = [1, 1]} : vector<64x16xbf16> to vector<16x16xbf16>
    %cst_56 = arith.constant dense<0.000000e+00> : vector<8x16xf32>
    %67 = tpu.matmul %65, %66, %cst_56 {dimension_numbers = #tpu.dot_dimension_numbers<[1], [0], [0], [1], [0, 0, 1, 1], [], []>} : vector<8x16xbf16>, vector<16x16xbf16>, vector<8x16xf32> -> vector<8x16xf32>
    %68 = arith.truncf %67 : vector<8x16xf32> to vector<8x16xbf16>
    %c2_57 = arith.constant 2 : index
    %c0_58 = arith.constant 0 : index
    %c0_59 = arith.constant 0 : index
    %c0_60 = arith.constant 0 : index
    %69 = vector.load %arg3[%c2_57, %c0_58, %c0_59, %c0_60] : memref<3x4x16x256xbf16, #tpu.memory_space<vmem>>, vector<1x1x16x256xbf16>
    %70 = vector.shape_cast %69 : vector<1x1x16x256xbf16> to vector<16x256xbf16>
    %cst_61 = arith.constant dense<0.000000e+00> : vector<8x256xf32>
    %71 = tpu.matmul %68, %70, %cst_61 {dimension_numbers = #tpu.dot_dimension_numbers<[1], [0], [0], [1], [0, 0, 1, 1], [], []>} : vector<8x16xbf16>, vector<16x256xbf16>, vector<8x256xf32> -> vector<8x256xf32>
    %72 = arith.addf %63, %71 : vector<8x256xf32>
    %73 = vector.extract_strided_slice %2 {offsets = [16, 0], sizes = [16, 16], strides = [1, 1]} : vector<64x16xbf16> to vector<16x16xbf16>
    %cst_62 = arith.constant dense<0.000000e+00> : vector<8x16xf32>
    %74 = tpu.matmul %65, %73, %cst_62 {dimension_numbers = #tpu.dot_dimension_numbers<[1], [0], [0], [1], [0, 0, 1, 1], [], []>} : vector<8x16xbf16>, vector<16x16xbf16>, vector<8x16xf32> -> vector<8x16xf32>
    %75 = arith.truncf %74 : vector<8x16xf32> to vector<8x16xbf16>
    %c2_63 = arith.constant 2 : index
    %c1_64 = arith.constant 1 : index
    %c0_65 = arith.constant 0 : index
    %c0_66 = arith.constant 0 : index
    %76 = vector.load %arg3[%c2_63, %c1_64, %c0_65, %c0_66] : memref<3x4x16x256xbf16, #tpu.memory_space<vmem>>, vector<1x1x16x256xbf16>
    %77 = vector.shape_cast %76 : vector<1x1x16x256xbf16> to vector<16x256xbf16>
    %cst_67 = arith.constant dense<0.000000e+00> : vector<8x256xf32>
    %78 = tpu.matmul %75, %77, %cst_67 {dimension_numbers = #tpu.dot_dimension_numbers<[1], [0], [0], [1], [0, 0, 1, 1], [], []>} : vector<8x16xbf16>, vector<16x256xbf16>, vector<8x256xf32> -> vector<8x256xf32>
    %79 = arith.addf %72, %78 : vector<8x256xf32>
    %80 = vector.extract_strided_slice %2 {offsets = [32, 0], sizes = [16, 16], strides = [1, 1]} : vector<64x16xbf16> to vector<16x16xbf16>
    %cst_68 = arith.constant dense<0.000000e+00> : vector<8x16xf32>
    %81 = tpu.matmul %65, %80, %cst_68 {dimension_numbers = #tpu.dot_dimension_numbers<[1], [0], [0], [1], [0, 0, 1, 1], [], []>} : vector<8x16xbf16>, vector<16x16xbf16>, vector<8x16xf32> -> vector<8x16xf32>
    %82 = arith.truncf %81 : vector<8x16xf32> to vector<8x16xbf16>
    %c2_69 = arith.constant 2 : index
    %c2_70 = arith.constant 2 : index
    %c0_71 = arith.constant 0 : index
    %c0_72 = arith.constant 0 : index
    %83 = vector.load %arg3[%c2_69, %c2_70, %c0_71, %c0_72] : memref<3x4x16x256xbf16, #tpu.memory_space<vmem>>, vector<1x1x16x256xbf16>
    %84 = vector.shape_cast %83 : vector<1x1x16x256xbf16> to vector<16x256xbf16>
    %cst_73 = arith.constant dense<0.000000e+00> : vector<8x256xf32>
    %85 = tpu.matmul %82, %84, %cst_73 {dimension_numbers = #tpu.dot_dimension_numbers<[1], [0], [0], [1], [0, 0, 1, 1], [], []>} : vector<8x16xbf16>, vector<16x256xbf16>, vector<8x256xf32> -> vector<8x256xf32>
    %86 = arith.addf %79, %85 : vector<8x256xf32>
    %87 = vector.extract_strided_slice %2 {offsets = [48, 0], sizes = [16, 16], strides = [1, 1]} : vector<64x16xbf16> to vector<16x16xbf16>
    %cst_74 = arith.constant dense<0.000000e+00> : vector<8x16xf32>
    %88 = tpu.matmul %65, %87, %cst_74 {dimension_numbers = #tpu.dot_dimension_numbers<[1], [0], [0], [1], [0, 0, 1, 1], [], []>} : vector<8x16xbf16>, vector<16x16xbf16>, vector<8x16xf32> -> vector<8x16xf32>
    %89 = arith.truncf %88 : vector<8x16xf32> to vector<8x16xbf16>
    %c2_75 = arith.constant 2 : index
    %c3_76 = arith.constant 3 : index
    %c0_77 = arith.constant 0 : index
    %c0_78 = arith.constant 0 : index
    %90 = vector.load %arg3[%c2_75, %c3_76, %c0_77, %c0_78] : memref<3x4x16x256xbf16, #tpu.memory_space<vmem>>, vector<1x1x16x256xbf16>
    %91 = vector.shape_cast %90 : vector<1x1x16x256xbf16> to vector<16x256xbf16>
    %cst_79 = arith.constant dense<0.000000e+00> : vector<8x256xf32>
    %92 = tpu.matmul %89, %91, %cst_79 {dimension_numbers = #tpu.dot_dimension_numbers<[1], [0], [0], [1], [0, 0, 1, 1], [], []>} : vector<8x16xbf16>, vector<16x256xbf16>, vector<8x256xf32> -> vector<8x256xf32>
    %93 = arith.addf %86, %92 : vector<8x256xf32>
    %c0_80 = arith.constant 0 : index
    %c0_81 = arith.constant 0 : index
    %94 = vector.load %arg4[%c0_80, %c0_81] : memref<1x256xf32, #tpu.memory_space<vmem>>, vector<1x256xf32>
    %95 = vector.broadcast %94 : vector<1x256xf32> to vector<8x256xf32>
    %96 = arith.addf %93, %95 : vector<8x256xf32>
    %cst_82 = arith.constant 0.000000e+00 : f32
    %97 = vector.broadcast %cst_82 : f32 to vector<8x256xf32>
    %98 = arith.maximumf %96, %97 : vector<8x256xf32>
    %99 = arith.truncf %98 : vector<8x256xf32> to vector<8x256xbf16>
    %cst_83 = arith.constant 0.000000e+00 : f32
    %100 = vector.broadcast %cst_83 : f32 to vector<4x128xf32>
    %c0_84 = arith.constant 0 : index
    %c0_85 = arith.constant 0 : index
    %c0_86 = arith.constant 0 : index
    %101 = vector.load %arg5[%c0_84, %c0_85, %c0_86] : memref<3x4x8xbf16, #tpu.memory_space<vmem>>, vector<1x4x8xbf16>
    %102 = vector.shape_cast %101 : vector<1x4x8xbf16> to vector<4x8xbf16>
    %cst_87 = arith.constant dense<0.000000e+00> : vector<4x256xf32>
    %103 = tpu.matmul %102, %99, %cst_87 {dimension_numbers = #tpu.dot_dimension_numbers<[1], [0], [0], [1], [0, 0, 1, 1], [], []>} : vector<4x8xbf16>, vector<8x256xbf16>, vector<4x256xf32> -> vector<4x256xf32>
    %104 = arith.truncf %103 : vector<4x256xf32> to vector<4x256xbf16>
    %c0_88 = arith.constant 0 : index
    %c0_89 = arith.constant 0 : index
    %c0_90 = arith.constant 0 : index
    %105 = vector.load %arg6[%c0_88, %c0_89, %c0_90] : memref<3x256x128xbf16, #tpu.memory_space<vmem>>, vector<1x256x128xbf16>
    %106 = vector.shape_cast %105 : vector<1x256x128xbf16> to vector<256x128xbf16>
    %cst_91 = arith.constant dense<0.000000e+00> : vector<4x128xf32>
    %107 = tpu.matmul %104, %106, %cst_91 {dimension_numbers = #tpu.dot_dimension_numbers<[1], [0], [0], [1], [0, 0, 1, 1], [], []>} : vector<4x256xbf16>, vector<256x128xbf16>, vector<4x128xf32> -> vector<4x128xf32>
    %108 = arith.addf %100, %107 : vector<4x128xf32>
    %c1_92 = arith.constant 1 : index
    %c0_93 = arith.constant 0 : index
    %c0_94 = arith.constant 0 : index
    %109 = vector.load %arg5[%c1_92, %c0_93, %c0_94] : memref<3x4x8xbf16, #tpu.memory_space<vmem>>, vector<1x4x8xbf16>
    %110 = vector.shape_cast %109 : vector<1x4x8xbf16> to vector<4x8xbf16>
    %cst_95 = arith.constant dense<0.000000e+00> : vector<4x256xf32>
    %111 = tpu.matmul %110, %99, %cst_95 {dimension_numbers = #tpu.dot_dimension_numbers<[1], [0], [0], [1], [0, 0, 1, 1], [], []>} : vector<4x8xbf16>, vector<8x256xbf16>, vector<4x256xf32> -> vector<4x256xf32>
    %112 = arith.truncf %111 : vector<4x256xf32> to vector<4x256xbf16>
    %c1_96 = arith.constant 1 : index
    %c0_97 = arith.constant 0 : index
    %c0_98 = arith.constant 0 : index
    %113 = vector.load %arg6[%c1_96, %c0_97, %c0_98] : memref<3x256x128xbf16, #tpu.memory_space<vmem>>, vector<1x256x128xbf16>
    %114 = vector.shape_cast %113 : vector<1x256x128xbf16> to vector<256x128xbf16>
    %cst_99 = arith.constant dense<0.000000e+00> : vector<4x128xf32>
    %115 = tpu.matmul %112, %114, %cst_99 {dimension_numbers = #tpu.dot_dimension_numbers<[1], [0], [0], [1], [0, 0, 1, 1], [], []>} : vector<4x256xbf16>, vector<256x128xbf16>, vector<4x128xf32> -> vector<4x128xf32>
    %116 = arith.addf %108, %115 : vector<4x128xf32>
    %c2_100 = arith.constant 2 : index
    %c0_101 = arith.constant 0 : index
    %c0_102 = arith.constant 0 : index
    %117 = vector.load %arg5[%c2_100, %c0_101, %c0_102] : memref<3x4x8xbf16, #tpu.memory_space<vmem>>, vector<1x4x8xbf16>
    %118 = vector.shape_cast %117 : vector<1x4x8xbf16> to vector<4x8xbf16>
    %cst_103 = arith.constant dense<0.000000e+00> : vector<4x256xf32>
    %119 = tpu.matmul %118, %99, %cst_103 {dimension_numbers = #tpu.dot_dimension_numbers<[1], [0], [0], [1], [0, 0, 1, 1], [], []>} : vector<4x8xbf16>, vector<8x256xbf16>, vector<4x256xf32> -> vector<4x256xf32>
    %120 = arith.truncf %119 : vector<4x256xf32> to vector<4x256xbf16>
    %c2_104 = arith.constant 2 : index
    %c0_105 = arith.constant 0 : index
    %c0_106 = arith.constant 0 : index
    %121 = vector.load %arg6[%c2_104, %c0_105, %c0_106] : memref<3x256x128xbf16, #tpu.memory_space<vmem>>, vector<1x256x128xbf16>
    %122 = vector.shape_cast %121 : vector<1x256x128xbf16> to vector<256x128xbf16>
    %cst_107 = arith.constant dense<0.000000e+00> : vector<4x128xf32>
    %123 = tpu.matmul %120, %122, %cst_107 {dimension_numbers = #tpu.dot_dimension_numbers<[1], [0], [0], [1], [0, 0, 1, 1], [], []>} : vector<4x256xbf16>, vector<256x128xbf16>, vector<4x128xf32> -> vector<4x128xf32>
    %124 = arith.addf %116, %123 : vector<4x128xf32>
    %c0_108 = arith.constant 0 : index
    %c0_109 = arith.constant 0 : index
    %125 = vector.load %arg7[%c0_108, %c0_109] : memref<1x128xf32, #tpu.memory_space<vmem>>, vector<1x128xf32>
    %126 = vector.broadcast %125 : vector<1x128xf32> to vector<4x128xf32>
    %127 = arith.addf %124, %126 : vector<4x128xf32>
    %cst_110 = arith.constant 0.000000e+00 : f32
    %128 = vector.broadcast %cst_110 : f32 to vector<4x128xf32>
    %129 = arith.maximumf %127, %128 : vector<4x128xf32>
    %130 = arith.truncf %129 : vector<4x128xf32> to vector<4x128xbf16>
    %cst_111 = arith.constant 0.000000e+00 : f32
    %131 = vector.broadcast %cst_111 : f32 to vector<4x256xf32>
    %c0_112 = arith.constant 0 : index
    %c0_113 = arith.constant 0 : index
    %c0_114 = arith.constant 0 : index
    %132 = vector.load %arg8[%c0_112, %c0_113, %c0_114] : memref<3x4x4xbf16, #tpu.memory_space<vmem>>, vector<1x4x4xbf16>
    %133 = vector.shape_cast %132 : vector<1x4x4xbf16> to vector<4x4xbf16>
    %cst_115 = arith.constant dense<0.000000e+00> : vector<4x128xf32>
    %134 = tpu.matmul %133, %130, %cst_115 {dimension_numbers = #tpu.dot_dimension_numbers<[1], [0], [0], [1], [0, 0, 1, 1], [], []>} : vector<4x4xbf16>, vector<4x128xbf16>, vector<4x128xf32> -> vector<4x128xf32>
    %135 = arith.truncf %134 : vector<4x128xf32> to vector<4x128xbf16>
    %c0_116 = arith.constant 0 : index
    %c0_117 = arith.constant 0 : index
    %c0_118 = arith.constant 0 : index
    %136 = vector.load %arg9[%c0_116, %c0_117, %c0_118] : memref<3x128x256xbf16, #tpu.memory_space<vmem>>, vector<1x128x256xbf16>
    %137 = vector.shape_cast %136 : vector<1x128x256xbf16> to vector<128x256xbf16>
    %cst_119 = arith.constant dense<0.000000e+00> : vector<4x256xf32>
    %138 = tpu.matmul %135, %137, %cst_119 {dimension_numbers = #tpu.dot_dimension_numbers<[1], [0], [0], [1], [0, 0, 1, 1], [], []>} : vector<4x128xbf16>, vector<128x256xbf16>, vector<4x256xf32> -> vector<4x256xf32>
    %139 = arith.addf %131, %138 : vector<4x256xf32>
    %c1_120 = arith.constant 1 : index
    %c0_121 = arith.constant 0 : index
    %c0_122 = arith.constant 0 : index
    %140 = vector.load %arg8[%c1_120, %c0_121, %c0_122] : memref<3x4x4xbf16, #tpu.memory_space<vmem>>, vector<1x4x4xbf16>
    %141 = vector.shape_cast %140 : vector<1x4x4xbf16> to vector<4x4xbf16>
    %cst_123 = arith.constant dense<0.000000e+00> : vector<4x128xf32>
    %142 = tpu.matmul %141, %130, %cst_123 {dimension_numbers = #tpu.dot_dimension_numbers<[1], [0], [0], [1], [0, 0, 1, 1], [], []>} : vector<4x4xbf16>, vector<4x128xbf16>, vector<4x128xf32> -> vector<4x128xf32>
    %143 = arith.truncf %142 : vector<4x128xf32> to vector<4x128xbf16>
    %c1_124 = arith.constant 1 : index
    %c0_125 = arith.constant 0 : index
    %c0_126 = arith.constant 0 : index
    %144 = vector.load %arg9[%c1_124, %c0_125, %c0_126] : memref<3x128x256xbf16, #tpu.memory_space<vmem>>, vector<1x128x256xbf16>
    %145 = vector.shape_cast %144 : vector<1x128x256xbf16> to vector<128x256xbf16>
    %cst_127 = arith.constant dense<0.000000e+00> : vector<4x256xf32>
    %146 = tpu.matmul %143, %145, %cst_127 {dimension_numbers = #tpu.dot_dimension_numbers<[1], [0], [0], [1], [0, 0, 1, 1], [], []>} : vector<4x128xbf16>, vector<128x256xbf16>, vector<4x256xf32> -> vector<4x256xf32>
    %147 = arith.addf %139, %146 : vector<4x256xf32>
    %c2_128 = arith.constant 2 : index
    %c0_129 = arith.constant 0 : index
    %c0_130 = arith.constant 0 : index
    %148 = vector.load %arg8[%c2_128, %c0_129, %c0_130] : memref<3x4x4xbf16, #tpu.memory_space<vmem>>, vector<1x4x4xbf16>
    %149 = vector.shape_cast %148 : vector<1x4x4xbf16> to vector<4x4xbf16>
    %cst_131 = arith.constant dense<0.000000e+00> : vector<4x128xf32>
    %150 = tpu.matmul %149, %130, %cst_131 {dimension_numbers = #tpu.dot_dimension_numbers<[1], [0], [0], [1], [0, 0, 1, 1], [], []>} : vector<4x4xbf16>, vector<4x128xbf16>, vector<4x128xf32> -> vector<4x128xf32>
    %151 = arith.truncf %150 : vector<4x128xf32> to vector<4x128xbf16>
    %c2_132 = arith.constant 2 : index
    %c0_133 = arith.constant 0 : index
    %c0_134 = arith.constant 0 : index
    %152 = vector.load %arg9[%c2_132, %c0_133, %c0_134] : memref<3x128x256xbf16, #tpu.memory_space<vmem>>, vector<1x128x256xbf16>
    %153 = vector.shape_cast %152 : vector<1x128x256xbf16> to vector<128x256xbf16>
    %cst_135 = arith.constant dense<0.000000e+00> : vector<4x256xf32>
    %154 = tpu.matmul %151, %153, %cst_135 {dimension_numbers = #tpu.dot_dimension_numbers<[1], [0], [0], [1], [0, 0, 1, 1], [], []>} : vector<4x128xbf16>, vector<128x256xbf16>, vector<4x256xf32> -> vector<4x256xf32>
    %155 = arith.addf %147, %154 : vector<4x256xf32>
    %c0_136 = arith.constant 0 : index
    %c0_137 = arith.constant 0 : index
    %156 = vector.load %arg10[%c0_136, %c0_137] : memref<1x256xf32, #tpu.memory_space<vmem>>, vector<1x256xf32>
    %157 = vector.broadcast %156 : vector<1x256xf32> to vector<4x256xf32>
    %158 = arith.addf %155, %157 : vector<4x256xf32>
    %cst_138 = arith.constant 0.000000e+00 : f32
    %159 = vector.broadcast %cst_138 : f32 to vector<4x256xf32>
    %160 = arith.maximumf %158, %159 : vector<4x256xf32>
    %161 = arith.truncf %160 : vector<4x256xf32> to vector<4x256xbf16>
    %c0_139 = arith.constant 0 : index
    %c0_140 = arith.constant 0 : index
    %162 = vector.load %arg11[%c0_139, %c0_140] : memref<2x4xbf16, #tpu.memory_space<vmem>>, vector<2x4xbf16>
    %cst_141 = arith.constant dense<0.000000e+00> : vector<2x256xf32>
    %163 = tpu.matmul %162, %161, %cst_141 {dimension_numbers = #tpu.dot_dimension_numbers<[1], [0], [0], [1], [0, 0, 1, 1], [], []>} : vector<2x4xbf16>, vector<4x256xbf16>, vector<2x256xf32> -> vector<2x256xf32>
    %164 = arith.truncf %163 : vector<2x256xf32> to vector<2x256xbf16>
    %c0_142 = arith.constant 0 : index
    %c0_143 = arith.constant 0 : index
    %165 = vector.load %arg12[%c0_142, %c0_143] : memref<256x128xbf16, #tpu.memory_space<vmem>>, vector<256x128xbf16>
    %cst_144 = arith.constant dense<0.000000e+00> : vector<2x128xf32>
    %166 = tpu.matmul %164, %165, %cst_144 {dimension_numbers = #tpu.dot_dimension_numbers<[1], [0], [0], [1], [0, 0, 1, 1], [], []>} : vector<2x256xbf16>, vector<256x128xbf16>, vector<2x128xf32> -> vector<2x128xf32>
    %167 = arith.truncf %166 : vector<2x128xf32> to vector<2x128xbf16>
    %cst_145 = arith.constant 0.000000e+00 : f32
    %168 = vector.broadcast %cst_145 : f32 to vector<2x128xf32>
    %c0_146 = arith.constant 0 : index
    %c0_147 = arith.constant 0 : index
    %c0_148 = arith.constant 0 : index
    %169 = vector.load %arg13[%c0_146, %c0_147, %c0_148] : memref<3x2x2xbf16, #tpu.memory_space<vmem>>, vector<1x2x2xbf16>
    %170 = vector.shape_cast %169 : vector<1x2x2xbf16> to vector<2x2xbf16>
    %cst_149 = arith.constant dense<0.000000e+00> : vector<2x128xf32>
    %171 = tpu.matmul %170, %167, %cst_149 {dimension_numbers = #tpu.dot_dimension_numbers<[1], [0], [0], [1], [0, 0, 1, 1], [], []>} : vector<2x2xbf16>, vector<2x128xbf16>, vector<2x128xf32> -> vector<2x128xf32>
    %172 = arith.truncf %171 : vector<2x128xf32> to vector<2x128xbf16>
    %c0_150 = arith.constant 0 : index
    %c0_151 = arith.constant 0 : index
    %c0_152 = arith.constant 0 : index
    %173 = vector.load %arg14[%c0_150, %c0_151, %c0_152] : memref<3x128x128xbf16, #tpu.memory_space<vmem>>, vector<1x128x128xbf16>
    %174 = vector.shape_cast %173 : vector<1x128x128xbf16> to vector<128x128xbf16>
    %cst_153 = arith.constant dense<0.000000e+00> : vector<2x128xf32>
    %175 = tpu.matmul %172, %174, %cst_153 {dimension_numbers = #tpu.dot_dimension_numbers<[1], [0], [0], [1], [0, 0, 1, 1], [], []>} : vector<2x128xbf16>, vector<128x128xbf16>, vector<2x128xf32> -> vector<2x128xf32>
    %176 = arith.addf %168, %175 : vector<2x128xf32>
    %c1_154 = arith.constant 1 : index
    %c0_155 = arith.constant 0 : index
    %c0_156 = arith.constant 0 : index
    %177 = vector.load %arg13[%c1_154, %c0_155, %c0_156] : memref<3x2x2xbf16, #tpu.memory_space<vmem>>, vector<1x2x2xbf16>
    %178 = vector.shape_cast %177 : vector<1x2x2xbf16> to vector<2x2xbf16>
    %cst_157 = arith.constant dense<0.000000e+00> : vector<2x128xf32>
    %179 = tpu.matmul %178, %167, %cst_157 {dimension_numbers = #tpu.dot_dimension_numbers<[1], [0], [0], [1], [0, 0, 1, 1], [], []>} : vector<2x2xbf16>, vector<2x128xbf16>, vector<2x128xf32> -> vector<2x128xf32>
    %180 = arith.truncf %179 : vector<2x128xf32> to vector<2x128xbf16>
    %c1_158 = arith.constant 1 : index
    %c0_159 = arith.constant 0 : index
    %c0_160 = arith.constant 0 : index
    %181 = vector.load %arg14[%c1_158, %c0_159, %c0_160] : memref<3x128x128xbf16, #tpu.memory_space<vmem>>, vector<1x128x128xbf16>
    %182 = vector.shape_cast %181 : vector<1x128x128xbf16> to vector<128x128xbf16>
    %cst_161 = arith.constant dense<0.000000e+00> : vector<2x128xf32>
    %183 = tpu.matmul %180, %182, %cst_161 {dimension_numbers = #tpu.dot_dimension_numbers<[1], [0], [0], [1], [0, 0, 1, 1], [], []>} : vector<2x128xbf16>, vector<128x128xbf16>, vector<2x128xf32> -> vector<2x128xf32>
    %184 = arith.addf %176, %183 : vector<2x128xf32>
    %c2_162 = arith.constant 2 : index
    %c0_163 = arith.constant 0 : index
    %c0_164 = arith.constant 0 : index
    %185 = vector.load %arg13[%c2_162, %c0_163, %c0_164] : memref<3x2x2xbf16, #tpu.memory_space<vmem>>, vector<1x2x2xbf16>
    %186 = vector.shape_cast %185 : vector<1x2x2xbf16> to vector<2x2xbf16>
    %cst_165 = arith.constant dense<0.000000e+00> : vector<2x128xf32>
    %187 = tpu.matmul %186, %167, %cst_165 {dimension_numbers = #tpu.dot_dimension_numbers<[1], [0], [0], [1], [0, 0, 1, 1], [], []>} : vector<2x2xbf16>, vector<2x128xbf16>, vector<2x128xf32> -> vector<2x128xf32>
    %188 = arith.truncf %187 : vector<2x128xf32> to vector<2x128xbf16>
    %c2_166 = arith.constant 2 : index
    %c0_167 = arith.constant 0 : index
    %c0_168 = arith.constant 0 : index
    %189 = vector.load %arg14[%c2_166, %c0_167, %c0_168] : memref<3x128x128xbf16, #tpu.memory_space<vmem>>, vector<1x128x128xbf16>
    %190 = vector.shape_cast %189 : vector<1x128x128xbf16> to vector<128x128xbf16>
    %cst_169 = arith.constant dense<0.000000e+00> : vector<2x128xf32>
    %191 = tpu.matmul %188, %190, %cst_169 {dimension_numbers = #tpu.dot_dimension_numbers<[1], [0], [0], [1], [0, 0, 1, 1], [], []>} : vector<2x128xbf16>, vector<128x128xbf16>, vector<2x128xf32> -> vector<2x128xf32>
    %192 = arith.addf %184, %191 : vector<2x128xf32>
    %c0_170 = arith.constant 0 : index
    %c0_171 = arith.constant 0 : index
    %193 = vector.load %arg15[%c0_170, %c0_171] : memref<1x128xf32, #tpu.memory_space<vmem>>, vector<1x128xf32>
    %194 = vector.broadcast %193 : vector<1x128xf32> to vector<2x128xf32>
    %195 = arith.addf %192, %194 : vector<2x128xf32>
    %cst_172 = arith.constant 0.000000e+00 : f32
    %196 = vector.broadcast %cst_172 : f32 to vector<2x128xf32>
    %197 = arith.maximumf %195, %196 : vector<2x128xf32>
    %198 = arith.truncf %197 : vector<2x128xf32> to vector<2x128xbf16>
    %c0_173 = arith.constant 0 : index
    %c0_174 = arith.constant 0 : index
    %199 = vector.load %arg16[%c0_173, %c0_174] : memref<1x2xbf16, #tpu.memory_space<vmem>>, vector<1x2xbf16>
    %cst_175 = arith.constant dense<0.000000e+00> : vector<1x128xf32>
    %200 = tpu.matmul %199, %198, %cst_175 {dimension_numbers = #tpu.dot_dimension_numbers<[1], [0], [0], [1], [0, 0, 1, 1], [], []>} : vector<1x2xbf16>, vector<2x128xbf16>, vector<1x128xf32> -> vector<1x128xf32>
    %201 = arith.truncf %200 : vector<1x128xf32> to vector<1x128xbf16>
    %c0_176 = arith.constant 0 : index
    %c0_177 = arith.constant 0 : index
    %202 = vector.load %arg17[%c0_176, %c0_177] : memref<128x64xbf16, #tpu.memory_space<vmem>>, vector<128x64xbf16>
    %cst_178 = arith.constant dense<0.000000e+00> : vector<1x64xf32>
    %203 = tpu.matmul %201, %202, %cst_178 {dimension_numbers = #tpu.dot_dimension_numbers<[1], [0], [0], [1], [0, 0, 1, 1], [], []>} : vector<1x128xbf16>, vector<128x64xbf16>, vector<1x64xf32> -> vector<1x64xf32>
    %204 = arith.truncf %203 : vector<1x64xf32> to vector<1x64xbf16>
    %c0_179 = arith.constant 0 : index
    %c0_180 = arith.constant 0 : index
    %205 = vector.load %arg19[%c0_179, %c0_180] : memref<1x512xf32, #tpu.memory_space<vmem>>, vector<1x512xf32>
    %c0_181 = arith.constant 0 : index
    %c0_182 = arith.constant 0 : index
    %c0_183 = arith.constant 0 : index
    %206 = vector.load %arg18[%c0_181, %c0_182, %c0_183] : memref<1x64x512xbf16, #tpu.memory_space<vmem>>, vector<1x64x512xbf16>
    %207 = vector.shape_cast %206 : vector<1x64x512xbf16> to vector<64x512xbf16>
    %cst_184 = arith.constant dense<0.000000e+00> : vector<1x512xf32>
    %208 = tpu.matmul %204, %207, %cst_184 {dimension_numbers = #tpu.dot_dimension_numbers<[1], [0], [0], [1], [0, 0, 1, 1], [], []>} : vector<1x64xbf16>, vector<64x512xbf16>, vector<1x512xf32> -> vector<1x512xf32>
    %209 = arith.addf %205, %208 : vector<1x512xf32>
    %cst_185 = arith.constant 0.000000e+00 : f32
    %210 = vector.broadcast %cst_185 : f32 to vector<1x512xf32>
    %211 = arith.cmpf ogt, %209, %210 : vector<1x512xf32>
    %cst_186 = arith.constant 0.000000e+00 : f32
    %212 = vector.broadcast %cst_186 : f32 to vector<1x512xf32>
    %213 = arith.minimumf %209, %212 : vector<1x512xf32>
    %214 = math.exp %213 : vector<1x512xf32>
    %cst_187 = arith.constant 1.000000e+00 : f32
    %215 = vector.broadcast %cst_187 : f32 to vector<1x512xf32>
    %216 = arith.subf %214, %215 : vector<1x512xf32>
    %217 = arith.select %211, %209, %216 : vector<1x512xi1>, vector<1x512xf32>
    %218 = arith.truncf %217 : vector<1x512xf32> to vector<1x512xbf16>
    %c0_188 = arith.constant 0 : index
    %c0_189 = arith.constant 0 : index
    %219 = vector.load %arg20[%c0_188, %c0_189] : memref<512x512xbf16, #tpu.memory_space<vmem>>, vector<512x512xbf16>
    %cst_190 = arith.constant dense<0.000000e+00> : vector<1x512xf32>
    %220 = tpu.matmul %218, %219, %cst_190 {dimension_numbers = #tpu.dot_dimension_numbers<[1], [0], [0], [1], [0, 0, 1, 1], [], []>} : vector<1x512xbf16>, vector<512x512xbf16>, vector<1x512xf32> -> vector<1x512xf32>
    %c0_191 = arith.constant 0 : index
    %c0_192 = arith.constant 0 : index
    %221 = vector.load %arg21[%c0_191, %c0_192] : memref<1x512xf32, #tpu.memory_space<vmem>>, vector<1x512xf32>
    %222 = arith.addf %220, %221 : vector<1x512xf32>
    %cst_193 = arith.constant 0.000000e+00 : f32
    %223 = vector.broadcast %cst_193 : f32 to vector<1x512xf32>
    %224 = arith.cmpf ogt, %222, %223 : vector<1x512xf32>
    %cst_194 = arith.constant 0.000000e+00 : f32
    %225 = vector.broadcast %cst_194 : f32 to vector<1x512xf32>
    %226 = arith.minimumf %222, %225 : vector<1x512xf32>
    %227 = math.exp %226 : vector<1x512xf32>
    %cst_195 = arith.constant 1.000000e+00 : f32
    %228 = vector.broadcast %cst_195 : f32 to vector<1x512xf32>
    %229 = arith.subf %227, %228 : vector<1x512xf32>
    %230 = arith.select %224, %222, %229 : vector<1x512xi1>, vector<1x512xf32>
    %231 = arith.truncf %230 : vector<1x512xf32> to vector<1x512xbf16>
    %c0_196 = arith.constant 0 : index
    %c0_197 = arith.constant 0 : index
    %232 = vector.load %arg22[%c0_196, %c0_197] : memref<512x512xbf16, #tpu.memory_space<vmem>>, vector<512x512xbf16>
    %cst_198 = arith.constant dense<0.000000e+00> : vector<1x512xf32>
    %233 = tpu.matmul %231, %232, %cst_198 {dimension_numbers = #tpu.dot_dimension_numbers<[1], [0], [0], [1], [0, 0, 1, 1], [], []>} : vector<1x512xbf16>, vector<512x512xbf16>, vector<1x512xf32> -> vector<1x512xf32>
    %c0_199 = arith.constant 0 : index
    %c0_200 = arith.constant 0 : index
    %234 = vector.load %arg23[%c0_199, %c0_200] : memref<1x512xf32, #tpu.memory_space<vmem>>, vector<1x512xf32>
    %235 = arith.addf %233, %234 : vector<1x512xf32>
    %c0_201 = arith.constant 0 : index
    %c0_202 = arith.constant 0 : index
    %c0_203 = arith.constant 0 : index
    %236 = vector.load %arg24[%c0_201, %c0_202, %c0_203] : memref<1x1x512xf32, #tpu.memory_space<vmem>>, vector<1x1x512xf32>
    %237 = vector.shape_cast %236 : vector<1x1x512xf32> to vector<1x512xf32>
    %238 = vector.shape_cast %235 : vector<1x512xf32> to vector<1x1x512xf32>
    tpu.vector_store %arg24[%c0_201, %c0_202, %c0_203], %238 {strides = array<i32>} : memref<1x1x512xf32, #tpu.memory_space<vmem>>, vector<1x1x512xf32>,
    return
  }
  func.func @transform_0(%arg0: i32) -> (i32, i32, i32) {
    %c0_i32 = arith.constant 0 : i32
    %c0_i32_0 = arith.constant 0 : i32
    %c0_i32_1 = arith.constant 0 : i32
    return %arg0, %c0_i32, %c0_i32_0 : i32, i32, i32
  }
  func.func @transform_1(%arg0: i32) -> (i32, i32, i32) {
    %c0_i32 = arith.constant 0 : i32
    %c0_i32_0 = arith.constant 0 : i32
    %c0_i32_1 = arith.constant 0 : i32
    %c0_i32_2 = arith.constant 0 : i32
    return %c0_i32, %c0_i32_0, %c0_i32_1 : i32, i32, i32
  }
  func.func @transform_2(%arg0: i32) -> (i32, i32, i32, i32) {
    %c0_i32 = arith.constant 0 : i32
    %c0_i32_0 = arith.constant 0 : i32
    %c0_i32_1 = arith.constant 0 : i32
    %c0_i32_2 = arith.constant 0 : i32
    %c0_i32_3 = arith.constant 0 : i32
    return %c0_i32, %c0_i32_0, %c0_i32_1, %c0_i32_2 : i32, i32, i32, i32
  }
  func.func @transform_3(%arg0: i32) -> (i32, i32) {
    %c0_i32 = arith.constant 0 : i32
    %c0_i32_0 = arith.constant 0 : i32
    %c0_i32_1 = arith.constant 0 : i32
    return %c0_i32, %c0_i32_0 : i32, i32
  }
  func.func @transform_4(%arg0: i32) -> (i32, i32, i32) {
    %c0_i32 = arith.constant 0 : i32
    %c0_i32_0 = arith.constant 0 : i32
    %c0_i32_1 = arith.constant 0 : i32
    %c0_i32_2 = arith.constant 0 : i32
    return %c0_i32, %c0_i32_0, %c0_i32_1 : i32, i32, i32
  }
  func.func @transform_5(%arg0: i32) -> (i32, i32, i32) {
    %c0_i32 = arith.constant 0 : i32
    %c0_i32_0 = arith.constant 0 : i32
    %c0_i32_1 = arith.constant 0 : i32
    %c0_i32_2 = arith.constant 0 : i32
    return %c0_i32, %c0_i32_0, %c0_i32_1 : i32, i32, i32
  }
  func.func @transform_6(%arg0: i32) -> (i32, i32) {
    %c0_i32 = arith.constant 0 : i32
    %c0_i32_0 = arith.constant 0 : i32
    %c0_i32_1 = arith.constant 0 : i32
    return %c0_i32, %c0_i32_0 : i32, i32
  }
  func.func @transform_7(%arg0: i32) -> (i32, i32, i32) {
    %c0_i32 = arith.constant 0 : i32
    %c0_i32_0 = arith.constant 0 : i32
    %c0_i32_1 = arith.constant 0 : i32
    %c0_i32_2 = arith.constant 0 : i32
    return %c0_i32, %c0_i32_0, %c0_i32_1 : i32, i32, i32
  }
  func.func @transform_8(%arg0: i32) -> (i32, i32, i32) {
    %c0_i32 = arith.constant 0 : i32
    %c0_i32_0 = arith.constant 0 : i32
    %c0_i32_1 = arith.constant 0 : i32
    %c0_i32_2 = arith.constant 0 : i32
    return %c0_i32, %c0_i32_0, %c0_i32_1 : i32, i32, i32
  }
  func.func @transform_9(%arg0: i32) -> (i32, i32) {
    %c0_i32 = arith.constant 0 : i32
    %c0_i32_0 = arith.constant 0 : i32
    %c0_i32_1 = arith.constant 0 : i32
    return %c0_i32, %c0_i32_0 : i32, i32
  }
  func.func @transform_10(%arg0: i32) -> (i32, i32) {
    %c0_i32 = arith.constant 0 : i32
    %c0_i32_0 = arith.constant 0 : i32
    %c0_i32_1 = arith.constant 0 : i32
    return %c0_i32, %c0_i32_0 : i32, i32
  }
  func.func @transform_11(%arg0: i32) -> (i32, i32) {
    %c0_i32 = arith.constant 0 : i32
    %c0_i32_0 = arith.constant 0 : i32
    %c0_i32_1 = arith.constant 0 : i32
    return %c0_i32, %c0_i32_0 : i32, i32
  }
  func.func @transform_12(%arg0: i32) -> (i32, i32, i32) {
    %c0_i32 = arith.constant 0 : i32
    %c0_i32_0 = arith.constant 0 : i32
    %c0_i32_1 = arith.constant 0 : i32
    %c0_i32_2 = arith.constant 0 : i32
    return %c0_i32, %c0_i32_0, %c0_i32_1 : i32, i32, i32
  }
  func.func @transform_13(%arg0: i32) -> (i32, i32, i32) {
    %c0_i32 = arith.constant 0 : i32
    %c0_i32_0 = arith.constant 0 : i32
    %c0_i32_1 = arith.constant 0 : i32
    %c0_i32_2 = arith.constant 0 : i32
    return %c0_i32, %c0_i32_0, %c0_i32_1 : i32, i32, i32
  }
  func.func @transform_14(%arg0: i32) -> (i32, i32) {
    %c0_i32 = arith.constant 0 : i32
    %c0_i32_0 = arith.constant 0 : i32
    %c0_i32_1 = arith.constant 0 : i32
    return %c0_i32, %c0_i32_0 : i32, i32
  }
  func.func @transform_15(%arg0: i32) -> (i32, i32) {
    %c0_i32 = arith.constant 0 : i32
    %c0_i32_0 = arith.constant 0 : i32
    %c0_i32_1 = arith.constant 0 : i32
    return %c0_i32, %c0_i32_0 : i32, i32
  }
  func.func @transform_16(%arg0: i32) -> (i32, i32) {
    %c0_i32 = arith.constant 0 : i32
    %c0_i32_0 = arith.constant 0 : i32
    %c0_i32_1 = arith.constant 0 : i32
    return %c0_i32, %c0_i32_0 : i32, i32
  }
  func.func @transform_17(%arg0: i32) -> (i32, i32, i32) {
    %c0_i32 = arith.constant 0 : i32
    %c0_i32_0 = arith.constant 0 : i32
    %c0_i32_1 = arith.constant 0 : i32
    %c0_i32_2 = arith.constant 0 : i32
    return %c0_i32, %c0_i32_0, %c0_i32_1 : i32, i32, i32
  }
  func.func @transform_18(%arg0: i32) -> (i32, i32) {
    %c0_i32 = arith.constant 0 : i32
    %c0_i32_0 = arith.constant 0 : i32
    %c0_i32_1 = arith.constant 0 : i32
    return %c0_i32, %c0_i32_0 : i32, i32
  }
  func.func @transform_19(%arg0: i32) -> (i32, i32) {
    %c0_i32 = arith.constant 0 : i32
    %c0_i32_0 = arith.constant 0 : i32
    %c0_i32_1 = arith.constant 0 : i32
    return %c0_i32, %c0_i32_0 : i32, i32
  }
  func.func @transform_20(%arg0: i32) -> (i32, i32) {
    %c0_i32 = arith.constant 0 : i32
    %c0_i32_0 = arith.constant 0 : i32
    %c0_i32_1 = arith.constant 0 : i32
    return %c0_i32, %c0_i32_0 : i32, i32
  }
  func.func @transform_21(%arg0: i32) -> (i32, i32) {
    %c0_i32 = arith.constant 0 : i32
    %c0_i32_0 = arith.constant 0 : i32
    %c0_i32_1 = arith.constant 0 : i32
    return %c0_i32, %c0_i32_0 : i32, i32
  }
  func.func @transform_22(%arg0: i32) -> (i32, i32) {
    %c0_i32 = arith.constant 0 : i32
    %c0_i32_0 = arith.constant 0 : i32
    %c0_i32_1 = arith.constant 0 : i32
    return %c0_i32, %c0_i32_0 : i32, i32
  }
  func.func @transform_23(%arg0: i32) -> (i32, i32, i32) {
    %c0_i32 = arith.constant 0 : i32
    %c0_i32_0 = arith.constant 0 : i32
    %c0_i32_1 = arith.constant 0 : i32
    return %arg0, %c0_i32, %c0_i32_0 : i32, i32, i32
  }
}

</mosaic_0001>

<llo_original>
// kernel: forward.1
$region0: #{forward.1}
  #allocation0 [shape = 'u32[]', space=smem, size = 0x4, offset = 0x4, fixed_abs, tag = 'smem constant byte address 0x4 - core index']
  #allocation1 [shape = 'u32[144,128]{1,0:T(1,128)}', space=vmem, size = 0x12000, scoped, tag = 'internal scratch']
  %s0 = inlined_call_operand.vmem [shape: f32[2,64,16], index: 0, kind: input, shape index: {}]
  %s1 = inlined_call_operand.vmem [shape: bf16[3,8,16], index: 1, kind: input, shape index: {}]
  %s2 = inlined_call_operand.hbm [shape: bf16[3,4,16,256], index: 2, kind: input, shape index: {}]
  %s3 = inlined_call_operand.vmem [shape: f32[1,256], index: 3, kind: input, shape index: {}]
  %s4 = inlined_call_operand.vmem [shape: bf16[3,4,8], index: 4, kind: input, shape index: {}]
  %s5 = inlined_call_operand.hbm [shape: bf16[3,256,128], index: 5, kind: input, shape index: {}]
  %s6 = inlined_call_operand.vmem [shape: f32[1,128], index: 6, kind: input, shape index: {}]
  %s7 = inlined_call_operand.vmem [shape: bf16[3,4,4], index: 7, kind: input, shape index: {}]
  %s8 = inlined_call_operand.hbm [shape: bf16[3,128,256], index: 8, kind: input, shape index: {}]
  %s9 = inlined_call_operand.vmem [shape: f32[1,256], index: 9, kind: input, shape index: {}]
  %s10 = inlined_call_operand.vmem [shape: bf16[2,4], index: 10, kind: input, shape index: {}]
  %s11 = inlined_call_operand.hbm [shape: bf16[256,128], index: 11, kind: input, shape index: {}]
  %s12 = inlined_call_operand.vmem [shape: bf16[3,2,2], index: 12, kind: input, shape index: {}]
  %s13 = inlined_call_operand.hbm [shape: bf16[3,128,128], index: 13, kind: input, shape index: {}]
  %s14 = inlined_call_operand.vmem [shape: f32[1,128], index: 14, kind: input, shape index: {}]
  %s15 = inlined_call_operand.vmem [shape: bf16[1,2], index: 15, kind: input, shape index: {}]
  %s16 = inlined_call_operand.vmem [shape: bf16[128,64], index: 16, kind: input, shape index: {}]
  %s17 = inlined_call_operand.hbm [shape: bf16[1,64,512], index: 17, kind: input, shape index: {}]
  %s18 = inlined_call_operand.vmem [shape: f32[1,512], index: 18, kind: input, shape index: {}]
  %s19 = inlined_call_operand.hbm [shape: bf16[512,512], index: 19, kind: input, shape index: {}]
  %s20 = inlined_call_operand.vmem [shape: f32[1,512], index: 20, kind: input, shape index: {}]
  %s21 = inlined_call_operand.hbm [shape: bf16[512,512], index: 21, kind: input, shape index: {}]
  %s22 = inlined_call_operand.vmem [shape: f32[1,512], index: 22, kind: input, shape index: {}]
  %s23 = inlined_call_operand.vmem [shape: f32[2,1,512], index: 23, kind: output, shape index: {}]
  %s24 = sld [smem:[#allocation0]]
  $region157: #{forward.1} parent=0
    _
  %s26 = ssub.s32 1, %s24
  %s27 = scalar_select 0, %s26, %s24
  $region1: #{forward.1} parent=0
    #allocation2 [shape = 'u8[98304]{0}', space=vmem, size = 0x18000, scoped, tag = 'input window, operand 2, single buffered']
    #allocation3 [shape = 's32[2]{0}', space=sflag, size = 0x8, scoped, tag = 'scoped memory for forward.1']
    #allocation4 [shape = 'u8[196608]{0}', space=vmem, size = 0x30000, scoped, tag = 'input window, operand 5, single buffered']
    #allocation5 [shape = 's32[1]{0}', space=sflag, size = 0x4, scoped, tag = 'scoped memory for forward.1']
    #allocation6 [shape = 'u8[196608]{0}', space=vmem, size = 0x30000, scoped, tag = 'input window, operand 8, single buffered']
    #allocation7 [shape = 'u8[65536]{0}', space=vmem, size = 0x10000, scoped, tag = 'input window, operand 11, single buffered']
    #allocation8 [shape = 's32[1]{0}', space=sflag, size = 0x4, scoped, tag = 'scoped memory for forward.1']
    #allocation9 [shape = 'u8[98304]{0}', space=vmem, size = 0x18000, scoped, tag = 'input window, operand 13, single buffered']
    #allocation10 [shape = 'u8[65536]{0}', space=vmem, size = 0x10000, scoped, tag = 'input window, operand 17, single buffered']
    #allocation11 [shape = 's32[1]{0}', space=sflag, size = 0x4, scoped, tag = 'scoped memory for forward.1']
    #allocation12 [shape = 'u8[524288]{0}', space=vmem, size = 0x80000, scoped, tag = 'input window, operand 19, single buffered']
    #allocation13 [shape = 'u8[524288]{0}', space=vmem, size = 0x80000, scoped, tag = 'input window, operand 21, single buffered']
    #allocation14 [shape = 's32[1]{0}', space=sflag, size = 0x4, scoped, tag = 'scoped memory for forward.1']
    %28 = vsyncpa [#allocation3], 0
    %29 = vsyncpa [#allocation5], 0
    %30 = vsyncpa [#allocation8], 0
    %31 = vsyncpa [#allocation11], 0
    %32 = vsyncpa [#allocation14], 0
    loop: start=0, step=1, limit=4
    $region2: #{forward.1} parent=1 // loop_pre_header
      _
    $region3: #{forward.1} parent=1 // loop_header
      %s34 = sphi 0, %s38
      %p35 = scmp.ge.s32.totalorder %s34, 4
      %s44 = sphi 0, %s46
      %s47 = sphi 0, %s44
      %s48 = sphi 0, %s47
      %s64 = sphi 0, %s48
      %s68 = sphi 0, %s68
      %s70 = sphi 0, %s68
      %s71 = sphi 0, %s70
      %s85 = sphi 0, %s71
      %s89 = sphi 0, %s89
      %s91 = sphi 0, %s89
      %s92 = sphi 0, %s91
      %s106 = sphi 0, %s92
      %s110 = sphi 0, %s110
      %s112 = sphi 0, %s110
      %s113 = sphi 0, %s112
      %s127 = sphi 0, %s113
      %s131 = sphi 0, %s131
      %s133 = sphi 0, %s131
      %s134 = sphi 0, %s133
      %s148 = sphi 0, %s134
      %s152 = sphi 0, %s152
      %s154 = sphi 0, %s152
      %s155 = sphi 0, %s154
      %s169 = sphi 0, %s155
      %s173 = sphi 0, %s173
      %s175 = sphi 0, %s173
      %s176 = sphi 0, %s175
      %s190 = sphi 0, %s176
      %s194 = sphi 0, %s194
      %s196 = sphi 0, %s194
      %s197 = sphi 0, %s196
      %s211 = sphi 0, %s197
      %s215 = sphi 0, %s215
      %s217 = sphi 0, %s215
      %s218 = sphi 0, %s217
      %s232 = sphi 0, %s218
      %s236 = sphi 0, %s236
      %s238 = sphi 0, %s236
      %s239 = sphi 0, %s238
      %s253 = sphi 0, %s239
      %s257 = sphi 0, %s257
      %s259 = sphi 0, %s257
      %s260 = sphi 0, %s259
      %s274 = sphi 0, %s260
      %s278 = sphi 0, %s278
      %s280 = sphi 0, %s278
      %s281 = sphi 0, %s280
      %s295 = sphi 0, %s281
      %s299 = sphi 0, %s299
      %s301 = sphi 0, %s299
      %s302 = sphi 0, %s301
      %s316 = sphi 0, %s302
      %s320 = sphi 0, %s320
      %s322 = sphi 0, %s320
      %s323 = sphi 0, %s322
      %s337 = sphi 0, %s323
      %s341 = sphi 0, %s341
      %s343 = sphi 0, %s341
      %s344 = sphi 0, %s343
      %s358 = sphi 0, %s344
      %s362 = sphi 0, %s362
      %s364 = sphi 0, %s362
      %s365 = sphi 0, %s364
      %s379 = sphi 0, %s365
      %s383 = sphi 0, %s383
      %s385 = sphi 0, %s383
      %s386 = sphi 0, %s385
      %s400 = sphi 0, %s386
      %s404 = sphi 0, %s404
      %s406 = sphi 0, %s404
      %s407 = sphi 0, %s406
      %s421 = sphi 0, %s407
      %s425 = sphi 0, %s425
      %s427 = sphi 0, %s425
      %s428 = sphi 0, %s427
      %s442 = sphi 0, %s428
      %s446 = sphi 0, %s446
      %s448 = sphi 0, %s446
      %s449 = sphi 0, %s448
      %s463 = sphi 0, %s449
      %s467 = sphi 0, %s467
      %s469 = sphi 0, %s467
      %s470 = sphi 0, %s469
      %s484 = sphi 0, %s470
      %s488 = sphi 0, %s488
      %s490 = sphi 0, %s488
      %s491 = sphi 0, %s490
      %s505 = sphi 0, %s491
      %s509 = sphi 0, %s509
      %s511 = sphi 0, %s509
      %s512 = sphi 0, %s511
      %s526 = sphi 0, %s512
      %s532 = sphi 0, %s534
      %s535 = sphi 0, %s532
      %s536 = sphi 0, %s535
      %s552 = sphi 0, %s536
    $region4: #{forward.1} parent=1 // loop_header_branch
      %37 = sbr.rel (%p35) target = $region8
    $region5: #{forward.1} parent=1 // loop_body
      %s39 = ssub.s32 %s34, 1
      %s40 = ssub.s32 %s34, 2
      %s41 = sadd.s32 %s34, 1
      %s42 = ssub.s32 %s34, %s41
      %p43 = scmp.eq.s32.totalorder %s42, 0
      %s45 = sadd.s32 %s44, 1
      %s46 = scalar_select %p43, %s44, %s45
      %p49 = pneg %p43
      %p50 = scmp.eq.s32.totalorder %s34, 1
      %p51 = por %p49, %p50
      %p52 = scmp.ne.s32.totalorder %s44, %s47
      %p53 = scmp.eq.s32.totalorder %s34, 0
      %p54 = por %p52, %p53
      %p55 = scmp.ne.s32.totalorder %s44, %s47
      %p56 = scmp.eq.s32.totalorder %s39, 1
      %p57 = por %p55, %p56
      %p58 = scmp.ne.s32.totalorder %s47, %s48
      %p59 = scmp.eq.s32.totalorder %s39, 0
      %p60 = por %p58, %p59
      %p61 = scmp.ne.s32.totalorder %s47, %s48
      %p62 = scmp.eq.s32.totalorder %s40, 1
      %p63 = por %p61, %p62
      %p65 = scmp.ne.s32.totalorder %s48, %s64
      %p66 = scmp.eq.s32.totalorder %s40, 0
      %p67 = por %p65, %p66
      %s69 = sadd.s32 %s68, 1
      %p72 = scmp.eq.s32.totalorder %s34, 1
      %p73 = scmp.ne.s32.totalorder %s68, %s70
      %p74 = scmp.eq.s32.totalorder %s34, 0
      %p75 = por %p73, %p74
      %p76 = scmp.ne.s32.totalorder %s68, %s70
      %p77 = scmp.eq.s32.totalorder %s39, 1
      %p78 = por %p76, %p77
      %p79 = scmp.ne.s32.totalorder %s70, %s71
      %p80 = scmp.eq.s32.totalorder %s39, 0
      %p81 = por %p79, %p80
      %p82 = scmp.ne.s32.totalorder %s70, %s71
      %p83 = scmp.eq.s32.totalorder %s40, 1
      %p84 = por %p82, %p83
      %p86 = scmp.ne.s32.totalorder %s71, %s85
      %p87 = scmp.eq.s32.totalorder %s40, 0
      %p88 = por %p86, %p87
      %s90 = sadd.s32 %s89, 1
      %p93 = scmp.eq.s32.totalorder %s34, 1
      %p94 = scmp.ne.s32.totalorder %s89, %s91
      %p95 = scmp.eq.s32.totalorder %s34, 0
      %p96 = por %p94, %p95
      %p97 = scmp.ne.s32.totalorder %s89, %s91
      %p98 = scmp.eq.s32.totalorder %s39, 1
      %p99 = por %p97, %p98
      %p100 = scmp.ne.s32.totalorder %s91, %s92
      %p101 = scmp.eq.s32.totalorder %s39, 0
      %p102 = por %p100, %p101
      %p103 = scmp.ne.s32.totalorder %s91, %s92
      %p104 = scmp.eq.s32.totalorder %s40, 1
      %p105 = por %p103, %p104
      %p107 = scmp.ne.s32.totalorder %s92, %s106
      %p108 = scmp.eq.s32.totalorder %s40, 0
      %p109 = por %p107, %p108
      %s111 = sadd.s32 %s110, 1
      %p114 = scmp.eq.s32.totalorder %s34, 1
      %p115 = scmp.ne.s32.totalorder %s110, %s112
      %p116 = scmp.eq.s32.totalorder %s34, 0
      %p117 = por %p115, %p116
      %p118 = scmp.ne.s32.totalorder %s110, %s112
      %p119 = scmp.eq.s32.totalorder %s39, 1
      %p120 = por %p118, %p119
      %p121 = scmp.ne.s32.totalorder %s112, %s113
      %p122 = scmp.eq.s32.totalorder %s39, 0
      %p123 = por %p121, %p122
      %p124 = scmp.ne.s32.totalorder %s112, %s113
      %p125 = scmp.eq.s32.totalorder %s40, 1
      %p126 = por %p124, %p125
      %p128 = scmp.ne.s32.totalorder %s113, %s127
      %p129 = scmp.eq.s32.totalorder %s40, 0
      %p130 = por %p128, %p129
      %s132 = sadd.s32 %s131, 1
      %p135 = scmp.eq.s32.totalorder %s34, 1
      %p136 = scmp.ne.s32.totalorder %s131, %s133
      %p137 = scmp.eq.s32.totalorder %s34, 0
      %p138 = por %p136, %p137
      %p139 = scmp.ne.s32.totalorder %s131, %s133
      %p140 = scmp.eq.s32.totalorder %s39, 1
      %p141 = por %p139, %p140
      %p142 = scmp.ne.s32.totalorder %s133, %s134
      %p143 = scmp.eq.s32.totalorder %s39, 0
      %p144 = por %p142, %p143
      %p145 = scmp.ne.s32.totalorder %s133, %s134
      %p146 = scmp.eq.s32.totalorder %s40, 1
      %p147 = por %p145, %p146
      %p149 = scmp.ne.s32.totalorder %s134, %s148
      %p150 = scmp.eq.s32.totalorder %s40, 0
      %p151 = por %p149, %p150
      %s153 = sadd.s32 %s152, 1
      %p156 = scmp.eq.s32.totalorder %s34, 1
      %p157 = scmp.ne.s32.totalorder %s152, %s154
      %p158 = scmp.eq.s32.totalorder %s34, 0
      %p159 = por %p157, %p158
      %p160 = scmp.ne.s32.totalorder %s152, %s154
      %p161 = scmp.eq.s32.totalorder %s39, 1
      %p162 = por %p160, %p161
      %p163 = scmp.ne.s32.totalorder %s154, %s155
      %p164 = scmp.eq.s32.totalorder %s39, 0
      %p165 = por %p163, %p164
      %p166 = scmp.ne.s32.totalorder %s154, %s155
      %p167 = scmp.eq.s32.totalorder %s40, 1
      %p168 = por %p166, %p167
      %p170 = scmp.ne.s32.totalorder %s155, %s169
      %p171 = scmp.eq.s32.totalorder %s40, 0
      %p172 = por %p170, %p171
      %s174 = sadd.s32 %s173, 1
      %p177 = scmp.eq.s32.totalorder %s34, 1
      %p178 = scmp.ne.s32.totalorder %s173, %s175
      %p179 = scmp.eq.s32.totalorder %s34, 0
      %p180 = por %p178, %p179
      %p181 = scmp.ne.s32.totalorder %s173, %s175
      %p182 = scmp.eq.s32.totalorder %s39, 1
      %p183 = por %p181, %p182
      %p184 = scmp.ne.s32.totalorder %s175, %s176
      %p185 = scmp.eq.s32.totalorder %s39, 0
      %p186 = por %p184, %p185
      %p187 = scmp.ne.s32.totalorder %s175, %s176
      %p188 = scmp.eq.s32.totalorder %s40, 1
      %p189 = por %p187, %p188
      %p191 = scmp.ne.s32.totalorder %s176, %s190
      %p192 = scmp.eq.s32.totalorder %s40, 0
      %p193 = por %p191, %p192
      %s195 = sadd.s32 %s194, 1
      %p198 = scmp.eq.s32.totalorder %s34, 1
      %p199 = scmp.ne.s32.totalorder %s194, %s196
      %p200 = scmp.eq.s32.totalorder %s34, 0
      %p201 = por %p199, %p200
      %p202 = scmp.ne.s32.totalorder %s194, %s196
      %p203 = scmp.eq.s32.totalorder %s39, 1
      %p204 = por %p202, %p203
      %p205 = scmp.ne.s32.totalorder %s196, %s197
      %p206 = scmp.eq.s32.totalorder %s39, 0
      %p207 = por %p205, %p206
      %p208 = scmp.ne.s32.totalorder %s196, %s197
      %p209 = scmp.eq.s32.totalorder %s40, 1
      %p210 = por %p208, %p209
      %p212 = scmp.ne.s32.totalorder %s197, %s211
      %p213 = scmp.eq.s32.totalorder %s40, 0
      %p214 = por %p212, %p213
      %s216 = sadd.s32 %s215, 1
      %p219 = scmp.eq.s32.totalorder %s34, 1
      %p220 = scmp.ne.s32.totalorder %s215, %s217
      %p221 = scmp.eq.s32.totalorder %s34, 0
      %p222 = por %p220, %p221
      %p223 = scmp.ne.s32.totalorder %s215, %s217
      %p224 = scmp.eq.s32.totalorder %s39, 1
      %p225 = por %p223, %p224
      %p226 = scmp.ne.s32.totalorder %s217, %s218
      %p227 = scmp.eq.s32.totalorder %s39, 0
      %p228 = por %p226, %p227
      %p229 = scmp.ne.s32.totalorder %s217, %s218
      %p230 = scmp.eq.s32.totalorder %s40, 1
      %p231 = por %p229, %p230
      %p233 = scmp.ne.s32.totalorder %s218, %s232
      %p234 = scmp.eq.s32.totalorder %s40, 0
      %p235 = por %p233, %p234
      %s237 = sadd.s32 %s236, 1
      %p240 = scmp.eq.s32.totalorder %s34, 1
      %p241 = scmp.ne.s32.totalorder %s236, %s238
      %p242 = scmp.eq.s32.totalorder %s34, 0
      %p243 = por %p241, %p242
      %p244 = scmp.ne.s32.totalorder %s236, %s238
      %p245 = scmp.eq.s32.totalorder %s39, 1
      %p246 = por %p244, %p245
      %p247 = scmp.ne.s32.totalorder %s238, %s239
      %p248 = scmp.eq.s32.totalorder %s39, 0
      %p249 = por %p247, %p248
      %p250 = scmp.ne.s32.totalorder %s238, %s239
      %p251 = scmp.eq.s32.totalorder %s40, 1
      %p252 = por %p250, %p251
      %p254 = scmp.ne.s32.totalorder %s239, %s253
      %p255 = scmp.eq.s32.totalorder %s40, 0
      %p256 = por %p254, %p255
      %s258 = sadd.s32 %s257, 1
      %p261 = scmp.eq.s32.totalorder %s34, 1
      %p262 = scmp.ne.s32.totalorder %s257, %s259
      %p263 = scmp.eq.s32.totalorder %s34, 0
      %p264 = por %p262, %p263
      %p265 = scmp.ne.s32.totalorder %s257, %s259
      %p266 = scmp.eq.s32.totalorder %s39, 1
      %p267 = por %p265, %p266
      %p268 = scmp.ne.s32.totalorder %s259, %s260
      %p269 = scmp.eq.s32.totalorder %s39, 0
      %p270 = por %p268, %p269
      %p271 = scmp.ne.s32.totalorder %s259, %s260
      %p272 = scmp.eq.s32.totalorder %s40, 1
      %p273 = por %p271, %p272
      %p275 = scmp.ne.s32.totalorder %s260, %s274
      %p276 = scmp.eq.s32.totalorder %s40, 0
      %p277 = por %p275, %p276
      %s279 = sadd.s32 %s278, 1
      %p282 = scmp.eq.s32.totalorder %s34, 1
      %p283 = scmp.ne.s32.totalorder %s278, %s280
      %p284 = scmp.eq.s32.totalorder %s34, 0
      %p285 = por %p283, %p284
      %p286 = scmp.ne.s32.totalorder %s278, %s280
      %p287 = scmp.eq.s32.totalorder %s39, 1
      %p288 = por %p286, %p287
      %p289 = scmp.ne.s32.totalorder %s280, %s281
      %p290 = scmp.eq.s32.totalorder %s39, 0
      %p291 = por %p289, %p290
      %p292 = scmp.ne.s32.totalorder %s280, %s281
      %p293 = scmp.eq.s32.totalorder %s40, 1
      %p294 = por %p292, %p293
      %p296 = scmp.ne.s32.totalorder %s281, %s295
      %p297 = scmp.eq.s32.totalorder %s40, 0
      %p298 = por %p296, %p297
      %s300 = sadd.s32 %s299, 1
      %p303 = scmp.eq.s32.totalorder %s34, 1
      %p304 = scmp.ne.s32.totalorder %s299, %s301
      %p305 = scmp.eq.s32.totalorder %s34, 0
      %p306 = por %p304, %p305
      %p307 = scmp.ne.s32.totalorder %s299, %s301
      %p308 = scmp.eq.s32.totalorder %s39, 1
      %p309 = por %p307, %p308
      %p310 = scmp.ne.s32.totalorder %s301, %s302
      %p311 = scmp.eq.s32.totalorder %s39, 0
      %p312 = por %p310, %p311
      %p313 = scmp.ne.s32.totalorder %s301, %s302
      %p314 = scmp.eq.s32.totalorder %s40, 1
      %p315 = por %p313, %p314
      %p317 = scmp.ne.s32.totalorder %s302, %s316
      %p318 = scmp.eq.s32.totalorder %s40, 0
      %p319 = por %p317, %p318
      %s321 = sadd.s32 %s320, 1
      %p324 = scmp.eq.s32.totalorder %s34, 1
      %p325 = scmp.ne.s32.totalorder %s320, %s322
      %p326 = scmp.eq.s32.totalorder %s34, 0
      %p327 = por %p325, %p326
      %p328 = scmp.ne.s32.totalorder %s320, %s322
      %p329 = scmp.eq.s32.totalorder %s39, 1
      %p330 = por %p328, %p329
      %p331 = scmp.ne.s32.totalorder %s322, %s323
      %p332 = scmp.eq.s32.totalorder %s39, 0
      %p333 = por %p331, %p332
      %p334 = scmp.ne.s32.totalorder %s322, %s323
      %p335 = scmp.eq.s32.totalorder %s40, 1
      %p336 = por %p334, %p335
      %p338 = scmp.ne.s32.totalorder %s323, %s337
      %p339 = scmp.eq.s32.totalorder %s40, 0
      %p340 = por %p338, %p339
      %s342 = sadd.s32 %s341, 1
      %p345 = scmp.eq.s32.totalorder %s34, 1
      %p346 = scmp.ne.s32.totalorder %s341, %s343
      %p347 = scmp.eq.s32.totalorder %s34, 0
      %p348 = por %p346, %p347
      %p349 = scmp.ne.s32.totalorder %s341, %s343
      %p350 = scmp.eq.s32.totalorder %s39, 1
      %p351 = por %p349, %p350
      %p352 = scmp.ne.s32.totalorder %s343, %s344
      %p353 = scmp.eq.s32.totalorder %s39, 0
      %p354 = por %p352, %p353
      %p355 = scmp.ne.s32.totalorder %s343, %s344
      %p356 = scmp.eq.s32.totalorder %s40, 1
      %p357 = por %p355, %p356
      %p359 = scmp.ne.s32.totalorder %s344, %s358
      %p360 = scmp.eq.s32.totalorder %s40, 0
      %p361 = por %p359, %p360
      %s363 = sadd.s32 %s362, 1
      %p366 = scmp.eq.s32.totalorder %s34, 1
      %p367 = scmp.ne.s32.totalorder %s362, %s364
      %p368 = scmp.eq.s32.totalorder %s34, 0
      %p369 = por %p367, %p368
      %p370 = scmp.ne.s32.totalorder %s362, %s364
      %p371 = scmp.eq.s32.totalorder %s39, 1
      %p372 = por %p370, %p371
      %p373 = scmp.ne.s32.totalorder %s364, %s365
      %p374 = scmp.eq.s32.totalorder %s39, 0
      %p375 = por %p373, %p374
      %p376 = scmp.ne.s32.totalorder %s364, %s365
      %p377 = scmp.eq.s32.totalorder %s40, 1
      %p378 = por %p376, %p377
      %p380 = scmp.ne.s32.totalorder %s365, %s379
      %p381 = scmp.eq.s32.totalorder %s40, 0
      %p382 = por %p380, %p381
      %s384 = sadd.s32 %s383, 1
      %p387 = scmp.eq.s32.totalorder %s34, 1
      %p388 = scmp.ne.s32.totalorder %s383, %s385
      %p389 = scmp.eq.s32.totalorder %s34, 0
      %p390 = por %p388, %p389
      %p391 = scmp.ne.s32.totalorder %s383, %s385
      %p392 = scmp.eq.s32.totalorder %s39, 1
      %p393 = por %p391, %p392
      %p394 = scmp.ne.s32.totalorder %s385, %s386
      %p395 = scmp.eq.s32.totalorder %s39, 0
      %p396 = por %p394, %p395
      %p397 = scmp.ne.s32.totalorder %s385, %s386
      %p398 = scmp.eq.s32.totalorder %s40, 1
      %p399 = por %p397, %p398
      %p401 = scmp.ne.s32.totalorder %s386, %s400
      %p402 = scmp.eq.s32.totalorder %s40, 0
      %p403 = por %p401, %p402
      %s405 = sadd.s32 %s404, 1
      %p408 = scmp.eq.s32.totalorder %s34, 1
      %p409 = scmp.ne.s32.totalorder %s404, %s406
      %p410 = scmp.eq.s32.totalorder %s34, 0
      %p411 = por %p409, %p410
      %p412 = scmp.ne.s32.totalorder %s404, %s406
      %p413 = scmp.eq.s32.totalorder %s39, 1
      %p414 = por %p412, %p413
      %p415 = scmp.ne.s32.totalorder %s406, %s407
      %p416 = scmp.eq.s32.totalorder %s39, 0
      %p417 = por %p415, %p416
      %p418 = scmp.ne.s32.totalorder %s406, %s407
      %p419 = scmp.eq.s32.totalorder %s40, 1
      %p420 = por %p418, %p419
      %p422 = scmp.ne.s32.totalorder %s407, %s421
      %p423 = scmp.eq.s32.totalorder %s40, 0
      %p424 = por %p422, %p423
      %s426 = sadd.s32 %s425, 1
      %p429 = scmp.eq.s32.totalorder %s34, 1
      %p430 = scmp.ne.s32.totalorder %s425, %s427
      %p431 = scmp.eq.s32.totalorder %s34, 0
      %p432 = por %p430, %p431
      %p433 = scmp.ne.s32.totalorder %s425, %s427
      %p434 = scmp.eq.s32.totalorder %s39, 1
      %p435 = por %p433, %p434
      %p436 = scmp.ne.s32.totalorder %s427, %s428
      %p437 = scmp.eq.s32.totalorder %s39, 0
      %p438 = por %p436, %p437
      %p439 = scmp.ne.s32.totalorder %s427, %s428
      %p440 = scmp.eq.s32.totalorder %s40, 1
      %p441 = por %p439, %p440
      %p443 = scmp.ne.s32.totalorder %s428, %s442
      %p444 = scmp.eq.s32.totalorder %s40, 0
      %p445 = por %p443, %p444
      %s447 = sadd.s32 %s446, 1
      %p450 = scmp.eq.s32.totalorder %s34, 1
      %p451 = scmp.ne.s32.totalorder %s446, %s448
      %p452 = scmp.eq.s32.totalorder %s34, 0
      %p453 = por %p451, %p452
      %p454 = scmp.ne.s32.totalorder %s446, %s448
      %p455 = scmp.eq.s32.totalorder %s39, 1
      %p456 = por %p454, %p455
      %p457 = scmp.ne.s32.totalorder %s448, %s449
      %p458 = scmp.eq.s32.totalorder %s39, 0
      %p459 = por %p457, %p458
      %p460 = scmp.ne.s32.totalorder %s448, %s449
      %p461 = scmp.eq.s32.totalorder %s40, 1
      %p462 = por %p460, %p461
      %p464 = scmp.ne.s32.totalorder %s449, %s463
      %p465 = scmp.eq.s32.totalorder %s40, 0
      %p466 = por %p464, %p465
      %s468 = sadd.s32 %s467, 1
      %p471 = scmp.eq.s32.totalorder %s34, 1
      %p472 = scmp.ne.s32.totalorder %s467, %s469
      %p473 = scmp.eq.s32.totalorder %s34, 0
      %p474 = por %p472, %p473
      %p475 = scmp.ne.s32.totalorder %s467, %s469
      %p476 = scmp.eq.s32.totalorder %s39, 1
      %p477 = por %p475, %p476
      %p478 = scmp.ne.s32.totalorder %s469, %s470
      %p479 = scmp.eq.s32.totalorder %s39, 0
      %p480 = por %p478, %p479
      %p481 = scmp.ne.s32.totalorder %s469, %s470
      %p482 = scmp.eq.s32.totalorder %s40, 1
      %p483 = por %p481, %p482
      %p485 = scmp.ne.s32.totalorder %s470, %s484
      %p486 = scmp.eq.s32.totalorder %s40, 0
      %p487 = por %p485, %p486
      %s489 = sadd.s32 %s488, 1
      %p492 = scmp.eq.s32.totalorder %s34, 1
      %p493 = scmp.ne.s32.totalorder %s488, %s490
      %p494 = scmp.eq.s32.totalorder %s34, 0
      %p495 = por %p493, %p494
      %p496 = scmp.ne.s32.totalorder %s488, %s490
      %p497 = scmp.eq.s32.totalorder %s39, 1
      %p498 = por %p496, %p497
      %p499 = scmp.ne.s32.totalorder %s490, %s491
      %p500 = scmp.eq.s32.totalorder %s39, 0
      %p501 = por %p499, %p500
      %p502 = scmp.ne.s32.totalorder %s490, %s491
      %p503 = scmp.eq.s32.totalorder %s40, 1
      %p504 = por %p502, %p503
      %p506 = scmp.ne.s32.totalorder %s491, %s505
      %p507 = scmp.eq.s32.totalorder %s40, 0
      %p508 = por %p506, %p507
      %s510 = sadd.s32 %s509, 1
      %p513 = scmp.eq.s32.totalorder %s34, 1
      %p514 = scmp.ne.s32.totalorder %s509, %s511
      %p515 = scmp.eq.s32.totalorder %s34, 0
      %p516 = por %p514, %p515
      %p517 = scmp.ne.s32.totalorder %s509, %s511
      %p518 = scmp.eq.s32.totalorder %s39, 1
      %p519 = por %p517, %p518
      %p520 = scmp.ne.s32.totalorder %s511, %s512
      %p521 = scmp.eq.s32.totalorder %s39, 0
      %p522 = por %p520, %p521
      %p523 = scmp.ne.s32.totalorder %s511, %s512
      %p524 = scmp.eq.s32.totalorder %s40, 1
      %p525 = por %p523, %p524
      %p527 = scmp.ne.s32.totalorder %s512, %s526
      %p528 = scmp.eq.s32.totalorder %s40, 0
      %p529 = por %p527, %p528
      %s530 = ssub.s32 %s34, %s41
      %p531 = scmp.eq.s32.totalorder %s530, 0
      %s533 = sadd.s32 %s532, 1
      %s534 = scalar_select %p531, %s532, %s533
      %p537 = pneg %p531
      %p538 = scmp.eq.s32.totalorder %s34, 1
      %p539 = por %p537, %p538
      %p540 = scmp.ne.s32.totalorder %s532, %s535
      %p541 = scmp.eq.s32.totalorder %s34, 0
      %p542 = por %p540, %p541
      %p543 = scmp.ne.s32.totalorder %s532, %s535
      %p544 = scmp.eq.s32.totalorder %s39, 1
      %p545 = por %p543, %p544
      %p546 = scmp.ne.s32.totalorder %s535, %s536
      %p547 = scmp.eq.s32.totalorder %s39, 0
      %p548 = por %p546, %p547
      %p549 = scmp.ne.s32.totalorder %s535, %s536
      %p550 = scmp.eq.s32.totalorder %s40, 1
      %p551 = por %p549, %p550
      %p553 = scmp.ne.s32.totalorder %s536, %s552
      %p554 = scmp.eq.s32.totalorder %s40, 0
      %p555 = por %p553, %p554
      %p556 = scmp.le.s32.totalorder 1, %s34
      %p557 = scmp.lt.s32.totalorder %s34, 3
      %p558 = pnand %p556, %p557
      %p559 = pneg %p558
      // Predicated region
      $region9: #{forward.1} parent=5 // pred_check
        _
      $region10: #{forward.1} parent=5 // pred_check_branch
        %561 = sbr.rel (%p558) target = $region12
      $region11: #{forward.1} parent=5 // pred_region
        %s562 = ssub.s32 %s34, 1
        // Predicated region
        $region13: #{forward.1} parent=11 // pred_check
          %p563 = pneg %p81
        $region14: #{forward.1} parent=11 // pred_check_branch
          %565 = sbr.rel (%p563) target = $region16
        $region15: #{forward.1} parent=11 // pred_region
          _
        $region16: #{forward.1} parent=11 // pred_fallthru
          _
        // Predicated region
        $region17: #{forward.1} parent=11 // pred_check
          %p566 = pneg %p102
        $region18: #{forward.1} parent=11 // pred_check_branch
          %568 = sbr.rel (%p566) target = $region20
        $region19: #{forward.1} parent=11 // pred_region
          %s570 = ssub.s32 3072, 3072
          %571 = vsyncadd [#allocation3], %s570
          %s572 = sshll.u32 [#allocation2], 4
          %s573 = int_to_ptr.vmem [resolvable:$true] %s572
          %578 = dma.hbm_to_vmem [thread:$0]  %s2, 3072, %s573, [#allocation3], 128, 128, 8
        $region20: #{forward.1} parent=11 // pred_fallthru
          _
        // Predicated region
        $region21: #{forward.1} parent=11 // pred_check
          %p579 = pneg %p123
        $region22: #{forward.1} parent=11 // pred_check_branch
          %581 = sbr.rel (%p579) target = $region24
        $region23: #{forward.1} parent=11 // pred_region
          _
        $region24: #{forward.1} parent=11 // pred_fallthru
          _
        // Predicated region
        $region25: #{forward.1} parent=11 // pred_check
          %p582 = pneg %p144
        $region26: #{forward.1} parent=11 // pred_check_branch
          %584 = sbr.rel (%p582) target = $region28
        $region27: #{forward.1} parent=11 // pred_region
          _
        $region28: #{forward.1} parent=11 // pred_fallthru
          _
        // Predicated region
        $region29: #{forward.1} parent=11 // pred_check
          %p585 = pneg %p165
        $region30: #{forward.1} parent=11 // pred_check_branch
          %587 = sbr.rel (%p585) target = $region32
        $region31: #{forward.1} parent=11 // pred_region
          %s589 = ssub.s32 6144, 6144
          %590 = vsyncadd [#allocation5], %s589
          %s591 = sshll.u32 [#allocation4], 4
          %s592 = int_to_ptr.vmem [resolvable:$true] %s591
          %597 = dma.hbm_to_vmem [thread:$0]  %s5, 6144, %s592, [#allocation5], 64, 64, 4
        $region32: #{forward.1} parent=11 // pred_fallthru
          _
        // Predicated region
        $region33: #{forward.1} parent=11 // pred_check
          %p598 = pneg %p186
        $region34: #{forward.1} parent=11 // pred_check_branch
          %600 = sbr.rel (%p598) target = $region36
        $region35: #{forward.1} parent=11 // pred_region
          _
        $region36: #{forward.1} parent=11 // pred_fallthru
          _
        // Predicated region
        $region37: #{forward.1} parent=11 // pred_check
          %p601 = pneg %p207
        $region38: #{forward.1} parent=11 // pred_check_branch
          %603 = sbr.rel (%p601) target = $region40
        $region39: #{forward.1} parent=11 // pred_region
          _
        $region40: #{forward.1} parent=11 // pred_fallthru
          _
        // Predicated region
        $region41: #{forward.1} parent=11 // pred_check
          %p604 = pneg %p228
        $region42: #{forward.1} parent=11 // pred_check_branch
          %606 = sbr.rel (%p604) target = $region44
        $region43: #{forward.1} parent=11 // pred_region
          %s608 = ssub.s32 6144, 6144
          %609 = vsyncadd [#allocation5], %s608
          %s610 = sshll.u32 [#allocation6], 4
          %s611 = int_to_ptr.vmem [resolvable:$true] %s610
          %616 = dma.hbm_to_vmem [thread:$0]  %s8, 6144, %s611, [#allocation5], 128, 128, 8
        $region44: #{forward.1} parent=11 // pred_fallthru
          _
        // Predicated region
        $region45: #{forward.1} parent=11 // pred_check
          %p617 = pneg %p249
        $region46: #{forward.1} parent=11 // pred_check_branch
          %619 = sbr.rel (%p617) target = $region48
        $region47: #{forward.1} parent=11 // pred_region
          _
        $region48: #{forward.1} parent=11 // pred_fallthru
          _
        // Predicated region
        $region49: #{forward.1} parent=11 // pred_check
          %p620 = pneg %p270
        $region50: #{forward.1} parent=11 // pred_check_branch
          %622 = sbr.rel (%p620) target = $region52
        $region51: #{forward.1} parent=11 // pred_region
          _
        $region52: #{forward.1} parent=11 // pred_fallthru
          _
        // Predicated region
        $region53: #{forward.1} parent=11 // pred_check
          %p623 = pneg %p291
        $region54: #{forward.1} parent=11 // pred_check_branch
          %625 = sbr.rel (%p623) target = $region56
        $region55: #{forward.1} parent=11 // pred_region
          %s627 = ssub.s32 2048, 2048
          %628 = vsyncadd [#allocation8], %s627
          %s629 = sshll.u32 [#allocation7], 4
          %s630 = int_to_ptr.vmem [resolvable:$true] %s629
          %635 = dma.hbm_to_vmem [thread:$0]  %s11, 2048, %s630, [#allocation8], 64, 64, 4
        $region56: #{forward.1} parent=11 // pred_fallthru
          _
        // Predicated region
        $region57: #{forward.1} parent=11 // pred_check
          %p636 = pneg %p312
        $region58: #{forward.1} parent=11 // pred_check_branch
          %638 = sbr.rel (%p636) target = $region60
        $region59: #{forward.1} parent=11 // pred_region
          _
        $region60: #{forward.1} parent=11 // pred_fallthru
          _
        // Predicated region
        $region61: #{forward.1} parent=11 // pred_check
          %p639 = pneg %p333
        $region62: #{forward.1} parent=11 // pred_check_branch
          %641 = sbr.rel (%p639) target = $region64
        $region63: #{forward.1} parent=11 // pred_region
          %s643 = ssub.s32 3072, 3072
          %644 = vsyncadd [#allocation8], %s643
          %s645 = sshll.u32 [#allocation9], 4
          %s646 = int_to_ptr.vmem [resolvable:$true] %s645
          %651 = dma.hbm_to_vmem [thread:$0]  %s13, 3072, %s646, [#allocation8], 64, 64, 4
        $region64: #{forward.1} parent=11 // pred_fallthru
          _
        // Predicated region
        $region65: #{forward.1} parent=11 // pred_check
          %p652 = pneg %p354
        $region66: #{forward.1} parent=11 // pred_check_branch
          %654 = sbr.rel (%p652) target = $region68
        $region67: #{forward.1} parent=11 // pred_region
          _
        $region68: #{forward.1} parent=11 // pred_fallthru
          _
        // Predicated region
        $region69: #{forward.1} parent=11 // pred_check
          %p655 = pneg %p375
        $region70: #{forward.1} parent=11 // pred_check_branch
          %657 = sbr.rel (%p655) target = $region72
        $region71: #{forward.1} parent=11 // pred_region
          _
        $region72: #{forward.1} parent=11 // pred_fallthru
          _
        // Predicated region
        $region73: #{forward.1} parent=11 // pred_check
          %p658 = pneg %p396
        $region74: #{forward.1} parent=11 // pred_check_branch
          %660 = sbr.rel (%p658) target = $region76
        $region75: #{forward.1} parent=11 // pred_region
          _
        $region76: #{forward.1} parent=11 // pred_fallthru
          _
        // Predicated region
        $region77: #{forward.1} parent=11 // pred_check
          %p661 = pneg %p417
        $region78: #{forward.1} parent=11 // pred_check_branch
          %663 = sbr.rel (%p661) target = $region80
        $region79: #{forward.1} parent=11 // pred_region
          %s665 = ssub.s32 2048, 2048
          %666 = vsyncadd [#allocation11], %s665
          %s667 = sshll.u32 [#allocation10], 4
          %s668 = int_to_ptr.vmem [resolvable:$true] %s667
          %673 = dma.hbm_to_vmem [thread:$0]  %s17, 2048, %s668, [#allocation11], 256, 256, 16
        $region80: #{forward.1} parent=11 // pred_fallthru
          _
        // Predicated region
        $region81: #{forward.1} parent=11 // pred_check
          %p674 = pneg %p438
        $region82: #{forward.1} parent=11 // pred_check_branch
          %676 = sbr.rel (%p674) target = $region84
        $region83: #{forward.1} parent=11 // pred_region
          _
        $region84: #{forward.1} parent=11 // pred_fallthru
          _
        // Predicated region
        $region85: #{forward.1} parent=11 // pred_check
          %p677 = pneg %p459
        $region86: #{forward.1} parent=11 // pred_check_branch
          %679 = sbr.rel (%p677) target = $region88
        $region87: #{forward.1} parent=11 // pred_region
          %s681 = ssub.s32 16384, 16384
          %682 = vsyncadd [#allocation11], %s681
          %s683 = sshll.u32 [#allocation12], 4
          %s684 = int_to_ptr.vmem [resolvable:$true] %s683
          %689 = dma.hbm_to_vmem [thread:$0]  %s19, 16384, %s684, [#allocation11], 256, 256, 16
        $region88: #{forward.1} parent=11 // pred_fallthru
          _
        // Predicated region
        $region89: #{forward.1} parent=11 // pred_check
          %p690 = pneg %p480
        $region90: #{forward.1} parent=11 // pred_check_branch
          %692 = sbr.rel (%p690) target = $region92
        $region91: #{forward.1} parent=11 // pred_region
          _
        $region92: #{forward.1} parent=11 // pred_fallthru
          _
        // Predicated region
        $region93: #{forward.1} parent=11 // pred_check
          %p693 = pneg %p501
        $region94: #{forward.1} parent=11 // pred_check_branch
          %695 = sbr.rel (%p693) target = $region96
        $region95: #{forward.1} parent=11 // pred_region
          %s697 = ssub.s32 16384, 16384
          %698 = vsyncadd [#allocation14], %s697
          %s699 = sshll.u32 [#allocation13], 4
          %s700 = int_to_ptr.vmem [resolvable:$true] %s699
          %705 = dma.hbm_to_vmem [thread:$0]  %s21, 16384, %s700, [#allocation14], 256, 256, 16
        $region96: #{forward.1} parent=11 // pred_fallthru
          _
        // Predicated region
        $region97: #{forward.1} parent=11 // pred_check
          %p706 = pneg %p522
        $region98: #{forward.1} parent=11 // pred_check_branch
          %708 = sbr.rel (%p706) target = $region100
        $region99: #{forward.1} parent=11 // pred_region
          _
        $region100: #{forward.1} parent=11 // pred_fallthru
          _
      $region12: #{forward.1} parent=5 // pred_fallthru
        _
      %p709 = scmp.lt.s32.totalorder %s34, 2
      // Predicated region
      $region101: #{forward.1} parent=5 // pred_check
        %p710 = pneg %p709
      $region102: #{forward.1} parent=5 // pred_check_branch
        %712 = sbr.rel (%p710) target = $region104
      $region103: #{forward.1} parent=5 // pred_region
        // Predicated region
        $region105: #{forward.1} parent=103 // pred_check
          %p713 = pneg %p54
        $region106: #{forward.1} parent=103 // pred_check_branch
          %715 = sbr.rel (%p713) target = $region108
        $region107: #{forward.1} parent=103 // pred_region
          %p716 = scmp.lt.s32.totalorder %s34, 1
          %s717 = scalar_select %p716, %s34, 1
          %s718 = smul.addr %s717, 8
          %s719 = smul.addr %s718, 8
          %s720 = scalar_lea.vmem %s0, %s719
        $region108: #{forward.1} parent=103 // pred_fallthru
          _
      $region104: #{forward.1} parent=5 // pred_fallthru
        _
      %p721 = scmp.le.s32.totalorder 1, %s34
      %p722 = scmp.lt.s32.totalorder %s34, 3
      %p723 = pnand %p721, %p722
      %p724 = pneg %p723
      // Predicated region
      $region109: #{forward.1} parent=5 // pred_check
        _
      $region110: #{forward.1} parent=5 // pred_check_branch
        %726 = sbr.rel (%p723) target = $region112
      $region111: #{forward.1} parent=5 // pred_region
        %s727 = ssub.s32 %s34, 1
        // Predicated region
        $region113: #{forward.1} parent=111 // pred_check
          %p728 = pneg %p102
        $region114: #{forward.1} parent=111 // pred_check_branch
          %730 = sbr.rel (%p728) target = $region116
        $region115: #{forward.1} parent=111 // pred_region
          %731 = dma.done [#allocation3], 3072
        $region116: #{forward.1} parent=111 // pred_fallthru
          _
        // Predicated region
        $region117: #{forward.1} parent=111 // pred_check
          %p732 = pneg %p165
        $region118: #{forward.1} parent=111 // pred_check_branch
          %734 = sbr.rel (%p732) target = $region120
        $region119: #{forward.1} parent=111 // pred_region
          %735 = dma.done [#allocation5], 6144
        $region120: #{forward.1} parent=111 // pred_fallthru
          _
        // Predicated region
        $region121: #{forward.1} parent=111 // pred_check
          %p736 = pneg %p228
        $region122: #{forward.1} parent=111 // pred_check_branch
          %738 = sbr.rel (%p736) target = $region124
        $region123: #{forward.1} parent=111 // pred_region
          %739 = dma.done [#allocation5], 6144
        $region124: #{forward.1} parent=111 // pred_fallthru
          _
        // Predicated region
        $region125: #{forward.1} parent=111 // pred_check
          %p740 = pneg %p291
        $region126: #{forward.1} parent=111 // pred_check_branch
          %742 = sbr.rel (%p740) target = $region128
        $region127: #{forward.1} parent=111 // pred_region
          %743 = dma.done [#allocation8], 2048
        $region128: #{forward.1} parent=111 // pred_fallthru
          _
        // Predicated region
        $region129: #{forward.1} parent=111 // pred_check
          %p744 = pneg %p333
        $region130: #{forward.1} parent=111 // pred_check_branch
          %746 = sbr.rel (%p744) target = $region132
        $region131: #{forward.1} parent=111 // pred_region
          %747 = dma.done [#allocation8], 3072
        $region132: #{forward.1} parent=111 // pred_fallthru
          _
        // Predicated region
        $region133: #{forward.1} parent=111 // pred_check
          %p748 = pneg %p417
        $region134: #{forward.1} parent=111 // pred_check_branch
          %750 = sbr.rel (%p748) target = $region136
        $region135: #{forward.1} parent=111 // pred_region
          %751 = dma.done [#allocation11], 2048
        $region136: #{forward.1} parent=111 // pred_fallthru
          _
        // Predicated region
        $region137: #{forward.1} parent=111 // pred_check
          %p752 = pneg %p459
        $region138: #{forward.1} parent=111 // pred_check_branch
          %754 = sbr.rel (%p752) target = $region140
        $region139: #{forward.1} parent=111 // pred_region
          %755 = dma.done [#allocation11], 16384
        $region140: #{forward.1} parent=111 // pred_fallthru
          _
        // Predicated region
        $region141: #{forward.1} parent=111 // pred_check
          %p756 = pneg %p501
        $region142: #{forward.1} parent=111 // pred_check_branch
          %758 = sbr.rel (%p756) target = $region144
        $region143: #{forward.1} parent=111 // pred_region
          %759 = dma.done [#allocation14], 16384
        $region144: #{forward.1} parent=111 // pred_fallthru
          _
        %p760 = scmp.lt.s32.totalorder %s39, 1
        %s761 = scalar_select %p760, %s39, 1
        %s762 = smul.addr %s761, 8
        %s763 = smul.addr %s762, 8
        %s764 = scalar_lea.vmem %s0, %s763
        %p765 = pneg %p60
        %p766 = pneg %p57
        %p767 = pneg %p81
        %p768 = pneg %p78
        %p769 = pneg %p102
        %p770 = pneg %p99
        %p771 = pneg %p123
        %p772 = pneg %p120
        %p773 = pneg %p144
        %p774 = pneg %p141
        %p775 = pneg %p165
        %p776 = pneg %p162
        %p777 = pneg %p186
        %p778 = pneg %p183
        %p779 = pneg %p207
        %p780 = pneg %p204
        %p781 = pneg %p228
        %p782 = pneg %p225
        %p783 = pneg %p249
        %p784 = pneg %p246
        %p785 = pneg %p270
        %p786 = pneg %p267
        %p787 = pneg %p291
        %p788 = pneg %p288
        %p789 = pneg %p312
        %p790 = pneg %p309
        %p791 = pneg %p333
        %p792 = pneg %p330
        %p793 = pneg %p354
        %p794 = pneg %p351
        %p795 = pneg %p375
        %p796 = pneg %p372
        %p797 = pneg %p396
        %p798 = pneg %p393
        %p799 = pneg %p417
        %p800 = pneg %p414
        %p801 = pneg %p438
        %p802 = pneg %p435
        %p803 = pneg %p459
        %p804 = pneg %p456
        %p805 = pneg %p480
        %p806 = pneg %p477
        %p807 = pneg %p501
        %p808 = pneg %p498
        %p809 = pneg %p522
        %p810 = pneg %p519
        %p811 = pneg %p548
        %p812 = pneg %p545
        %p813 = scmp.lt.s32.totalorder %s39, 1
        %s814 = scalar_select %p813, %s39, 1
        %s815 = smul.addr %s814, 4
        %s816 = scalar_lea.vmem %s23, %s815
        %p817 = scmp.lt.s32.totalorder %s39, 1
        %s818 = scalar_select %p817, %s39, 1
        %s819 = smul.addr %s818, 8
        %s820 = smul.addr %s819, 8
        %s821 = scalar_lea.vmem %s0, %s820
        %p822 = scmp.lt.s32.totalorder %s39, 1
        %s823 = scalar_select %p822, %s39, 1
        %s824 = smul.addr %s823, 4
        %s825 = scalar_lea.vmem %s23, %s824
        %v827 = vld [vmem:[%s821] sm:$0xff]
        %v828 = vld [vmem:[%s821 + $0x8] sm:$0xff]
        %v829 = vld [vmem:[%s821 + $0x10] sm:$0xff]
        %v830 = vld [vmem:[%s821 + $0x18] sm:$0xff]
        %v831 = vld [vmem:[%s821 + $0x20] sm:$0xff]
        %v832 = vld [vmem:[%s821 + $0x28] sm:$0xff]
        %v833 = vld [vmem:[%s821 + $0x30] sm:$0xff]
        %v834 = vld [vmem:[%s821 + $0x38] sm:$0xff]
        %v835 = vpack.c.bf16 %v828, %v827
        %v836 = vpack.c.bf16 %v830, %v829
        %v837 = vpack.c.bf16 %v832, %v831
        %v838 = vpack.c.bf16 %v834, %v833
        %v839 = vld [vmem:[%s1] sm:$0xf]
        %vm840 = vcmask 130048
        %v842 = vsel %vm840, %v839, 0
        %844 = vmatprep.subr.bf16.mxu0 0
        %845 = vmatpush1.bf16.msra.mxu0 %v835
        %846 = vmatprep.subr.bf16.mxu0 0
        %847 = vmatpush1.bf16.msra.mxu0 0
        %848 = vmatprep.subr.bf16.mxu0 0
        %849 = vmatpush1.bf16.msra.mxu0 0
        %850 = vmatprep.subr.bf16.mxu0 0
        %851 = vmatpush1.bf16.msra.mxu0 0
        %852 = vmatprep.subr.bf16.mxu0 0
        %853 = vmatpush1.bf16.msra.mxu0 0
        %854 = vmatprep.subr.bf16.mxu0 0
        %855 = vmatpush1.bf16.msra.mxu0 0
        %856 = vmatprep.subr.bf16.mxu0 0
        %857 = vmatpush1.bf16.msra.mxu0 0
        %858 = vmatprep.subr.bf16.mxu0 0
        %859 = vmatpush1.bf16.msra.mxu0 0
        %860 = vmatprep.subr.bf16.mxu0 0
        %861 = vmatpush1.bf16.msra.mxu0 0
        %862 = vmatprep.subr.bf16.mxu0 0
        %863 = vmatpush1.bf16.msra.mxu0 0
        %864 = vmatprep.subr.bf16.mxu0 0
        %865 = vmatpush1.bf16.msra.mxu0 0
        %866 = vmatprep.subr.bf16.mxu0 0
        %867 = vmatpush1.bf16.msra.mxu0 0
        %868 = vmatprep.subr.bf16.mxu0 0
        %869 = vmatpush1.bf16.msra.mxu0 0
        %870 = vmatprep.subr.bf16.mxu0 0
        %871 = vmatpush1.bf16.msra.mxu0 0
        %872 = vmatprep.subr.bf16.mxu0 0
        %873 = vmatpush1.bf16.msra.mxu0 0
        %874 = vmatprep.subr.bf16.mxu0 0
        %875 = vmatpush1.bf16.msra.mxu0 0
        %876 = vmatprep.mubr.bf16.mxu0 0
        %877 = vmatmul.mubr.bf16.gmra.mrb[0].mxu0 %v842
        %v878 = vpop.f32.mrb[0].mxu0
        %v879 = vadd.f32 0.0, %v878
        %v880 = vpop.f32.mrb[0].mxu0
        %v881 = vpop.f32.mrb[0].mxu0
        %v882 = vpop.f32.mrb[0].mxu0
        %883 = vdwg.mxu0
        %v884 = vpack.c.bf16 %v879, %v879
        %v885 = vld [vmem:[#allocation2] sm:$0xff]
        %v886 = vld [vmem:[#allocation2 + $0x8] sm:$0xff]
        %887 = vmatprep.subr.bf16.mxu0 0
        %888 = vmatpush1.bf16.msra.mxu0 %v836
        %889 = vmatprep.subr.bf16.mxu0 0
        %890 = vmatpush1.bf16.msra.mxu0 0
        %891 = vmatprep.subr.bf16.mxu0 0
        %892 = vmatpush1.bf16.msra.mxu0 0
        %893 = vmatprep.subr.bf16.mxu0 0
        %894 = vmatpush1.bf16.msra.mxu0 0
        %895 = vmatprep.subr.bf16.mxu0 0
        %896 = vmatpush1.bf16.msra.mxu0 0
        %897 = vmatprep.subr.bf16.mxu0 0
        %898 = vmatpush1.bf16.msra.mxu0 0
        %899 = vmatprep.subr.bf16.mxu0 0
        %900 = vmatpush1.bf16.msra.mxu0 0
        %901 = vmatprep.subr.bf16.mxu0 0
        %902 = vmatpush1.bf16.msra.mxu0 0
        %903 = vmatprep.subr.bf16.mxu0 0
        %904 = vmatpush1.bf16.msra.mxu0 0
        %905 = vmatprep.subr.bf16.mxu0 0
        %906 = vmatpush1.bf16.msra.mxu0 0
        %907 = vmatprep.subr.bf16.mxu0 0
        %908 = vmatpush1.bf16.msra.mxu0 0
        %909 = vmatprep.subr.bf16.mxu0 0
        %910 = vmatpush1.bf16.msra.mxu0 0
        %911 = vmatprep.subr.bf16.mxu0 0
        %912 = vmatpush1.bf16.msra.mxu0 0
        %913 = vmatprep.subr.bf16.mxu0 0
        %914 = vmatpush1.bf16.msra.mxu0 0
        %915 = vmatprep.subr.bf16.mxu0 0
        %916 = vmatpush1.bf16.msra.mxu0 0
        %917 = vmatprep.subr.bf16.mxu0 0
        %918 = vmatpush1.bf16.msra.mxu0 0
        %919 = vmatprep.mubr.bf16.mxu0 0
        %920 = vmatmul.mubr.bf16.gmra.mrb[0].mxu0 %v842
        %v921 = vpop.f32.mrb[0].mxu0
        %v922 = vadd.f32 0.0, %v921
        %v923 = vpop.f32.mrb[0].mxu0
        %v924 = vpop.f32.mrb[0].mxu0
        %v925 = vpop.f32.mrb[0].mxu0
        %926 = vdwg.mxu0
        %v927 = vpack.c.bf16 %v922, %v922
        %s928 = scalar_lea.vmem [#allocation2], 16
        %v929 = vld [vmem:[%s928] sm:$0xff]
        %v930 = vld [vmem:[%s928 + $0x8] sm:$0xff]
        %v933 = vunpack.c.l.b16 %v929
        %v934 = vunpack.c.h.b16 %v929
        %v935 = vunpack.c.l.b16 %v930
        %v936 = vunpack.c.h.b16 %v930
        %v937 = vpack.c.b16 %v935, %v933
        %v938 = vpack.c.b16 %v936, %v934
        %v942 = vsel %vm840, %v927, 0
        %944 = vmatprep.subr.bf16.mxu0 %v938
        %945 = vmatpush1.bf16.msra.mxu0 %v937
        %946 = vmatprep.subr.bf16.mxu0 0
        %947 = vmatpush1.bf16.msra.mxu0 0
        %948 = vmatprep.subr.bf16.mxu0 0
        %949 = vmatpush1.bf16.msra.mxu0 0
        %950 = vmatprep.subr.bf16.mxu0 0
        %951 = vmatpush1.bf16.msra.mxu0 0
        %952 = vmatprep.subr.bf16.mxu0 0
        %953 = vmatpush1.bf16.msra.mxu0 0
        %954 = vmatprep.subr.bf16.mxu0 0
        %955 = vmatpush1.bf16.msra.mxu0 0
        %956 = vmatprep.subr.bf16.mxu0 0
        %957 = vmatpush1.bf16.msra.mxu0 0
        %958 = vmatprep.subr.bf16.mxu0 0
        %959 = vmatpush1.bf16.msra.mxu0 0
        %960 = vmatprep.subr.bf16.mxu0 0
        %961 = vmatpush1.bf16.msra.mxu0 0
        %962 = vmatprep.subr.bf16.mxu0 0
        %963 = vmatpush1.bf16.msra.mxu0 0
        %964 = vmatprep.subr.bf16.mxu0 0
        %965 = vmatpush1.bf16.msra.mxu0 0
        %966 = vmatprep.subr.bf16.mxu0 0
        %967 = vmatpush1.bf16.msra.mxu0 0
        %968 = vmatprep.subr.bf16.mxu0 0
        %969 = vmatpush1.bf16.msra.mxu0 0
        %970 = vmatprep.subr.bf16.mxu0 0
        %971 = vmatpush1.bf16.msra.mxu0 0
        %972 = vmatprep.subr.bf16.mxu0 0
        %973 = vmatpush1.bf16.msra.mxu0 0
        %974 = vmatprep.subr.bf16.mxu0 0
        %975 = vmatpush1.bf16.msra.mxu0 0
        %976 = vmatprep.mubr.bf16.mxu0 0
        %977 = vmatmul.mubr.bf16.gmra.mrb[0].mxu0 %v942
        %v978 = vpop.f32.mrb[0].mxu0
        %v979 = vadd.f32 0.0, %v978
        %v980 = vpop.f32.mrb[0].mxu0
        %v981 = vadd.f32 0.0, %v980
        %v982 = vpop.f32.mrb[0].mxu0
        %v983 = vpop.f32.mrb[0].mxu0
        %984 = vdwg.mxu0
        %v987 = vunpack.c.l.b16 %v885
        %v988 = vunpack.c.h.b16 %v885
        %v989 = vunpack.c.l.b16 %v886
        %v990 = vunpack.c.h.b16 %v886
        %v991 = vpack.c.b16 %v989, %v987
        %v992 = vpack.c.b16 %v990, %v988
        %v996 = vsel %vm840, %v884, 0
        %998 = vmatprep.subr.bf16.mxu0 %v992
        %999 = vmatpush1.bf16.msra.mxu0 %v991
        %1000 = vmatprep.subr.bf16.mxu0 0
        %1001 = vmatpush1.bf16.msra.mxu0 0
        %1002 = vmatprep.subr.bf16.mxu0 0
        %1003 = vmatpush1.bf16.msra.mxu0 0
        %1004 = vmatprep.subr.bf16.mxu0 0
        %1005 = vmatpush1.bf16.msra.mxu0 0
        %1006 = vmatprep.subr.bf16.mxu0 0
        %1007 = vmatpush1.bf16.msra.mxu0 0
        %1008 = vmatprep.subr.bf16.mxu0 0
        %1009 = vmatpush1.bf16.msra.mxu0 0
        %1010 = vmatprep.subr.bf16.mxu0 0
        %1011 = vmatpush1.bf16.msra.mxu0 0
        %1012 = vmatprep.subr.bf16.mxu0 0
        %1013 = vmatpush1.bf16.msra.mxu0 0
        %1014 = vmatprep.subr.bf16.mxu0 0
        %1015 = vmatpush1.bf16.msra.mxu0 0
        %1016 = vmatprep.subr.bf16.mxu0 0
        %1017 = vmatpush1.bf16.msra.mxu0 0
        %1018 = vmatprep.subr.bf16.mxu0 0
        %1019 = vmatpush1.bf16.msra.mxu0 0
        %1020 = vmatprep.subr.bf16.mxu0 0
        %1021 = vmatpush1.bf16.msra.mxu0 0
        %1022 = vmatprep.subr.bf16.mxu0 0
        %1023 = vmatpush1.bf16.msra.mxu0 0
        %1024 = vmatprep.subr.bf16.mxu0 0
        %1025 = vmatpush1.bf16.msra.mxu0 0
        %1026 = vmatprep.subr.bf16.mxu0 0
        %1027 = vmatpush1.bf16.msra.mxu0 0
        %1028 = vmatprep.subr.bf16.mxu0 0
        %1029 = vmatpush1.bf16.msra.mxu0 0
        %1030 = vmatprep.mubr.bf16.mxu0 0
        %1031 = vmatmul.mubr.bf16.gmra.mrb[0].mxu0 %v996
        %v1032 = vpop.f32.mrb[0].mxu0
        %v1033 = vadd.f32 %v979, %v1032
        %v1034 = vpop.f32.mrb[0].mxu0
        %v1035 = vadd.f32 %v981, %v1034
        %v1036 = vpop.f32.mrb[0].mxu0
        %v1037 = vpop.f32.mrb[0].mxu0
        %1038 = vdwg.mxu0
        %1039 = vmatprep.subr.bf16.mxu0 0
        %1040 = vmatpush1.bf16.msra.mxu0 %v837
        %1041 = vmatprep.subr.bf16.mxu0 0
        %1042 = vmatpush1.bf16.msra.mxu0 0
        %1043 = vmatprep.subr.bf16.mxu0 0
        %1044 = vmatpush1.bf16.msra.mxu0 0
        %1045 = vmatprep.subr.bf16.mxu0 0
        %1046 = vmatpush1.bf16.msra.mxu0 0
        %1047 = vmatprep.subr.bf16.mxu0 0
        %1048 = vmatpush1.bf16.msra.mxu0 0
        %1049 = vmatprep.subr.bf16.mxu0 0
        %1050 = vmatpush1.bf16.msra.mxu0 0
        %1051 = vmatprep.subr.bf16.mxu0 0
        %1052 = vmatpush1.bf16.msra.mxu0 0
        %1053 = vmatprep.subr.bf16.mxu0 0
        %1054 = vmatpush1.bf16.msra.mxu0 0
        %1055 = vmatprep.subr.bf16.mxu0 0
        %1056 = vmatpush1.bf16.msra.mxu0 0
        %1057 = vmatprep.subr.bf16.mxu0 0
        %1058 = vmatpush1.bf16.msra.mxu0 0
        %1059 = vmatprep.subr.bf16.mxu0 0
        %1060 = vmatpush1.bf16.msra.mxu0 0
        %1061 = vmatprep.subr.bf16.mxu0 0
        %1062 = vmatpush1.bf16.msra.mxu0 0
        %1063 = vmatprep.subr.bf16.mxu0 0
        %1064 = vmatpush1.bf16.msra.mxu0 0
        %1065 = vmatprep.subr.bf16.mxu0 0
        %1066 = vmatpush1.bf16.msra.mxu0 0
        %1067 = vmatprep.subr.bf16.mxu0 0
        %1068 = vmatpush1.bf16.msra.mxu0 0
        %1069 = vmatprep.subr.bf16.mxu0 0
        %1070 = vmatpush1.bf16.msra.mxu0 0
        %1071 = vmatprep.mubr.bf16.mxu0 0
        %1072 = vmatmul.mubr.bf16.gmra.mrb[0].mxu0 %v842
        %v1073 = vpop.f32.mrb[0].mxu0
        %v1074 = vadd.f32 0.0, %v1073
        %v1075 = vpop.f32.mrb[0].mxu0
        %v1076 = vpop.f32.mrb[0].mxu0
        %v1077 = vpop.f32.mrb[0].mxu0
        %1078 = vdwg.mxu0
        %v1079 = vpack.c.bf16 %v1074, %v1074
        %s1080 = scalar_lea.vmem [#allocation2], 32
        %v1081 = vld [vmem:[%s1080] sm:$0xff]
        %v1082 = vld [vmem:[%s1080 + $0x8] sm:$0xff]
        %v1085 = vunpack.c.l.b16 %v1081
        %v1086 = vunpack.c.h.b16 %v1081
        %v1087 = vunpack.c.l.b16 %v1082
        %v1088 = vunpack.c.h.b16 %v1082
        %v1089 = vpack.c.b16 %v1087, %v1085
        %v1090 = vpack.c.b16 %v1088, %v1086
        %v1094 = vsel %vm840, %v1079, 0
        %1096 = vmatprep.subr.bf16.mxu0 %v1090
        %1097 = vmatpush1.bf16.msra.mxu0 %v1089
        %1098 = vmatprep.subr.bf16.mxu0 0
        %1099 = vmatpush1.bf16.msra.mxu0 0
        %1100 = vmatprep.subr.bf16.mxu0 0
        %1101 = vmatpush1.bf16.msra.mxu0 0
        %1102 = vmatprep.subr.bf16.mxu0 0
        %1103 = vmatpush1.bf16.msra.mxu0 0
        %1104 = vmatprep.subr.bf16.mxu0 0
        %1105 = vmatpush1.bf16.msra.mxu0 0
        %1106 = vmatprep.subr.bf16.mxu0 0
        %1107 = vmatpush1.bf16.msra.mxu0 0
        %1108 = vmatprep.subr.bf16.mxu0 0
        %1109 = vmatpush1.bf16.msra.mxu0 0
        %1110 = vmatprep.subr.bf16.mxu0 0
        %1111 = vmatpush1.bf16.msra.mxu0 0
        %1112 = vmatprep.subr.bf16.mxu0 0
        %1113 = vmatpush1.bf16.msra.mxu0 0
        %1114 = vmatprep.subr.bf16.mxu0 0
        %1115 = vmatpush1.bf16.msra.mxu0 0
        %1116 = vmatprep.subr.bf16.mxu0 0
        %1117 = vmatpush1.bf16.msra.mxu0 0
        %1118 = vmatprep.subr.bf16.mxu0 0
        %1119 = vmatpush1.bf16.msra.mxu0 0
        %1120 = vmatprep.subr.bf16.mxu0 0
        %1121 = vmatpush1.bf16.msra.mxu0 0
        %1122 = vmatprep.subr.bf16.mxu0 0
        %1123 = vmatpush1.bf16.msra.mxu0 0
        %1124 = vmatprep.subr.bf16.mxu0 0
        %1125 = vmatpush1.bf16.msra.mxu0 0
        %1126 = vmatprep.subr.bf16.mxu0 0
        %1127 = vmatpush1.bf16.msra.mxu0 0
        %1128 = vmatprep.mubr.bf16.mxu0 0
        %1129 = vmatmul.mubr.bf16.gmra.mrb[0].mxu0 %v1094
        %v1130 = vpop.f32.mrb[0].mxu0
        %v1131 = vadd.f32 0.0, %v1130
        %v1132 = vpop.f32.mrb[0].mxu0
        %v1133 = vadd.f32 0.0, %v1132
        %v1134 = vpop.f32.mrb[0].mxu0
        %v1135 = vpop.f32.mrb[0].mxu0
        %1136 = vdwg.mxu0
        %v1137 = vadd.f32 %v1033, %v1131
        %v1138 = vadd.f32 %v1035, %v1133
        %1139 = vmatprep.subr.bf16.mxu0 0
        %1140 = vmatpush1.bf16.msra.mxu0 %v838
        %1141 = vmatprep.subr.bf16.mxu0 0
        %1142 = vmatpush1.bf16.msra.mxu0 0
        %1143 = vmatprep.subr.bf16.mxu0 0
        %1144 = vmatpush1.bf16.msra.mxu0 0
        %1145 = vmatprep.subr.bf16.mxu0 0
        %1146 = vmatpush1.bf16.msra.mxu0 0
        %1147 = vmatprep.subr.bf16.mxu0 0
        %1148 = vmatpush1.bf16.msra.mxu0 0
        %1149 = vmatprep.subr.bf16.mxu0 0
        %1150 = vmatpush1.bf16.msra.mxu0 0
        %1151 = vmatprep.subr.bf16.mxu0 0
        %1152 = vmatpush1.bf16.msra.mxu0 0
        %1153 = vmatprep.subr.bf16.mxu0 0
        %1154 = vmatpush1.bf16.msra.mxu0 0
        %1155 = vmatprep.subr.bf16.mxu0 0
        %1156 = vmatpush1.bf16.msra.mxu0 0
        %1157 = vmatprep.subr.bf16.mxu0 0
        %1158 = vmatpush1.bf16.msra.mxu0 0
        %1159 = vmatprep.subr.bf16.mxu0 0
        %1160 = vmatpush1.bf16.msra.mxu0 0
        %1161 = vmatprep.subr.bf16.mxu0 0
        %1162 = vmatpush1.bf16.msra.mxu0 0
        %1163 = vmatprep.subr.bf16.mxu0 0
        %1164 = vmatpush1.bf16.msra.mxu0 0
        %1165 = vmatprep.subr.bf16.mxu0 0
        %1166 = vmatpush1.bf16.msra.mxu0 0
        %1167 = vmatprep.subr.bf16.mxu0 0
        %1168 = vmatpush1.bf16.msra.mxu0 0
        %1169 = vmatprep.subr.bf16.mxu0 0
        %1170 = vmatpush1.bf16.msra.mxu0 0
        %1171 = vmatprep.mubr.bf16.mxu0 0
        %1172 = vmatmul.mubr.bf16.gmra.mrb[0].mxu0 %v842
        %v1173 = vpop.f32.mrb[0].mxu0
        %v1174 = vadd.f32 0.0, %v1173
        %v1175 = vpop.f32.mrb[0].mxu0
        %v1176 = vpop.f32.mrb[0].mxu0
        %v1177 = vpop.f32.mrb[0].mxu0
        %1178 = vdwg.mxu0
        %v1179 = vpack.c.bf16 %v1174, %v1174
        %s1180 = scalar_lea.vmem [#allocation2], 48
        %v1181 = vld [vmem:[%s1180] sm:$0xff]
        %v1182 = vld [vmem:[%s1180 + $0x8] sm:$0xff]
        %v1185 = vunpack.c.l.b16 %v1181
        %v1186 = vunpack.c.h.b16 %v1181
        %v1187 = vunpack.c.l.b16 %v1182
        %v1188 = vunpack.c.h.b16 %v1182
        %v1189 = vpack.c.b16 %v1187, %v1185
        %v1190 = vpack.c.b16 %v1188, %v1186
        %v1194 = vsel %vm840, %v1179, 0
        %1196 = vmatprep.subr.bf16.mxu0 %v1190
        %1197 = vmatpush1.bf16.msra.mxu0 %v1189
        %1198 = vmatprep.subr.bf16.mxu0 0
        %1199 = vmatpush1.bf16.msra.mxu0 0
        %1200 = vmatprep.subr.bf16.mxu0 0
        %1201 = vmatpush1.bf16.msra.mxu0 0
        %1202 = vmatprep.subr.bf16.mxu0 0
        %1203 = vmatpush1.bf16.msra.mxu0 0
        %1204 = vmatprep.subr.bf16.mxu0 0
        %1205 = vmatpush1.bf16.msra.mxu0 0
        %1206 = vmatprep.subr.bf16.mxu0 0
        %1207 = vmatpush1.bf16.msra.mxu0 0
        %1208 = vmatprep.subr.bf16.mxu0 0
        %1209 = vmatpush1.bf16.msra.mxu0 0
        %1210 = vmatprep.subr.bf16.mxu0 0
        %1211 = vmatpush1.bf16.msra.mxu0 0
        %1212 = vmatprep.subr.bf16.mxu0 0
        %1213 = vmatpush1.bf16.msra.mxu0 0
        %1214 = vmatprep.subr.bf16.mxu0 0
        %1215 = vmatpush1.bf16.msra.mxu0 0
        %1216 = vmatprep.subr.bf16.mxu0 0
        %1217 = vmatpush1.bf16.msra.mxu0 0
        %1218 = vmatprep.subr.bf16.mxu0 0
        %1219 = vmatpush1.bf16.msra.mxu0 0
        %1220 = vmatprep.subr.bf16.mxu0 0
        %1221 = vmatpush1.bf16.msra.mxu0 0
        %1222 = vmatprep.subr.bf16.mxu0 0
        %1223 = vmatpush1.bf16.msra.mxu0 0
        %1224 = vmatprep.subr.bf16.mxu0 0
        %1225 = vmatpush1.bf16.msra.mxu0 0
        %1226 = vmatprep.subr.bf16.mxu0 0
        %1227 = vmatpush1.bf16.msra.mxu0 0
        %1228 = vmatprep.mubr.bf16.mxu0 0
        %1229 = vmatmul.mubr.bf16.gmra.mrb[0].mxu0 %v1194
        %v1230 = vpop.f32.mrb[0].mxu0
        %v1231 = vadd.f32 0.0, %v1230
        %v1232 = vpop.f32.mrb[0].mxu0
        %v1233 = vadd.f32 0.0, %v1232
        %v1234 = vpop.f32.mrb[0].mxu0
        %v1235 = vpop.f32.mrb[0].mxu0
        %1236 = vdwg.mxu0
        %v1237 = vadd.f32 %v1137, %v1231
        %v1238 = vadd.f32 %v1138, %v1233
        %s1239 = scalar_lea.vmem %s1, 4
        %v1240 = vld [vmem:[%s1239] sm:$0xf]
        %v1242 = vsel %vm840, %v1240, 0
        %1244 = vmatprep.subr.bf16.mxu0 0
        %1245 = vmatpush1.bf16.msra.mxu0 %v835
        %1246 = vmatprep.subr.bf16.mxu0 0
        %1247 = vmatpush1.bf16.msra.mxu0 0
        %1248 = vmatprep.subr.bf16.mxu0 0
        %1249 = vmatpush1.bf16.msra.mxu0 0
        %1250 = vmatprep.subr.bf16.mxu0 0
        %1251 = vmatpush1.bf16.msra.mxu0 0
        %1252 = vmatprep.subr.bf16.mxu0 0
        %1253 = vmatpush1.bf16.msra.mxu0 0
        %1254 = vmatprep.subr.bf16.mxu0 0
        %1255 = vmatpush1.bf16.msra.mxu0 0
        %1256 = vmatprep.subr.bf16.mxu0 0
        %1257 = vmatpush1.bf16.msra.mxu0 0
        %1258 = vmatprep.subr.bf16.mxu0 0
        %1259 = vmatpush1.bf16.msra.mxu0 0
        %1260 = vmatprep.subr.bf16.mxu0 0
        %1261 = vmatpush1.bf16.msra.mxu0 0
        %1262 = vmatprep.subr.bf16.mxu0 0
        %1263 = vmatpush1.bf16.msra.mxu0 0
        %1264 = vmatprep.subr.bf16.mxu0 0
        %1265 = vmatpush1.bf16.msra.mxu0 0
        %1266 = vmatprep.subr.bf16.mxu0 0
        %1267 = vmatpush1.bf16.msra.mxu0 0
        %1268 = vmatprep.subr.bf16.mxu0 0
        %1269 = vmatpush1.bf16.msra.mxu0 0
        %1270 = vmatprep.subr.bf16.mxu0 0
        %1271 = vmatpush1.bf16.msra.mxu0 0
        %1272 = vmatprep.subr.bf16.mxu0 0
        %1273 = vmatpush1.bf16.msra.mxu0 0
        %1274 = vmatprep.subr.bf16.mxu0 0
        %1275 = vmatpush1.bf16.msra.mxu0 0
        %1276 = vmatprep.mubr.bf16.mxu0 0
        %1277 = vmatmul.mubr.bf16.gmra.mrb[0].mxu0 %v1242
        %v1278 = vpop.f32.mrb[0].mxu0
        %v1279 = vadd.f32 0.0, %v1278
        %v1280 = vpop.f32.mrb[0].mxu0
        %v1281 = vpop.f32.mrb[0].mxu0
        %v1282 = vpop.f32.mrb[0].mxu0
        %1283 = vdwg.mxu0
        %v1284 = vpack.c.bf16 %v1279, %v1279
        %s1285 = scalar_lea.vmem [#allocation2], 64
        %v1286 = vld [vmem:[%s1285] sm:$0xff]
        %v1287 = vld [vmem:[%s1285 + $0x8] sm:$0xff]
        %v1290 = vunpack.c.l.b16 %v1286
        %v1291 = vunpack.c.h.b16 %v1286
        %v1292 = vunpack.c.l.b16 %v1287
        %v1293 = vunpack.c.h.b16 %v1287
        %v1294 = vpack.c.b16 %v1292, %v1290
        %v1295 = vpack.c.b16 %v1293, %v1291
        %v1299 = vsel %vm840, %v1284, 0
        %1301 = vmatprep.subr.bf16.mxu0 %v1295
        %1302 = vmatpush1.bf16.msra.mxu0 %v1294
        %1303 = vmatprep.subr.bf16.mxu0 0
        %1304 = vmatpush1.bf16.msra.mxu0 0
        %1305 = vmatprep.subr.bf16.mxu0 0
        %1306 = vmatpush1.bf16.msra.mxu0 0
        %1307 = vmatprep.subr.bf16.mxu0 0
        %1308 = vmatpush1.bf16.msra.mxu0 0
        %1309 = vmatprep.subr.bf16.mxu0 0
        %1310 = vmatpush1.bf16.msra.mxu0 0
        %1311 = vmatprep.subr.bf16.mxu0 0
        %1312 = vmatpush1.bf16.msra.mxu0 0
        %1313 = vmatprep.subr.bf16.mxu0 0
        %1314 = vmatpush1.bf16.msra.mxu0 0
        %1315 = vmatprep.subr.bf16.mxu0 0
        %1316 = vmatpush1.bf16.msra.mxu0 0
        %1317 = vmatprep.subr.bf16.mxu0 0
        %1318 = vmatpush1.bf16.msra.mxu0 0
        %1319 = vmatprep.subr.bf16.mxu0 0
        %1320 = vmatpush1.bf16.msra.mxu0 0
        %1321 = vmatprep.subr.bf16.mxu0 0
        %1322 = vmatpush1.bf16.msra.mxu0 0
        %1323 = vmatprep.subr.bf16.mxu0 0
        %1324 = vmatpush1.bf16.msra.mxu0 0
        %1325 = vmatprep.subr.bf16.mxu0 0
        %1326 = vmatpush1.bf16.msra.mxu0 0
        %1327 = vmatprep.subr.bf16.mxu0 0
        %1328 = vmatpush1.bf16.msra.mxu0 0
        %1329 = vmatprep.subr.bf16.mxu0 0
        %1330 = vmatpush1.bf16.msra.mxu0 0
        %1331 = vmatprep.subr.bf16.mxu0 0
        %1332 = vmatpush1.bf16.msra.mxu0 0
        %1333 = vmatprep.mubr.bf16.mxu0 0
        %1334 = vmatmul.mubr.bf16.gmra.mrb[0].mxu0 %v1299
        %v1335 = vpop.f32.mrb[0].mxu0
        %v1336 = vadd.f32 0.0, %v1335
        %v1337 = vpop.f32.mrb[0].mxu0
        %v1338 = vadd.f32 0.0, %v1337
        %v1339 = vpop.f32.mrb[0].mxu0
        %v1340 = vpop.f32.mrb[0].mxu0
        %1341 = vdwg.mxu0
        %v1342 = vadd.f32 %v1237, %v1336
        %v1343 = vadd.f32 %v1238, %v1338
        %1344 = vmatprep.subr.bf16.mxu0 0
        %1345 = vmatpush1.bf16.msra.mxu0 %v836
        %1346 = vmatprep.subr.bf16.mxu0 0
        %1347 = vmatpush1.bf16.msra.mxu0 0
        %1348 = vmatprep.subr.bf16.mxu0 0
        %1349 = vmatpush1.bf16.msra.mxu0 0
        %1350 = vmatprep.subr.bf16.mxu0 0
        %1351 = vmatpush1.bf16.msra.mxu0 0
        %1352 = vmatprep.subr.bf16.mxu0 0
        %1353 = vmatpush1.bf16.msra.mxu0 0
        %1354 = vmatprep.subr.bf16.mxu0 0
        %1355 = vmatpush1.bf16.msra.mxu0 0
        %1356 = vmatprep.subr.bf16.mxu0 0
        %1357 = vmatpush1.bf16.msra.mxu0 0
        %1358 = vmatprep.subr.bf16.mxu0 0
        %1359 = vmatpush1.bf16.msra.mxu0 0
        %1360 = vmatprep.subr.bf16.mxu0 0
        %1361 = vmatpush1.bf16.msra.mxu0 0
        %1362 = vmatprep.subr.bf16.mxu0 0
        %1363 = vmatpush1.bf16.msra.mxu0 0
        %1364 = vmatprep.subr.bf16.mxu0 0
        %1365 = vmatpush1.bf16.msra.mxu0 0
        %1366 = vmatprep.subr.bf16.mxu0 0
        %1367 = vmatpush1.bf16.msra.mxu0 0
        %1368 = vmatprep.subr.bf16.mxu0 0
        %1369 = vmatpush1.bf16.msra.mxu0 0
        %1370 = vmatprep.subr.bf16.mxu0 0
        %1371 = vmatpush1.bf16.msra.mxu0 0
        %1372 = vmatprep.subr.bf16.mxu0 0
        %1373 = vmatpush1.bf16.msra.mxu0 0
        %1374 = vmatprep.subr.bf16.mxu0 0
        %1375 = vmatpush1.bf16.msra.mxu0 0
        %1376 = vmatprep.mubr.bf16.mxu0 0
        %1377 = vmatmul.mubr.bf16.gmra.mrb[0].mxu0 %v1242
        %v1378 = vpop.f32.mrb[0].mxu0
        %v1379 = vadd.f32 0.0, %v1378
        %v1380 = vpop.f32.mrb[0].mxu0
        %v1381 = vpop.f32.mrb[0].mxu0
        %v1382 = vpop.f32.mrb[0].mxu0
        %1383 = vdwg.mxu0
        %v1384 = vpack.c.bf16 %v1379, %v1379
        %s1385 = scalar_lea.vmem [#allocation2], 80
        %v1386 = vld [vmem:[%s1385] sm:$0xff]
        %v1387 = vld [vmem:[%s1385 + $0x8] sm:$0xff]
        %v1390 = vunpack.c.l.b16 %v1386
        %v1391 = vunpack.c.h.b16 %v1386
        %v1392 = vunpack.c.l.b16 %v1387
        %v1393 = vunpack.c.h.b16 %v1387
        %v1394 = vpack.c.b16 %v1392, %v1390
        %v1395 = vpack.c.b16 %v1393, %v1391
        %v1399 = vsel %vm840, %v1384, 0
        %1401 = vmatprep.subr.bf16.mxu0 %v1395
        %1402 = vmatpush1.bf16.msra.mxu0 %v1394
        %1403 = vmatprep.subr.bf16.mxu0 0
        %1404 = vmatpush1.bf16.msra.mxu0 0
        %1405 = vmatprep.subr.bf16.mxu0 0
        %1406 = vmatpush1.bf16.msra.mxu0 0
        %1407 = vmatprep.subr.bf16.mxu0 0
        %1408 = vmatpush1.bf16.msra.mxu0 0
        %1409 = vmatprep.subr.bf16.mxu0 0
        %1410 = vmatpush1.bf16.msra.mxu0 0
        %1411 = vmatprep.subr.bf16.mxu0 0
        %1412 = vmatpush1.bf16.msra.mxu0 0
        %1413 = vmatprep.subr.bf16.mxu0 0
        %1414 = vmatpush1.bf16.msra.mxu0 0
        %1415 = vmatprep.subr.bf16.mxu0 0
        %1416 = vmatpush1.bf16.msra.mxu0 0
        %1417 = vmatprep.subr.bf16.mxu0 0
        %1418 = vmatpush1.bf16.msra.mxu0 0
        %1419 = vmatprep.subr.bf16.mxu0 0
        %1420 = vmatpush1.bf16.msra.mxu0 0
        %1421 = vmatprep.subr.bf16.mxu0 0
        %1422 = vmatpush1.bf16.msra.mxu0 0
        %1423 = vmatprep.subr.bf16.mxu0 0
        %1424 = vmatpush1.bf16.msra.mxu0 0
        %1425 = vmatprep.subr.bf16.mxu0 0
        %1426 = vmatpush1.bf16.msra.mxu0 0
        %1427 = vmatprep.subr.bf16.mxu0 0
        %1428 = vmatpush1.bf16.msra.mxu0 0
        %1429 = vmatprep.subr.bf16.mxu0 0
        %1430 = vmatpush1.bf16.msra.mxu0 0
        %1431 = vmatprep.subr.bf16.mxu0 0
        %1432 = vmatpush1.bf16.msra.mxu0 0
        %1433 = vmatprep.mubr.bf16.mxu0 0
        %1434 = vmatmul.mubr.bf16.gmra.mrb[0].mxu0 %v1399
        %v1435 = vpop.f32.mrb[0].mxu0
        %v1436 = vadd.f32 0.0, %v1435
        %v1437 = vpop.f32.mrb[0].mxu0
        %v1438 = vadd.f32 0.0, %v1437
        %v1439 = vpop.f32.mrb[0].mxu0
        %v1440 = vpop.f32.mrb[0].mxu0
        %1441 = vdwg.mxu0
        %v1442 = vadd.f32 %v1342, %v1436
        %v1443 = vadd.f32 %v1343, %v1438
        %1444 = vmatprep.subr.bf16.mxu0 0
        %1445 = vmatpush1.bf16.msra.mxu0 %v837
        %1446 = vmatprep.subr.bf16.mxu0 0
        %1447 = vmatpush1.bf16.msra.mxu0 0
        %1448 = vmatprep.subr.bf16.mxu0 0
        %1449 = vmatpush1.bf16.msra.mxu0 0
        %1450 = vmatprep.subr.bf16.mxu0 0
        %1451 = vmatpush1.bf16.msra.mxu0 0
        %1452 = vmatprep.subr.bf16.mxu0 0
        %1453 = vmatpush1.bf16.msra.mxu0 0
        %1454 = vmatprep.subr.bf16.mxu0 0
        %1455 = vmatpush1.bf16.msra.mxu0 0
        %1456 = vmatprep.subr.bf16.mxu0 0
        %1457 = vmatpush1.bf16.msra.mxu0 0
        %1458 = vmatprep.subr.bf16.mxu0 0
        %1459 = vmatpush1.bf16.msra.mxu0 0
        %1460 = vmatprep.subr.bf16.mxu0 0
        %1461 = vmatpush1.bf16.msra.mxu0 0
        %1462 = vmatprep.subr.bf16.mxu0 0
        %1463 = vmatpush1.bf16.msra.mxu0 0
        %1464 = vmatprep.subr.bf16.mxu0 0
        %1465 = vmatpush1.bf16.msra.mxu0 0
        %1466 = vmatprep.subr.bf16.mxu0 0
        %1467 = vmatpush1.bf16.msra.mxu0 0
        %1468 = vmatprep.subr.bf16.mxu0 0
        %1469 = vmatpush1.bf16.msra.mxu0 0
        %1470 = vmatprep.subr.bf16.mxu0 0
        %1471 = vmatpush1.bf16.msra.mxu0 0
        %1472 = vmatprep.subr.bf16.mxu0 0
        %1473 = vmatpush1.bf16.msra.mxu0 0
        %1474 = vmatprep.subr.bf16.mxu0 0
        %1475 = vmatpush1.bf16.msra.mxu0 0
        %1476 = vmatprep.mubr.bf16.mxu0 0
        %1477 = vmatmul.mubr.bf16.gmra.mrb[0].mxu0 %v1242
        %v1478 = vpop.f32.mrb[0].mxu0
        %v1479 = vadd.f32 0.0, %v1478
        %v1480 = vpop.f32.mrb[0].mxu0
        %v1481 = vpop.f32.mrb[0].mxu0
        %v1482 = vpop.f32.mrb[0].mxu0
        %1483 = vdwg.mxu0
        %v1484 = vpack.c.bf16 %v1479, %v1479
        %s1485 = scalar_lea.vmem [#allocation2], 96
        %v1486 = vld [vmem:[%s1485] sm:$0xff]
        %v1487 = vld [vmem:[%s1485 + $0x8] sm:$0xff]
        %v1490 = vunpack.c.l.b16 %v1486
        %v1491 = vunpack.c.h.b16 %v1486
        %v1492 = vunpack.c.l.b16 %v1487
        %v1493 = vunpack.c.h.b16 %v1487
        %v1494 = vpack.c.b16 %v1492, %v1490
        %v1495 = vpack.c.b16 %v1493, %v1491
        %v1499 = vsel %vm840, %v1484, 0
        %1501 = vmatprep.subr.bf16.mxu0 %v1495
        %1502 = vmatpush1.bf16.msra.mxu0 %v1494
        %1503 = vmatprep.subr.bf16.mxu0 0
        %1504 = vmatpush1.bf16.msra.mxu0 0
        %1505 = vmatprep.subr.bf16.mxu0 0
        %1506 = vmatpush1.bf16.msra.mxu0 0
        %1507 = vmatprep.subr.bf16.mxu0 0
        %1508 = vmatpush1.bf16.msra.mxu0 0
        %1509 = vmatprep.subr.bf16.mxu0 0
        %1510 = vmatpush1.bf16.msra.mxu0 0
        %1511 = vmatprep.subr.bf16.mxu0 0
        %1512 = vmatpush1.bf16.msra.mxu0 0
        %1513 = vmatprep.subr.bf16.mxu0 0
        %1514 = vmatpush1.bf16.msra.mxu0 0
        %1515 = vmatprep.subr.bf16.mxu0 0
        %1516 = vmatpush1.bf16.msra.mxu0 0
        %1517 = vmatprep.subr.bf16.mxu0 0
        %1518 = vmatpush1.bf16.msra.mxu0 0
        %1519 = vmatprep.subr.bf16.mxu0 0
        %1520 = vmatpush1.bf16.msra.mxu0 0
        %1521 = vmatprep.subr.bf16.mxu0 0
        %1522 = vmatpush1.bf16.msra.mxu0 0
        %1523 = vmatprep.subr.bf16.mxu0 0
        %1524 = vmatpush1.bf16.msra.mxu0 0
        %1525 = vmatprep.subr.bf16.mxu0 0
        %1526 = vmatpush1.bf16.msra.mxu0 0
        %1527 = vmatprep.subr.bf16.mxu0 0
        %1528 = vmatpush1.bf16.msra.mxu0 0
        %1529 = vmatprep.subr.bf16.mxu0 0
        %1530 = vmatpush1.bf16.msra.mxu0 0
        %1531 = vmatprep.subr.bf16.mxu0 0
        %1532 = vmatpush1.bf16.msra.mxu0 0
        %1533 = vmatprep.mubr.bf16.mxu0 0
        %1534 = vmatmul.mubr.bf16.gmra.mrb[0].mxu0 %v1499
        %v1535 = vpop.f32.mrb[0].mxu0
        %v1536 = vadd.f32 0.0, %v1535
        %v1537 = vpop.f32.mrb[0].mxu0
        %v1538 = vadd.f32 0.0, %v1537
        %v1539 = vpop.f32.mrb[0].mxu0
        %v1540 = vpop.f32.mrb[0].mxu0
        %1541 = vdwg.mxu0
        %v1542 = vadd.f32 %v1442, %v1536
        %v1543 = vadd.f32 %v1443, %v1538
        %1544 = vmatprep.subr.bf16.mxu0 0
        %1545 = vmatpush1.bf16.msra.mxu0 %v838
        %1546 = vmatprep.subr.bf16.mxu0 0
        %1547 = vmatpush1.bf16.msra.mxu0 0
        %1548 = vmatprep.subr.bf16.mxu0 0
        %1549 = vmatpush1.bf16.msra.mxu0 0
        %1550 = vmatprep.subr.bf16.mxu0 0
        %1551 = vmatpush1.bf16.msra.mxu0 0
        %1552 = vmatprep.subr.bf16.mxu0 0
        %1553 = vmatpush1.bf16.msra.mxu0 0
        %1554 = vmatprep.subr.bf16.mxu0 0
        %1555 = vmatpush1.bf16.msra.mxu0 0
        %1556 = vmatprep.subr.bf16.mxu0 0
        %1557 = vmatpush1.bf16.msra.mxu0 0
        %1558 = vmatprep.subr.bf16.mxu0 0
        %1559 = vmatpush1.bf16.msra.mxu0 0
        %1560 = vmatprep.subr.bf16.mxu0 0
        %1561 = vmatpush1.bf16.msra.mxu0 0
        %1562 = vmatprep.subr.bf16.mxu0 0
        %1563 = vmatpush1.bf16.msra.mxu0 0
        %1564 = vmatprep.subr.bf16.mxu0 0
        %1565 = vmatpush1.bf16.msra.mxu0 0
        %1566 = vmatprep.subr.bf16.mxu0 0
        %1567 = vmatpush1.bf16.msra.mxu0 0
        %1568 = vmatprep.subr.bf16.mxu0 0
        %1569 = vmatpush1.bf16.msra.mxu0 0
        %1570 = vmatprep.subr.bf16.mxu0 0
        %1571 = vmatpush1.bf16.msra.mxu0 0
        %1572 = vmatprep.subr.bf16.mxu0 0
        %1573 = vmatpush1.bf16.msra.mxu0 0
        %1574 = vmatprep.subr.bf16.mxu0 0
        %1575 = vmatpush1.bf16.msra.mxu0 0
        %1576 = vmatprep.mubr.bf16.mxu0 0
        %1577 = vmatmul.mubr.bf16.gmra.mrb[0].mxu0 %v1242
        %v1578 = vpop.f32.mrb[0].mxu0
        %v1579 = vadd.f32 0.0, %v1578
        %v1580 = vpop.f32.mrb[0].mxu0
        %v1581 = vpop.f32.mrb[0].mxu0
        %v1582 = vpop.f32.mrb[0].mxu0
        %1583 = vdwg.mxu0
        %v1584 = vpack.c.bf16 %v1579, %v1579
        %s1585 = scalar_lea.vmem [#allocation2], 112
        %v1586 = vld [vmem:[%s1585] sm:$0xff]
        %v1587 = vld [vmem:[%s1585 + $0x8] sm:$0xff]
        %v1590 = vunpack.c.l.b16 %v1586
        %v1591 = vunpack.c.h.b16 %v1586
        %v1592 = vunpack.c.l.b16 %v1587
        %v1593 = vunpack.c.h.b16 %v1587
        %v1594 = vpack.c.b16 %v1592, %v1590
        %v1595 = vpack.c.b16 %v1593, %v1591
        %v1599 = vsel %vm840, %v1584, 0
        %1601 = vmatprep.subr.bf16.mxu0 %v1595
        %1602 = vmatpush1.bf16.msra.mxu0 %v1594
        %1603 = vmatprep.subr.bf16.mxu0 0
        %1604 = vmatpush1.bf16.msra.mxu0 0
        %1605 = vmatprep.subr.bf16.mxu0 0
        %1606 = vmatpush1.bf16.msra.mxu0 0
        %1607 = vmatprep.subr.bf16.mxu0 0
        %1608 = vmatpush1.bf16.msra.mxu0 0
        %1609 = vmatprep.subr.bf16.mxu0 0
        %1610 = vmatpush1.bf16.msra.mxu0 0
        %1611 = vmatprep.subr.bf16.mxu0 0
        %1612 = vmatpush1.bf16.msra.mxu0 0
        %1613 = vmatprep.subr.bf16.mxu0 0
        %1614 = vmatpush1.bf16.msra.mxu0 0
        %1615 = vmatprep.subr.bf16.mxu0 0
        %1616 = vmatpush1.bf16.msra.mxu0 0
        %1617 = vmatprep.subr.bf16.mxu0 0
        %1618 = vmatpush1.bf16.msra.mxu0 0
        %1619 = vmatprep.subr.bf16.mxu0 0
        %1620 = vmatpush1.bf16.msra.mxu0 0
        %1621 = vmatprep.subr.bf16.mxu0 0
        %1622 = vmatpush1.bf16.msra.mxu0 0
        %1623 = vmatprep.subr.bf16.mxu0 0
        %1624 = vmatpush1.bf16.msra.mxu0 0
        %1625 = vmatprep.subr.bf16.mxu0 0
        %1626 = vmatpush1.bf16.msra.mxu0 0
        %1627 = vmatprep.subr.bf16.mxu0 0
        %1628 = vmatpush1.bf16.msra.mxu0 0
        %1629 = vmatprep.subr.bf16.mxu0 0
        %1630 = vmatpush1.bf16.msra.mxu0 0
        %1631 = vmatprep.subr.bf16.mxu0 0
        %1632 = vmatpush1.bf16.msra.mxu0 0
        %1633 = vmatprep.mubr.bf16.mxu0 0
        %1634 = vmatmul.mubr.bf16.gmra.mrb[0].mxu0 %v1599
        %v1635 = vpop.f32.mrb[0].mxu0
        %v1636 = vadd.f32 0.0, %v1635
        %v1637 = vpop.f32.mrb[0].mxu0
        %v1638 = vadd.f32 0.0, %v1637
        %v1639 = vpop.f32.mrb[0].mxu0
        %v1640 = vpop.f32.mrb[0].mxu0
        %1641 = vdwg.mxu0
        %v1642 = vadd.f32 %v1542, %v1636
        %v1643 = vadd.f32 %v1543, %v1638
        %s1644 = scalar_lea.vmem %s1, 8
        %v1645 = vld [vmem:[%s1644] sm:$0xf]
        %v1647 = vsel %vm840, %v1645, 0
        %1649 = vmatprep.subr.bf16.mxu0 0
        %1650 = vmatpush1.bf16.msra.mxu0 %v835
        %1651 = vmatprep.subr.bf16.mxu0 0
        %1652 = vmatpush1.bf16.msra.mxu0 0
        %1653 = vmatprep.subr.bf16.mxu0 0
        %1654 = vmatpush1.bf16.msra.mxu0 0
        %1655 = vmatprep.subr.bf16.mxu0 0
        %1656 = vmatpush1.bf16.msra.mxu0 0
        %1657 = vmatprep.subr.bf16.mxu0 0
        %1658 = vmatpush1.bf16.msra.mxu0 0
        %1659 = vmatprep.subr.bf16.mxu0 0
        %1660 = vmatpush1.bf16.msra.mxu0 0
        %1661 = vmatprep.subr.bf16.mxu0 0
        %1662 = vmatpush1.bf16.msra.mxu0 0
        %1663 = vmatprep.subr.bf16.mxu0 0
        %1664 = vmatpush1.bf16.msra.mxu0 0
        %1665 = vmatprep.subr.bf16.mxu0 0
        %1666 = vmatpush1.bf16.msra.mxu0 0
        %1667 = vmatprep.subr.bf16.mxu0 0
        %1668 = vmatpush1.bf16.msra.mxu0 0
        %1669 = vmatprep.subr.bf16.mxu0 0
        %1670 = vmatpush1.bf16.msra.mxu0 0
        %1671 = vmatprep.subr.bf16.mxu0 0
        %1672 = vmatpush1.bf16.msra.mxu0 0
        %1673 = vmatprep.subr.bf16.mxu0 0
        %1674 = vmatpush1.bf16.msra.mxu0 0
        %1675 = vmatprep.subr.bf16.mxu0 0
        %1676 = vmatpush1.bf16.msra.mxu0 0
        %1677 = vmatprep.subr.bf16.mxu0 0
        %1678 = vmatpush1.bf16.msra.mxu0 0
        %1679 = vmatprep.subr.bf16.mxu0 0
        %1680 = vmatpush1.bf16.msra.mxu0 0
        %1681 = vmatprep.mubr.bf16.mxu0 0
        %1682 = vmatmul.mubr.bf16.gmra.mrb[0].mxu0 %v1647
        %v1683 = vpop.f32.mrb[0].mxu0
        %v1684 = vadd.f32 0.0, %v1683
        %v1685 = vpop.f32.mrb[0].mxu0
        %v1686 = vpop.f32.mrb[0].mxu0
        %v1687 = vpop.f32.mrb[0].mxu0
        %1688 = vdwg.mxu0
        %v1689 = vpack.c.bf16 %v1684, %v1684
        %s1690 = scalar_lea.vmem [#allocation2], 128
        %v1691 = vld [vmem:[%s1690] sm:$0xff]
        %v1692 = vld [vmem:[%s1690 + $0x8] sm:$0xff]
        %v1695 = vunpack.c.l.b16 %v1691
        %v1696 = vunpack.c.h.b16 %v1691
        %v1697 = vunpack.c.l.b16 %v1692
        %v1698 = vunpack.c.h.b16 %v1692
        %v1699 = vpack.c.b16 %v1697, %v1695
        %v1700 = vpack.c.b16 %v1698, %v1696
        %v1704 = vsel %vm840, %v1689, 0
        %1706 = vmatprep.subr.bf16.mxu0 %v1700
        %1707 = vmatpush1.bf16.msra.mxu0 %v1699
        %1708 = vmatprep.subr.bf16.mxu0 0
        %1709 = vmatpush1.bf16.msra.mxu0 0
        %1710 = vmatprep.subr.bf16.mxu0 0
        %1711 = vmatpush1.bf16.msra.mxu0 0
        %1712 = vmatprep.subr.bf16.mxu0 0
        %1713 = vmatpush1.bf16.msra.mxu0 0
        %1714 = vmatprep.subr.bf16.mxu0 0
        %1715 = vmatpush1.bf16.msra.mxu0 0
        %1716 = vmatprep.subr.bf16.mxu0 0
        %1717 = vmatpush1.bf16.msra.mxu0 0
        %1718 = vmatprep.subr.bf16.mxu0 0
        %1719 = vmatpush1.bf16.msra.mxu0 0
        %1720 = vmatprep.subr.bf16.mxu0 0
        %1721 = vmatpush1.bf16.msra.mxu0 0
        %1722 = vmatprep.subr.bf16.mxu0 0
        %1723 = vmatpush1.bf16.msra.mxu0 0
        %1724 = vmatprep.subr.bf16.mxu0 0
        %1725 = vmatpush1.bf16.msra.mxu0 0
        %1726 = vmatprep.subr.bf16.mxu0 0
        %1727 = vmatpush1.bf16.msra.mxu0 0
        %1728 = vmatprep.subr.bf16.mxu0 0
        %1729 = vmatpush1.bf16.msra.mxu0 0
        %1730 = vmatprep.subr.bf16.mxu0 0
        %1731 = vmatpush1.bf16.msra.mxu0 0
        %1732 = vmatprep.subr.bf16.mxu0 0
        %1733 = vmatpush1.bf16.msra.mxu0 0
        %1734 = vmatprep.subr.bf16.mxu0 0
        %1735 = vmatpush1.bf16.msra.mxu0 0
        %1736 = vmatprep.subr.bf16.mxu0 0
        %1737 = vmatpush1.bf16.msra.mxu0 0
        %1738 = vmatprep.mubr.bf16.mxu0 0
        %1739 = vmatmul.mubr.bf16.gmra.mrb[0].mxu0 %v1704
        %v1740 = vpop.f32.mrb[0].mxu0
        %v1741 = vadd.f32 0.0, %v1740
        %v1742 = vpop.f32.mrb[0].mxu0
        %v1743 = vadd.f32 0.0, %v1742
        %v1744 = vpop.f32.mrb[0].mxu0
        %v1745 = vpop.f32.mrb[0].mxu0
        %1746 = vdwg.mxu0
        %v1747 = vadd.f32 %v1642, %v1741
        %v1748 = vadd.f32 %v1643, %v1743
        %1749 = vmatprep.subr.bf16.mxu0 0
        %1750 = vmatpush1.bf16.msra.mxu0 %v836
        %1751 = vmatprep.subr.bf16.mxu0 0
        %1752 = vmatpush1.bf16.msra.mxu0 0
        %1753 = vmatprep.subr.bf16.mxu0 0
        %1754 = vmatpush1.bf16.msra.mxu0 0
        %1755 = vmatprep.subr.bf16.mxu0 0
        %1756 = vmatpush1.bf16.msra.mxu0 0
        %1757 = vmatprep.subr.bf16.mxu0 0
        %1758 = vmatpush1.bf16.msra.mxu0 0
        %1759 = vmatprep.subr.bf16.mxu0 0
        %1760 = vmatpush1.bf16.msra.mxu0 0
        %1761 = vmatprep.subr.bf16.mxu0 0
        %1762 = vmatpush1.bf16.msra.mxu0 0
        %1763 = vmatprep.subr.bf16.mxu0 0
        %1764 = vmatpush1.bf16.msra.mxu0 0
        %1765 = vmatprep.subr.bf16.mxu0 0
        %1766 = vmatpush1.bf16.msra.mxu0 0
        %1767 = vmatprep.subr.bf16.mxu0 0
        %1768 = vmatpush1.bf16.msra.mxu0 0
        %1769 = vmatprep.subr.bf16.mxu0 0
        %1770 = vmatpush1.bf16.msra.mxu0 0
        %1771 = vmatprep.subr.bf16.mxu0 0
        %1772 = vmatpush1.bf16.msra.mxu0 0
        %1773 = vmatprep.subr.bf16.mxu0 0
        %1774 = vmatpush1.bf16.msra.mxu0 0
        %1775 = vmatprep.subr.bf16.mxu0 0
        %1776 = vmatpush1.bf16.msra.mxu0 0
        %1777 = vmatprep.subr.bf16.mxu0 0
        %1778 = vmatpush1.bf16.msra.mxu0 0
        %1779 = vmatprep.subr.bf16.mxu0 0
        %1780 = vmatpush1.bf16.msra.mxu0 0
        %1781 = vmatprep.mubr.bf16.mxu0 0
        %1782 = vmatmul.mubr.bf16.gmra.mrb[0].mxu0 %v1647
        %v1783 = vpop.f32.mrb[0].mxu0
        %v1784 = vadd.f32 0.0, %v1783
        %v1785 = vpop.f32.mrb[0].mxu0
        %v1786 = vpop.f32.mrb[0].mxu0
        %v1787 = vpop.f32.mrb[0].mxu0
        %1788 = vdwg.mxu0
        %v1789 = vpack.c.bf16 %v1784, %v1784
        %s1790 = scalar_lea.vmem [#allocation2], 144
        %v1791 = vld [vmem:[%s1790] sm:$0xff]
        %v1792 = vld [vmem:[%s1790 + $0x8] sm:$0xff]
        %v1795 = vunpack.c.l.b16 %v1791
        %v1796 = vunpack.c.h.b16 %v1791
        %v1797 = vunpack.c.l.b16 %v1792
        %v1798 = vunpack.c.h.b16 %v1792
        %v1799 = vpack.c.b16 %v1797, %v1795
        %v1800 = vpack.c.b16 %v1798, %v1796
        %v1804 = vsel %vm840, %v1789, 0
        %1806 = vmatprep.subr.bf16.mxu0 %v1800
        %1807 = vmatpush1.bf16.msra.mxu0 %v1799
        %1808 = vmatprep.subr.bf16.mxu0 0
        %1809 = vmatpush1.bf16.msra.mxu0 0
        %1810 = vmatprep.subr.bf16.mxu0 0
        %1811 = vmatpush1.bf16.msra.mxu0 0
        %1812 = vmatprep.subr.bf16.mxu0 0
        %1813 = vmatpush1.bf16.msra.mxu0 0
        %1814 = vmatprep.subr.bf16.mxu0 0
        %1815 = vmatpush1.bf16.msra.mxu0 0
        %1816 = vmatprep.subr.bf16.mxu0 0
        %1817 = vmatpush1.bf16.msra.mxu0 0
        %1818 = vmatprep.subr.bf16.mxu0 0
        %1819 = vmatpush1.bf16.msra.mxu0 0
        %1820 = vmatprep.subr.bf16.mxu0 0
        %1821 = vmatpush1.bf16.msra.mxu0 0
        %1822 = vmatprep.subr.bf16.mxu0 0
        %1823 = vmatpush1.bf16.msra.mxu0 0
        %1824 = vmatprep.subr.bf16.mxu0 0
        %1825 = vmatpush1.bf16.msra.mxu0 0
        %1826 = vmatprep.subr.bf16.mxu0 0
        %1827 = vmatpush1.bf16.msra.mxu0 0
        %1828 = vmatprep.subr.bf16.mxu0 0
        %1829 = vmatpush1.bf16.msra.mxu0 0
        %1830 = vmatprep.subr.bf16.mxu0 0
        %1831 = vmatpush1.bf16.msra.mxu0 0
        %1832 = vmatprep.subr.bf16.mxu0 0
        %1833 = vmatpush1.bf16.msra.mxu0 0
        %1834 = vmatprep.subr.bf16.mxu0 0
        %1835 = vmatpush1.bf16.msra.mxu0 0
        %1836 = vmatprep.subr.bf16.mxu0 0
        %1837 = vmatpush1.bf16.msra.mxu0 0
        %1838 = vmatprep.mubr.bf16.mxu0 0
        %1839 = vmatmul.mubr.bf16.gmra.mrb[0].mxu0 %v1804
        %v1840 = vpop.f32.mrb[0].mxu0
        %v1841 = vadd.f32 0.0, %v1840
        %v1842 = vpop.f32.mrb[0].mxu0
        %v1843 = vadd.f32 0.0, %v1842
        %v1844 = vpop.f32.mrb[0].mxu0
        %v1845 = vpop.f32.mrb[0].mxu0
        %1846 = vdwg.mxu0
        %v1847 = vadd.f32 %v1747, %v1841
        %v1848 = vadd.f32 %v1748, %v1843
        %1849 = vmatprep.subr.bf16.mxu0 0
        %1850 = vmatpush1.bf16.msra.mxu0 %v837
        %1851 = vmatprep.subr.bf16.mxu0 0
        %1852 = vmatpush1.bf16.msra.mxu0 0
        %1853 = vmatprep.subr.bf16.mxu0 0
        %1854 = vmatpush1.bf16.msra.mxu0 0
        %1855 = vmatprep.subr.bf16.mxu0 0
        %1856 = vmatpush1.bf16.msra.mxu0 0
        %1857 = vmatprep.subr.bf16.mxu0 0
        %1858 = vmatpush1.bf16.msra.mxu0 0
        %1859 = vmatprep.subr.bf16.mxu0 0
        %1860 = vmatpush1.bf16.msra.mxu0 0
        %1861 = vmatprep.subr.bf16.mxu0 0
        %1862 = vmatpush1.bf16.msra.mxu0 0
        %1863 = vmatprep.subr.bf16.mxu0 0
        %1864 = vmatpush1.bf16.msra.mxu0 0
        %1865 = vmatprep.subr.bf16.mxu0 0
        %1866 = vmatpush1.bf16.msra.mxu0 0
        %1867 = vmatprep.subr.bf16.mxu0 0
        %1868 = vmatpush1.bf16.msra.mxu0 0
        %1869 = vmatprep.subr.bf16.mxu0 0
        %1870 = vmatpush1.bf16.msra.mxu0 0
        %1871 = vmatprep.subr.bf16.mxu0 0
        %1872 = vmatpush1.bf16.msra.mxu0 0
        %1873 = vmatprep.subr.bf16.mxu0 0
        %1874 = vmatpush1.bf16.msra.mxu0 0
        %1875 = vmatprep.subr.bf16.mxu0 0
        %1876 = vmatpush1.bf16.msra.mxu0 0
        %1877 = vmatprep.subr.bf16.mxu0 0
        %1878 = vmatpush1.bf16.msra.mxu0 0
        %1879 = vmatprep.subr.bf16.mxu0 0
        %1880 = vmatpush1.bf16.msra.mxu0 0
        %1881 = vmatprep.mubr.bf16.mxu0 0
        %1882 = vmatmul.mubr.bf16.gmra.mrb[0].mxu0 %v1647
        %v1883 = vpop.f32.mrb[0].mxu0
        %v1884 = vadd.f32 0.0, %v1883
        %v1885 = vpop.f32.mrb[0].mxu0
        %v1886 = vpop.f32.mrb[0].mxu0
        %v1887 = vpop.f32.mrb[0].mxu0
        %1888 = vdwg.mxu0
        %v1889 = vpack.c.bf16 %v1884, %v1884
        %s1890 = scalar_lea.vmem [#allocation2], 160
        %v1891 = vld [vmem:[%s1890] sm:$0xff]
        %v1892 = vld [vmem:[%s1890 + $0x8] sm:$0xff]
        %v1895 = vunpack.c.l.b16 %v1891
        %v1896 = vunpack.c.h.b16 %v1891
        %v1897 = vunpack.c.l.b16 %v1892
        %v1898 = vunpack.c.h.b16 %v1892
        %v1899 = vpack.c.b16 %v1897, %v1895
        %v1900 = vpack.c.b16 %v1898, %v1896
        %v1904 = vsel %vm840, %v1889, 0
        %1906 = vmatprep.subr.bf16.mxu0 %v1900
        %1907 = vmatpush1.bf16.msra.mxu0 %v1899
        %1908 = vmatprep.subr.bf16.mxu0 0
        %1909 = vmatpush1.bf16.msra.mxu0 0
        %1910 = vmatprep.subr.bf16.mxu0 0
        %1911 = vmatpush1.bf16.msra.mxu0 0
        %1912 = vmatprep.subr.bf16.mxu0 0
        %1913 = vmatpush1.bf16.msra.mxu0 0
        %1914 = vmatprep.subr.bf16.mxu0 0
        %1915 = vmatpush1.bf16.msra.mxu0 0
        %1916 = vmatprep.subr.bf16.mxu0 0
        %1917 = vmatpush1.bf16.msra.mxu0 0
        %1918 = vmatprep.subr.bf16.mxu0 0
        %1919 = vmatpush1.bf16.msra.mxu0 0
        %1920 = vmatprep.subr.bf16.mxu0 0
        %1921 = vmatpush1.bf16.msra.mxu0 0
        %1922 = vmatprep.subr.bf16.mxu0 0
        %1923 = vmatpush1.bf16.msra.mxu0 0
        %1924 = vmatprep.subr.bf16.mxu0 0
        %1925 = vmatpush1.bf16.msra.mxu0 0
        %1926 = vmatprep.subr.bf16.mxu0 0
        %1927 = vmatpush1.bf16.msra.mxu0 0
        %1928 = vmatprep.subr.bf16.mxu0 0
        %1929 = vmatpush1.bf16.msra.mxu0 0
        %1930 = vmatprep.subr.bf16.mxu0 0
        %1931 = vmatpush1.bf16.msra.mxu0 0
        %1932 = vmatprep.subr.bf16.mxu0 0
        %1933 = vmatpush1.bf16.msra.mxu0 0
        %1934 = vmatprep.subr.bf16.mxu0 0
        %1935 = vmatpush1.bf16.msra.mxu0 0
        %1936 = vmatprep.subr.bf16.mxu0 0
        %1937 = vmatpush1.bf16.msra.mxu0 0
        %1938 = vmatprep.mubr.bf16.mxu0 0
        %1939 = vmatmul.mubr.bf16.gmra.mrb[0].mxu0 %v1904
        %v1940 = vpop.f32.mrb[0].mxu0
        %v1941 = vadd.f32 0.0, %v1940
        %v1942 = vpop.f32.mrb[0].mxu0
        %v1943 = vadd.f32 0.0, %v1942
        %v1944 = vpop.f32.mrb[0].mxu0
        %v1945 = vpop.f32.mrb[0].mxu0
        %1946 = vdwg.mxu0
        %v1947 = vadd.f32 %v1847, %v1941
        %v1948 = vadd.f32 %v1848, %v1943
        %1949 = vmatprep.subr.bf16.mxu0 0
        %1950 = vmatpush1.bf16.msra.mxu0 %v838
        %1951 = vmatprep.subr.bf16.mxu0 0
        %1952 = vmatpush1.bf16.msra.mxu0 0
        %1953 = vmatprep.subr.bf16.mxu0 0
        %1954 = vmatpush1.bf16.msra.mxu0 0
        %1955 = vmatprep.subr.bf16.mxu0 0
        %1956 = vmatpush1.bf16.msra.mxu0 0
        %1957 = vmatprep.subr.bf16.mxu0 0
        %1958 = vmatpush1.bf16.msra.mxu0 0
        %1959 = vmatprep.subr.bf16.mxu0 0
        %1960 = vmatpush1.bf16.msra.mxu0 0
        %1961 = vmatprep.subr.bf16.mxu0 0
        %1962 = vmatpush1.bf16.msra.mxu0 0
        %1963 = vmatprep.subr.bf16.mxu0 0
        %1964 = vmatpush1.bf16.msra.mxu0 0
        %1965 = vmatprep.subr.bf16.mxu0 0
        %1966 = vmatpush1.bf16.msra.mxu0 0
        %1967 = vmatprep.subr.bf16.mxu0 0
        %1968 = vmatpush1.bf16.msra.mxu0 0
        %1969 = vmatprep.subr.bf16.mxu0 0
        %1970 = vmatpush1.bf16.msra.mxu0 0
        %1971 = vmatprep.subr.bf16.mxu0 0
        %1972 = vmatpush1.bf16.msra.mxu0 0
        %1973 = vmatprep.subr.bf16.mxu0 0
        %1974 = vmatpush1.bf16.msra.mxu0 0
        %1975 = vmatprep.subr.bf16.mxu0 0
        %1976 = vmatpush1.bf16.msra.mxu0 0
        %1977 = vmatprep.subr.bf16.mxu0 0
        %1978 = vmatpush1.bf16.msra.mxu0 0
        %1979 = vmatprep.subr.bf16.mxu0 0
        %1980 = vmatpush1.bf16.msra.mxu0 0
        %1981 = vmatprep.mubr.bf16.mxu0 0
        %1982 = vmatmul.mubr.bf16.gmra.mrb[0].mxu0 %v1647
        %v1983 = vpop.f32.mrb[0].mxu0
        %v1984 = vadd.f32 0.0, %v1983
        %v1985 = vpop.f32.mrb[0].mxu0
        %v1986 = vpop.f32.mrb[0].mxu0
        %v1987 = vpop.f32.mrb[0].mxu0
        %1988 = vdwg.mxu0
        %v1989 = vpack.c.bf16 %v1984, %v1984
        %s1990 = scalar_lea.vmem [#allocation2], 176
        %v1991 = vld [vmem:[%s1990] sm:$0xff]
        %v1992 = vld [vmem:[%s1990 + $0x8] sm:$0xff]
        %v1995 = vunpack.c.l.b16 %v1991
        %v1996 = vunpack.c.h.b16 %v1991
        %v1997 = vunpack.c.l.b16 %v1992
        %v1998 = vunpack.c.h.b16 %v1992
        %v1999 = vpack.c.b16 %v1997, %v1995
        %v2000 = vpack.c.b16 %v1998, %v1996
        %v2004 = vsel %vm840, %v1989, 0
        %2006 = vmatprep.subr.bf16.mxu0 %v2000
        %2007 = vmatpush1.bf16.msra.mxu0 %v1999
        %2008 = vmatprep.subr.bf16.mxu0 0
        %2009 = vmatpush1.bf16.msra.mxu0 0
        %2010 = vmatprep.subr.bf16.mxu0 0
        %2011 = vmatpush1.bf16.msra.mxu0 0
        %2012 = vmatprep.subr.bf16.mxu0 0
        %2013 = vmatpush1.bf16.msra.mxu0 0
        %2014 = vmatprep.subr.bf16.mxu0 0
        %2015 = vmatpush1.bf16.msra.mxu0 0
        %2016 = vmatprep.subr.bf16.mxu0 0
        %2017 = vmatpush1.bf16.msra.mxu0 0
        %2018 = vmatprep.subr.bf16.mxu0 0
        %2019 = vmatpush1.bf16.msra.mxu0 0
        %2020 = vmatprep.subr.bf16.mxu0 0
        %2021 = vmatpush1.bf16.msra.mxu0 0
        %2022 = vmatprep.subr.bf16.mxu0 0
        %2023 = vmatpush1.bf16.msra.mxu0 0
        %2024 = vmatprep.subr.bf16.mxu0 0
        %2025 = vmatpush1.bf16.msra.mxu0 0
        %2026 = vmatprep.subr.bf16.mxu0 0
        %2027 = vmatpush1.bf16.msra.mxu0 0
        %2028 = vmatprep.subr.bf16.mxu0 0
        %2029 = vmatpush1.bf16.msra.mxu0 0
        %2030 = vmatprep.subr.bf16.mxu0 0
        %2031 = vmatpush1.bf16.msra.mxu0 0
        %2032 = vmatprep.subr.bf16.mxu0 0
        %2033 = vmatpush1.bf16.msra.mxu0 0
        %2034 = vmatprep.subr.bf16.mxu0 0
        %2035 = vmatpush1.bf16.msra.mxu0 0
        %2036 = vmatprep.subr.bf16.mxu0 0
        %2037 = vmatpush1.bf16.msra.mxu0 0
        %2038 = vmatprep.mubr.bf16.mxu0 0
        %2039 = vmatmul.mubr.bf16.gmra.mrb[0].mxu0 %v2004
        %v2040 = vpop.f32.mrb[0].mxu0
        %v2041 = vadd.f32 0.0, %v2040
        %v2042 = vpop.f32.mrb[0].mxu0
        %v2043 = vadd.f32 0.0, %v2042
        %v2044 = vpop.f32.mrb[0].mxu0
        %v2045 = vpop.f32.mrb[0].mxu0
        %2046 = vdwg.mxu0
        %v2047 = vadd.f32 %v1947, %v2041
        %v2048 = vadd.f32 %v1948, %v2043
        %v2049 = vld [vmem:[%s3] sm:$0x3]
        %v2051 = vlaneseq
        %v2052 = vshrl.u32 %v2051, 7
        %v2053 = vsub.s32 0, %v2052
        %v2054 = vrot.slane %v2049, %v2053
        %v2055 = vlaneseq
        %v2056 = vshrl.u32 %v2055, 7
        %v2057 = vsub.s32 1, %v2056
        %v2058 = vrot.slane %v2049, %v2057
        %v2061 = vadd.f32 %v2047, %v2054
        %v2062 = vadd.f32 %v2048, %v2058
        %v2063 = vmax.f32 %v2061, 0.0
        %v2064 = vmax.f32 %v2062, 0.0
        %v2065 = vpack.c.bf16 %v2063, %v2063
        %v2066 = vpack.c.bf16 %v2064, %v2064
        %v2067 = vld [vmem:[%s4] sm:$0x3]
        %vm2068 = vcmask 64512
        %v2070 = vsel %vm2068, %v2067, 0
        %vm2072 = vcmask 1043456
        %v2074 = vsel %vm2072, %v2065, 0
        %v2077 = vsel %vm2072, %v2066, 0
        %2079 = vmatprep.subr.bf16.mxu0 %v2077
        %2080 = vmatpush1.bf16.msra.mxu0 %v2074
        %2081 = vmatprep.subr.bf16.mxu0 0
        %2082 = vmatpush1.bf16.msra.mxu0 0
        %2083 = vmatprep.subr.bf16.mxu0 0
        %2084 = vmatpush1.bf16.msra.mxu0 0
        %2085 = vmatprep.subr.bf16.mxu0 0
        %2086 = vmatpush1.bf16.msra.mxu0 0
        %2087 = vmatprep.subr.bf16.mxu0 0
        %2088 = vmatpush1.bf16.msra.mxu0 0
        %2089 = vmatprep.subr.bf16.mxu0 0
        %2090 = vmatpush1.bf16.msra.mxu0 0
        %2091 = vmatprep.subr.bf16.mxu0 0
        %2092 = vmatpush1.bf16.msra.mxu0 0
        %2093 = vmatprep.subr.bf16.mxu0 0
        %2094 = vmatpush1.bf16.msra.mxu0 0
        %2095 = vmatprep.subr.bf16.mxu0 0
        %2096 = vmatpush1.bf16.msra.mxu0 0
        %2097 = vmatprep.subr.bf16.mxu0 0
        %2098 = vmatpush1.bf16.msra.mxu0 0
        %2099 = vmatprep.subr.bf16.mxu0 0
        %2100 = vmatpush1.bf16.msra.mxu0 0
        %2101 = vmatprep.subr.bf16.mxu0 0
        %2102 = vmatpush1.bf16.msra.mxu0 0
        %2103 = vmatprep.subr.bf16.mxu0 0
        %2104 = vmatpush1.bf16.msra.mxu0 0
        %2105 = vmatprep.subr.bf16.mxu0 0
        %2106 = vmatpush1.bf16.msra.mxu0 0
        %2107 = vmatprep.subr.bf16.mxu0 0
        %2108 = vmatpush1.bf16.msra.mxu0 0
        %2109 = vmatprep.subr.bf16.mxu0 0
        %2110 = vmatpush1.bf16.msra.mxu0 0
        %2111 = vmatprep.mubr.bf16.mxu0 0
        %2112 = vmatmul.mubr.bf16.gmra.mrb[0].mxu0 %v2070
        %v2113 = vpop.f32.mrb[0].mxu0
        %v2114 = vadd.f32 0.0, %v2113
        %v2115 = vpop.f32.mrb[0].mxu0
        %v2116 = vadd.f32 0.0, %v2115
        %v2117 = vpop.f32.mrb[0].mxu0
        %v2118 = vpop.f32.mrb[0].mxu0
        %2119 = vdwg.mxu0
        %v2120 = vpack.c.bf16 %v2114, %v2114
        %v2121 = vpack.c.bf16 %v2116, %v2116
        %v2122 = vld [vmem:[#allocation4] sm:$0xf]
        %v2123 = vld [vmem:[#allocation4 + $0x4] sm:$0xf]
        %v2124 = vld [vmem:[#allocation4 + $0x8] sm:$0xf]
        %v2125 = vld [vmem:[#allocation4 + $0xc] sm:$0xf]
        %v2126 = vld [vmem:[#allocation4 + $0x10] sm:$0xf]
        %v2127 = vld [vmem:[#allocation4 + $0x14] sm:$0xf]
        %v2128 = vld [vmem:[#allocation4 + $0x18] sm:$0xf]
        %v2129 = vld [vmem:[#allocation4 + $0x1c] sm:$0xf]
        %v2130 = vld [vmem:[#allocation4 + $0x20] sm:$0xf]
        %v2131 = vld [vmem:[#allocation4 + $0x24] sm:$0xf]
        %v2132 = vld [vmem:[#allocation4 + $0x28] sm:$0xf]
        %v2133 = vld [vmem:[#allocation4 + $0x2c] sm:$0xf]
        %v2134 = vld [vmem:[#allocation4 + $0x30] sm:$0xf]
        %v2135 = vld [vmem:[#allocation4 + $0x34] sm:$0xf]
        %v2136 = vld [vmem:[#allocation4 + $0x38] sm:$0xf]
        %v2137 = vld [vmem:[#allocation4 + $0x3c] sm:$0xf]
        %v2138 = vld [vmem:[#allocation4 + $0x40] sm:$0xf]
        %v2139 = vld [vmem:[#allocation4 + $0x44] sm:$0xf]
        %v2140 = vld [vmem:[#allocation4 + $0x48] sm:$0xf]
        %v2141 = vld [vmem:[#allocation4 + $0x4c] sm:$0xf]
        %v2142 = vld [vmem:[#allocation4 + $0x50] sm:$0xf]
        %v2143 = vld [vmem:[#allocation4 + $0x54] sm:$0xf]
        %v2144 = vld [vmem:[#allocation4 + $0x58] sm:$0xf]
        %v2145 = vld [vmem:[#allocation4 + $0x5c] sm:$0xf]
        %v2146 = vld [vmem:[#allocation4 + $0x60] sm:$0xf]
        %v2147 = vld [vmem:[#allocation4 + $0x64] sm:$0xf]
        %v2148 = vld [vmem:[#allocation4 + $0x68] sm:$0xf]
        %v2149 = vld [vmem:[#allocation4 + $0x6c] sm:$0xf]
        %v2150 = vld [vmem:[#allocation4 + $0x70] sm:$0xf]
        %v2151 = vld [vmem:[#allocation4 + $0x74] sm:$0xf]
        %v2152 = vld [vmem:[#allocation4 + $0x78] sm:$0xf]
        %v2153 = vld [vmem:[#allocation4 + $0x7c] sm:$0xf]
        %s2154 = scalar_lea.vmem %s4, 2
        %v2155 = vld [vmem:[%s2154] sm:$0x3]
        %v2157 = vsel %vm2068, %v2155, 0
        %2159 = vmatprep.subr.bf16.mxu0 %v2077
        %2160 = vmatpush1.bf16.msra.mxu0 %v2074
        %2161 = vmatprep.subr.bf16.mxu0 0
        %2162 = vmatpush1.bf16.msra.mxu0 0
        %2163 = vmatprep.subr.bf16.mxu0 0
        %2164 = vmatpush1.bf16.msra.mxu0 0
        %2165 = vmatprep.subr.bf16.mxu0 0
        %2166 = vmatpush1.bf16.msra.mxu0 0
        %2167 = vmatprep.subr.bf16.mxu0 0
        %2168 = vmatpush1.bf16.msra.mxu0 0
        %2169 = vmatprep.subr.bf16.mxu0 0
        %2170 = vmatpush1.bf16.msra.mxu0 0
        %2171 = vmatprep.subr.bf16.mxu0 0
        %2172 = vmatpush1.bf16.msra.mxu0 0
        %2173 = vmatprep.subr.bf16.mxu0 0
        %2174 = vmatpush1.bf16.msra.mxu0 0
        %2175 = vmatprep.subr.bf16.mxu0 0
        %2176 = vmatpush1.bf16.msra.mxu0 0
        %2177 = vmatprep.subr.bf16.mxu0 0
        %2178 = vmatpush1.bf16.msra.mxu0 0
        %2179 = vmatprep.subr.bf16.mxu0 0
        %2180 = vmatpush1.bf16.msra.mxu0 0
        %2181 = vmatprep.subr.bf16.mxu0 0
        %2182 = vmatpush1.bf16.msra.mxu0 0
        %2183 = vmatprep.subr.bf16.mxu0 0
        %2184 = vmatpush1.bf16.msra.mxu0 0
        %2185 = vmatprep.subr.bf16.mxu0 0
        %2186 = vmatpush1.bf16.msra.mxu0 0
        %2187 = vmatprep.subr.bf16.mxu0 0
        %2188 = vmatpush1.bf16.msra.mxu0 0
        %2189 = vmatprep.subr.bf16.mxu0 0
        %2190 = vmatpush1.bf16.msra.mxu0 0
        %2191 = vmatprep.mubr.bf16.mxu0 0
        %2192 = vmatmul.mubr.bf16.gmra.mrb[0].mxu0 %v2157
        %v2193 = vpop.f32.mrb[0].mxu0
        %v2194 = vadd.f32 0.0, %v2193
        %v2195 = vpop.f32.mrb[0].mxu0
        %v2196 = vadd.f32 0.0, %v2195
        %v2197 = vpop.f32.mrb[0].mxu0
        %v2198 = vpop.f32.mrb[0].mxu0
        %2199 = vdwg.mxu0
        %v2200 = vpack.c.bf16 %v2194, %v2194
        %v2201 = vpack.c.bf16 %v2196, %v2196
        %s2202 = scalar_lea.vmem [#allocation4], 128
        %v2203 = vld [vmem:[%s2202] sm:$0xf]
        %v2204 = vld [vmem:[%s2202 + $0x4] sm:$0xf]
        %v2205 = vld [vmem:[%s2202 + $0x8] sm:$0xf]
        %v2206 = vld [vmem:[%s2202 + $0xc] sm:$0xf]
        %v2207 = vld [vmem:[%s2202 + $0x10] sm:$0xf]
        %v2208 = vld [vmem:[%s2202 + $0x14] sm:$0xf]
        %v2209 = vld [vmem:[%s2202 + $0x18] sm:$0xf]
        %v2210 = vld [vmem:[%s2202 + $0x1c] sm:$0xf]
        %v2211 = vld [vmem:[%s2202 + $0x20] sm:$0xf]
        %v2212 = vld [vmem:[%s2202 + $0x24] sm:$0xf]
        %v2213 = vld [vmem:[%s2202 + $0x28] sm:$0xf]
        %v2214 = vld [vmem:[%s2202 + $0x2c] sm:$0xf]
        %v2215 = vld [vmem:[%s2202 + $0x30] sm:$0xf]
        %v2216 = vld [vmem:[%s2202 + $0x34] sm:$0xf]
        %v2217 = vld [vmem:[%s2202 + $0x38] sm:$0xf]
        %v2218 = vld [vmem:[%s2202 + $0x3c] sm:$0xf]
        %v2219 = vld [vmem:[%s2202 + $0x40] sm:$0xf]
        %v2220 = vld [vmem:[%s2202 + $0x44] sm:$0xf]
        %v2221 = vld [vmem:[%s2202 + $0x48] sm:$0xf]
        %v2222 = vld [vmem:[%s2202 + $0x4c] sm:$0xf]
        %v2223 = vld [vmem:[%s2202 + $0x50] sm:$0xf]
        %v2224 = vld [vmem:[%s2202 + $0x54] sm:$0xf]
        %v2225 = vld [vmem:[%s2202 + $0x58] sm:$0xf]
        %v2226 = vld [vmem:[%s2202 + $0x5c] sm:$0xf]
        %v2227 = vld [vmem:[%s2202 + $0x60] sm:$0xf]
        %v2228 = vld [vmem:[%s2202 + $0x64] sm:$0xf]
        %v2229 = vld [vmem:[%s2202 + $0x68] sm:$0xf]
        %v2230 = vld [vmem:[%s2202 + $0x6c] sm:$0xf]
        %v2231 = vld [vmem:[%s2202 + $0x70] sm:$0xf]
        %v2232 = vld [vmem:[%s2202 + $0x74] sm:$0xf]
        %v2233 = vld [vmem:[%s2202 + $0x78] sm:$0xf]
        %v2234 = vld [vmem:[%s2202 + $0x7c] sm:$0xf]
        %v2267 = vunpack.c.l.b16 %v2203
        %v2268 = vunpack.c.l.b16 %v2204
        %v2269 = vunpack.c.l.b16 %v2205
        %v2270 = vunpack.c.l.b16 %v2206
        %v2271 = vunpack.c.l.b16 %v2207
        %v2272 = vunpack.c.l.b16 %v2208
        %v2273 = vunpack.c.l.b16 %v2209
        %v2274 = vunpack.c.l.b16 %v2210
        %v2275 = vunpack.c.l.b16 %v2211
        %v2276 = vunpack.c.l.b16 %v2212
        %v2277 = vunpack.c.l.b16 %v2213
        %v2278 = vunpack.c.l.b16 %v2214
        %v2279 = vunpack.c.l.b16 %v2215
        %v2280 = vunpack.c.l.b16 %v2216
        %v2281 = vunpack.c.l.b16 %v2217
        %v2282 = vunpack.c.l.b16 %v2218
        %v2283 = vunpack.c.l.b16 %v2219
        %v2284 = vunpack.c.l.b16 %v2220
        %v2285 = vunpack.c.l.b16 %v2221
        %v2286 = vunpack.c.l.b16 %v2222
        %v2287 = vunpack.c.l.b16 %v2223
        %v2288 = vunpack.c.l.b16 %v2224
        %v2289 = vunpack.c.l.b16 %v2225
        %v2290 = vunpack.c.l.b16 %v2226
        %v2291 = vunpack.c.l.b16 %v2227
        %v2292 = vunpack.c.l.b16 %v2228
        %v2293 = vunpack.c.l.b16 %v2229
        %v2294 = vunpack.c.l.b16 %v2230
        %v2295 = vunpack.c.l.b16 %v2231
        %v2296 = vunpack.c.l.b16 %v2232
        %v2297 = vunpack.c.l.b16 %v2233
        %v2298 = vunpack.c.l.b16 %v2234
        %v2299 = vpack.c.b16 %v2268, %v2267
        %v2300 = vpack.c.b16 %v2270, %v2269
        %v2301 = vpack.c.b16 %v2272, %v2271
        %v2302 = vpack.c.b16 %v2274, %v2273
        %v2303 = vpack.c.b16 %v2276, %v2275
        %v2304 = vpack.c.b16 %v2278, %v2277
        %v2305 = vpack.c.b16 %v2280, %v2279
        %v2306 = vpack.c.b16 %v2282, %v2281
        %v2307 = vpack.c.b16 %v2284, %v2283
        %v2308 = vpack.c.b16 %v2286, %v2285
        %v2309 = vpack.c.b16 %v2288, %v2287
        %v2310 = vpack.c.b16 %v2290, %v2289
        %v2311 = vpack.c.b16 %v2292, %v2291
        %v2312 = vpack.c.b16 %v2294, %v2293
        %v2313 = vpack.c.b16 %v2296, %v2295
        %v2314 = vpack.c.b16 %v2298, %v2297
        %2331 = vmatprep.subr.bf16.mxu0 0
        %2332 = vmatpush1.bf16.msra.mxu0 %v2299
        %2333 = vmatprep.subr.bf16.mxu0 0
        %2334 = vmatpush1.bf16.msra.mxu0 %v2300
        %2335 = vmatprep.subr.bf16.mxu0 0
        %2336 = vmatpush1.bf16.msra.mxu0 %v2301
        %2337 = vmatprep.subr.bf16.mxu0 0
        %2338 = vmatpush1.bf16.msra.mxu0 %v2302
        %2339 = vmatprep.subr.bf16.mxu0 0
        %2340 = vmatpush1.bf16.msra.mxu0 %v2303
        %2341 = vmatprep.subr.bf16.mxu0 0
        %2342 = vmatpush1.bf16.msra.mxu0 %v2304
        %2343 = vmatprep.subr.bf16.mxu0 0
        %2344 = vmatpush1.bf16.msra.mxu0 %v2305
        %2345 = vmatprep.subr.bf16.mxu0 0
        %2346 = vmatpush1.bf16.msra.mxu0 %v2306
        %2347 = vmatprep.subr.bf16.mxu0 0
        %2348 = vmatpush1.bf16.msra.mxu0 %v2307
        %2349 = vmatprep.subr.bf16.mxu0 0
        %2350 = vmatpush1.bf16.msra.mxu0 %v2308
        %2351 = vmatprep.subr.bf16.mxu0 0
        %2352 = vmatpush1.bf16.msra.mxu0 %v2309
        %2353 = vmatprep.subr.bf16.mxu0 0
        %2354 = vmatpush1.bf16.msra.mxu0 %v2310
        %2355 = vmatprep.subr.bf16.mxu0 0
        %2356 = vmatpush1.bf16.msra.mxu0 %v2311
        %2357 = vmatprep.subr.bf16.mxu0 0
        %2358 = vmatpush1.bf16.msra.mxu0 %v2312
        %2359 = vmatprep.subr.bf16.mxu0 0
        %2360 = vmatpush1.bf16.msra.mxu0 %v2313
        %2361 = vmatprep.subr.bf16.mxu0 0
        %2362 = vmatpush1.bf16.msra.mxu0 %v2314
        %2363 = vmatprep.mubr.bf16.mxu0 %v2201
        %2364 = vmatmul.mubr.bf16.gmra.mrb[0].mxu0 %v2200
        %v2365 = vpop.f32.mrb[0].mxu0
        %v2366 = vadd.f32 0.0, %v2365
        %v2367 = vpop.f32.mrb[0].mxu0
        %v2368 = vpop.f32.mrb[0].mxu0
        %v2369 = vpop.f32.mrb[0].mxu0
        %2370 = vdwg.mxu0
        %v2403 = vunpack.c.l.b16 %v2122
        %v2404 = vunpack.c.l.b16 %v2123
        %v2405 = vunpack.c.l.b16 %v2124
        %v2406 = vunpack.c.l.b16 %v2125
        %v2407 = vunpack.c.l.b16 %v2126
        %v2408 = vunpack.c.l.b16 %v2127
        %v2409 = vunpack.c.l.b16 %v2128
        %v2410 = vunpack.c.l.b16 %v2129
        %v2411 = vunpack.c.l.b16 %v2130
        %v2412 = vunpack.c.l.b16 %v2131
        %v2413 = vunpack.c.l.b16 %v2132
        %v2414 = vunpack.c.l.b16 %v2133
        %v2415 = vunpack.c.l.b16 %v2134
        %v2416 = vunpack.c.l.b16 %v2135
        %v2417 = vunpack.c.l.b16 %v2136
        %v2418 = vunpack.c.l.b16 %v2137
        %v2419 = vunpack.c.l.b16 %v2138
        %v2420 = vunpack.c.l.b16 %v2139
        %v2421 = vunpack.c.l.b16 %v2140
        %v2422 = vunpack.c.l.b16 %v2141
        %v2423 = vunpack.c.l.b16 %v2142
        %v2424 = vunpack.c.l.b16 %v2143
        %v2425 = vunpack.c.l.b16 %v2144
        %v2426 = vunpack.c.l.b16 %v2145
        %v2427 = vunpack.c.l.b16 %v2146
        %v2428 = vunpack.c.l.b16 %v2147
        %v2429 = vunpack.c.l.b16 %v2148
        %v2430 = vunpack.c.l.b16 %v2149
        %v2431 = vunpack.c.l.b16 %v2150
        %v2432 = vunpack.c.l.b16 %v2151
        %v2433 = vunpack.c.l.b16 %v2152
        %v2434 = vunpack.c.l.b16 %v2153
        %v2435 = vpack.c.b16 %v2404, %v2403
        %v2436 = vpack.c.b16 %v2406, %v2405
        %v2437 = vpack.c.b16 %v2408, %v2407
        %v2438 = vpack.c.b16 %v2410, %v2409
        %v2439 = vpack.c.b16 %v2412, %v2411
        %v2440 = vpack.c.b16 %v2414, %v2413
        %v2441 = vpack.c.b16 %v2416, %v2415
        %v2442 = vpack.c.b16 %v2418, %v2417
        %v2443 = vpack.c.b16 %v2420, %v2419
        %v2444 = vpack.c.b16 %v2422, %v2421
        %v2445 = vpack.c.b16 %v2424, %v2423
        %v2446 = vpack.c.b16 %v2426, %v2425
        %v2447 = vpack.c.b16 %v2428, %v2427
        %v2448 = vpack.c.b16 %v2430, %v2429
        %v2449 = vpack.c.b16 %v2432, %v2431
        %v2450 = vpack.c.b16 %v2434, %v2433
        %2467 = vmatprep.subr.bf16.mxu0 0
        %2468 = vmatpush1.bf16.msra.mxu0 %v2435
        %2469 = vmatprep.subr.bf16.mxu0 0
        %2470 = vmatpush1.bf16.msra.mxu0 %v2436
        %2471 = vmatprep.subr.bf16.mxu0 0
        %2472 = vmatpush1.bf16.msra.mxu0 %v2437
        %2473 = vmatprep.subr.bf16.mxu0 0
        %2474 = vmatpush1.bf16.msra.mxu0 %v2438
        %2475 = vmatprep.subr.bf16.mxu0 0
        %2476 = vmatpush1.bf16.msra.mxu0 %v2439
        %2477 = vmatprep.subr.bf16.mxu0 0
        %2478 = vmatpush1.bf16.msra.mxu0 %v2440
        %2479 = vmatprep.subr.bf16.mxu0 0
        %2480 = vmatpush1.bf16.msra.mxu0 %v2441
        %2481 = vmatprep.subr.bf16.mxu0 0
        %2482 = vmatpush1.bf16.msra.mxu0 %v2442
        %2483 = vmatprep.subr.bf16.mxu0 0
        %2484 = vmatpush1.bf16.msra.mxu0 %v2443
        %2485 = vmatprep.subr.bf16.mxu0 0
        %2486 = vmatpush1.bf16.msra.mxu0 %v2444
        %2487 = vmatprep.subr.bf16.mxu0 0
        %2488 = vmatpush1.bf16.msra.mxu0 %v2445
        %2489 = vmatprep.subr.bf16.mxu0 0
        %2490 = vmatpush1.bf16.msra.mxu0 %v2446
        %2491 = vmatprep.subr.bf16.mxu0 0
        %2492 = vmatpush1.bf16.msra.mxu0 %v2447
        %2493 = vmatprep.subr.bf16.mxu0 0
        %2494 = vmatpush1.bf16.msra.mxu0 %v2448
        %2495 = vmatprep.subr.bf16.mxu0 0
        %2496 = vmatpush1.bf16.msra.mxu0 %v2449
        %2497 = vmatprep.subr.bf16.mxu0 0
        %2498 = vmatpush1.bf16.msra.mxu0 %v2450
        %2499 = vmatprep.mubr.bf16.mxu0 %v2121
        %2500 = vmatmul.mubr.bf16.gmra.mrb[0].mxu0 %v2120
        %v2501 = vpop.f32.mrb[0].mxu0
        %v2502 = vadd.f32 %v2366, %v2501
        %v2503 = vpop.f32.mrb[0].mxu0
        %v2504 = vpop.f32.mrb[0].mxu0
        %v2505 = vpop.f32.mrb[0].mxu0
        %2506 = vdwg.mxu0
        %s2507 = scalar_lea.vmem %s4, 4
        %v2508 = vld [vmem:[%s2507] sm:$0x3]
        %v2510 = vsel %vm2068, %v2508, 0
        %2512 = vmatprep.subr.bf16.mxu0 %v2077
        %2513 = vmatpush1.bf16.msra.mxu0 %v2074
        %2514 = vmatprep.subr.bf16.mxu0 0
        %2515 = vmatpush1.bf16.msra.mxu0 0
        %2516 = vmatprep.subr.bf16.mxu0 0
        %2517 = vmatpush1.bf16.msra.mxu0 0
        %2518 = vmatprep.subr.bf16.mxu0 0
        %2519 = vmatpush1.bf16.msra.mxu0 0
        %2520 = vmatprep.subr.bf16.mxu0 0
        %2521 = vmatpush1.bf16.msra.mxu0 0
        %2522 = vmatprep.subr.bf16.mxu0 0
        %2523 = vmatpush1.bf16.msra.mxu0 0
        %2524 = vmatprep.subr.bf16.mxu0 0
        %2525 = vmatpush1.bf16.msra.mxu0 0
        %2526 = vmatprep.subr.bf16.mxu0 0
        %2527 = vmatpush1.bf16.msra.mxu0 0
        %2528 = vmatprep.subr.bf16.mxu0 0
        %2529 = vmatpush1.bf16.msra.mxu0 0
        %2530 = vmatprep.subr.bf16.mxu0 0
        %2531 = vmatpush1.bf16.msra.mxu0 0
        %2532 = vmatprep.subr.bf16.mxu0 0
        %2533 = vmatpush1.bf16.msra.mxu0 0
        %2534 = vmatprep.subr.bf16.mxu0 0
        %2535 = vmatpush1.bf16.msra.mxu0 0
        %2536 = vmatprep.subr.bf16.mxu0 0
        %2537 = vmatpush1.bf16.msra.mxu0 0
        %2538 = vmatprep.subr.bf16.mxu0 0
        %2539 = vmatpush1.bf16.msra.mxu0 0
        %2540 = vmatprep.subr.bf16.mxu0 0
        %2541 = vmatpush1.bf16.msra.mxu0 0
        %2542 = vmatprep.subr.bf16.mxu0 0
        %2543 = vmatpush1.bf16.msra.mxu0 0
        %2544 = vmatprep.mubr.bf16.mxu0 0
        %2545 = vmatmul.mubr.bf16.gmra.mrb[0].mxu0 %v2510
        %v2546 = vpop.f32.mrb[0].mxu0
        %v2547 = vadd.f32 0.0, %v2546
        %v2548 = vpop.f32.mrb[0].mxu0
        %v2549 = vadd.f32 0.0, %v2548
        %v2550 = vpop.f32.mrb[0].mxu0
        %v2551 = vpop.f32.mrb[0].mxu0
        %2552 = vdwg.mxu0
        %v2553 = vpack.c.bf16 %v2547, %v2547
        %v2554 = vpack.c.bf16 %v2549, %v2549
        %s2555 = scalar_lea.vmem [#allocation4], 256
        %v2556 = vld [vmem:[%s2555] sm:$0xf]
        %v2557 = vld [vmem:[%s2555 + $0x4] sm:$0xf]
        %v2558 = vld [vmem:[%s2555 + $0x8] sm:$0xf]
        %v2559 = vld [vmem:[%s2555 + $0xc] sm:$0xf]
        %v2560 = vld [vmem:[%s2555 + $0x10] sm:$0xf]
        %v2561 = vld [vmem:[%s2555 + $0x14] sm:$0xf]
        %v2562 = vld [vmem:[%s2555 + $0x18] sm:$0xf]
        %v2563 = vld [vmem:[%s2555 + $0x1c] sm:$0xf]
        %v2564 = vld [vmem:[%s2555 + $0x20] sm:$0xf]
        %v2565 = vld [vmem:[%s2555 + $0x24] sm:$0xf]
        %v2566 = vld [vmem:[%s2555 + $0x28] sm:$0xf]
        %v2567 = vld [vmem:[%s2555 + $0x2c] sm:$0xf]
        %v2568 = vld [vmem:[%s2555 + $0x30] sm:$0xf]
        %v2569 = vld [vmem:[%s2555 + $0x34] sm:$0xf]
        %v2570 = vld [vmem:[%s2555 + $0x38] sm:$0xf]
        %v2571 = vld [vmem:[%s2555 + $0x3c] sm:$0xf]
        %v2572 = vld [vmem:[%s2555 + $0x40] sm:$0xf]
        %v2573 = vld [vmem:[%s2555 + $0x44] sm:$0xf]
        %v2574 = vld [vmem:[%s2555 + $0x48] sm:$0xf]
        %v2575 = vld [vmem:[%s2555 + $0x4c] sm:$0xf]
        %v2576 = vld [vmem:[%s2555 + $0x50] sm:$0xf]
        %v2577 = vld [vmem:[%s2555 + $0x54] sm:$0xf]
        %v2578 = vld [vmem:[%s2555 + $0x58] sm:$0xf]
        %v2579 = vld [vmem:[%s2555 + $0x5c] sm:$0xf]
        %v2580 = vld [vmem:[%s2555 + $0x60] sm:$0xf]
        %v2581 = vld [vmem:[%s2555 + $0x64] sm:$0xf]
        %v2582 = vld [vmem:[%s2555 + $0x68] sm:$0xf]
        %v2583 = vld [vmem:[%s2555 + $0x6c] sm:$0xf]
        %v2584 = vld [vmem:[%s2555 + $0x70] sm:$0xf]
        %v2585 = vld [vmem:[%s2555 + $0x74] sm:$0xf]
        %v2586 = vld [vmem:[%s2555 + $0x78] sm:$0xf]
        %v2587 = vld [vmem:[%s2555 + $0x7c] sm:$0xf]
        %v2620 = vunpack.c.l.b16 %v2556
        %v2621 = vunpack.c.l.b16 %v2557
        %v2622 = vunpack.c.l.b16 %v2558
        %v2623 = vunpack.c.l.b16 %v2559
        %v2624 = vunpack.c.l.b16 %v2560
        %v2625 = vunpack.c.l.b16 %v2561
        %v2626 = vunpack.c.l.b16 %v2562
        %v2627 = vunpack.c.l.b16 %v2563
        %v2628 = vunpack.c.l.b16 %v2564
        %v2629 = vunpack.c.l.b16 %v2565
        %v2630 = vunpack.c.l.b16 %v2566
        %v2631 = vunpack.c.l.b16 %v2567
        %v2632 = vunpack.c.l.b16 %v2568
        %v2633 = vunpack.c.l.b16 %v2569
        %v2634 = vunpack.c.l.b16 %v2570
        %v2635 = vunpack.c.l.b16 %v2571
        %v2636 = vunpack.c.l.b16 %v2572
        %v2637 = vunpack.c.l.b16 %v2573
        %v2638 = vunpack.c.l.b16 %v2574
        %v2639 = vunpack.c.l.b16 %v2575
        %v2640 = vunpack.c.l.b16 %v2576
        %v2641 = vunpack.c.l.b16 %v2577
        %v2642 = vunpack.c.l.b16 %v2578
        %v2643 = vunpack.c.l.b16 %v2579
        %v2644 = vunpack.c.l.b16 %v2580
        %v2645 = vunpack.c.l.b16 %v2581
        %v2646 = vunpack.c.l.b16 %v2582
        %v2647 = vunpack.c.l.b16 %v2583
        %v2648 = vunpack.c.l.b16 %v2584
        %v2649 = vunpack.c.l.b16 %v2585
        %v2650 = vunpack.c.l.b16 %v2586
        %v2651 = vunpack.c.l.b16 %v2587
        %v2652 = vpack.c.b16 %v2621, %v2620
        %v2653 = vpack.c.b16 %v2623, %v2622
        %v2654 = vpack.c.b16 %v2625, %v2624
        %v2655 = vpack.c.b16 %v2627, %v2626
        %v2656 = vpack.c.b16 %v2629, %v2628
        %v2657 = vpack.c.b16 %v2631, %v2630
        %v2658 = vpack.c.b16 %v2633, %v2632
        %v2659 = vpack.c.b16 %v2635, %v2634
        %v2660 = vpack.c.b16 %v2637, %v2636
        %v2661 = vpack.c.b16 %v2639, %v2638
        %v2662 = vpack.c.b16 %v2641, %v2640
        %v2663 = vpack.c.b16 %v2643, %v2642
        %v2664 = vpack.c.b16 %v2645, %v2644
        %v2665 = vpack.c.b16 %v2647, %v2646
        %v2666 = vpack.c.b16 %v2649, %v2648
        %v2667 = vpack.c.b16 %v2651, %v2650
        %2684 = vmatprep.subr.bf16.mxu0 0
        %2685 = vmatpush1.bf16.msra.mxu0 %v2652
        %2686 = vmatprep.subr.bf16.mxu0 0
        %2687 = vmatpush1.bf16.msra.mxu0 %v2653
        %2688 = vmatprep.subr.bf16.mxu0 0
        %2689 = vmatpush1.bf16.msra.mxu0 %v2654
        %2690 = vmatprep.subr.bf16.mxu0 0
        %2691 = vmatpush1.bf16.msra.mxu0 %v2655
        %2692 = vmatprep.subr.bf16.mxu0 0
        %2693 = vmatpush1.bf16.msra.mxu0 %v2656
        %2694 = vmatprep.subr.bf16.mxu0 0
        %2695 = vmatpush1.bf16.msra.mxu0 %v2657
        %2696 = vmatprep.subr.bf16.mxu0 0
        %2697 = vmatpush1.bf16.msra.mxu0 %v2658
        %2698 = vmatprep.subr.bf16.mxu0 0
        %2699 = vmatpush1.bf16.msra.mxu0 %v2659
        %2700 = vmatprep.subr.bf16.mxu0 0
        %2701 = vmatpush1.bf16.msra.mxu0 %v2660
        %2702 = vmatprep.subr.bf16.mxu0 0
        %2703 = vmatpush1.bf16.msra.mxu0 %v2661
        %2704 = vmatprep.subr.bf16.mxu0 0
        %2705 = vmatpush1.bf16.msra.mxu0 %v2662
        %2706 = vmatprep.subr.bf16.mxu0 0
        %2707 = vmatpush1.bf16.msra.mxu0 %v2663
        %2708 = vmatprep.subr.bf16.mxu0 0
        %2709 = vmatpush1.bf16.msra.mxu0 %v2664
        %2710 = vmatprep.subr.bf16.mxu0 0
        %2711 = vmatpush1.bf16.msra.mxu0 %v2665
        %2712 = vmatprep.subr.bf16.mxu0 0
        %2713 = vmatpush1.bf16.msra.mxu0 %v2666
        %2714 = vmatprep.subr.bf16.mxu0 0
        %2715 = vmatpush1.bf16.msra.mxu0 %v2667
        %2716 = vmatprep.mubr.bf16.mxu0 %v2554
        %2717 = vmatmul.mubr.bf16.gmra.mrb[0].mxu0 %v2553
        %v2718 = vpop.f32.mrb[0].mxu0
        %v2719 = vadd.f32 0.0, %v2718
        %v2720 = vpop.f32.mrb[0].mxu0
        %v2721 = vpop.f32.mrb[0].mxu0
        %v2722 = vpop.f32.mrb[0].mxu0
        %2723 = vdwg.mxu0
        %v2724 = vadd.f32 %v2502, %v2719
        %v2725 = vld [vmem:[%s6] sm:$0x1]
        %v2727 = vlaneseq
        %v2728 = vshrl.u32 %v2727, 7
        %v2729 = vsub.s32 0, %v2728
        %v2730 = vrot.slane %v2725, %v2729
        %v2732 = vadd.f32 %v2724, %v2730
        %v2733 = vmax.f32 %v2732, 0.0
        %v2734 = vpack.c.bf16 %v2733, %v2733
        %v2735 = vld [vmem:[%s7] sm:$0x3]
        %vm2736 = vcmask 31744
        %v2738 = vsel %vm2736, %v2735, 0
        %vm2740 = vcmask 1041408
        %v2742 = vsel %vm2740, %v2734, 0
        %2744 = vmatprep.subr.bf16.mxu0 0
        %2745 = vmatpush1.bf16.msra.mxu0 %v2742
        %2746 = vmatprep.subr.bf16.mxu0 0
        %2747 = vmatpush1.bf16.msra.mxu0 0
        %2748 = vmatprep.subr.bf16.mxu0 0
        %2749 = vmatpush1.bf16.msra.mxu0 0
        %2750 = vmatprep.subr.bf16.mxu0 0
        %2751 = vmatpush1.bf16.msra.mxu0 0
        %2752 = vmatprep.subr.bf16.mxu0 0
        %2753 = vmatpush1.bf16.msra.mxu0 0
        %2754 = vmatprep.subr.bf16.mxu0 0
        %2755 = vmatpush1.bf16.msra.mxu0 0
        %2756 = vmatprep.subr.bf16.mxu0 0
        %2757 = vmatpush1.bf16.msra.mxu0 0
        %2758 = vmatprep.subr.bf16.mxu0 0
        %2759 = vmatpush1.bf16.msra.mxu0 0
        %2760 = vmatprep.subr.bf16.mxu0 0
        %2761 = vmatpush1.bf16.msra.mxu0 0
        %2762 = vmatprep.subr.bf16.mxu0 0
        %2763 = vmatpush1.bf16.msra.mxu0 0
        %2764 = vmatprep.subr.bf16.mxu0 0
        %2765 = vmatpush1.bf16.msra.mxu0 0
        %2766 = vmatprep.subr.bf16.mxu0 0
        %2767 = vmatpush1.bf16.msra.mxu0 0
        %2768 = vmatprep.subr.bf16.mxu0 0
        %2769 = vmatpush1.bf16.msra.mxu0 0
        %2770 = vmatprep.subr.bf16.mxu0 0
        %2771 = vmatpush1.bf16.msra.mxu0 0
        %2772 = vmatprep.subr.bf16.mxu0 0
        %2773 = vmatpush1.bf16.msra.mxu0 0
        %2774 = vmatprep.subr.bf16.mxu0 0
        %2775 = vmatpush1.bf16.msra.mxu0 0
        %2776 = vmatprep.mubr.bf16.mxu0 0
        %2777 = vmatmul.mubr.bf16.gmra.mrb[0].mxu0 %v2738
        %v2778 = vpop.f32.mrb[0].mxu0
        %v2779 = vadd.f32 0.0, %v2778
        %v2780 = vpop.f32.mrb[0].mxu0
        %v2781 = vpop.f32.mrb[0].mxu0
        %v2782 = vpop.f32.mrb[0].mxu0
        %2783 = vdwg.mxu0
        %v2784 = vpack.c.bf16 %v2779, %v2779
        %v2785 = vld [vmem:[#allocation6] sm:$0xff]
        %v2786 = vld [vmem:[#allocation6 + $0x8] sm:$0xff]
        %v2787 = vld [vmem:[#allocation6 + $0x10] sm:$0xff]
        %v2788 = vld [vmem:[#allocation6 + $0x18] sm:$0xff]
        %v2789 = vld [vmem:[#allocation6 + $0x20] sm:$0xff]
        %v2790 = vld [vmem:[#allocation6 + $0x28] sm:$0xff]
        %v2791 = vld [vmem:[#allocation6 + $0x30] sm:$0xff]
        %v2792 = vld [vmem:[#allocation6 + $0x38] sm:$0xff]
        %v2793 = vld [vmem:[#allocation6 + $0x40] sm:$0xff]
        %v2794 = vld [vmem:[#allocation6 + $0x48] sm:$0xff]
        %v2795 = vld [vmem:[#allocation6 + $0x50] sm:$0xff]
        %v2796 = vld [vmem:[#allocation6 + $0x58] sm:$0xff]
        %v2797 = vld [vmem:[#allocation6 + $0x60] sm:$0xff]
        %v2798 = vld [vmem:[#allocation6 + $0x68] sm:$0xff]
        %v2799 = vld [vmem:[#allocation6 + $0x70] sm:$0xff]
        %v2800 = vld [vmem:[#allocation6 + $0x78] sm:$0xff]
        %s2801 = scalar_lea.vmem %s7, 2
        %v2802 = vld [vmem:[%s2801] sm:$0x3]
        %v2804 = vsel %vm2736, %v2802, 0
        %2806 = vmatprep.subr.bf16.mxu0 0
        %2807 = vmatpush1.bf16.msra.mxu0 %v2742
        %2808 = vmatprep.subr.bf16.mxu0 0
        %2809 = vmatpush1.bf16.msra.mxu0 0
        %2810 = vmatprep.subr.bf16.mxu0 0
        %2811 = vmatpush1.bf16.msra.mxu0 0
        %2812 = vmatprep.subr.bf16.mxu0 0
        %2813 = vmatpush1.bf16.msra.mxu0 0
        %2814 = vmatprep.subr.bf16.mxu0 0
        %2815 = vmatpush1.bf16.msra.mxu0 0
        %2816 = vmatprep.subr.bf16.mxu0 0
        %2817 = vmatpush1.bf16.msra.mxu0 0
        %2818 = vmatprep.subr.bf16.mxu0 0
        %2819 = vmatpush1.bf16.msra.mxu0 0
        %2820 = vmatprep.subr.bf16.mxu0 0
        %2821 = vmatpush1.bf16.msra.mxu0 0
        %2822 = vmatprep.subr.bf16.mxu0 0
        %2823 = vmatpush1.bf16.msra.mxu0 0
        %2824 = vmatprep.subr.bf16.mxu0 0
        %2825 = vmatpush1.bf16.msra.mxu0 0
        %2826 = vmatprep.subr.bf16.mxu0 0
        %2827 = vmatpush1.bf16.msra.mxu0 0
        %2828 = vmatprep.subr.bf16.mxu0 0
        %2829 = vmatpush1.bf16.msra.mxu0 0
        %2830 = vmatprep.subr.bf16.mxu0 0
        %2831 = vmatpush1.bf16.msra.mxu0 0
        %2832 = vmatprep.subr.bf16.mxu0 0
        %2833 = vmatpush1.bf16.msra.mxu0 0
        %2834 = vmatprep.subr.bf16.mxu0 0
        %2835 = vmatpush1.bf16.msra.mxu0 0
        %2836 = vmatprep.subr.bf16.mxu0 0
        %2837 = vmatpush1.bf16.msra.mxu0 0
        %2838 = vmatprep.mubr.bf16.mxu0 0
        %2839 = vmatmul.mubr.bf16.gmra.mrb[0].mxu0 %v2804
        %v2840 = vpop.f32.mrb[0].mxu0
        %v2841 = vadd.f32 0.0, %v2840
        %v2842 = vpop.f32.mrb[0].mxu0
        %v2843 = vpop.f32.mrb[0].mxu0
        %v2844 = vpop.f32.mrb[0].mxu0
        %2845 = vdwg.mxu0
        %v2846 = vpack.c.bf16 %v2841, %v2841
        %s2847 = scalar_lea.vmem [#allocation6], 128
        %v2848 = vld [vmem:[%s2847] sm:$0xff]
        %v2849 = vld [vmem:[%s2847 + $0x8] sm:$0xff]
        %v2850 = vld [vmem:[%s2847 + $0x10] sm:$0xff]
        %v2851 = vld [vmem:[%s2847 + $0x18] sm:$0xff]
        %v2852 = vld [vmem:[%s2847 + $0x20] sm:$0xff]
        %v2853 = vld [vmem:[%s2847 + $0x28] sm:$0xff]
        %v2854 = vld [vmem:[%s2847 + $0x30] sm:$0xff]
        %v2855 = vld [vmem:[%s2847 + $0x38] sm:$0xff]
        %v2856 = vld [vmem:[%s2847 + $0x40] sm:$0xff]
        %v2857 = vld [vmem:[%s2847 + $0x48] sm:$0xff]
        %v2858 = vld [vmem:[%s2847 + $0x50] sm:$0xff]
        %v2859 = vld [vmem:[%s2847 + $0x58] sm:$0xff]
        %v2860 = vld [vmem:[%s2847 + $0x60] sm:$0xff]
        %v2861 = vld [vmem:[%s2847 + $0x68] sm:$0xff]
        %v2862 = vld [vmem:[%s2847 + $0x70] sm:$0xff]
        %v2863 = vld [vmem:[%s2847 + $0x78] sm:$0xff]
        %v2880 = vunpack.c.l.b16 %v2848
        %v2881 = vunpack.c.h.b16 %v2848
        %v2882 = vunpack.c.l.b16 %v2849
        %v2883 = vunpack.c.h.b16 %v2849
        %v2884 = vunpack.c.l.b16 %v2850
        %v2885 = vunpack.c.h.b16 %v2850
        %v2886 = vunpack.c.l.b16 %v2851
        %v2887 = vunpack.c.h.b16 %v2851
        %v2888 = vunpack.c.l.b16 %v2852
        %v2889 = vunpack.c.h.b16 %v2852
        %v2890 = vunpack.c.l.b16 %v2853
        %v2891 = vunpack.c.h.b16 %v2853
        %v2892 = vunpack.c.l.b16 %v2854
        %v2893 = vunpack.c.h.b16 %v2854
        %v2894 = vunpack.c.l.b16 %v2855
        %v2895 = vunpack.c.h.b16 %v2855
        %v2896 = vunpack.c.l.b16 %v2856
        %v2897 = vunpack.c.h.b16 %v2856
        %v2898 = vunpack.c.l.b16 %v2857
        %v2899 = vunpack.c.h.b16 %v2857
        %v2900 = vunpack.c.l.b16 %v2858
        %v2901 = vunpack.c.h.b16 %v2858
        %v2902 = vunpack.c.l.b16 %v2859
        %v2903 = vunpack.c.h.b16 %v2859
        %v2904 = vunpack.c.l.b16 %v2860
        %v2905 = vunpack.c.h.b16 %v2860
        %v2906 = vunpack.c.l.b16 %v2861
        %v2907 = vunpack.c.h.b16 %v2861
        %v2908 = vunpack.c.l.b16 %v2862
        %v2909 = vunpack.c.h.b16 %v2862
        %v2910 = vunpack.c.l.b16 %v2863
        %v2911 = vunpack.c.h.b16 %v2863
        %v2912 = vpack.c.b16 %v2882, %v2880
        %v2913 = vpack.c.b16 %v2883, %v2881
        %v2914 = vpack.c.b16 %v2886, %v2884
        %v2915 = vpack.c.b16 %v2887, %v2885
        %v2916 = vpack.c.b16 %v2890, %v2888
        %v2917 = vpack.c.b16 %v2891, %v2889
        %v2918 = vpack.c.b16 %v2894, %v2892
        %v2919 = vpack.c.b16 %v2895, %v2893
        %v2920 = vpack.c.b16 %v2898, %v2896
        %v2921 = vpack.c.b16 %v2899, %v2897
        %v2922 = vpack.c.b16 %v2902, %v2900
        %v2923 = vpack.c.b16 %v2903, %v2901
        %v2924 = vpack.c.b16 %v2906, %v2904
        %v2925 = vpack.c.b16 %v2907, %v2905
        %v2926 = vpack.c.b16 %v2910, %v2908
        %v2927 = vpack.c.b16 %v2911, %v2909
        %2944 = vmatprep.subr.bf16.mxu0 %v2913
        %2945 = vmatpush1.bf16.msra.mxu0 %v2912
        %2946 = vmatprep.subr.bf16.mxu0 %v2915
        %2947 = vmatpush1.bf16.msra.mxu0 %v2914
        %2948 = vmatprep.subr.bf16.mxu0 %v2917
        %2949 = vmatpush1.bf16.msra.mxu0 %v2916
        %2950 = vmatprep.subr.bf16.mxu0 %v2919
        %2951 = vmatpush1.bf16.msra.mxu0 %v2918
        %2952 = vmatprep.subr.bf16.mxu0 %v2921
        %2953 = vmatpush1.bf16.msra.mxu0 %v2920
        %2954 = vmatprep.subr.bf16.mxu0 %v2923
        %2955 = vmatpush1.bf16.msra.mxu0 %v2922
        %2956 = vmatprep.subr.bf16.mxu0 %v2925
        %2957 = vmatpush1.bf16.msra.mxu0 %v2924
        %2958 = vmatprep.subr.bf16.mxu0 %v2927
        %2959 = vmatpush1.bf16.msra.mxu0 %v2926
        %2960 = vmatprep.subr.bf16.mxu0 0
        %2961 = vmatpush1.bf16.msra.mxu0 0
        %2962 = vmatprep.subr.bf16.mxu0 0
        %2963 = vmatpush1.bf16.msra.mxu0 0
        %2964 = vmatprep.subr.bf16.mxu0 0
        %2965 = vmatpush1.bf16.msra.mxu0 0
        %2966 = vmatprep.subr.bf16.mxu0 0
        %2967 = vmatpush1.bf16.msra.mxu0 0
        %2968 = vmatprep.subr.bf16.mxu0 0
        %2969 = vmatpush1.bf16.msra.mxu0 0
        %2970 = vmatprep.subr.bf16.mxu0 0
        %2971 = vmatpush1.bf16.msra.mxu0 0
        %2972 = vmatprep.subr.bf16.mxu0 0
        %2973 = vmatpush1.bf16.msra.mxu0 0
        %2974 = vmatprep.subr.bf16.mxu0 0
        %2975 = vmatpush1.bf16.msra.mxu0 0
        %2976 = vmatprep.mubr.bf16.mxu0 0
        %2977 = vmatmul.mubr.bf16.gmra.mrb[0].mxu0 %v2846
        %v2978 = vpop.f32.mrb[0].mxu0
        %v2979 = vadd.f32 0.0, %v2978
        %v2980 = vpop.f32.mrb[0].mxu0
        %v2981 = vadd.f32 0.0, %v2980
        %v2982 = vpop.f32.mrb[0].mxu0
        %v2983 = vpop.f32.mrb[0].mxu0
        %2984 = vdwg.mxu0
        %v3001 = vunpack.c.l.b16 %v2785
        %v3002 = vunpack.c.h.b16 %v2785
        %v3003 = vunpack.c.l.b16 %v2786
        %v3004 = vunpack.c.h.b16 %v2786
        %v3005 = vunpack.c.l.b16 %v2787
        %v3006 = vunpack.c.h.b16 %v2787
        %v3007 = vunpack.c.l.b16 %v2788
        %v3008 = vunpack.c.h.b16 %v2788
        %v3009 = vunpack.c.l.b16 %v2789
        %v3010 = vunpack.c.h.b16 %v2789
        %v3011 = vunpack.c.l.b16 %v2790
        %v3012 = vunpack.c.h.b16 %v2790
        %v3013 = vunpack.c.l.b16 %v2791
        %v3014 = vunpack.c.h.b16 %v2791
        %v3015 = vunpack.c.l.b16 %v2792
        %v3016 = vunpack.c.h.b16 %v2792
        %v3017 = vunpack.c.l.b16 %v2793
        %v3018 = vunpack.c.h.b16 %v2793
        %v3019 = vunpack.c.l.b16 %v2794
        %v3020 = vunpack.c.h.b16 %v2794
        %v3021 = vunpack.c.l.b16 %v2795
        %v3022 = vunpack.c.h.b16 %v2795
        %v3023 = vunpack.c.l.b16 %v2796
        %v3024 = vunpack.c.h.b16 %v2796
        %v3025 = vunpack.c.l.b16 %v2797
        %v3026 = vunpack.c.h.b16 %v2797
        %v3027 = vunpack.c.l.b16 %v2798
        %v3028 = vunpack.c.h.b16 %v2798
        %v3029 = vunpack.c.l.b16 %v2799
        %v3030 = vunpack.c.h.b16 %v2799
        %v3031 = vunpack.c.l.b16 %v2800
        %v3032 = vunpack.c.h.b16 %v2800
        %v3033 = vpack.c.b16 %v3003, %v3001
        %v3034 = vpack.c.b16 %v3004, %v3002
        %v3035 = vpack.c.b16 %v3007, %v3005
        %v3036 = vpack.c.b16 %v3008, %v3006
        %v3037 = vpack.c.b16 %v3011, %v3009
        %v3038 = vpack.c.b16 %v3012, %v3010
        %v3039 = vpack.c.b16 %v3015, %v3013
        %v3040 = vpack.c.b16 %v3016, %v3014
        %v3041 = vpack.c.b16 %v3019, %v3017
        %v3042 = vpack.c.b16 %v3020, %v3018
        %v3043 = vpack.c.b16 %v3023, %v3021
        %v3044 = vpack.c.b16 %v3024, %v3022
        %v3045 = vpack.c.b16 %v3027, %v3025
        %v3046 = vpack.c.b16 %v3028, %v3026
        %v3047 = vpack.c.b16 %v3031, %v3029
        %v3048 = vpack.c.b16 %v3032, %v3030
        %3065 = vmatprep.subr.bf16.mxu0 %v3034
        %3066 = vmatpush1.bf16.msra.mxu0 %v3033
        %3067 = vmatprep.subr.bf16.mxu0 %v3036
        %3068 = vmatpush1.bf16.msra.mxu0 %v3035
        %3069 = vmatprep.subr.bf16.mxu0 %v3038
        %3070 = vmatpush1.bf16.msra.mxu0 %v3037
        %3071 = vmatprep.subr.bf16.mxu0 %v3040
        %3072 = vmatpush1.bf16.msra.mxu0 %v3039
        %3073 = vmatprep.subr.bf16.mxu0 %v3042
        %3074 = vmatpush1.bf16.msra.mxu0 %v3041
        %3075 = vmatprep.subr.bf16.mxu0 %v3044
        %3076 = vmatpush1.bf16.msra.mxu0 %v3043
        %3077 = vmatprep.subr.bf16.mxu0 %v3046
        %3078 = vmatpush1.bf16.msra.mxu0 %v3045
        %3079 = vmatprep.subr.bf16.mxu0 %v3048
        %3080 = vmatpush1.bf16.msra.mxu0 %v3047
        %3081 = vmatprep.subr.bf16.mxu0 0
        %3082 = vmatpush1.bf16.msra.mxu0 0
        %3083 = vmatprep.subr.bf16.mxu0 0
        %3084 = vmatpush1.bf16.msra.mxu0 0
        %3085 = vmatprep.subr.bf16.mxu0 0
        %3086 = vmatpush1.bf16.msra.mxu0 0
        %3087 = vmatprep.subr.bf16.mxu0 0
        %3088 = vmatpush1.bf16.msra.mxu0 0
        %3089 = vmatprep.subr.bf16.mxu0 0
        %3090 = vmatpush1.bf16.msra.mxu0 0
        %3091 = vmatprep.subr.bf16.mxu0 0
        %3092 = vmatpush1.bf16.msra.mxu0 0
        %3093 = vmatprep.subr.bf16.mxu0 0
        %3094 = vmatpush1.bf16.msra.mxu0 0
        %3095 = vmatprep.subr.bf16.mxu0 0
        %3096 = vmatpush1.bf16.msra.mxu0 0
        %3097 = vmatprep.mubr.bf16.mxu0 0
        %3098 = vmatmul.mubr.bf16.gmra.mrb[0].mxu0 %v2784
        %v3099 = vpop.f32.mrb[0].mxu0
        %v3100 = vadd.f32 %v2979, %v3099
        %v3101 = vpop.f32.mrb[0].mxu0
        %v3102 = vadd.f32 %v2981, %v3101
        %v3103 = vpop.f32.mrb[0].mxu0
        %v3104 = vpop.f32.mrb[0].mxu0
        %3105 = vdwg.mxu0
        %s3106 = scalar_lea.vmem %s7, 4
        %v3107 = vld [vmem:[%s3106] sm:$0x3]
        %v3109 = vsel %vm2736, %v3107, 0
        %3111 = vmatprep.subr.bf16.mxu0 0
        %3112 = vmatpush1.bf16.msra.mxu0 %v2742
        %3113 = vmatprep.subr.bf16.mxu0 0
        %3114 = vmatpush1.bf16.msra.mxu0 0
        %3115 = vmatprep.subr.bf16.mxu0 0
        %3116 = vmatpush1.bf16.msra.mxu0 0
        %3117 = vmatprep.subr.bf16.mxu0 0
        %3118 = vmatpush1.bf16.msra.mxu0 0
        %3119 = vmatprep.subr.bf16.mxu0 0
        %3120 = vmatpush1.bf16.msra.mxu0 0
        %3121 = vmatprep.subr.bf16.mxu0 0
        %3122 = vmatpush1.bf16.msra.mxu0 0
        %3123 = vmatprep.subr.bf16.mxu0 0
        %3124 = vmatpush1.bf16.msra.mxu0 0
        %3125 = vmatprep.subr.bf16.mxu0 0
        %3126 = vmatpush1.bf16.msra.mxu0 0
        %3127 = vmatprep.subr.bf16.mxu0 0
        %3128 = vmatpush1.bf16.msra.mxu0 0
        %3129 = vmatprep.subr.bf16.mxu0 0
        %3130 = vmatpush1.bf16.msra.mxu0 0
        %3131 = vmatprep.subr.bf16.mxu0 0
        %3132 = vmatpush1.bf16.msra.mxu0 0
        %3133 = vmatprep.subr.bf16.mxu0 0
        %3134 = vmatpush1.bf16.msra.mxu0 0
        %3135 = vmatprep.subr.bf16.mxu0 0
        %3136 = vmatpush1.bf16.msra.mxu0 0
        %3137 = vmatprep.subr.bf16.mxu0 0
        %3138 = vmatpush1.bf16.msra.mxu0 0
        %3139 = vmatprep.subr.bf16.mxu0 0
        %3140 = vmatpush1.bf16.msra.mxu0 0
        %3141 = vmatprep.subr.bf16.mxu0 0
        %3142 = vmatpush1.bf16.msra.mxu0 0
        %3143 = vmatprep.mubr.bf16.mxu0 0
        %3144 = vmatmul.mubr.bf16.gmra.mrb[0].mxu0 %v3109
        %v3145 = vpop.f32.mrb[0].mxu0
        %v3146 = vadd.f32 0.0, %v3145
        %v3147 = vpop.f32.mrb[0].mxu0
        %v3148 = vpop.f32.mrb[0].mxu0
        %v3149 = vpop.f32.mrb[0].mxu0
        %3150 = vdwg.mxu0
        %v3151 = vpack.c.bf16 %v3146, %v3146
        %s3152 = scalar_lea.vmem [#allocation6], 256
        %v3153 = vld [vmem:[%s3152] sm:$0xff]
        %v3154 = vld [vmem:[%s3152 + $0x8] sm:$0xff]
        %v3155 = vld [vmem:[%s3152 + $0x10] sm:$0xff]
        %v3156 = vld [vmem:[%s3152 + $0x18] sm:$0xff]
        %v3157 = vld [vmem:[%s3152 + $0x20] sm:$0xff]
        %v3158 = vld [vmem:[%s3152 + $0x28] sm:$0xff]
        %v3159 = vld [vmem:[%s3152 + $0x30] sm:$0xff]
        %v3160 = vld [vmem:[%s3152 + $0x38] sm:$0xff]
        %v3161 = vld [vmem:[%s3152 + $0x40] sm:$0xff]
        %v3162 = vld [vmem:[%s3152 + $0x48] sm:$0xff]
        %v3163 = vld [vmem:[%s3152 + $0x50] sm:$0xff]
        %v3164 = vld [vmem:[%s3152 + $0x58] sm:$0xff]
        %v3165 = vld [vmem:[%s3152 + $0x60] sm:$0xff]
        %v3166 = vld [vmem:[%s3152 + $0x68] sm:$0xff]
        %v3167 = vld [vmem:[%s3152 + $0x70] sm:$0xff]
        %v3168 = vld [vmem:[%s3152 + $0x78] sm:$0xff]
        %v3185 = vunpack.c.l.b16 %v3153
        %v3186 = vunpack.c.h.b16 %v3153
        %v3187 = vunpack.c.l.b16 %v3154
        %v3188 = vunpack.c.h.b16 %v3154
        %v3189 = vunpack.c.l.b16 %v3155
        %v3190 = vunpack.c.h.b16 %v3155
        %v3191 = vunpack.c.l.b16 %v3156
        %v3192 = vunpack.c.h.b16 %v3156
        %v3193 = vunpack.c.l.b16 %v3157
        %v3194 = vunpack.c.h.b16 %v3157
        %v3195 = vunpack.c.l.b16 %v3158
        %v3196 = vunpack.c.h.b16 %v3158
        %v3197 = vunpack.c.l.b16 %v3159
        %v3198 = vunpack.c.h.b16 %v3159
        %v3199 = vunpack.c.l.b16 %v3160
        %v3200 = vunpack.c.h.b16 %v3160
        %v3201 = vunpack.c.l.b16 %v3161
        %v3202 = vunpack.c.h.b16 %v3161
        %v3203 = vunpack.c.l.b16 %v3162
        %v3204 = vunpack.c.h.b16 %v3162
        %v3205 = vunpack.c.l.b16 %v3163
        %v3206 = vunpack.c.h.b16 %v3163
        %v3207 = vunpack.c.l.b16 %v3164
        %v3208 = vunpack.c.h.b16 %v3164
        %v3209 = vunpack.c.l.b16 %v3165
        %v3210 = vunpack.c.h.b16 %v3165
        %v3211 = vunpack.c.l.b16 %v3166
        %v3212 = vunpack.c.h.b16 %v3166
        %v3213 = vunpack.c.l.b16 %v3167
        %v3214 = vunpack.c.h.b16 %v3167
        %v3215 = vunpack.c.l.b16 %v3168
        %v3216 = vunpack.c.h.b16 %v3168
        %v3217 = vpack.c.b16 %v3187, %v3185
        %v3218 = vpack.c.b16 %v3188, %v3186
        %v3219 = vpack.c.b16 %v3191, %v3189
        %v3220 = vpack.c.b16 %v3192, %v3190
        %v3221 = vpack.c.b16 %v3195, %v3193
        %v3222 = vpack.c.b16 %v3196, %v3194
        %v3223 = vpack.c.b16 %v3199, %v3197
        %v3224 = vpack.c.b16 %v3200, %v3198
        %v3225 = vpack.c.b16 %v3203, %v3201
        %v3226 = vpack.c.b16 %v3204, %v3202
        %v3227 = vpack.c.b16 %v3207, %v3205
        %v3228 = vpack.c.b16 %v3208, %v3206
        %v3229 = vpack.c.b16 %v3211, %v3209
        %v3230 = vpack.c.b16 %v3212, %v3210
        %v3231 = vpack.c.b16 %v3215, %v3213
        %v3232 = vpack.c.b16 %v3216, %v3214
        %3249 = vmatprep.subr.bf16.mxu0 %v3218
        %3250 = vmatpush1.bf16.msra.mxu0 %v3217
        %3251 = vmatprep.subr.bf16.mxu0 %v3220
        %3252 = vmatpush1.bf16.msra.mxu0 %v3219
        %3253 = vmatprep.subr.bf16.mxu0 %v3222
        %3254 = vmatpush1.bf16.msra.mxu0 %v3221
        %3255 = vmatprep.subr.bf16.mxu0 %v3224
        %3256 = vmatpush1.bf16.msra.mxu0 %v3223
        %3257 = vmatprep.subr.bf16.mxu0 %v3226
        %3258 = vmatpush1.bf16.msra.mxu0 %v3225
        %3259 = vmatprep.subr.bf16.mxu0 %v3228
        %3260 = vmatpush1.bf16.msra.mxu0 %v3227
        %3261 = vmatprep.subr.bf16.mxu0 %v3230
        %3262 = vmatpush1.bf16.msra.mxu0 %v3229
        %3263 = vmatprep.subr.bf16.mxu0 %v3232
        %3264 = vmatpush1.bf16.msra.mxu0 %v3231
        %3265 = vmatprep.subr.bf16.mxu0 0
        %3266 = vmatpush1.bf16.msra.mxu0 0
        %3267 = vmatprep.subr.bf16.mxu0 0
        %3268 = vmatpush1.bf16.msra.mxu0 0
        %3269 = vmatprep.subr.bf16.mxu0 0
        %3270 = vmatpush1.bf16.msra.mxu0 0
        %3271 = vmatprep.subr.bf16.mxu0 0
        %3272 = vmatpush1.bf16.msra.mxu0 0
        %3273 = vmatprep.subr.bf16.mxu0 0
        %3274 = vmatpush1.bf16.msra.mxu0 0
        %3275 = vmatprep.subr.bf16.mxu0 0
        %3276 = vmatpush1.bf16.msra.mxu0 0
        %3277 = vmatprep.subr.bf16.mxu0 0
        %3278 = vmatpush1.bf16.msra.mxu0 0
        %3279 = vmatprep.subr.bf16.mxu0 0
        %3280 = vmatpush1.bf16.msra.mxu0 0
        %3281 = vmatprep.mubr.bf16.mxu0 0
        %3282 = vmatmul.mubr.bf16.gmra.mrb[0].mxu0 %v3151
        %v3283 = vpop.f32.mrb[0].mxu0
        %v3284 = vadd.f32 0.0, %v3283
        %v3285 = vpop.f32.mrb[0].mxu0
        %v3286 = vadd.f32 0.0, %v3285
        %v3287 = vpop.f32.mrb[0].mxu0
        %v3288 = vpop.f32.mrb[0].mxu0
        %3289 = vdwg.mxu0
        %v3290 = vadd.f32 %v3100, %v3284
        %v3291 = vadd.f32 %v3102, %v3286
        %v3292 = vld [vmem:[%s9] sm:$0x3]
        %v3294 = vlaneseq
        %v3295 = vshrl.u32 %v3294, 7
        %v3296 = vsub.s32 0, %v3295
        %v3297 = vrot.slane %v3292, %v3296
        %v3298 = vlaneseq
        %v3299 = vshrl.u32 %v3298, 7
        %v3300 = vsub.s32 1, %v3299
        %v3301 = vrot.slane %v3292, %v3300
        %v3304 = vadd.f32 %v3290, %v3297
        %v3305 = vadd.f32 %v3291, %v3301
        %v3306 = vmax.f32 %v3304, 0.0
        %v3307 = vmax.f32 %v3305, 0.0
        %v3308 = vpack.c.bf16 %v3306, %v3306
        %v3309 = vpack.c.bf16 %v3307, %v3307
        %v3310 = vld [vmem:[%s10] sm:$0x1]
        %v3312 = vsel %vm2736, %v3310, 0
        %v3315 = vsel %vm2740, %v3308, 0
        %v3318 = vsel %vm2740, %v3309, 0
        %3320 = vmatprep.subr.bf16.mxu0 %v3318
        %3321 = vmatpush1.bf16.msra.mxu0 %v3315
        %3322 = vmatprep.subr.bf16.mxu0 0
        %3323 = vmatpush1.bf16.msra.mxu0 0
        %3324 = vmatprep.subr.bf16.mxu0 0
        %3325 = vmatpush1.bf16.msra.mxu0 0
        %3326 = vmatprep.subr.bf16.mxu0 0
        %3327 = vmatpush1.bf16.msra.mxu0 0
        %3328 = vmatprep.subr.bf16.mxu0 0
        %3329 = vmatpush1.bf16.msra.mxu0 0
        %3330 = vmatprep.subr.bf16.mxu0 0
        %3331 = vmatpush1.bf16.msra.mxu0 0
        %3332 = vmatprep.subr.bf16.mxu0 0
        %3333 = vmatpush1.bf16.msra.mxu0 0
        %3334 = vmatprep.subr.bf16.mxu0 0
        %3335 = vmatpush1.bf16.msra.mxu0 0
        %3336 = vmatprep.subr.bf16.mxu0 0
        %3337 = vmatpush1.bf16.msra.mxu0 0
        %3338 = vmatprep.subr.bf16.mxu0 0
        %3339 = vmatpush1.bf16.msra.mxu0 0
        %3340 = vmatprep.subr.bf16.mxu0 0
        %3341 = vmatpush1.bf16.msra.mxu0 0
        %3342 = vmatprep.subr.bf16.mxu0 0
        %3343 = vmatpush1.bf16.msra.mxu0 0
        %3344 = vmatprep.subr.bf16.mxu0 0
        %3345 = vmatpush1.bf16.msra.mxu0 0
        %3346 = vmatprep.subr.bf16.mxu0 0
        %3347 = vmatpush1.bf16.msra.mxu0 0
        %3348 = vmatprep.subr.bf16.mxu0 0
        %3349 = vmatpush1.bf16.msra.mxu0 0
        %3350 = vmatprep.subr.bf16.mxu0 0
        %3351 = vmatpush1.bf16.msra.mxu0 0
        %3352 = vmatprep.mubr.bf16.mxu0 0
        %3353 = vmatmul.mubr.bf16.gmra.mrb[0].mxu0 %v3312
        %v3354 = vpop.f32.mrb[0].mxu0
        %v3355 = vadd.f32 0.0, %v3354
        %v3356 = vpop.f32.mrb[0].mxu0
        %v3357 = vadd.f32 0.0, %v3356
        %v3358 = vpop.f32.mrb[0].mxu0
        %v3359 = vpop.f32.mrb[0].mxu0
        %3360 = vdwg.mxu0
        %v3361 = vpack.c.bf16 %v3355, %v3355
        %v3362 = vpack.c.bf16 %v3357, %v3357
        %v3363 = vld [vmem:[#allocation7] sm:$0xf]
        %v3364 = vld [vmem:[#allocation7 + $0x4] sm:$0xf]
        %v3365 = vld [vmem:[#allocation7 + $0x8] sm:$0xf]
        %v3366 = vld [vmem:[#allocation7 + $0xc] sm:$0xf]
        %v3367 = vld [vmem:[#allocation7 + $0x10] sm:$0xf]
        %v3368 = vld [vmem:[#allocation7 + $0x14] sm:$0xf]
        %v3369 = vld [vmem:[#allocation7 + $0x18] sm:$0xf]
        %v3370 = vld [vmem:[#allocation7 + $0x1c] sm:$0xf]
        %v3371 = vld [vmem:[#allocation7 + $0x20] sm:$0xf]
        %v3372 = vld [vmem:[#allocation7 + $0x24] sm:$0xf]
        %v3373 = vld [vmem:[#allocation7 + $0x28] sm:$0xf]
        %v3374 = vld [vmem:[#allocation7 + $0x2c] sm:$0xf]
        %v3375 = vld [vmem:[#allocation7 + $0x30] sm:$0xf]
        %v3376 = vld [vmem:[#allocation7 + $0x34] sm:$0xf]
        %v3377 = vld [vmem:[#allocation7 + $0x38] sm:$0xf]
        %v3378 = vld [vmem:[#allocation7 + $0x3c] sm:$0xf]
        %v3379 = vld [vmem:[#allocation7 + $0x40] sm:$0xf]
        %v3380 = vld [vmem:[#allocation7 + $0x44] sm:$0xf]
        %v3381 = vld [vmem:[#allocation7 + $0x48] sm:$0xf]
        %v3382 = vld [vmem:[#allocation7 + $0x4c] sm:$0xf]
        %v3383 = vld [vmem:[#allocation7 + $0x50] sm:$0xf]
        %v3384 = vld [vmem:[#allocation7 + $0x54] sm:$0xf]
        %v3385 = vld [vmem:[#allocation7 + $0x58] sm:$0xf]
        %v3386 = vld [vmem:[#allocation7 + $0x5c] sm:$0xf]
        %v3387 = vld [vmem:[#allocation7 + $0x60] sm:$0xf]
        %v3388 = vld [vmem:[#allocation7 + $0x64] sm:$0xf]
        %v3389 = vld [vmem:[#allocation7 + $0x68] sm:$0xf]
        %v3390 = vld [vmem:[#allocation7 + $0x6c] sm:$0xf]
        %v3391 = vld [vmem:[#allocation7 + $0x70] sm:$0xf]
        %v3392 = vld [vmem:[#allocation7 + $0x74] sm:$0xf]
        %v3393 = vld [vmem:[#allocation7 + $0x78] sm:$0xf]
        %v3394 = vld [vmem:[#allocation7 + $0x7c] sm:$0xf]
        %v3427 = vunpack.c.l.b16 %v3363
        %v3428 = vunpack.c.l.b16 %v3364
        %v3429 = vunpack.c.l.b16 %v3365
        %v3430 = vunpack.c.l.b16 %v3366
        %v3431 = vunpack.c.l.b16 %v3367
        %v3432 = vunpack.c.l.b16 %v3368
        %v3433 = vunpack.c.l.b16 %v3369
        %v3434 = vunpack.c.l.b16 %v3370
        %v3435 = vunpack.c.l.b16 %v3371
        %v3436 = vunpack.c.l.b16 %v3372
        %v3437 = vunpack.c.l.b16 %v3373
        %v3438 = vunpack.c.l.b16 %v3374
        %v3439 = vunpack.c.l.b16 %v3375
        %v3440 = vunpack.c.l.b16 %v3376
        %v3441 = vunpack.c.l.b16 %v3377
        %v3442 = vunpack.c.l.b16 %v3378
        %v3443 = vunpack.c.l.b16 %v3379
        %v3444 = vunpack.c.l.b16 %v3380
        %v3445 = vunpack.c.l.b16 %v3381
        %v3446 = vunpack.c.l.b16 %v3382
        %v3447 = vunpack.c.l.b16 %v3383
        %v3448 = vunpack.c.l.b16 %v3384
        %v3449 = vunpack.c.l.b16 %v3385
        %v3450 = vunpack.c.l.b16 %v3386
        %v3451 = vunpack.c.l.b16 %v3387
        %v3452 = vunpack.c.l.b16 %v3388
        %v3453 = vunpack.c.l.b16 %v3389
        %v3454 = vunpack.c.l.b16 %v3390
        %v3455 = vunpack.c.l.b16 %v3391
        %v3456 = vunpack.c.l.b16 %v3392
        %v3457 = vunpack.c.l.b16 %v3393
        %v3458 = vunpack.c.l.b16 %v3394
        %v3459 = vpack.c.b16 %v3428, %v3427
        %v3460 = vpack.c.b16 %v3430, %v3429
        %v3461 = vpack.c.b16 %v3432, %v3431
        %v3462 = vpack.c.b16 %v3434, %v3433
        %v3463 = vpack.c.b16 %v3436, %v3435
        %v3464 = vpack.c.b16 %v3438, %v3437
        %v3465 = vpack.c.b16 %v3440, %v3439
        %v3466 = vpack.c.b16 %v3442, %v3441
        %v3467 = vpack.c.b16 %v3444, %v3443
        %v3468 = vpack.c.b16 %v3446, %v3445
        %v3469 = vpack.c.b16 %v3448, %v3447
        %v3470 = vpack.c.b16 %v3450, %v3449
        %v3471 = vpack.c.b16 %v3452, %v3451
        %v3472 = vpack.c.b16 %v3454, %v3453
        %v3473 = vpack.c.b16 %v3456, %v3455
        %v3474 = vpack.c.b16 %v3458, %v3457
        %3491 = vmatprep.subr.bf16.mxu0 0
        %3492 = vmatpush1.bf16.msra.mxu0 %v3459
        %3493 = vmatprep.subr.bf16.mxu0 0
        %3494 = vmatpush1.bf16.msra.mxu0 %v3460
        %3495 = vmatprep.subr.bf16.mxu0 0
        %3496 = vmatpush1.bf16.msra.mxu0 %v3461
        %3497 = vmatprep.subr.bf16.mxu0 0
        %3498 = vmatpush1.bf16.msra.mxu0 %v3462
        %3499 = vmatprep.subr.bf16.mxu0 0
        %3500 = vmatpush1.bf16.msra.mxu0 %v3463
        %3501 = vmatprep.subr.bf16.mxu0 0
        %3502 = vmatpush1.bf16.msra.mxu0 %v3464
        %3503 = vmatprep.subr.bf16.mxu0 0
        %3504 = vmatpush1.bf16.msra.mxu0 %v3465
        %3505 = vmatprep.subr.bf16.mxu0 0
        %3506 = vmatpush1.bf16.msra.mxu0 %v3466
        %3507 = vmatprep.subr.bf16.mxu0 0
        %3508 = vmatpush1.bf16.msra.mxu0 %v3467
        %3509 = vmatprep.subr.bf16.mxu0 0
        %3510 = vmatpush1.bf16.msra.mxu0 %v3468
        %3511 = vmatprep.subr.bf16.mxu0 0
        %3512 = vmatpush1.bf16.msra.mxu0 %v3469
        %3513 = vmatprep.subr.bf16.mxu0 0
        %3514 = vmatpush1.bf16.msra.mxu0 %v3470
        %3515 = vmatprep.subr.bf16.mxu0 0
        %3516 = vmatpush1.bf16.msra.mxu0 %v3471
        %3517 = vmatprep.subr.bf16.mxu0 0
        %3518 = vmatpush1.bf16.msra.mxu0 %v3472
        %3519 = vmatprep.subr.bf16.mxu0 0
        %3520 = vmatpush1.bf16.msra.mxu0 %v3473
        %3521 = vmatprep.subr.bf16.mxu0 0
        %3522 = vmatpush1.bf16.msra.mxu0 %v3474
        %3523 = vmatprep.mubr.bf16.mxu0 %v3362
        %3524 = vmatmul.mubr.bf16.gmra.mrb[0].mxu0 %v3361
        %v3525 = vpop.f32.mrb[0].mxu0
        %v3526 = vadd.f32 0.0, %v3525
        %v3527 = vpop.f32.mrb[0].mxu0
        %v3528 = vpop.f32.mrb[0].mxu0
        %v3529 = vpop.f32.mrb[0].mxu0
        %3530 = vdwg.mxu0
        %v3531 = vpack.c.bf16 %v3526, %v3526
        %v3532 = vld [vmem:[%s12] sm:$0x1]
        %vm3533 = vcmask 15360
        %v3535 = vsel %vm3533, %v3532, 0
        %vm3537 = vcmask 1040384
        %v3539 = vsel %vm3537, %v3531, 0
        %3541 = vmatprep.subr.bf16.mxu0 0
        %3542 = vmatpush1.bf16.msra.mxu0 %v3539
        %3543 = vmatprep.subr.bf16.mxu0 0
        %3544 = vmatpush1.bf16.msra.mxu0 0
        %3545 = vmatprep.subr.bf16.mxu0 0
        %3546 = vmatpush1.bf16.msra.mxu0 0
        %3547 = vmatprep.subr.bf16.mxu0 0
        %3548 = vmatpush1.bf16.msra.mxu0 0
        %3549 = vmatprep.subr.bf16.mxu0 0
        %3550 = vmatpush1.bf16.msra.mxu0 0
        %3551 = vmatprep.subr.bf16.mxu0 0
        %3552 = vmatpush1.bf16.msra.mxu0 0
        %3553 = vmatprep.subr.bf16.mxu0 0
        %3554 = vmatpush1.bf16.msra.mxu0 0
        %3555 = vmatprep.subr.bf16.mxu0 0
        %3556 = vmatpush1.bf16.msra.mxu0 0
        %3557 = vmatprep.subr.bf16.mxu0 0
        %3558 = vmatpush1.bf16.msra.mxu0 0
        %3559 = vmatprep.subr.bf16.mxu0 0
        %3560 = vmatpush1.bf16.msra.mxu0 0
        %3561 = vmatprep.subr.bf16.mxu0 0
        %3562 = vmatpush1.bf16.msra.mxu0 0
        %3563 = vmatprep.subr.bf16.mxu0 0
        %3564 = vmatpush1.bf16.msra.mxu0 0
        %3565 = vmatprep.subr.bf16.mxu0 0
        %3566 = vmatpush1.bf16.msra.mxu0 0
        %3567 = vmatprep.subr.bf16.mxu0 0
        %3568 = vmatpush1.bf16.msra.mxu0 0
        %3569 = vmatprep.subr.bf16.mxu0 0
        %3570 = vmatpush1.bf16.msra.mxu0 0
        %3571 = vmatprep.subr.bf16.mxu0 0
        %3572 = vmatpush1.bf16.msra.mxu0 0
        %3573 = vmatprep.mubr.bf16.mxu0 0
        %3574 = vmatmul.mubr.bf16.gmra.mrb[0].mxu0 %v3535
        %v3575 = vpop.f32.mrb[0].mxu0
        %v3576 = vadd.f32 0.0, %v3575
        %v3577 = vpop.f32.mrb[0].mxu0
        %v3578 = vpop.f32.mrb[0].mxu0
        %v3579 = vpop.f32.mrb[0].mxu0
        %3580 = vdwg.mxu0
        %v3581 = vpack.c.bf16 %v3576, %v3576
        %v3582 = vld [vmem:[#allocation9] sm:$0xf]
        %v3583 = vld [vmem:[#allocation9 + $0x4] sm:$0xf]
        %v3584 = vld [vmem:[#allocation9 + $0x8] sm:$0xf]
        %v3585 = vld [vmem:[#allocation9 + $0xc] sm:$0xf]
        %v3586 = vld [vmem:[#allocation9 + $0x10] sm:$0xf]
        %v3587 = vld [vmem:[#allocation9 + $0x14] sm:$0xf]
        %v3588 = vld [vmem:[#allocation9 + $0x18] sm:$0xf]
        %v3589 = vld [vmem:[#allocation9 + $0x1c] sm:$0xf]
        %v3590 = vld [vmem:[#allocation9 + $0x20] sm:$0xf]
        %v3591 = vld [vmem:[#allocation9 + $0x24] sm:$0xf]
        %v3592 = vld [vmem:[#allocation9 + $0x28] sm:$0xf]
        %v3593 = vld [vmem:[#allocation9 + $0x2c] sm:$0xf]
        %v3594 = vld [vmem:[#allocation9 + $0x30] sm:$0xf]
        %v3595 = vld [vmem:[#allocation9 + $0x34] sm:$0xf]
        %v3596 = vld [vmem:[#allocation9 + $0x38] sm:$0xf]
        %v3597 = vld [vmem:[#allocation9 + $0x3c] sm:$0xf]
        %s3598 = scalar_lea.vmem %s12, 1
        %v3599 = vld [vmem:[%s3598] sm:$0x1]
        %v3601 = vsel %vm3533, %v3599, 0
        %3603 = vmatprep.subr.bf16.mxu0 0
        %3604 = vmatpush1.bf16.msra.mxu0 %v3539
        %3605 = vmatprep.subr.bf16.mxu0 0
        %3606 = vmatpush1.bf16.msra.mxu0 0
        %3607 = vmatprep.subr.bf16.mxu0 0
        %3608 = vmatpush1.bf16.msra.mxu0 0
        %3609 = vmatprep.subr.bf16.mxu0 0
        %3610 = vmatpush1.bf16.msra.mxu0 0
        %3611 = vmatprep.subr.bf16.mxu0 0
        %3612 = vmatpush1.bf16.msra.mxu0 0
        %3613 = vmatprep.subr.bf16.mxu0 0
        %3614 = vmatpush1.bf16.msra.mxu0 0
        %3615 = vmatprep.subr.bf16.mxu0 0
        %3616 = vmatpush1.bf16.msra.mxu0 0
        %3617 = vmatprep.subr.bf16.mxu0 0
        %3618 = vmatpush1.bf16.msra.mxu0 0
        %3619 = vmatprep.subr.bf16.mxu0 0
        %3620 = vmatpush1.bf16.msra.mxu0 0
        %3621 = vmatprep.subr.bf16.mxu0 0
        %3622 = vmatpush1.bf16.msra.mxu0 0
        %3623 = vmatprep.subr.bf16.mxu0 0
        %3624 = vmatpush1.bf16.msra.mxu0 0
        %3625 = vmatprep.subr.bf16.mxu0 0
        %3626 = vmatpush1.bf16.msra.mxu0 0
        %3627 = vmatprep.subr.bf16.mxu0 0
        %3628 = vmatpush1.bf16.msra.mxu0 0
        %3629 = vmatprep.subr.bf16.mxu0 0
        %3630 = vmatpush1.bf16.msra.mxu0 0
        %3631 = vmatprep.subr.bf16.mxu0 0
        %3632 = vmatpush1.bf16.msra.mxu0 0
        %3633 = vmatprep.subr.bf16.mxu0 0
        %3634 = vmatpush1.bf16.msra.mxu0 0
        %3635 = vmatprep.mubr.bf16.mxu0 0
        %3636 = vmatmul.mubr.bf16.gmra.mrb[0].mxu0 %v3601
        %v3637 = vpop.f32.mrb[0].mxu0
        %v3638 = vadd.f32 0.0, %v3637
        %v3639 = vpop.f32.mrb[0].mxu0
        %v3640 = vpop.f32.mrb[0].mxu0
        %v3641 = vpop.f32.mrb[0].mxu0
        %3642 = vdwg.mxu0
        %v3643 = vpack.c.bf16 %v3638, %v3638
        %s3644 = scalar_lea.vmem [#allocation9], 64
        %v3645 = vld [vmem:[%s3644] sm:$0xf]
        %v3646 = vld [vmem:[%s3644 + $0x4] sm:$0xf]
        %v3647 = vld [vmem:[%s3644 + $0x8] sm:$0xf]
        %v3648 = vld [vmem:[%s3644 + $0xc] sm:$0xf]
        %v3649 = vld [vmem:[%s3644 + $0x10] sm:$0xf]
        %v3650 = vld [vmem:[%s3644 + $0x14] sm:$0xf]
        %v3651 = vld [vmem:[%s3644 + $0x18] sm:$0xf]
        %v3652 = vld [vmem:[%s3644 + $0x1c] sm:$0xf]
        %v3653 = vld [vmem:[%s3644 + $0x20] sm:$0xf]
        %v3654 = vld [vmem:[%s3644 + $0x24] sm:$0xf]
        %v3655 = vld [vmem:[%s3644 + $0x28] sm:$0xf]
        %v3656 = vld [vmem:[%s3644 + $0x2c] sm:$0xf]
        %v3657 = vld [vmem:[%s3644 + $0x30] sm:$0xf]
        %v3658 = vld [vmem:[%s3644 + $0x34] sm:$0xf]
        %v3659 = vld [vmem:[%s3644 + $0x38] sm:$0xf]
        %v3660 = vld [vmem:[%s3644 + $0x3c] sm:$0xf]
        %v3677 = vunpack.c.l.b16 %v3645
        %v3678 = vunpack.c.l.b16 %v3646
        %v3679 = vunpack.c.l.b16 %v3647
        %v3680 = vunpack.c.l.b16 %v3648
        %v3681 = vunpack.c.l.b16 %v3649
        %v3682 = vunpack.c.l.b16 %v3650
        %v3683 = vunpack.c.l.b16 %v3651
        %v3684 = vunpack.c.l.b16 %v3652
        %v3685 = vunpack.c.l.b16 %v3653
        %v3686 = vunpack.c.l.b16 %v3654
        %v3687 = vunpack.c.l.b16 %v3655
        %v3688 = vunpack.c.l.b16 %v3656
        %v3689 = vunpack.c.l.b16 %v3657
        %v3690 = vunpack.c.l.b16 %v3658
        %v3691 = vunpack.c.l.b16 %v3659
        %v3692 = vunpack.c.l.b16 %v3660
        %v3693 = vpack.c.b16 %v3678, %v3677
        %v3694 = vpack.c.b16 %v3680, %v3679
        %v3695 = vpack.c.b16 %v3682, %v3681
        %v3696 = vpack.c.b16 %v3684, %v3683
        %v3697 = vpack.c.b16 %v3686, %v3685
        %v3698 = vpack.c.b16 %v3688, %v3687
        %v3699 = vpack.c.b16 %v3690, %v3689
        %v3700 = vpack.c.b16 %v3692, %v3691
        %3709 = vmatprep.subr.bf16.mxu0 0
        %3710 = vmatpush1.bf16.msra.mxu0 %v3693
        %3711 = vmatprep.subr.bf16.mxu0 0
        %3712 = vmatpush1.bf16.msra.mxu0 %v3694
        %3713 = vmatprep.subr.bf16.mxu0 0
        %3714 = vmatpush1.bf16.msra.mxu0 %v3695
        %3715 = vmatprep.subr.bf16.mxu0 0
        %3716 = vmatpush1.bf16.msra.mxu0 %v3696
        %3717 = vmatprep.subr.bf16.mxu0 0
        %3718 = vmatpush1.bf16.msra.mxu0 %v3697
        %3719 = vmatprep.subr.bf16.mxu0 0
        %3720 = vmatpush1.bf16.msra.mxu0 %v3698
        %3721 = vmatprep.subr.bf16.mxu0 0
        %3722 = vmatpush1.bf16.msra.mxu0 %v3699
        %3723 = vmatprep.subr.bf16.mxu0 0
        %3724 = vmatpush1.bf16.msra.mxu0 %v3700
        %3725 = vmatprep.subr.bf16.mxu0 0
        %3726 = vmatpush1.bf16.msra.mxu0 0
        %3727 = vmatprep.subr.bf16.mxu0 0
        %3728 = vmatpush1.bf16.msra.mxu0 0
        %3729 = vmatprep.subr.bf16.mxu0 0
        %3730 = vmatpush1.bf16.msra.mxu0 0
        %3731 = vmatprep.subr.bf16.mxu0 0
        %3732 = vmatpush1.bf16.msra.mxu0 0
        %3733 = vmatprep.subr.bf16.mxu0 0
        %3734 = vmatpush1.bf16.msra.mxu0 0
        %3735 = vmatprep.subr.bf16.mxu0 0
        %3736 = vmatpush1.bf16.msra.mxu0 0
        %3737 = vmatprep.subr.bf16.mxu0 0
        %3738 = vmatpush1.bf16.msra.mxu0 0
        %3739 = vmatprep.subr.bf16.mxu0 0
        %3740 = vmatpush1.bf16.msra.mxu0 0
        %3741 = vmatprep.mubr.bf16.mxu0 0
        %3742 = vmatmul.mubr.bf16.gmra.mrb[0].mxu0 %v3643
        %v3743 = vpop.f32.mrb[0].mxu0
        %v3744 = vadd.f32 0.0, %v3743
        %v3745 = vpop.f32.mrb[0].mxu0
        %v3746 = vpop.f32.mrb[0].mxu0
        %v3747 = vpop.f32.mrb[0].mxu0
        %3748 = vdwg.mxu0
        %v3765 = vunpack.c.l.b16 %v3582
        %v3766 = vunpack.c.l.b16 %v3583
        %v3767 = vunpack.c.l.b16 %v3584
        %v3768 = vunpack.c.l.b16 %v3585
        %v3769 = vunpack.c.l.b16 %v3586
        %v3770 = vunpack.c.l.b16 %v3587
        %v3771 = vunpack.c.l.b16 %v3588
        %v3772 = vunpack.c.l.b16 %v3589
        %v3773 = vunpack.c.l.b16 %v3590
        %v3774 = vunpack.c.l.b16 %v3591
        %v3775 = vunpack.c.l.b16 %v3592
        %v3776 = vunpack.c.l.b16 %v3593
        %v3777 = vunpack.c.l.b16 %v3594
        %v3778 = vunpack.c.l.b16 %v3595
        %v3779 = vunpack.c.l.b16 %v3596
        %v3780 = vunpack.c.l.b16 %v3597
        %v3781 = vpack.c.b16 %v3766, %v3765
        %v3782 = vpack.c.b16 %v3768, %v3767
        %v3783 = vpack.c.b16 %v3770, %v3769
        %v3784 = vpack.c.b16 %v3772, %v3771
        %v3785 = vpack.c.b16 %v3774, %v3773
        %v3786 = vpack.c.b16 %v3776, %v3775
        %v3787 = vpack.c.b16 %v3778, %v3777
        %v3788 = vpack.c.b16 %v3780, %v3779
        %3797 = vmatprep.subr.bf16.mxu0 0
        %3798 = vmatpush1.bf16.msra.mxu0 %v3781
        %3799 = vmatprep.subr.bf16.mxu0 0
        %3800 = vmatpush1.bf16.msra.mxu0 %v3782
        %3801 = vmatprep.subr.bf16.mxu0 0
        %3802 = vmatpush1.bf16.msra.mxu0 %v3783
        %3803 = vmatprep.subr.bf16.mxu0 0
        %3804 = vmatpush1.bf16.msra.mxu0 %v3784
        %3805 = vmatprep.subr.bf16.mxu0 0
        %3806 = vmatpush1.bf16.msra.mxu0 %v3785
        %3807 = vmatprep.subr.bf16.mxu0 0
        %3808 = vmatpush1.bf16.msra.mxu0 %v3786
        %3809 = vmatprep.subr.bf16.mxu0 0
        %3810 = vmatpush1.bf16.msra.mxu0 %v3787
        %3811 = vmatprep.subr.bf16.mxu0 0
        %3812 = vmatpush1.bf16.msra.mxu0 %v3788
        %3813 = vmatprep.subr.bf16.mxu0 0
        %3814 = vmatpush1.bf16.msra.mxu0 0
        %3815 = vmatprep.subr.bf16.mxu0 0
        %3816 = vmatpush1.bf16.msra.mxu0 0
        %3817 = vmatprep.subr.bf16.mxu0 0
        %3818 = vmatpush1.bf16.msra.mxu0 0
        %3819 = vmatprep.subr.bf16.mxu0 0
        %3820 = vmatpush1.bf16.msra.mxu0 0
        %3821 = vmatprep.subr.bf16.mxu0 0
        %3822 = vmatpush1.bf16.msra.mxu0 0
        %3823 = vmatprep.subr.bf16.mxu0 0
        %3824 = vmatpush1.bf16.msra.mxu0 0
        %3825 = vmatprep.subr.bf16.mxu0 0
        %3826 = vmatpush1.bf16.msra.mxu0 0
        %3827 = vmatprep.subr.bf16.mxu0 0
        %3828 = vmatpush1.bf16.msra.mxu0 0
        %3829 = vmatprep.mubr.bf16.mxu0 0
        %3830 = vmatmul.mubr.bf16.gmra.mrb[0].mxu0 %v3581
        %v3831 = vpop.f32.mrb[0].mxu0
        %v3832 = vadd.f32 %v3744, %v3831
        %v3833 = vpop.f32.mrb[0].mxu0
        %v3834 = vpop.f32.mrb[0].mxu0
        %v3835 = vpop.f32.mrb[0].mxu0
        %3836 = vdwg.mxu0
        %s3837 = scalar_lea.vmem %s12, 2
        %v3838 = vld [vmem:[%s3837] sm:$0x1]
        %v3840 = vsel %vm3533, %v3838, 0
        %3842 = vmatprep.subr.bf16.mxu0 0
        %3843 = vmatpush1.bf16.msra.mxu0 %v3539
        %3844 = vmatprep.subr.bf16.mxu0 0
        %3845 = vmatpush1.bf16.msra.mxu0 0
        %3846 = vmatprep.subr.bf16.mxu0 0
        %3847 = vmatpush1.bf16.msra.mxu0 0
        %3848 = vmatprep.subr.bf16.mxu0 0
        %3849 = vmatpush1.bf16.msra.mxu0 0
        %3850 = vmatprep.subr.bf16.mxu0 0
        %3851 = vmatpush1.bf16.msra.mxu0 0
        %3852 = vmatprep.subr.bf16.mxu0 0
        %3853 = vmatpush1.bf16.msra.mxu0 0
        %3854 = vmatprep.subr.bf16.mxu0 0
        %3855 = vmatpush1.bf16.msra.mxu0 0
        %3856 = vmatprep.subr.bf16.mxu0 0
        %3857 = vmatpush1.bf16.msra.mxu0 0
        %3858 = vmatprep.subr.bf16.mxu0 0
        %3859 = vmatpush1.bf16.msra.mxu0 0
        %3860 = vmatprep.subr.bf16.mxu0 0
        %3861 = vmatpush1.bf16.msra.mxu0 0
        %3862 = vmatprep.subr.bf16.mxu0 0
        %3863 = vmatpush1.bf16.msra.mxu0 0
        %3864 = vmatprep.subr.bf16.mxu0 0
        %3865 = vmatpush1.bf16.msra.mxu0 0
        %3866 = vmatprep.subr.bf16.mxu0 0
        %3867 = vmatpush1.bf16.msra.mxu0 0
        %3868 = vmatprep.subr.bf16.mxu0 0
        %3869 = vmatpush1.bf16.msra.mxu0 0
        %3870 = vmatprep.subr.bf16.mxu0 0
        %3871 = vmatpush1.bf16.msra.mxu0 0
        %3872 = vmatprep.subr.bf16.mxu0 0
        %3873 = vmatpush1.bf16.msra.mxu0 0
        %3874 = vmatprep.mubr.bf16.mxu0 0
        %3875 = vmatmul.mubr.bf16.gmra.mrb[0].mxu0 %v3840
        %v3876 = vpop.f32.mrb[0].mxu0
        %v3877 = vadd.f32 0.0, %v3876
        %v3878 = vpop.f32.mrb[0].mxu0
        %v3879 = vpop.f32.mrb[0].mxu0
        %v3880 = vpop.f32.mrb[0].mxu0
        %3881 = vdwg.mxu0
        %v3882 = vpack.c.bf16 %v3877, %v3877
        %s3883 = scalar_lea.vmem [#allocation9], 128
        %v3884 = vld [vmem:[%s3883] sm:$0xf]
        %v3885 = vld [vmem:[%s3883 + $0x4] sm:$0xf]
        %v3886 = vld [vmem:[%s3883 + $0x8] sm:$0xf]
        %v3887 = vld [vmem:[%s3883 + $0xc] sm:$0xf]
        %v3888 = vld [vmem:[%s3883 + $0x10] sm:$0xf]
        %v3889 = vld [vmem:[%s3883 + $0x14] sm:$0xf]
        %v3890 = vld [vmem:[%s3883 + $0x18] sm:$0xf]
        %v3891 = vld [vmem:[%s3883 + $0x1c] sm:$0xf]
        %v3892 = vld [vmem:[%s3883 + $0x20] sm:$0xf]
        %v3893 = vld [vmem:[%s3883 + $0x24] sm:$0xf]
        %v3894 = vld [vmem:[%s3883 + $0x28] sm:$0xf]
        %v3895 = vld [vmem:[%s3883 + $0x2c] sm:$0xf]
        %v3896 = vld [vmem:[%s3883 + $0x30] sm:$0xf]
        %v3897 = vld [vmem:[%s3883 + $0x34] sm:$0xf]
        %v3898 = vld [vmem:[%s3883 + $0x38] sm:$0xf]
        %v3899 = vld [vmem:[%s3883 + $0x3c] sm:$0xf]
        %v3916 = vunpack.c.l.b16 %v3884
        %v3917 = vunpack.c.l.b16 %v3885
        %v3918 = vunpack.c.l.b16 %v3886
        %v3919 = vunpack.c.l.b16 %v3887
        %v3920 = vunpack.c.l.b16 %v3888
        %v3921 = vunpack.c.l.b16 %v3889
        %v3922 = vunpack.c.l.b16 %v3890
        %v3923 = vunpack.c.l.b16 %v3891
        %v3924 = vunpack.c.l.b16 %v3892
        %v3925 = vunpack.c.l.b16 %v3893
        %v3926 = vunpack.c.l.b16 %v3894
        %v3927 = vunpack.c.l.b16 %v3895
        %v3928 = vunpack.c.l.b16 %v3896
        %v3929 = vunpack.c.l.b16 %v3897
        %v3930 = vunpack.c.l.b16 %v3898
        %v3931 = vunpack.c.l.b16 %v3899
        %v3932 = vpack.c.b16 %v3917, %v3916
        %v3933 = vpack.c.b16 %v3919, %v3918
        %v3934 = vpack.c.b16 %v3921, %v3920
        %v3935 = vpack.c.b16 %v3923, %v3922
        %v3936 = vpack.c.b16 %v3925, %v3924
        %v3937 = vpack.c.b16 %v3927, %v3926
        %v3938 = vpack.c.b16 %v3929, %v3928
        %v3939 = vpack.c.b16 %v3931, %v3930
        %3948 = vmatprep.subr.bf16.mxu0 0
        %3949 = vmatpush1.bf16.msra.mxu0 %v3932
        %3950 = vmatprep.subr.bf16.mxu0 0
        %3951 = vmatpush1.bf16.msra.mxu0 %v3933
        %3952 = vmatprep.subr.bf16.mxu0 0
        %3953 = vmatpush1.bf16.msra.mxu0 %v3934
        %3954 = vmatprep.subr.bf16.mxu0 0
        %3955 = vmatpush1.bf16.msra.mxu0 %v3935
        %3956 = vmatprep.subr.bf16.mxu0 0
        %3957 = vmatpush1.bf16.msra.mxu0 %v3936
        %3958 = vmatprep.subr.bf16.mxu0 0
        %3959 = vmatpush1.bf16.msra.mxu0 %v3937
        %3960 = vmatprep.subr.bf16.mxu0 0
        %3961 = vmatpush1.bf16.msra.mxu0 %v3938
        %3962 = vmatprep.subr.bf16.mxu0 0
        %3963 = vmatpush1.bf16.msra.mxu0 %v3939
        %3964 = vmatprep.subr.bf16.mxu0 0
        %3965 = vmatpush1.bf16.msra.mxu0 0
        %3966 = vmatprep.subr.bf16.mxu0 0
        %3967 = vmatpush1.bf16.msra.mxu0 0
        %3968 = vmatprep.subr.bf16.mxu0 0
        %3969 = vmatpush1.bf16.msra.mxu0 0
        %3970 = vmatprep.subr.bf16.mxu0 0
        %3971 = vmatpush1.bf16.msra.mxu0 0
        %3972 = vmatprep.subr.bf16.mxu0 0
        %3973 = vmatpush1.bf16.msra.mxu0 0
        %3974 = vmatprep.subr.bf16.mxu0 0
        %3975 = vmatpush1.bf16.msra.mxu0 0
        %3976 = vmatprep.subr.bf16.mxu0 0
        %3977 = vmatpush1.bf16.msra.mxu0 0
        %3978 = vmatprep.subr.bf16.mxu0 0
        %3979 = vmatpush1.bf16.msra.mxu0 0
        %3980 = vmatprep.mubr.bf16.mxu0 0
        %3981 = vmatmul.mubr.bf16.gmra.mrb[0].mxu0 %v3882
        %v3982 = vpop.f32.mrb[0].mxu0
        %v3983 = vadd.f32 0.0, %v3982
        %v3984 = vpop.f32.mrb[0].mxu0
        %v3985 = vpop.f32.mrb[0].mxu0
        %v3986 = vpop.f32.mrb[0].mxu0
        %3987 = vdwg.mxu0
        %v3988 = vadd.f32 %v3832, %v3983
        %v3989 = vld [vmem:[%s14] sm:$0x1]
        %v3991 = vlaneseq
        %v3992 = vshrl.u32 %v3991, 7
        %v3993 = vsub.s32 0, %v3992
        %v3994 = vrot.slane %v3989, %v3993
        %v3996 = vadd.f32 %v3988, %v3994
        %v3997 = vmax.f32 %v3996, 0.0
        %v3998 = vpack.c.bf16 %v3997, %v3997
        %v3999 = vld [vmem:[%s15] sm:$0x1]
        %v4001 = vsel %vm3533, %v3999, 0
        %v4004 = vsel %vm3537, %v3998, 0
        %4006 = vmatprep.subr.bf16.mxu0 0
        %4007 = vmatpush1.bf16.msra.mxu0 %v4004
        %4008 = vmatprep.subr.bf16.mxu0 0
        %4009 = vmatpush1.bf16.msra.mxu0 0
        %4010 = vmatprep.subr.bf16.mxu0 0
        %4011 = vmatpush1.bf16.msra.mxu0 0
        %4012 = vmatprep.subr.bf16.mxu0 0
        %4013 = vmatpush1.bf16.msra.mxu0 0
        %4014 = vmatprep.subr.bf16.mxu0 0
        %4015 = vmatpush1.bf16.msra.mxu0 0
        %4016 = vmatprep.subr.bf16.mxu0 0
        %4017 = vmatpush1.bf16.msra.mxu0 0
        %4018 = vmatprep.subr.bf16.mxu0 0
        %4019 = vmatpush1.bf16.msra.mxu0 0
        %4020 = vmatprep.subr.bf16.mxu0 0
        %4021 = vmatpush1.bf16.msra.mxu0 0
        %4022 = vmatprep.subr.bf16.mxu0 0
        %4023 = vmatpush1.bf16.msra.mxu0 0
        %4024 = vmatprep.subr.bf16.mxu0 0
        %4025 = vmatpush1.bf16.msra.mxu0 0
        %4026 = vmatprep.subr.bf16.mxu0 0
        %4027 = vmatpush1.bf16.msra.mxu0 0
        %4028 = vmatprep.subr.bf16.mxu0 0
        %4029 = vmatpush1.bf16.msra.mxu0 0
        %4030 = vmatprep.subr.bf16.mxu0 0
        %4031 = vmatpush1.bf16.msra.mxu0 0
        %4032 = vmatprep.subr.bf16.mxu0 0
        %4033 = vmatpush1.bf16.msra.mxu0 0
        %4034 = vmatprep.subr.bf16.mxu0 0
        %4035 = vmatpush1.bf16.msra.mxu0 0
        %4036 = vmatprep.subr.bf16.mxu0 0
        %4037 = vmatpush1.bf16.msra.mxu0 0
        %4038 = vmatprep.mubr.bf16.mxu0 0
        %4039 = vmatmul.mubr.bf16.gmra.mrb[0].mxu0 %v4001
        %v4040 = vpop.f32.mrb[0].mxu0
        %v4041 = vadd.f32 0.0, %v4040
        %v4042 = vpop.f32.mrb[0].mxu0
        %v4043 = vpop.f32.mrb[0].mxu0
        %v4044 = vpop.f32.mrb[0].mxu0
        %4045 = vdwg.mxu0
        %v4046 = vpack.c.bf16 %v4041, %v4041
        %v4047 = vld [vmem:[%s16] sm:$0xf]
        %v4048 = vld [vmem:[%s16 + $0x4] sm:$0xf]
        %v4049 = vld [vmem:[%s16 + $0x8] sm:$0xf]
        %v4050 = vld [vmem:[%s16 + $0xc] sm:$0xf]
        %v4051 = vld [vmem:[%s16 + $0x10] sm:$0xf]
        %v4052 = vld [vmem:[%s16 + $0x14] sm:$0xf]
        %v4053 = vld [vmem:[%s16 + $0x18] sm:$0xf]
        %v4054 = vld [vmem:[%s16 + $0x1c] sm:$0xf]
        %v4055 = vld [vmem:[%s16 + $0x20] sm:$0xf]
        %v4056 = vld [vmem:[%s16 + $0x24] sm:$0xf]
        %v4057 = vld [vmem:[%s16 + $0x28] sm:$0xf]
        %v4058 = vld [vmem:[%s16 + $0x2c] sm:$0xf]
        %v4059 = vld [vmem:[%s16 + $0x30] sm:$0xf]
        %v4060 = vld [vmem:[%s16 + $0x34] sm:$0xf]
        %v4061 = vld [vmem:[%s16 + $0x38] sm:$0xf]
        %v4062 = vld [vmem:[%s16 + $0x3c] sm:$0xf]
        %v4079 = vunpack.c.l.b16 %v4047
        %v4080 = vunpack.c.l.b16 %v4048
        %v4081 = vunpack.c.l.b16 %v4049
        %v4082 = vunpack.c.l.b16 %v4050
        %v4083 = vunpack.c.l.b16 %v4051
        %v4084 = vunpack.c.l.b16 %v4052
        %v4085 = vunpack.c.l.b16 %v4053
        %v4086 = vunpack.c.l.b16 %v4054
        %v4087 = vunpack.c.l.b16 %v4055
        %v4088 = vunpack.c.l.b16 %v4056
        %v4089 = vunpack.c.l.b16 %v4057
        %v4090 = vunpack.c.l.b16 %v4058
        %v4091 = vunpack.c.l.b16 %v4059
        %v4092 = vunpack.c.l.b16 %v4060
        %v4093 = vunpack.c.l.b16 %v4061
        %v4094 = vunpack.c.l.b16 %v4062
        %v4095 = vpack.c.b16 %v4080, %v4079
        %v4096 = vpack.c.b16 %v4082, %v4081
        %v4097 = vpack.c.b16 %v4084, %v4083
        %v4098 = vpack.c.b16 %v4086, %v4085
        %v4099 = vpack.c.b16 %v4088, %v4087
        %v4100 = vpack.c.b16 %v4090, %v4089
        %v4101 = vpack.c.b16 %v4092, %v4091
        %v4102 = vpack.c.b16 %v4094, %v4093
        %4111 = vmatprep.subr.bf16.mxu0 0
        %4112 = vmatpush1.bf16.msra.mxu0 %v4095
        %4113 = vmatprep.subr.bf16.mxu0 0
        %4114 = vmatpush1.bf16.msra.mxu0 %v4096
        %4115 = vmatprep.subr.bf16.mxu0 0
        %4116 = vmatpush1.bf16.msra.mxu0 %v4097
        %4117 = vmatprep.subr.bf16.mxu0 0
        %4118 = vmatpush1.bf16.msra.mxu0 %v4098
        %4119 = vmatprep.subr.bf16.mxu0 0
        %4120 = vmatpush1.bf16.msra.mxu0 %v4099
        %4121 = vmatprep.subr.bf16.mxu0 0
        %4122 = vmatpush1.bf16.msra.mxu0 %v4100
        %4123 = vmatprep.subr.bf16.mxu0 0
        %4124 = vmatpush1.bf16.msra.mxu0 %v4101
        %4125 = vmatprep.subr.bf16.mxu0 0
        %4126 = vmatpush1.bf16.msra.mxu0 %v4102
        %4127 = vmatprep.subr.bf16.mxu0 0
        %4128 = vmatpush1.bf16.msra.mxu0 0
        %4129 = vmatprep.subr.bf16.mxu0 0
        %4130 = vmatpush1.bf16.msra.mxu0 0
        %4131 = vmatprep.subr.bf16.mxu0 0
        %4132 = vmatpush1.bf16.msra.mxu0 0
        %4133 = vmatprep.subr.bf16.mxu0 0
        %4134 = vmatpush1.bf16.msra.mxu0 0
        %4135 = vmatprep.subr.bf16.mxu0 0
        %4136 = vmatpush1.bf16.msra.mxu0 0
        %4137 = vmatprep.subr.bf16.mxu0 0
        %4138 = vmatpush1.bf16.msra.mxu0 0
        %4139 = vmatprep.subr.bf16.mxu0 0
        %4140 = vmatpush1.bf16.msra.mxu0 0
        %4141 = vmatprep.subr.bf16.mxu0 0
        %4142 = vmatpush1.bf16.msra.mxu0 0
        %4143 = vmatprep.mubr.bf16.mxu0 0
        %4144 = vmatmul.mubr.bf16.gmra.mrb[0].mxu0 %v4046
        %v4145 = vpop.f32.mrb[0].mxu0
        %v4146 = vadd.f32 0.0, %v4145
        %v4147 = vpop.f32.mrb[0].mxu0
        %v4148 = vpop.f32.mrb[0].mxu0
        %v4149 = vpop.f32.mrb[0].mxu0
        %4150 = vdwg.mxu0
        %v4151 = vpack.c.bf16 %v4146, %v4146
        %v4152 = vld [vmem:[%s18] sm:$0xf]
        %v4153 = vld [vmem:[#allocation10] sm:$0xff]
        %v4154 = vld [vmem:[#allocation10 + $0x8] sm:$0xff]
        %v4155 = vld [vmem:[#allocation10 + $0x10] sm:$0xff]
        %v4156 = vld [vmem:[#allocation10 + $0x18] sm:$0xff]
        %v4157 = vld [vmem:[#allocation10 + $0x20] sm:$0xff]
        %v4158 = vld [vmem:[#allocation10 + $0x28] sm:$0xff]
        %v4159 = vld [vmem:[#allocation10 + $0x30] sm:$0xff]
        %v4160 = vld [vmem:[#allocation10 + $0x38] sm:$0xff]
        %v4161 = vld [vmem:[#allocation10 + $0x40] sm:$0xff]
        %v4162 = vld [vmem:[#allocation10 + $0x48] sm:$0xff]
        %v4163 = vld [vmem:[#allocation10 + $0x50] sm:$0xff]
        %v4164 = vld [vmem:[#allocation10 + $0x58] sm:$0xff]
        %v4165 = vld [vmem:[#allocation10 + $0x60] sm:$0xff]
        %v4166 = vld [vmem:[#allocation10 + $0x68] sm:$0xff]
        %v4167 = vld [vmem:[#allocation10 + $0x70] sm:$0xff]
        %v4168 = vld [vmem:[#allocation10 + $0x78] sm:$0xff]
        %v4185 = vunpack.c.l.b16 %v4153
        %v4186 = vunpack.c.h.b16 %v4153
        %v4187 = vunpack.c.l.b16 %v4154
        %v4188 = vunpack.c.h.b16 %v4154
        %v4189 = vunpack.c.l.b16 %v4155
        %v4190 = vunpack.c.h.b16 %v4155
        %v4191 = vunpack.c.l.b16 %v4156
        %v4192 = vunpack.c.h.b16 %v4156
        %v4193 = vunpack.c.l.b16 %v4157
        %v4194 = vunpack.c.h.b16 %v4157
        %v4195 = vunpack.c.l.b16 %v4158
        %v4196 = vunpack.c.h.b16 %v4158
        %v4197 = vunpack.c.l.b16 %v4159
        %v4198 = vunpack.c.h.b16 %v4159
        %v4199 = vunpack.c.l.b16 %v4160
        %v4200 = vunpack.c.h.b16 %v4160
        %v4201 = vunpack.c.l.b16 %v4161
        %v4202 = vunpack.c.h.b16 %v4161
        %v4203 = vunpack.c.l.b16 %v4162
        %v4204 = vunpack.c.h.b16 %v4162
        %v4205 = vunpack.c.l.b16 %v4163
        %v4206 = vunpack.c.h.b16 %v4163
        %v4207 = vunpack.c.l.b16 %v4164
        %v4208 = vunpack.c.h.b16 %v4164
        %v4209 = vunpack.c.l.b16 %v4165
        %v4210 = vunpack.c.h.b16 %v4165
        %v4211 = vunpack.c.l.b16 %v4166
        %v4212 = vunpack.c.h.b16 %v4166
        %v4213 = vunpack.c.l.b16 %v4167
        %v4214 = vunpack.c.h.b16 %v4167
        %v4215 = vunpack.c.l.b16 %v4168
        %v4216 = vunpack.c.h.b16 %v4168
        %v4217 = vpack.c.b16 %v4189, %v4185
        %v4218 = vpack.c.b16 %v4190, %v4186
        %v4219 = vpack.c.b16 %v4191, %v4187
        %v4220 = vpack.c.b16 %v4192, %v4188
        %v4221 = vpack.c.b16 %v4197, %v4193
        %v4222 = vpack.c.b16 %v4198, %v4194
        %v4223 = vpack.c.b16 %v4199, %v4195
        %v4224 = vpack.c.b16 %v4200, %v4196
        %v4225 = vpack.c.b16 %v4205, %v4201
        %v4226 = vpack.c.b16 %v4206, %v4202
        %v4227 = vpack.c.b16 %v4207, %v4203
        %v4228 = vpack.c.b16 %v4208, %v4204
        %v4229 = vpack.c.b16 %v4213, %v4209
        %v4230 = vpack.c.b16 %v4214, %v4210
        %v4231 = vpack.c.b16 %v4215, %v4211
        %v4232 = vpack.c.b16 %v4216, %v4212
        %vm4249 = vcmask 523264
        %v4251 = vsel %vm4249, %v4151, 0
        %4253 = vmatprep.subr.bf16.mxu0 %v4218
        %4254 = vmatpush1.bf16.msra.mxu0 %v4217
        %4255 = vmatprep.subr.bf16.mxu0 %v4222
        %4256 = vmatpush1.bf16.msra.mxu0 %v4221
        %4257 = vmatprep.subr.bf16.mxu0 %v4226
        %4258 = vmatpush1.bf16.msra.mxu0 %v4225
        %4259 = vmatprep.subr.bf16.mxu0 %v4230
        %4260 = vmatpush1.bf16.msra.mxu0 %v4229
        %4261 = vmatprep.subr.bf16.mxu0 0
        %4262 = vmatpush1.bf16.msra.mxu0 0
        %4263 = vmatprep.subr.bf16.mxu0 0
        %4264 = vmatpush1.bf16.msra.mxu0 0
        %4265 = vmatprep.subr.bf16.mxu0 0
        %4266 = vmatpush1.bf16.msra.mxu0 0
        %4267 = vmatprep.subr.bf16.mxu0 0
        %4268 = vmatpush1.bf16.msra.mxu0 0
        %4269 = vmatprep.subr.bf16.mxu0 0
        %4270 = vmatpush1.bf16.msra.mxu0 0
        %4271 = vmatprep.subr.bf16.mxu0 0
        %4272 = vmatpush1.bf16.msra.mxu0 0
        %4273 = vmatprep.subr.bf16.mxu0 0
        %4274 = vmatpush1.bf16.msra.mxu0 0
        %4275 = vmatprep.subr.bf16.mxu0 0
        %4276 = vmatpush1.bf16.msra.mxu0 0
        %4277 = vmatprep.subr.bf16.mxu0 0
        %4278 = vmatpush1.bf16.msra.mxu0 0
        %4279 = vmatprep.subr.bf16.mxu0 0
        %4280 = vmatpush1.bf16.msra.mxu0 0
        %4281 = vmatprep.subr.bf16.mxu0 0
        %4282 = vmatpush1.bf16.msra.mxu0 0
        %4283 = vmatprep.subr.bf16.mxu0 0
        %4284 = vmatpush1.bf16.msra.mxu0 0
        %4285 = vmatprep.mubr.bf16.mxu0 0
        %4286 = vmatmul.mubr.bf16.gmra.mrb[0].mxu0 %v4251
        %v4287 = vpop.f32.mrb[0].mxu0
        %v4288 = vadd.f32 0.0, %v4287
        %v4289 = vpop.f32.mrb[0].mxu0
        %v4290 = vadd.f32 0.0, %v4289
        %v4291 = vpop.f32.mrb[0].mxu0
        %v4292 = vpop.f32.mrb[0].mxu0
        %4293 = vdwg.mxu0
        %4294 = vmatprep.subr.bf16.mxu0 %v4220
        %4295 = vmatpush1.bf16.msra.mxu0 %v4219
        %4296 = vmatprep.subr.bf16.mxu0 %v4224
        %4297 = vmatpush1.bf16.msra.mxu0 %v4223
        %4298 = vmatprep.subr.bf16.mxu0 %v4228
        %4299 = vmatpush1.bf16.msra.mxu0 %v4227
        %4300 = vmatprep.subr.bf16.mxu0 %v4232
        %4301 = vmatpush1.bf16.msra.mxu0 %v4231
        %4302 = vmatprep.subr.bf16.mxu0 0
        %4303 = vmatpush1.bf16.msra.mxu0 0
        %4304 = vmatprep.subr.bf16.mxu0 0
        %4305 = vmatpush1.bf16.msra.mxu0 0
        %4306 = vmatprep.subr.bf16.mxu0 0
        %4307 = vmatpush1.bf16.msra.mxu0 0
        %4308 = vmatprep.subr.bf16.mxu0 0
        %4309 = vmatpush1.bf16.msra.mxu0 0
        %4310 = vmatprep.subr.bf16.mxu0 0
        %4311 = vmatpush1.bf16.msra.mxu0 0
        %4312 = vmatprep.subr.bf16.mxu0 0
        %4313 = vmatpush1.bf16.msra.mxu0 0
        %4314 = vmatprep.subr.bf16.mxu0 0
        %4315 = vmatpush1.bf16.msra.mxu0 0
        %4316 = vmatprep.subr.bf16.mxu0 0
        %4317 = vmatpush1.bf16.msra.mxu0 0
        %4318 = vmatprep.subr.bf16.mxu0 0
        %4319 = vmatpush1.bf16.msra.mxu0 0
        %4320 = vmatprep.subr.bf16.mxu0 0
        %4321 = vmatpush1.bf16.msra.mxu0 0
        %4322 = vmatprep.subr.bf16.mxu0 0
        %4323 = vmatpush1.bf16.msra.mxu0 0
        %4324 = vmatprep.subr.bf16.mxu0 0
        %4325 = vmatpush1.bf16.msra.mxu0 0
        %4326 = vmatprep.mubr.bf16.mxu0 0
        %4327 = vmatmul.mubr.bf16.gmra.mrb[0].mxu0 %v4251
        %v4328 = vpop.f32.mrb[0].mxu0
        %v4329 = vadd.f32 0.0, %v4328
        %v4330 = vpop.f32.mrb[0].mxu0
        %v4331 = vadd.f32 0.0, %v4330
        %v4332 = vpop.f32.mrb[0].mxu0
        %v4333 = vpop.f32.mrb[0].mxu0
        %4334 = vdwg.mxu0
        %v4339 = vcombine.low %v4288, %v4290
        %v4340 = vcombine.low %v4329, %v4331
        %v4342 = vunpack.c.l.s4 1966171168
        %v4343 = vunpack.c.0.s8 %v4342
        %v4344 = vlaneseq
        %v4345 = vshrl.u32 %v4344, 7
        %v4346 = vsub.s32 %v4343, %v4345
        %v4347 = vrot.slane %v4339, %v4346
        %v4349 = vunpack.c.l.s4 1966171168
        %v4350 = vunpack.c.0.s8 %v4349
        %v4351 = vlaneseq
        %v4352 = vshrl.u32 %v4351, 7
        %v4353 = vsub.s32 %v4350, %v4352
        %v4354 = vrot.slane %v4340, %v4353
        %v4355 = vcombine.low %v4347, %v4354
        %v4357 = vunpack.c.l.s4 1966171168
        %v4358 = vunpack.c.0.s8 %v4357
        %v4359 = vlaneseq
        %v4360 = vshrl.u32 %v4359, 7
        %v4361 = vsub.s32 %v4358, %v4360
        %v4362 = vrot.slane %v4355, %v4361
        %v4364 = vadd.f32 %v4152, %v4362
        %vm4365 = vcmp.gt.f32.partialorder %v4364, 0.0
        %v4366 = vmin.f32 %v4364, 0.0
        %v4367 = vmul.f32 %v4366, 1.442695
        %v4368 = vpow.pop %v4367
        %v4369 = vsub.f32 %v4368, 1.0
        %v4370 = vsel %vm4365, %v4364, %v4369
        %v4372 = vlaneseq
        %v4373 = vshrl.u32 %v4372, 7
        %v4374 = vsub.s32 0, %v4373
        %v4375 = vrot.slane %v4370, %v4374
        %v4376 = vlaneseq
        %v4377 = vshrl.u32 %v4376, 7
        %v4378 = vsub.s32 1, %v4377
        %v4379 = vrot.slane %v4370, %v4378
        %v4380 = vlaneseq
        %v4381 = vshrl.u32 %v4380, 7
        %v4382 = vsub.s32 2, %v4381
        %v4383 = vrot.slane %v4370, %v4382
        %v4384 = vlaneseq
        %v4385 = vshrl.u32 %v4384, 7
        %v4386 = vsub.s32 3, %v4385
        %v4387 = vrot.slane %v4370, %v4386
        %v4392 = vpack.c.bf16 %v4375, %v4375
        %v4393 = vpack.c.bf16 %v4379, %v4379
        %v4394 = vpack.c.bf16 %v4383, %v4383
        %v4395 = vpack.c.bf16 %v4387, %v4387
        %v4396 = vld [vmem:[#allocation12] sm:$0xff]
        %v4397 = vld [vmem:[#allocation12 + $0x8] sm:$0xff]
        %v4398 = vld [vmem:[#allocation12 + $0x10] sm:$0xff]
        %v4399 = vld [vmem:[#allocation12 + $0x18] sm:$0xff]
        %v4400 = vld [vmem:[#allocation12 + $0x20] sm:$0xff]
        %v4401 = vld [vmem:[#allocation12 + $0x28] sm:$0xff]
        %v4402 = vld [vmem:[#allocation12 + $0x30] sm:$0xff]
        %v4403 = vld [vmem:[#allocation12 + $0x38] sm:$0xff]
        %v4404 = vld [vmem:[#allocation12 + $0x40] sm:$0xff]
        %v4405 = vld [vmem:[#allocation12 + $0x48] sm:$0xff]
        %v4406 = vld [vmem:[#allocation12 + $0x50] sm:$0xff]
        %v4407 = vld [vmem:[#allocation12 + $0x58] sm:$0xff]
        %v4408 = vld [vmem:[#allocation12 + $0x60] sm:$0xff]
        %v4409 = vld [vmem:[#allocation12 + $0x68] sm:$0xff]
        %v4410 = vld [vmem:[#allocation12 + $0x70] sm:$0xff]
        %v4411 = vld [vmem:[#allocation12 + $0x78] sm:$0xff]
        %v4412 = vld [vmem:[#allocation12 + $0x80] sm:$0xff]
        %v4413 = vld [vmem:[#allocation12 + $0x88] sm:$0xff]
        %v4414 = vld [vmem:[#allocation12 + $0x90] sm:$0xff]
        %v4415 = vld [vmem:[#allocation12 + $0x98] sm:$0xff]
        %v4416 = vld [vmem:[#allocation12 + $0xa0] sm:$0xff]
        %v4417 = vld [vmem:[#allocation12 + $0xa8] sm:$0xff]
        %v4418 = vld [vmem:[#allocation12 + $0xb0] sm:$0xff]
        %v4419 = vld [vmem:[#allocation12 + $0xb8] sm:$0xff]
        %v4420 = vld [vmem:[#allocation12 + $0xc0] sm:$0xff]
        %v4421 = vld [vmem:[#allocation12 + $0xc8] sm:$0xff]
        %v4422 = vld [vmem:[#allocation12 + $0xd0] sm:$0xff]
        %v4423 = vld [vmem:[#allocation12 + $0xd8] sm:$0xff]
        %v4424 = vld [vmem:[#allocation12 + $0xe0] sm:$0xff]
        %v4425 = vld [vmem:[#allocation12 + $0xe8] sm:$0xff]
        %v4426 = vld [vmem:[#allocation12 + $0xf0] sm:$0xff]
        %v4427 = vld [vmem:[#allocation12 + $0xf8] sm:$0xff]
        %v4428 = vld [vmem:[#allocation12 + $0x100] sm:$0xff]
        %v4429 = vld [vmem:[#allocation12 + $0x108] sm:$0xff]
        %v4430 = vld [vmem:[#allocation12 + $0x110] sm:$0xff]
        %v4431 = vld [vmem:[#allocation12 + $0x118] sm:$0xff]
        %v4432 = vld [vmem:[#allocation12 + $0x120] sm:$0xff]
        %v4433 = vld [vmem:[#allocation12 + $0x128] sm:$0xff]
        %v4434 = vld [vmem:[#allocation12 + $0x130] sm:$0xff]
        %v4435 = vld [vmem:[#allocation12 + $0x138] sm:$0xff]
        %v4436 = vld [vmem:[#allocation12 + $0x140] sm:$0xff]
        %v4437 = vld [vmem:[#allocation12 + $0x148] sm:$0xff]
        %v4438 = vld [vmem:[#allocation12 + $0x150] sm:$0xff]
        %v4439 = vld [vmem:[#allocation12 + $0x158] sm:$0xff]
        %v4440 = vld [vmem:[#allocation12 + $0x160] sm:$0xff]
        %v4441 = vld [vmem:[#allocation12 + $0x168] sm:$0xff]
        %v4442 = vld [vmem:[#allocation12 + $0x170] sm:$0xff]
        %v4443 = vld [vmem:[#allocation12 + $0x178] sm:$0xff]
        %v4444 = vld [vmem:[#allocation12 + $0x180] sm:$0xff]
        %v4445 = vld [vmem:[#allocation12 + $0x188] sm:$0xff]
        %v4446 = vld [vmem:[#allocation12 + $0x190] sm:$0xff]
        %v4447 = vld [vmem:[#allocation12 + $0x198] sm:$0xff]
        %v4448 = vld [vmem:[#allocation12 + $0x1a0] sm:$0xff]
        %v4449 = vld [vmem:[#allocation12 + $0x1a8] sm:$0xff]
        %v4450 = vld [vmem:[#allocation12 + $0x1b0] sm:$0xff]
        %v4451 = vld [vmem:[#allocation12 + $0x1b8] sm:$0xff]
        %v4452 = vld [vmem:[#allocation12 + $0x1c0] sm:$0xff]
        %v4453 = vld [vmem:[#allocation12 + $0x1c8] sm:$0xff]
        %v4454 = vld [vmem:[#allocation12 + $0x1d0] sm:$0xff]
        %v4455 = vld [vmem:[#allocation12 + $0x1d8] sm:$0xff]
        %v4456 = vld [vmem:[#allocation12 + $0x1e0] sm:$0xff]
        %v4457 = vld [vmem:[#allocation12 + $0x1e8] sm:$0xff]
        %v4458 = vld [vmem:[#allocation12 + $0x1f0] sm:$0xff]
        %v4459 = vld [vmem:[#allocation12 + $0x1f8] sm:$0xff]
        %v4460 = vld [vmem:[#allocation12 + $0x200] sm:$0xff]
        %v4461 = vld [vmem:[#allocation12 + $0x208] sm:$0xff]
        %v4462 = vld [vmem:[#allocation12 + $0x210] sm:$0xff]
        %v4463 = vld [vmem:[#allocation12 + $0x218] sm:$0xff]
        %v4464 = vld [vmem:[#allocation12 + $0x220] sm:$0xff]
        %v4465 = vld [vmem:[#allocation12 + $0x228] sm:$0xff]
        %v4466 = vld [vmem:[#allocation12 + $0x230] sm:$0xff]
        %v4467 = vld [vmem:[#allocation12 + $0x238] sm:$0xff]
        %v4468 = vld [vmem:[#allocation12 + $0x240] sm:$0xff]
        %v4469 = vld [vmem:[#allocation12 + $0x248] sm:$0xff]
        %v4470 = vld [vmem:[#allocation12 + $0x250] sm:$0xff]
        %v4471 = vld [vmem:[#allocation12 + $0x258] sm:$0xff]
        %v4472 = vld [vmem:[#allocation12 + $0x260] sm:$0xff]
        %v4473 = vld [vmem:[#allocation12 + $0x268] sm:$0xff]
        %v4474 = vld [vmem:[#allocation12 + $0x270] sm:$0xff]
        %v4475 = vld [vmem:[#allocation12 + $0x278] sm:$0xff]
        %v4476 = vld [vmem:[#allocation12 + $0x280] sm:$0xff]
        %v4477 = vld [vmem:[#allocation12 + $0x288] sm:$0xff]
        %v4478 = vld [vmem:[#allocation12 + $0x290] sm:$0xff]
        %v4479 = vld [vmem:[#allocation12 + $0x298] sm:$0xff]
        %v4480 = vld [vmem:[#allocation12 + $0x2a0] sm:$0xff]
        %v4481 = vld [vmem:[#allocation12 + $0x2a8] sm:$0xff]
        %v4482 = vld [vmem:[#allocation12 + $0x2b0] sm:$0xff]
        %v4483 = vld [vmem:[#allocation12 + $0x2b8] sm:$0xff]
        %v4484 = vld [vmem:[#allocation12 + $0x2c0] sm:$0xff]
        %v4485 = vld [vmem:[#allocation12 + $0x2c8] sm:$0xff]
        %v4486 = vld [vmem:[#allocation12 + $0x2d0] sm:$0xff]
        %v4487 = vld [vmem:[#allocation12 + $0x2d8] sm:$0xff]
        %v4488 = vld [vmem:[#allocation12 + $0x2e0] sm:$0xff]
        %v4489 = vld [vmem:[#allocation12 + $0x2e8] sm:$0xff]
        %v4490 = vld [vmem:[#allocation12 + $0x2f0] sm:$0xff]
        %v4491 = vld [vmem:[#allocation12 + $0x2f8] sm:$0xff]
        %v4492 = vld [vmem:[#allocation12 + $0x300] sm:$0xff]
        %v4493 = vld [vmem:[#allocation12 + $0x308] sm:$0xff]
        %v4494 = vld [vmem:[#allocation12 + $0x310] sm:$0xff]
        %v4495 = vld [vmem:[#allocation12 + $0x318] sm:$0xff]
        %v4496 = vld [vmem:[#allocation12 + $0x320] sm:$0xff]
        %v4497 = vld [vmem:[#allocation12 + $0x328] sm:$0xff]
        %v4498 = vld [vmem:[#allocation12 + $0x330] sm:$0xff]
        %v4499 = vld [vmem:[#allocation12 + $0x338] sm:$0xff]
        %v4500 = vld [vmem:[#allocation12 + $0x340] sm:$0xff]
        %v4501 = vld [vmem:[#allocation12 + $0x348] sm:$0xff]
        %v4502 = vld [vmem:[#allocation12 + $0x350] sm:$0xff]
        %v4503 = vld [vmem:[#allocation12 + $0x358] sm:$0xff]
        %v4504 = vld [vmem:[#allocation12 + $0x360] sm:$0xff]
        %v4505 = vld [vmem:[#allocation12 + $0x368] sm:$0xff]
        %v4506 = vld [vmem:[#allocation12 + $0x370] sm:$0xff]
        %v4507 = vld [vmem:[#allocation12 + $0x378] sm:$0xff]
        %v4508 = vld [vmem:[#allocation12 + $0x380] sm:$0xff]
        %v4509 = vld [vmem:[#allocation12 + $0x388] sm:$0xff]
        %v4510 = vld [vmem:[#allocation12 + $0x390] sm:$0xff]
        %v4511 = vld [vmem:[#allocation12 + $0x398] sm:$0xff]
        %v4512 = vld [vmem:[#allocation12 + $0x3a0] sm:$0xff]
        %v4513 = vld [vmem:[#allocation12 + $0x3a8] sm:$0xff]
        %v4514 = vld [vmem:[#allocation12 + $0x3b0] sm:$0xff]
        %v4515 = vld [vmem:[#allocation12 + $0x3b8] sm:$0xff]
        %v4516 = vld [vmem:[#allocation12 + $0x3c0] sm:$0xff]
        %v4517 = vld [vmem:[#allocation12 + $0x3c8] sm:$0xff]
        %v4518 = vld [vmem:[#allocation12 + $0x3d0] sm:$0xff]
        %v4519 = vld [vmem:[#allocation12 + $0x3d8] sm:$0xff]
        %v4520 = vld [vmem:[#allocation12 + $0x3e0] sm:$0xff]
        %v4521 = vld [vmem:[#allocation12 + $0x3e8] sm:$0xff]
        %v4522 = vld [vmem:[#allocation12 + $0x3f0] sm:$0xff]
        %v4523 = vld [vmem:[#allocation12 + $0x3f8] sm:$0xff]
        %v4524 = vld [vmem:[%s20] sm:$0xf]
        %v4653 = vunpack.c.l.b16 %v4396
        %v4654 = vunpack.c.h.b16 %v4396
        %v4655 = vunpack.c.l.b16 %v4397
        %v4656 = vunpack.c.h.b16 %v4397
        %v4657 = vunpack.c.l.b16 %v4398
        %v4658 = vunpack.c.h.b16 %v4398
        %v4659 = vunpack.c.l.b16 %v4399
        %v4660 = vunpack.c.h.b16 %v4399
        %v4661 = vunpack.c.l.b16 %v4400
        %v4662 = vunpack.c.h.b16 %v4400
        %v4663 = vunpack.c.l.b16 %v4401
        %v4664 = vunpack.c.h.b16 %v4401
        %v4665 = vunpack.c.l.b16 %v4402
        %v4666 = vunpack.c.h.b16 %v4402
        %v4667 = vunpack.c.l.b16 %v4403
        %v4668 = vunpack.c.h.b16 %v4403
        %v4669 = vunpack.c.l.b16 %v4404
        %v4670 = vunpack.c.h.b16 %v4404
        %v4671 = vunpack.c.l.b16 %v4405
        %v4672 = vunpack.c.h.b16 %v4405
        %v4673 = vunpack.c.l.b16 %v4406
        %v4674 = vunpack.c.h.b16 %v4406
        %v4675 = vunpack.c.l.b16 %v4407
        %v4676 = vunpack.c.h.b16 %v4407
        %v4677 = vunpack.c.l.b16 %v4408
        %v4678 = vunpack.c.h.b16 %v4408
        %v4679 = vunpack.c.l.b16 %v4409
        %v4680 = vunpack.c.h.b16 %v4409
        %v4681 = vunpack.c.l.b16 %v4410
        %v4682 = vunpack.c.h.b16 %v4410
        %v4683 = vunpack.c.l.b16 %v4411
        %v4684 = vunpack.c.h.b16 %v4411
        %v4685 = vunpack.c.l.b16 %v4412
        %v4686 = vunpack.c.h.b16 %v4412
        %v4687 = vunpack.c.l.b16 %v4413
        %v4688 = vunpack.c.h.b16 %v4413
        %v4689 = vunpack.c.l.b16 %v4414
        %v4690 = vunpack.c.h.b16 %v4414
        %v4691 = vunpack.c.l.b16 %v4415
        %v4692 = vunpack.c.h.b16 %v4415
        %v4693 = vunpack.c.l.b16 %v4416
        %v4694 = vunpack.c.h.b16 %v4416
        %v4695 = vunpack.c.l.b16 %v4417
        %v4696 = vunpack.c.h.b16 %v4417
        %v4697 = vunpack.c.l.b16 %v4418
        %v4698 = vunpack.c.h.b16 %v4418
        %v4699 = vunpack.c.l.b16 %v4419
        %v4700 = vunpack.c.h.b16 %v4419
        %v4701 = vunpack.c.l.b16 %v4420
        %v4702 = vunpack.c.h.b16 %v4420
        %v4703 = vunpack.c.l.b16 %v4421
        %v4704 = vunpack.c.h.b16 %v4421
        %v4705 = vunpack.c.l.b16 %v4422
        %v4706 = vunpack.c.h.b16 %v4422
        %v4707 = vunpack.c.l.b16 %v4423
        %v4708 = vunpack.c.h.b16 %v4423
        %v4709 = vunpack.c.l.b16 %v4424
        %v4710 = vunpack.c.h.b16 %v4424
        %v4711 = vunpack.c.l.b16 %v4425
        %v4712 = vunpack.c.h.b16 %v4425
        %v4713 = vunpack.c.l.b16 %v4426
        %v4714 = vunpack.c.h.b16 %v4426
        %v4715 = vunpack.c.l.b16 %v4427
        %v4716 = vunpack.c.h.b16 %v4427
        %v4717 = vunpack.c.l.b16 %v4428
        %v4718 = vunpack.c.h.b16 %v4428
        %v4719 = vunpack.c.l.b16 %v4429
        %v4720 = vunpack.c.h.b16 %v4429
        %v4721 = vunpack.c.l.b16 %v4430
        %v4722 = vunpack.c.h.b16 %v4430
        %v4723 = vunpack.c.l.b16 %v4431
        %v4724 = vunpack.c.h.b16 %v4431
        %v4725 = vunpack.c.l.b16 %v4432
        %v4726 = vunpack.c.h.b16 %v4432
        %v4727 = vunpack.c.l.b16 %v4433
        %v4728 = vunpack.c.h.b16 %v4433
        %v4729 = vunpack.c.l.b16 %v4434
        %v4730 = vunpack.c.h.b16 %v4434
        %v4731 = vunpack.c.l.b16 %v4435
        %v4732 = vunpack.c.h.b16 %v4435
        %v4733 = vunpack.c.l.b16 %v4436
        %v4734 = vunpack.c.h.b16 %v4436
        %v4735 = vunpack.c.l.b16 %v4437
        %v4736 = vunpack.c.h.b16 %v4437
        %v4737 = vunpack.c.l.b16 %v4438
        %v4738 = vunpack.c.h.b16 %v4438
        %v4739 = vunpack.c.l.b16 %v4439
        %v4740 = vunpack.c.h.b16 %v4439
        %v4741 = vunpack.c.l.b16 %v4440
        %v4742 = vunpack.c.h.b16 %v4440
        %v4743 = vunpack.c.l.b16 %v4441
        %v4744 = vunpack.c.h.b16 %v4441
        %v4745 = vunpack.c.l.b16 %v4442
        %v4746 = vunpack.c.h.b16 %v4442
        %v4747 = vunpack.c.l.b16 %v4443
        %v4748 = vunpack.c.h.b16 %v4443
        %v4749 = vunpack.c.l.b16 %v4444
        %v4750 = vunpack.c.h.b16 %v4444
        %v4751 = vunpack.c.l.b16 %v4445
        %v4752 = vunpack.c.h.b16 %v4445
        %v4753 = vunpack.c.l.b16 %v4446
        %v4754 = vunpack.c.h.b16 %v4446
        %v4755 = vunpack.c.l.b16 %v4447
        %v4756 = vunpack.c.h.b16 %v4447
        %v4757 = vunpack.c.l.b16 %v4448
        %v4758 = vunpack.c.h.b16 %v4448
        %v4759 = vunpack.c.l.b16 %v4449
        %v4760 = vunpack.c.h.b16 %v4449
        %v4761 = vunpack.c.l.b16 %v4450
        %v4762 = vunpack.c.h.b16 %v4450
        %v4763 = vunpack.c.l.b16 %v4451
        %v4764 = vunpack.c.h.b16 %v4451
        %v4765 = vunpack.c.l.b16 %v4452
        %v4766 = vunpack.c.h.b16 %v4452
        %v4767 = vunpack.c.l.b16 %v4453
        %v4768 = vunpack.c.h.b16 %v4453
        %v4769 = vunpack.c.l.b16 %v4454
        %v4770 = vunpack.c.h.b16 %v4454
        %v4771 = vunpack.c.l.b16 %v4455
        %v4772 = vunpack.c.h.b16 %v4455
        %v4773 = vunpack.c.l.b16 %v4456
        %v4774 = vunpack.c.h.b16 %v4456
        %v4775 = vunpack.c.l.b16 %v4457
        %v4776 = vunpack.c.h.b16 %v4457
        %v4777 = vunpack.c.l.b16 %v4458
        %v4778 = vunpack.c.h.b16 %v4458
        %v4779 = vunpack.c.l.b16 %v4459
        %v4780 = vunpack.c.h.b16 %v4459
        %v4781 = vunpack.c.l.b16 %v4460
        %v4782 = vunpack.c.h.b16 %v4460
        %v4783 = vunpack.c.l.b16 %v4461
        %v4784 = vunpack.c.h.b16 %v4461
        %v4785 = vunpack.c.l.b16 %v4462
        %v4786 = vunpack.c.h.b16 %v4462
        %v4787 = vunpack.c.l.b16 %v4463
        %v4788 = vunpack.c.h.b16 %v4463
        %v4789 = vunpack.c.l.b16 %v4464
        %v4790 = vunpack.c.h.b16 %v4464
        %v4791 = vunpack.c.l.b16 %v4465
        %v4792 = vunpack.c.h.b16 %v4465
        %v4793 = vunpack.c.l.b16 %v4466
        %v4794 = vunpack.c.h.b16 %v4466
        %v4795 = vunpack.c.l.b16 %v4467
        %v4796 = vunpack.c.h.b16 %v4467
        %v4797 = vunpack.c.l.b16 %v4468
        %v4798 = vunpack.c.h.b16 %v4468
        %v4799 = vunpack.c.l.b16 %v4469
        %v4800 = vunpack.c.h.b16 %v4469
        %v4801 = vunpack.c.l.b16 %v4470
        %v4802 = vunpack.c.h.b16 %v4470
        %v4803 = vunpack.c.l.b16 %v4471
        %v4804 = vunpack.c.h.b16 %v4471
        %v4805 = vunpack.c.l.b16 %v4472
        %v4806 = vunpack.c.h.b16 %v4472
        %v4807 = vunpack.c.l.b16 %v4473
        %v4808 = vunpack.c.h.b16 %v4473
        %v4809 = vunpack.c.l.b16 %v4474
        %v4810 = vunpack.c.h.b16 %v4474
        %v4811 = vunpack.c.l.b16 %v4475
        %v4812 = vunpack.c.h.b16 %v4475
        %v4813 = vunpack.c.l.b16 %v4476
        %v4814 = vunpack.c.h.b16 %v4476
        %v4815 = vunpack.c.l.b16 %v4477
        %v4816 = vunpack.c.h.b16 %v4477
        %v4817 = vunpack.c.l.b16 %v4478
        %v4818 = vunpack.c.h.b16 %v4478
        %v4819 = vunpack.c.l.b16 %v4479
        %v4820 = vunpack.c.h.b16 %v4479
        %v4821 = vunpack.c.l.b16 %v4480
        %v4822 = vunpack.c.h.b16 %v4480
        %v4823 = vunpack.c.l.b16 %v4481
        %v4824 = vunpack.c.h.b16 %v4481
        %v4825 = vunpack.c.l.b16 %v4482
        %v4826 = vunpack.c.h.b16 %v4482
        %v4827 = vunpack.c.l.b16 %v4483
        %v4828 = vunpack.c.h.b16 %v4483
        %v4829 = vunpack.c.l.b16 %v4484
        %v4830 = vunpack.c.h.b16 %v4484
        %v4831 = vunpack.c.l.b16 %v4485
        %v4832 = vunpack.c.h.b16 %v4485
        %v4833 = vunpack.c.l.b16 %v4486
        %v4834 = vunpack.c.h.b16 %v4486
        %v4835 = vunpack.c.l.b16 %v4487
        %v4836 = vunpack.c.h.b16 %v4487
        %v4837 = vunpack.c.l.b16 %v4488
        %v4838 = vunpack.c.h.b16 %v4488
        %v4839 = vunpack.c.l.b16 %v4489
        %v4840 = vunpack.c.h.b16 %v4489
        %v4841 = vunpack.c.l.b16 %v4490
        %v4842 = vunpack.c.h.b16 %v4490
        %v4843 = vunpack.c.l.b16 %v4491
        %v4844 = vunpack.c.h.b16 %v4491
        %v4845 = vunpack.c.l.b16 %v4492
        %v4846 = vunpack.c.h.b16 %v4492
        %v4847 = vunpack.c.l.b16 %v4493
        %v4848 = vunpack.c.h.b16 %v4493
        %v4849 = vunpack.c.l.b16 %v4494
        %v4850 = vunpack.c.h.b16 %v4494
        %v4851 = vunpack.c.l.b16 %v4495
        %v4852 = vunpack.c.h.b16 %v4495
        %v4853 = vunpack.c.l.b16 %v4496
        %v4854 = vunpack.c.h.b16 %v4496
        %v4855 = vunpack.c.l.b16 %v4497
        %v4856 = vunpack.c.h.b16 %v4497
        %v4857 = vunpack.c.l.b16 %v4498
        %v4858 = vunpack.c.h.b16 %v4498
        %v4859 = vunpack.c.l.b16 %v4499
        %v4860 = vunpack.c.h.b16 %v4499
        %v4861 = vunpack.c.l.b16 %v4500
        %v4862 = vunpack.c.h.b16 %v4500
        %v4863 = vunpack.c.l.b16 %v4501
        %v4864 = vunpack.c.h.b16 %v4501
        %v4865 = vunpack.c.l.b16 %v4502
        %v4866 = vunpack.c.h.b16 %v4502
        %v4867 = vunpack.c.l.b16 %v4503
        %v4868 = vunpack.c.h.b16 %v4503
        %v4869 = vunpack.c.l.b16 %v4504
        %v4870 = vunpack.c.h.b16 %v4504
        %v4871 = vunpack.c.l.b16 %v4505
        %v4872 = vunpack.c.h.b16 %v4505
        %v4873 = vunpack.c.l.b16 %v4506
        %v4874 = vunpack.c.h.b16 %v4506
        %v4875 = vunpack.c.l.b16 %v4507
        %v4876 = vunpack.c.h.b16 %v4507
        %v4877 = vunpack.c.l.b16 %v4508
        %v4878 = vunpack.c.h.b16 %v4508
        %v4879 = vunpack.c.l.b16 %v4509
        %v4880 = vunpack.c.h.b16 %v4509
        %v4881 = vunpack.c.l.b16 %v4510
        %v4882 = vunpack.c.h.b16 %v4510
        %v4883 = vunpack.c.l.b16 %v4511
        %v4884 = vunpack.c.h.b16 %v4511
        %v4885 = vunpack.c.l.b16 %v4512
        %v4886 = vunpack.c.h.b16 %v4512
        %v4887 = vunpack.c.l.b16 %v4513
        %v4888 = vunpack.c.h.b16 %v4513
        %v4889 = vunpack.c.l.b16 %v4514
        %v4890 = vunpack.c.h.b16 %v4514
        %v4891 = vunpack.c.l.b16 %v4515
        %v4892 = vunpack.c.h.b16 %v4515
        %v4893 = vunpack.c.l.b16 %v4516
        %v4894 = vunpack.c.h.b16 %v4516
        %v4895 = vunpack.c.l.b16 %v4517
        %v4896 = vunpack.c.h.b16 %v4517
        %v4897 = vunpack.c.l.b16 %v4518
        %v4898 = vunpack.c.h.b16 %v4518
        %v4899 = vunpack.c.l.b16 %v4519
        %v4900 = vunpack.c.h.b16 %v4519
        %v4901 = vunpack.c.l.b16 %v4520
        %v4902 = vunpack.c.h.b16 %v4520
        %v4903 = vunpack.c.l.b16 %v4521
        %v4904 = vunpack.c.h.b16 %v4521
        %v4905 = vunpack.c.l.b16 %v4522
        %v4906 = vunpack.c.h.b16 %v4522
        %v4907 = vunpack.c.l.b16 %v4523
        %v4908 = vunpack.c.h.b16 %v4523
        %v4909 = vpack.c.b16 %v4657, %v4653
        %v4910 = vpack.c.b16 %v4658, %v4654
        %v4911 = vpack.c.b16 %v4659, %v4655
        %v4912 = vpack.c.b16 %v4660, %v4656
        %v4913 = vpack.c.b16 %v4665, %v4661
        %v4914 = vpack.c.b16 %v4666, %v4662
        %v4915 = vpack.c.b16 %v4667, %v4663
        %v4916 = vpack.c.b16 %v4668, %v4664
        %v4917 = vpack.c.b16 %v4673, %v4669
        %v4918 = vpack.c.b16 %v4674, %v4670
        %v4919 = vpack.c.b16 %v4675, %v4671
        %v4920 = vpack.c.b16 %v4676, %v4672
        %v4921 = vpack.c.b16 %v4681, %v4677
        %v4922 = vpack.c.b16 %v4682, %v4678
        %v4923 = vpack.c.b16 %v4683, %v4679
        %v4924 = vpack.c.b16 %v4684, %v4680
        %v4925 = vpack.c.b16 %v4689, %v4685
        %v4926 = vpack.c.b16 %v4690, %v4686
        %v4927 = vpack.c.b16 %v4691, %v4687
        %v4928 = vpack.c.b16 %v4692, %v4688
        %v4929 = vpack.c.b16 %v4697, %v4693
        %v4930 = vpack.c.b16 %v4698, %v4694
        %v4931 = vpack.c.b16 %v4699, %v4695
        %v4932 = vpack.c.b16 %v4700, %v4696
        %v4933 = vpack.c.b16 %v4705, %v4701
        %v4934 = vpack.c.b16 %v4706, %v4702
        %v4935 = vpack.c.b16 %v4707, %v4703
        %v4936 = vpack.c.b16 %v4708, %v4704
        %v4937 = vpack.c.b16 %v4713, %v4709
        %v4938 = vpack.c.b16 %v4714, %v4710
        %v4939 = vpack.c.b16 %v4715, %v4711
        %v4940 = vpack.c.b16 %v4716, %v4712
        %v4941 = vpack.c.b16 %v4721, %v4717
        %v4942 = vpack.c.b16 %v4722, %v4718
        %v4943 = vpack.c.b16 %v4723, %v4719
        %v4944 = vpack.c.b16 %v4724, %v4720
        %v4945 = vpack.c.b16 %v4729, %v4725
        %v4946 = vpack.c.b16 %v4730, %v4726
        %v4947 = vpack.c.b16 %v4731, %v4727
        %v4948 = vpack.c.b16 %v4732, %v4728
        %v4949 = vpack.c.b16 %v4737, %v4733
        %v4950 = vpack.c.b16 %v4738, %v4734
        %v4951 = vpack.c.b16 %v4739, %v4735
        %v4952 = vpack.c.b16 %v4740, %v4736
        %v4953 = vpack.c.b16 %v4745, %v4741
        %v4954 = vpack.c.b16 %v4746, %v4742
        %v4955 = vpack.c.b16 %v4747, %v4743
        %v4956 = vpack.c.b16 %v4748, %v4744
        %v4957 = vpack.c.b16 %v4753, %v4749
        %v4958 = vpack.c.b16 %v4754, %v4750
        %v4959 = vpack.c.b16 %v4755, %v4751
        %v4960 = vpack.c.b16 %v4756, %v4752
        %v4961 = vpack.c.b16 %v4761, %v4757
        %v4962 = vpack.c.b16 %v4762, %v4758
        %v4963 = vpack.c.b16 %v4763, %v4759
        %v4964 = vpack.c.b16 %v4764, %v4760
        %v4965 = vpack.c.b16 %v4769, %v4765
        %v4966 = vpack.c.b16 %v4770, %v4766
        %v4967 = vpack.c.b16 %v4771, %v4767
        %v4968 = vpack.c.b16 %v4772, %v4768
        %v4969 = vpack.c.b16 %v4777, %v4773
        %v4970 = vpack.c.b16 %v4778, %v4774
        %v4971 = vpack.c.b16 %v4779, %v4775
        %v4972 = vpack.c.b16 %v4780, %v4776
        %v4973 = vpack.c.b16 %v4785, %v4781
        %v4974 = vpack.c.b16 %v4786, %v4782
        %v4975 = vpack.c.b16 %v4787, %v4783
        %v4976 = vpack.c.b16 %v4788, %v4784
        %v4977 = vpack.c.b16 %v4793, %v4789
        %v4978 = vpack.c.b16 %v4794, %v4790
        %v4979 = vpack.c.b16 %v4795, %v4791
        %v4980 = vpack.c.b16 %v4796, %v4792
        %v4981 = vpack.c.b16 %v4801, %v4797
        %v4982 = vpack.c.b16 %v4802, %v4798
        %v4983 = vpack.c.b16 %v4803, %v4799
        %v4984 = vpack.c.b16 %v4804, %v4800
        %v4985 = vpack.c.b16 %v4809, %v4805
        %v4986 = vpack.c.b16 %v4810, %v4806
        %v4987 = vpack.c.b16 %v4811, %v4807
        %v4988 = vpack.c.b16 %v4812, %v4808
        %v4989 = vpack.c.b16 %v4817, %v4813
        %v4990 = vpack.c.b16 %v4818, %v4814
        %v4991 = vpack.c.b16 %v4819, %v4815
        %v4992 = vpack.c.b16 %v4820, %v4816
        %v4993 = vpack.c.b16 %v4825, %v4821
        %v4994 = vpack.c.b16 %v4826, %v4822
        %v4995 = vpack.c.b16 %v4827, %v4823
        %v4996 = vpack.c.b16 %v4828, %v4824
        %v4997 = vpack.c.b16 %v4833, %v4829
        %v4998 = vpack.c.b16 %v4834, %v4830
        %v4999 = vpack.c.b16 %v4835, %v4831
        %v5000 = vpack.c.b16 %v4836, %v4832
        %v5001 = vpack.c.b16 %v4841, %v4837
        %v5002 = vpack.c.b16 %v4842, %v4838
        %v5003 = vpack.c.b16 %v4843, %v4839
        %v5004 = vpack.c.b16 %v4844, %v4840
        %v5005 = vpack.c.b16 %v4849, %v4845
        %v5006 = vpack.c.b16 %v4850, %v4846
        %v5007 = vpack.c.b16 %v4851, %v4847
        %v5008 = vpack.c.b16 %v4852, %v4848
        %v5009 = vpack.c.b16 %v4857, %v4853
        %v5010 = vpack.c.b16 %v4858, %v4854
        %v5011 = vpack.c.b16 %v4859, %v4855
        %v5012 = vpack.c.b16 %v4860, %v4856
        %v5013 = vpack.c.b16 %v4865, %v4861
        %v5014 = vpack.c.b16 %v4866, %v4862
        %v5015 = vpack.c.b16 %v4867, %v4863
        %v5016 = vpack.c.b16 %v4868, %v4864
        %v5017 = vpack.c.b16 %v4873, %v4869
        %v5018 = vpack.c.b16 %v4874, %v4870
        %v5019 = vpack.c.b16 %v4875, %v4871
        %v5020 = vpack.c.b16 %v4876, %v4872
        %v5021 = vpack.c.b16 %v4881, %v4877
        %v5022 = vpack.c.b16 %v4882, %v4878
        %v5023 = vpack.c.b16 %v4883, %v4879
        %v5024 = vpack.c.b16 %v4884, %v4880
        %v5025 = vpack.c.b16 %v4889, %v4885
        %v5026 = vpack.c.b16 %v4890, %v4886
        %v5027 = vpack.c.b16 %v4891, %v4887
        %v5028 = vpack.c.b16 %v4892, %v4888
        %v5029 = vpack.c.b16 %v4897, %v4893
        %v5030 = vpack.c.b16 %v4898, %v4894
        %v5031 = vpack.c.b16 %v4899, %v4895
        %v5032 = vpack.c.b16 %v4900, %v4896
        %v5033 = vpack.c.b16 %v4905, %v4901
        %v5034 = vpack.c.b16 %v4906, %v4902
        %v5035 = vpack.c.b16 %v4907, %v4903
        %v5036 = vpack.c.b16 %v4908, %v4904
        %v5166 = vlaneseq
        %v5167 = vshrl.u32 %v5166, 7
        %v5168 = vsub.s32 0, %v5167
        %v5169 = vrot.slane %v4524, %v5168
        %v5170 = vlaneseq
        %v5171 = vshrl.u32 %v5170, 7
        %v5172 = vsub.s32 1, %v5171
        %v5173 = vrot.slane %v4524, %v5172
        %v5174 = vlaneseq
        %v5175 = vshrl.u32 %v5174, 7
        %v5176 = vsub.s32 2, %v5175
        %v5177 = vrot.slane %v4524, %v5176
        %v5178 = vlaneseq
        %v5179 = vshrl.u32 %v5178, 7
        %v5180 = vsub.s32 3, %v5179
        %v5181 = vrot.slane %v4524, %v5180
        %5186 = vmatprep.subr.bf16.mxu0 %v4910
        %5187 = vmatpush1.bf16.msra.mxu0 %v4909
        %5188 = vmatprep.subr.bf16.mxu0 %v4914
        %5189 = vmatpush1.bf16.msra.mxu0 %v4913
        %5190 = vmatprep.subr.bf16.mxu0 %v4918
        %5191 = vmatpush1.bf16.msra.mxu0 %v4917
        %5192 = vmatprep.subr.bf16.mxu0 %v4922
        %5193 = vmatpush1.bf16.msra.mxu0 %v4921
        %5194 = vmatprep.subr.bf16.mxu0 %v4926
        %5195 = vmatpush1.bf16.msra.mxu0 %v4925
        %5196 = vmatprep.subr.bf16.mxu0 %v4930
        %5197 = vmatpush1.bf16.msra.mxu0 %v4929
        %5198 = vmatprep.subr.bf16.mxu0 %v4934
        %5199 = vmatpush1.bf16.msra.mxu0 %v4933
        %5200 = vmatprep.subr.bf16.mxu0 %v4938
        %5201 = vmatpush1.bf16.msra.mxu0 %v4937
        %5202 = vmatprep.subr.bf16.mxu0 %v4942
        %5203 = vmatpush1.bf16.msra.mxu0 %v4941
        %5204 = vmatprep.subr.bf16.mxu0 %v4946
        %5205 = vmatpush1.bf16.msra.mxu0 %v4945
        %5206 = vmatprep.subr.bf16.mxu0 %v4950
        %5207 = vmatpush1.bf16.msra.mxu0 %v4949
        %5208 = vmatprep.subr.bf16.mxu0 %v4954
        %5209 = vmatpush1.bf16.msra.mxu0 %v4953
        %5210 = vmatprep.subr.bf16.mxu0 %v4958
        %5211 = vmatpush1.bf16.msra.mxu0 %v4957
        %5212 = vmatprep.subr.bf16.mxu0 %v4962
        %5213 = vmatpush1.bf16.msra.mxu0 %v4961
        %5214 = vmatprep.subr.bf16.mxu0 %v4966
        %5215 = vmatpush1.bf16.msra.mxu0 %v4965
        %5216 = vmatprep.subr.bf16.mxu0 %v4970
        %5217 = vmatpush1.bf16.msra.mxu0 %v4969
        %5218 = vmatprep.mubr.bf16.mxu0 %v4393
        %5219 = vmatmul.mubr.bf16.gmra.mrb[0].mxu0 %v4392
        %v5220 = vpop.f32.mrb[0].mxu0
        %v5221 = vadd.f32 %v5169, %v5220
        %v5222 = vpop.f32.mrb[0].mxu0
        %v5223 = vadd.f32 %v5173, %v5222
        %v5224 = vpop.f32.mrb[0].mxu0
        %v5225 = vpop.f32.mrb[0].mxu0
        %5226 = vdwg.mxu0
        %5227 = vmatprep.subr.bf16.mxu0 %v4974
        %5228 = vmatpush1.bf16.msra.mxu0 %v4973
        %5229 = vmatprep.subr.bf16.mxu0 %v4978
        %5230 = vmatpush1.bf16.msra.mxu0 %v4977
        %5231 = vmatprep.subr.bf16.mxu0 %v4982
        %5232 = vmatpush1.bf16.msra.mxu0 %v4981
        %5233 = vmatprep.subr.bf16.mxu0 %v4986
        %5234 = vmatpush1.bf16.msra.mxu0 %v4985
        %5235 = vmatprep.subr.bf16.mxu0 %v4990
        %5236 = vmatpush1.bf16.msra.mxu0 %v4989
        %5237 = vmatprep.subr.bf16.mxu0 %v4994
        %5238 = vmatpush1.bf16.msra.mxu0 %v4993
        %5239 = vmatprep.subr.bf16.mxu0 %v4998
        %5240 = vmatpush1.bf16.msra.mxu0 %v4997
        %5241 = vmatprep.subr.bf16.mxu0 %v5002
        %5242 = vmatpush1.bf16.msra.mxu0 %v5001
        %5243 = vmatprep.subr.bf16.mxu0 %v5006
        %5244 = vmatpush1.bf16.msra.mxu0 %v5005
        %5245 = vmatprep.subr.bf16.mxu0 %v5010
        %5246 = vmatpush1.bf16.msra.mxu0 %v5009
        %5247 = vmatprep.subr.bf16.mxu0 %v5014
        %5248 = vmatpush1.bf16.msra.mxu0 %v5013
        %5249 = vmatprep.subr.bf16.mxu0 %v5018
        %5250 = vmatpush1.bf16.msra.mxu0 %v5017
        %5251 = vmatprep.subr.bf16.mxu0 %v5022
        %5252 = vmatpush1.bf16.msra.mxu0 %v5021
        %5253 = vmatprep.subr.bf16.mxu0 %v5026
        %5254 = vmatpush1.bf16.msra.mxu0 %v5025
        %5255 = vmatprep.subr.bf16.mxu0 %v5030
        %5256 = vmatpush1.bf16.msra.mxu0 %v5029
        %5257 = vmatprep.subr.bf16.mxu0 %v5034
        %5258 = vmatpush1.bf16.msra.mxu0 %v5033
        %5259 = vmatprep.mubr.bf16.mxu0 %v4395
        %5260 = vmatmul.mubr.bf16.gmra.mrb[0].mxu0 %v4394
        %v5261 = vpop.f32.mrb[0].mxu0
        %v5262 = vadd.f32 %v5221, %v5261
        %v5263 = vpop.f32.mrb[0].mxu0
        %v5264 = vadd.f32 %v5223, %v5263
        %v5265 = vpop.f32.mrb[0].mxu0
        %v5266 = vpop.f32.mrb[0].mxu0
        %5267 = vdwg.mxu0
        %5268 = vmatprep.subr.bf16.mxu0 %v4912
        %5269 = vmatpush1.bf16.msra.mxu0 %v4911
        %5270 = vmatprep.subr.bf16.mxu0 %v4916
        %5271 = vmatpush1.bf16.msra.mxu0 %v4915
        %5272 = vmatprep.subr.bf16.mxu0 %v4920
        %5273 = vmatpush1.bf16.msra.mxu0 %v4919
        %5274 = vmatprep.subr.bf16.mxu0 %v4924
        %5275 = vmatpush1.bf16.msra.mxu0 %v4923
        %5276 = vmatprep.subr.bf16.mxu0 %v4928
        %5277 = vmatpush1.bf16.msra.mxu0 %v4927
        %5278 = vmatprep.subr.bf16.mxu0 %v4932
        %5279 = vmatpush1.bf16.msra.mxu0 %v4931
        %5280 = vmatprep.subr.bf16.mxu0 %v4936
        %5281 = vmatpush1.bf16.msra.mxu0 %v4935
        %5282 = vmatprep.subr.bf16.mxu0 %v4940
        %5283 = vmatpush1.bf16.msra.mxu0 %v4939
        %5284 = vmatprep.subr.bf16.mxu0 %v4944
        %5285 = vmatpush1.bf16.msra.mxu0 %v4943
        %5286 = vmatprep.subr.bf16.mxu0 %v4948
        %5287 = vmatpush1.bf16.msra.mxu0 %v4947
        %5288 = vmatprep.subr.bf16.mxu0 %v4952
        %5289 = vmatpush1.bf16.msra.mxu0 %v4951
        %5290 = vmatprep.subr.bf16.mxu0 %v4956
        %5291 = vmatpush1.bf16.msra.mxu0 %v4955
        %5292 = vmatprep.subr.bf16.mxu0 %v4960
        %5293 = vmatpush1.bf16.msra.mxu0 %v4959
        %5294 = vmatprep.subr.bf16.mxu0 %v4964
        %5295 = vmatpush1.bf16.msra.mxu0 %v4963
        %5296 = vmatprep.subr.bf16.mxu0 %v4968
        %5297 = vmatpush1.bf16.msra.mxu0 %v4967
        %5298 = vmatprep.subr.bf16.mxu0 %v4972
        %5299 = vmatpush1.bf16.msra.mxu0 %v4971
        %5300 = vmatprep.mubr.bf16.mxu0 %v4393
        %5301 = vmatmul.mubr.bf16.gmra.mrb[0].mxu0 %v4392
        %v5302 = vpop.f32.mrb[0].mxu0
        %v5303 = vadd.f32 %v5177, %v5302
        %v5304 = vpop.f32.mrb[0].mxu0
        %v5305 = vadd.f32 %v5181, %v5304
        %v5306 = vpop.f32.mrb[0].mxu0
        %v5307 = vpop.f32.mrb[0].mxu0
        %5308 = vdwg.mxu0
        %5309 = vmatprep.subr.bf16.mxu0 %v4976
        %5310 = vmatpush1.bf16.msra.mxu0 %v4975
        %5311 = vmatprep.subr.bf16.mxu0 %v4980
        %5312 = vmatpush1.bf16.msra.mxu0 %v4979
        %5313 = vmatprep.subr.bf16.mxu0 %v4984
        %5314 = vmatpush1.bf16.msra.mxu0 %v4983
        %5315 = vmatprep.subr.bf16.mxu0 %v4988
        %5316 = vmatpush1.bf16.msra.mxu0 %v4987
        %5317 = vmatprep.subr.bf16.mxu0 %v4992
        %5318 = vmatpush1.bf16.msra.mxu0 %v4991
        %5319 = vmatprep.subr.bf16.mxu0 %v4996
        %5320 = vmatpush1.bf16.msra.mxu0 %v4995
        %5321 = vmatprep.subr.bf16.mxu0 %v5000
        %5322 = vmatpush1.bf16.msra.mxu0 %v4999
        %5323 = vmatprep.subr.bf16.mxu0 %v5004
        %5324 = vmatpush1.bf16.msra.mxu0 %v5003
        %5325 = vmatprep.subr.bf16.mxu0 %v5008
        %5326 = vmatpush1.bf16.msra.mxu0 %v5007
        %5327 = vmatprep.subr.bf16.mxu0 %v5012
        %5328 = vmatpush1.bf16.msra.mxu0 %v5011
        %5329 = vmatprep.subr.bf16.mxu0 %v5016
        %5330 = vmatpush1.bf16.msra.mxu0 %v5015
        %5331 = vmatprep.subr.bf16.mxu0 %v5020
        %5332 = vmatpush1.bf16.msra.mxu0 %v5019
        %5333 = vmatprep.subr.bf16.mxu0 %v5024
        %5334 = vmatpush1.bf16.msra.mxu0 %v5023
        %5335 = vmatprep.subr.bf16.mxu0 %v5028
        %5336 = vmatpush1.bf16.msra.mxu0 %v5027
        %5337 = vmatprep.subr.bf16.mxu0 %v5032
        %5338 = vmatpush1.bf16.msra.mxu0 %v5031
        %5339 = vmatprep.subr.bf16.mxu0 %v5036
        %5340 = vmatpush1.bf16.msra.mxu0 %v5035
        %5341 = vmatprep.mubr.bf16.mxu0 %v4395
        %5342 = vmatmul.mubr.bf16.gmra.mrb[0].mxu0 %v4394
        %v5343 = vpop.f32.mrb[0].mxu0
        %v5344 = vadd.f32 %v5303, %v5343
        %v5345 = vpop.f32.mrb[0].mxu0
        %v5346 = vadd.f32 %v5305, %v5345
        %v5347 = vpop.f32.mrb[0].mxu0
        %v5348 = vpop.f32.mrb[0].mxu0
        %5349 = vdwg.mxu0
        %vm5350 = vcmp.gt.f32.partialorder %v5262, 0.0
        %vm5351 = vcmp.gt.f32.partialorder %v5264, 0.0
        %vm5352 = vcmp.gt.f32.partialorder %v5344, 0.0
        %vm5353 = vcmp.gt.f32.partialorder %v5346, 0.0
        %v5354 = vmin.f32 %v5262, 0.0
        %v5355 = vmin.f32 %v5264, 0.0
        %v5356 = vmin.f32 %v5344, 0.0
        %v5357 = vmin.f32 %v5346, 0.0
        %v5358 = vmul.f32 %v5354, 1.442695
        %v5359 = vpow.pop %v5358
        %v5360 = vmul.f32 %v5355, 1.442695
        %v5361 = vpow.pop %v5360
        %v5362 = vmul.f32 %v5356, 1.442695
        %v5363 = vpow.pop %v5362
        %v5364 = vmul.f32 %v5357, 1.442695
        %v5365 = vpow.pop %v5364
        %v5366 = vsub.f32 %v5359, 1.0
        %v5367 = vsub.f32 %v5361, 1.0
        %v5368 = vsub.f32 %v5363, 1.0
        %v5369 = vsub.f32 %v5365, 1.0
        %v5370 = vsel %vm5350, %v5262, %v5366
        %v5371 = vsel %vm5351, %v5264, %v5367
        %v5372 = vsel %vm5352, %v5344, %v5368
        %v5373 = vsel %vm5353, %v5346, %v5369
        %v5374 = vpack.c.bf16 %v5370, %v5370
        %v5375 = vpack.c.bf16 %v5371, %v5371
        %v5376 = vpack.c.bf16 %v5372, %v5372
        %v5377 = vpack.c.bf16 %v5373, %v5373
        %v5378 = vld [vmem:[#allocation13] sm:$0xff]
        %v5379 = vld [vmem:[#allocation13 + $0x8] sm:$0xff]
        %v5380 = vld [vmem:[#allocation13 + $0x10] sm:$0xff]
        %v5381 = vld [vmem:[#allocation13 + $0x18] sm:$0xff]
        %v5382 = vld [vmem:[#allocation13 + $0x20] sm:$0xff]
        %v5383 = vld [vmem:[#allocation13 + $0x28] sm:$0xff]
        %v5384 = vld [vmem:[#allocation13 + $0x30] sm:$0xff]
        %v5385 = vld [vmem:[#allocation13 + $0x38] sm:$0xff]
        %v5386 = vld [vmem:[#allocation13 + $0x40] sm:$0xff]
        %v5387 = vld [vmem:[#allocation13 + $0x48] sm:$0xff]
        %v5388 = vld [vmem:[#allocation13 + $0x50] sm:$0xff]
        %v5389 = vld [vmem:[#allocation13 + $0x58] sm:$0xff]
        %v5390 = vld [vmem:[#allocation13 + $0x60] sm:$0xff]
        %v5391 = vld [vmem:[#allocation13 + $0x68] sm:$0xff]
        %v5392 = vld [vmem:[#allocation13 + $0x70] sm:$0xff]
        %v5393 = vld [vmem:[#allocation13 + $0x78] sm:$0xff]
        %v5394 = vld [vmem:[#allocation13 + $0x80] sm:$0xff]
        %v5395 = vld [vmem:[#allocation13 + $0x88] sm:$0xff]
        %v5396 = vld [vmem:[#allocation13 + $0x90] sm:$0xff]
        %v5397 = vld [vmem:[#allocation13 + $0x98] sm:$0xff]
        %v5398 = vld [vmem:[#allocation13 + $0xa0] sm:$0xff]
        %v5399 = vld [vmem:[#allocation13 + $0xa8] sm:$0xff]
        %v5400 = vld [vmem:[#allocation13 + $0xb0] sm:$0xff]
        %v5401 = vld [vmem:[#allocation13 + $0xb8] sm:$0xff]
        %v5402 = vld [vmem:[#allocation13 + $0xc0] sm:$0xff]
        %v5403 = vld [vmem:[#allocation13 + $0xc8] sm:$0xff]
        %v5404 = vld [vmem:[#allocation13 + $0xd0] sm:$0xff]
        %v5405 = vld [vmem:[#allocation13 + $0xd8] sm:$0xff]
        %v5406 = vld [vmem:[#allocation13 + $0xe0] sm:$0xff]
        %v5407 = vld [vmem:[#allocation13 + $0xe8] sm:$0xff]
        %v5408 = vld [vmem:[#allocation13 + $0xf0] sm:$0xff]
        %v5409 = vld [vmem:[#allocation13 + $0xf8] sm:$0xff]
        %v5410 = vld [vmem:[#allocation13 + $0x100] sm:$0xff]
        %v5411 = vld [vmem:[#allocation13 + $0x108] sm:$0xff]
        %v5412 = vld [vmem:[#allocation13 + $0x110] sm:$0xff]
        %v5413 = vld [vmem:[#allocation13 + $0x118] sm:$0xff]
        %v5414 = vld [vmem:[#allocation13 + $0x120] sm:$0xff]
        %v5415 = vld [vmem:[#allocation13 + $0x128] sm:$0xff]
        %v5416 = vld [vmem:[#allocation13 + $0x130] sm:$0xff]
        %v5417 = vld [vmem:[#allocation13 + $0x138] sm:$0xff]
        %v5418 = vld [vmem:[#allocation13 + $0x140] sm:$0xff]
        %v5419 = vld [vmem:[#allocation13 + $0x148] sm:$0xff]
        %v5420 = vld [vmem:[#allocation13 + $0x150] sm:$0xff]
        %v5421 = vld [vmem:[#allocation13 + $0x158] sm:$0xff]
        %v5422 = vld [vmem:[#allocation13 + $0x160] sm:$0xff]
        %v5423 = vld [vmem:[#allocation13 + $0x168] sm:$0xff]
        %v5424 = vld [vmem:[#allocation13 + $0x170] sm:$0xff]
        %v5425 = vld [vmem:[#allocation13 + $0x178] sm:$0xff]
        %v5426 = vld [vmem:[#allocation13 + $0x180] sm:$0xff]
        %v5427 = vld [vmem:[#allocation13 + $0x188] sm:$0xff]
        %v5428 = vld [vmem:[#allocation13 + $0x190] sm:$0xff]
        %v5429 = vld [vmem:[#allocation13 + $0x198] sm:$0xff]
        %v5430 = vld [vmem:[#allocation13 + $0x1a0] sm:$0xff]
        %v5431 = vld [vmem:[#allocation13 + $0x1a8] sm:$0xff]
        %v5432 = vld [vmem:[#allocation13 + $0x1b0] sm:$0xff]
        %v5433 = vld [vmem:[#allocation13 + $0x1b8] sm:$0xff]
        %v5434 = vld [vmem:[#allocation13 + $0x1c0] sm:$0xff]
        %v5435 = vld [vmem:[#allocation13 + $0x1c8] sm:$0xff]
        %v5436 = vld [vmem:[#allocation13 + $0x1d0] sm:$0xff]
        %v5437 = vld [vmem:[#allocation13 + $0x1d8] sm:$0xff]
        %v5438 = vld [vmem:[#allocation13 + $0x1e0] sm:$0xff]
        %v5439 = vld [vmem:[#allocation13 + $0x1e8] sm:$0xff]
        %v5440 = vld [vmem:[#allocation13 + $0x1f0] sm:$0xff]
        %v5441 = vld [vmem:[#allocation13 + $0x1f8] sm:$0xff]
        %v5442 = vld [vmem:[#allocation13 + $0x200] sm:$0xff]
        %v5443 = vld [vmem:[#allocation13 + $0x208] sm:$0xff]
        %v5444 = vld [vmem:[#allocation13 + $0x210] sm:$0xff]
        %v5445 = vld [vmem:[#allocation13 + $0x218] sm:$0xff]
        %v5446 = vld [vmem:[#allocation13 + $0x220] sm:$0xff]
        %v5447 = vld [vmem:[#allocation13 + $0x228] sm:$0xff]
        %v5448 = vld [vmem:[#allocation13 + $0x230] sm:$0xff]
        %v5449 = vld [vmem:[#allocation13 + $0x238] sm:$0xff]
        %v5450 = vld [vmem:[#allocation13 + $0x240] sm:$0xff]
        %v5451 = vld [vmem:[#allocation13 + $0x248] sm:$0xff]
        %v5452 = vld [vmem:[#allocation13 + $0x250] sm:$0xff]
        %v5453 = vld [vmem:[#allocation13 + $0x258] sm:$0xff]
        %v5454 = vld [vmem:[#allocation13 + $0x260] sm:$0xff]
        %v5455 = vld [vmem:[#allocation13 + $0x268] sm:$0xff]
        %v5456 = vld [vmem:[#allocation13 + $0x270] sm:$0xff]
        %v5457 = vld [vmem:[#allocation13 + $0x278] sm:$0xff]
        %v5458 = vld [vmem:[#allocation13 + $0x280] sm:$0xff]
        %v5459 = vld [vmem:[#allocation13 + $0x288] sm:$0xff]
        %v5460 = vld [vmem:[#allocation13 + $0x290] sm:$0xff]
        %v5461 = vld [vmem:[#allocation13 + $0x298] sm:$0xff]
        %v5462 = vld [vmem:[#allocation13 + $0x2a0] sm:$0xff]
        %v5463 = vld [vmem:[#allocation13 + $0x2a8] sm:$0xff]
        %v5464 = vld [vmem:[#allocation13 + $0x2b0] sm:$0xff]
        %v5465 = vld [vmem:[#allocation13 + $0x2b8] sm:$0xff]
        %v5466 = vld [vmem:[#allocation13 + $0x2c0] sm:$0xff]
        %v5467 = vld [vmem:[#allocation13 + $0x2c8] sm:$0xff]
        %v5468 = vld [vmem:[#allocation13 + $0x2d0] sm:$0xff]
        %v5469 = vld [vmem:[#allocation13 + $0x2d8] sm:$0xff]
        %v5470 = vld [vmem:[#allocation13 + $0x2e0] sm:$0xff]
        %v5471 = vld [vmem:[#allocation13 + $0x2e8] sm:$0xff]
        %v5472 = vld [vmem:[#allocation13 + $0x2f0] sm:$0xff]
        %v5473 = vld [vmem:[#allocation13 + $0x2f8] sm:$0xff]
        %v5474 = vld [vmem:[#allocation13 + $0x300] sm:$0xff]
        %v5475 = vld [vmem:[#allocation13 + $0x308] sm:$0xff]
        %v5476 = vld [vmem:[#allocation13 + $0x310] sm:$0xff]
        %v5477 = vld [vmem:[#allocation13 + $0x318] sm:$0xff]
        %v5478 = vld [vmem:[#allocation13 + $0x320] sm:$0xff]
        %v5479 = vld [vmem:[#allocation13 + $0x328] sm:$0xff]
        %v5480 = vld [vmem:[#allocation13 + $0x330] sm:$0xff]
        %v5481 = vld [vmem:[#allocation13 + $0x338] sm:$0xff]
        %v5482 = vld [vmem:[#allocation13 + $0x340] sm:$0xff]
        %v5483 = vld [vmem:[#allocation13 + $0x348] sm:$0xff]
        %v5484 = vld [vmem:[#allocation13 + $0x350] sm:$0xff]
        %v5485 = vld [vmem:[#allocation13 + $0x358] sm:$0xff]
        %v5486 = vld [vmem:[#allocation13 + $0x360] sm:$0xff]
        %v5487 = vld [vmem:[#allocation13 + $0x368] sm:$0xff]
        %v5488 = vld [vmem:[#allocation13 + $0x370] sm:$0xff]
        %v5489 = vld [vmem:[#allocation13 + $0x378] sm:$0xff]
        %v5490 = vld [vmem:[#allocation13 + $0x380] sm:$0xff]
        %v5491 = vld [vmem:[#allocation13 + $0x388] sm:$0xff]
        %v5492 = vld [vmem:[#allocation13 + $0x390] sm:$0xff]
        %v5493 = vld [vmem:[#allocation13 + $0x398] sm:$0xff]
        %v5494 = vld [vmem:[#allocation13 + $0x3a0] sm:$0xff]
        %v5495 = vld [vmem:[#allocation13 + $0x3a8] sm:$0xff]
        %v5496 = vld [vmem:[#allocation13 + $0x3b0] sm:$0xff]
        %v5497 = vld [vmem:[#allocation13 + $0x3b8] sm:$0xff]
        %v5498 = vld [vmem:[#allocation13 + $0x3c0] sm:$0xff]
        %v5499 = vld [vmem:[#allocation13 + $0x3c8] sm:$0xff]
        %v5500 = vld [vmem:[#allocation13 + $0x3d0] sm:$0xff]
        %v5501 = vld [vmem:[#allocation13 + $0x3d8] sm:$0xff]
        %v5502 = vld [vmem:[#allocation13 + $0x3e0] sm:$0xff]
        %v5503 = vld [vmem:[#allocation13 + $0x3e8] sm:$0xff]
        %v5504 = vld [vmem:[#allocation13 + $0x3f0] sm:$0xff]
        %v5505 = vld [vmem:[#allocation13 + $0x3f8] sm:$0xff]
        %v5506 = vld [vmem:[%s22] sm:$0xf]
        %v5635 = vunpack.c.l.b16 %v5378
        %v5636 = vunpack.c.h.b16 %v5378
        %v5637 = vunpack.c.l.b16 %v5379
        %v5638 = vunpack.c.h.b16 %v5379
        %v5639 = vunpack.c.l.b16 %v5380
        %v5640 = vunpack.c.h.b16 %v5380
        %v5641 = vunpack.c.l.b16 %v5381
        %v5642 = vunpack.c.h.b16 %v5381
        %v5643 = vunpack.c.l.b16 %v5382
        %v5644 = vunpack.c.h.b16 %v5382
        %v5645 = vunpack.c.l.b16 %v5383
        %v5646 = vunpack.c.h.b16 %v5383
        %v5647 = vunpack.c.l.b16 %v5384
        %v5648 = vunpack.c.h.b16 %v5384
        %v5649 = vunpack.c.l.b16 %v5385
        %v5650 = vunpack.c.h.b16 %v5385
        %v5651 = vunpack.c.l.b16 %v5386
        %v5652 = vunpack.c.h.b16 %v5386
        %v5653 = vunpack.c.l.b16 %v5387
        %v5654 = vunpack.c.h.b16 %v5387
        %v5655 = vunpack.c.l.b16 %v5388
        %v5656 = vunpack.c.h.b16 %v5388
        %v5657 = vunpack.c.l.b16 %v5389
        %v5658 = vunpack.c.h.b16 %v5389
        %v5659 = vunpack.c.l.b16 %v5390
        %v5660 = vunpack.c.h.b16 %v5390
        %v5661 = vunpack.c.l.b16 %v5391
        %v5662 = vunpack.c.h.b16 %v5391
        %v5663 = vunpack.c.l.b16 %v5392
        %v5664 = vunpack.c.h.b16 %v5392
        %v5665 = vunpack.c.l.b16 %v5393
        %v5666 = vunpack.c.h.b16 %v5393
        %v5667 = vunpack.c.l.b16 %v5394
        %v5668 = vunpack.c.h.b16 %v5394
        %v5669 = vunpack.c.l.b16 %v5395
        %v5670 = vunpack.c.h.b16 %v5395
        %v5671 = vunpack.c.l.b16 %v5396
        %v5672 = vunpack.c.h.b16 %v5396
        %v5673 = vunpack.c.l.b16 %v5397
        %v5674 = vunpack.c.h.b16 %v5397
        %v5675 = vunpack.c.l.b16 %v5398
        %v5676 = vunpack.c.h.b16 %v5398
        %v5677 = vunpack.c.l.b16 %v5399
        %v5678 = vunpack.c.h.b16 %v5399
        %v5679 = vunpack.c.l.b16 %v5400
        %v5680 = vunpack.c.h.b16 %v5400
        %v5681 = vunpack.c.l.b16 %v5401
        %v5682 = vunpack.c.h.b16 %v5401
        %v5683 = vunpack.c.l.b16 %v5402
        %v5684 = vunpack.c.h.b16 %v5402
        %v5685 = vunpack.c.l.b16 %v5403
        %v5686 = vunpack.c.h.b16 %v5403
        %v5687 = vunpack.c.l.b16 %v5404
        %v5688 = vunpack.c.h.b16 %v5404
        %v5689 = vunpack.c.l.b16 %v5405
        %v5690 = vunpack.c.h.b16 %v5405
        %v5691 = vunpack.c.l.b16 %v5406
        %v5692 = vunpack.c.h.b16 %v5406
        %v5693 = vunpack.c.l.b16 %v5407
        %v5694 = vunpack.c.h.b16 %v5407
        %v5695 = vunpack.c.l.b16 %v5408
        %v5696 = vunpack.c.h.b16 %v5408
        %v5697 = vunpack.c.l.b16 %v5409
        %v5698 = vunpack.c.h.b16 %v5409
        %v5699 = vunpack.c.l.b16 %v5410
        %v5700 = vunpack.c.h.b16 %v5410
        %v5701 = vunpack.c.l.b16 %v5411
        %v5702 = vunpack.c.h.b16 %v5411
        %v5703 = vunpack.c.l.b16 %v5412
        %v5704 = vunpack.c.h.b16 %v5412
        %v5705 = vunpack.c.l.b16 %v5413
        %v5706 = vunpack.c.h.b16 %v5413
        %v5707 = vunpack.c.l.b16 %v5414
        %v5708 = vunpack.c.h.b16 %v5414
        %v5709 = vunpack.c.l.b16 %v5415
        %v5710 = vunpack.c.h.b16 %v5415
        %v5711 = vunpack.c.l.b16 %v5416
        %v5712 = vunpack.c.h.b16 %v5416
        %v5713 = vunpack.c.l.b16 %v5417
        %v5714 = vunpack.c.h.b16 %v5417
        %v5715 = vunpack.c.l.b16 %v5418
        %v5716 = vunpack.c.h.b16 %v5418
        %v5717 = vunpack.c.l.b16 %v5419
        %v5718 = vunpack.c.h.b16 %v5419
        %v5719 = vunpack.c.l.b16 %v5420
        %v5720 = vunpack.c.h.b16 %v5420
        %v5721 = vunpack.c.l.b16 %v5421
        %v5722 = vunpack.c.h.b16 %v5421
        %v5723 = vunpack.c.l.b16 %v5422
        %v5724 = vunpack.c.h.b16 %v5422
        %v5725 = vunpack.c.l.b16 %v5423
        %v5726 = vunpack.c.h.b16 %v5423
        %v5727 = vunpack.c.l.b16 %v5424
        %v5728 = vunpack.c.h.b16 %v5424
        %v5729 = vunpack.c.l.b16 %v5425
        %v5730 = vunpack.c.h.b16 %v5425
        %v5731 = vunpack.c.l.b16 %v5426
        %v5732 = vunpack.c.h.b16 %v5426
        %v5733 = vunpack.c.l.b16 %v5427
        %v5734 = vunpack.c.h.b16 %v5427
        %v5735 = vunpack.c.l.b16 %v5428
        %v5736 = vunpack.c.h.b16 %v5428
        %v5737 = vunpack.c.l.b16 %v5429
        %v5738 = vunpack.c.h.b16 %v5429
        %v5739 = vunpack.c.l.b16 %v5430
        %v5740 = vunpack.c.h.b16 %v5430
        %v5741 = vunpack.c.l.b16 %v5431
        %v5742 = vunpack.c.h.b16 %v5431
        %v5743 = vunpack.c.l.b16 %v5432
        %v5744 = vunpack.c.h.b16 %v5432
        %v5745 = vunpack.c.l.b16 %v5433
        %v5746 = vunpack.c.h.b16 %v5433
        %v5747 = vunpack.c.l.b16 %v5434
        %v5748 = vunpack.c.h.b16 %v5434
        %v5749 = vunpack.c.l.b16 %v5435
        %v5750 = vunpack.c.h.b16 %v5435
        %v5751 = vunpack.c.l.b16 %v5436
        %v5752 = vunpack.c.h.b16 %v5436
        %v5753 = vunpack.c.l.b16 %v5437
        %v5754 = vunpack.c.h.b16 %v5437
        %v5755 = vunpack.c.l.b16 %v5438
        %v5756 = vunpack.c.h.b16 %v5438
        %v5757 = vunpack.c.l.b16 %v5439
        %v5758 = vunpack.c.h.b16 %v5439
        %v5759 = vunpack.c.l.b16 %v5440
        %v5760 = vunpack.c.h.b16 %v5440
        %v5761 = vunpack.c.l.b16 %v5441
        %v5762 = vunpack.c.h.b16 %v5441
        %v5763 = vunpack.c.l.b16 %v5442
        %v5764 = vunpack.c.h.b16 %v5442
        %v5765 = vunpack.c.l.b16 %v5443
        %v5766 = vunpack.c.h.b16 %v5443
        %v5767 = vunpack.c.l.b16 %v5444
        %v5768 = vunpack.c.h.b16 %v5444
        %v5769 = vunpack.c.l.b16 %v5445
        %v5770 = vunpack.c.h.b16 %v5445
        %v5771 = vunpack.c.l.b16 %v5446
        %v5772 = vunpack.c.h.b16 %v5446
        %v5773 = vunpack.c.l.b16 %v5447
        %v5774 = vunpack.c.h.b16 %v5447
        %v5775 = vunpack.c.l.b16 %v5448
        %v5776 = vunpack.c.h.b16 %v5448
        %v5777 = vunpack.c.l.b16 %v5449
        %v5778 = vunpack.c.h.b16 %v5449
        %v5779 = vunpack.c.l.b16 %v5450
        %v5780 = vunpack.c.h.b16 %v5450
        %v5781 = vunpack.c.l.b16 %v5451
        %v5782 = vunpack.c.h.b16 %v5451
        %v5783 = vunpack.c.l.b16 %v5452
        %v5784 = vunpack.c.h.b16 %v5452
        %v5785 = vunpack.c.l.b16 %v5453
        %v5786 = vunpack.c.h.b16 %v5453
        %v5787 = vunpack.c.l.b16 %v5454
        %v5788 = vunpack.c.h.b16 %v5454
        %v5789 = vunpack.c.l.b16 %v5455
        %v5790 = vunpack.c.h.b16 %v5455
        %v5791 = vunpack.c.l.b16 %v5456
        %v5792 = vunpack.c.h.b16 %v5456
        %v5793 = vunpack.c.l.b16 %v5457
        %v5794 = vunpack.c.h.b16 %v5457
        %v5795 = vunpack.c.l.b16 %v5458
        %v5796 = vunpack.c.h.b16 %v5458
        %v5797 = vunpack.c.l.b16 %v5459
        %v5798 = vunpack.c.h.b16 %v5459
        %v5799 = vunpack.c.l.b16 %v5460
        %v5800 = vunpack.c.h.b16 %v5460
        %v5801 = vunpack.c.l.b16 %v5461
        %v5802 = vunpack.c.h.b16 %v5461
        %v5803 = vunpack.c.l.b16 %v5462
        %v5804 = vunpack.c.h.b16 %v5462
        %v5805 = vunpack.c.l.b16 %v5463
        %v5806 = vunpack.c.h.b16 %v5463
        %v5807 = vunpack.c.l.b16 %v5464
        %v5808 = vunpack.c.h.b16 %v5464
        %v5809 = vunpack.c.l.b16 %v5465
        %v5810 = vunpack.c.h.b16 %v5465
        %v5811 = vunpack.c.l.b16 %v5466
        %v5812 = vunpack.c.h.b16 %v5466
        %v5813 = vunpack.c.l.b16 %v5467
        %v5814 = vunpack.c.h.b16 %v5467
        %v5815 = vunpack.c.l.b16 %v5468
        %v5816 = vunpack.c.h.b16 %v5468
        %v5817 = vunpack.c.l.b16 %v5469
        %v5818 = vunpack.c.h.b16 %v5469
        %v5819 = vunpack.c.l.b16 %v5470
        %v5820 = vunpack.c.h.b16 %v5470
        %v5821 = vunpack.c.l.b16 %v5471
        %v5822 = vunpack.c.h.b16 %v5471
        %v5823 = vunpack.c.l.b16 %v5472
        %v5824 = vunpack.c.h.b16 %v5472
        %v5825 = vunpack.c.l.b16 %v5473
        %v5826 = vunpack.c.h.b16 %v5473
        %v5827 = vunpack.c.l.b16 %v5474
        %v5828 = vunpack.c.h.b16 %v5474
        %v5829 = vunpack.c.l.b16 %v5475
        %v5830 = vunpack.c.h.b16 %v5475
        %v5831 = vunpack.c.l.b16 %v5476
        %v5832 = vunpack.c.h.b16 %v5476
        %v5833 = vunpack.c.l.b16 %v5477
        %v5834 = vunpack.c.h.b16 %v5477
        %v5835 = vunpack.c.l.b16 %v5478
        %v5836 = vunpack.c.h.b16 %v5478
        %v5837 = vunpack.c.l.b16 %v5479
        %v5838 = vunpack.c.h.b16 %v5479
        %v5839 = vunpack.c.l.b16 %v5480
        %v5840 = vunpack.c.h.b16 %v5480
        %v5841 = vunpack.c.l.b16 %v5481
        %v5842 = vunpack.c.h.b16 %v5481
        %v5843 = vunpack.c.l.b16 %v5482
        %v5844 = vunpack.c.h.b16 %v5482
        %v5845 = vunpack.c.l.b16 %v5483
        %v5846 = vunpack.c.h.b16 %v5483
        %v5847 = vunpack.c.l.b16 %v5484
        %v5848 = vunpack.c.h.b16 %v5484
        %v5849 = vunpack.c.l.b16 %v5485
        %v5850 = vunpack.c.h.b16 %v5485
        %v5851 = vunpack.c.l.b16 %v5486
        %v5852 = vunpack.c.h.b16 %v5486
        %v5853 = vunpack.c.l.b16 %v5487
        %v5854 = vunpack.c.h.b16 %v5487
        %v5855 = vunpack.c.l.b16 %v5488
        %v5856 = vunpack.c.h.b16 %v5488
        %v5857 = vunpack.c.l.b16 %v5489
        %v5858 = vunpack.c.h.b16 %v5489
        %v5859 = vunpack.c.l.b16 %v5490
        %v5860 = vunpack.c.h.b16 %v5490
        %v5861 = vunpack.c.l.b16 %v5491
        %v5862 = vunpack.c.h.b16 %v5491
        %v5863 = vunpack.c.l.b16 %v5492
        %v5864 = vunpack.c.h.b16 %v5492
        %v5865 = vunpack.c.l.b16 %v5493
        %v5866 = vunpack.c.h.b16 %v5493
        %v5867 = vunpack.c.l.b16 %v5494
        %v5868 = vunpack.c.h.b16 %v5494
        %v5869 = vunpack.c.l.b16 %v5495
        %v5870 = vunpack.c.h.b16 %v5495
        %v5871 = vunpack.c.l.b16 %v5496
        %v5872 = vunpack.c.h.b16 %v5496
        %v5873 = vunpack.c.l.b16 %v5497
        %v5874 = vunpack.c.h.b16 %v5497
        %v5875 = vunpack.c.l.b16 %v5498
        %v5876 = vunpack.c.h.b16 %v5498
        %v5877 = vunpack.c.l.b16 %v5499
        %v5878 = vunpack.c.h.b16 %v5499
        %v5879 = vunpack.c.l.b16 %v5500
        %v5880 = vunpack.c.h.b16 %v5500
        %v5881 = vunpack.c.l.b16 %v5501
        %v5882 = vunpack.c.h.b16 %v5501
        %v5883 = vunpack.c.l.b16 %v5502
        %v5884 = vunpack.c.h.b16 %v5502
        %v5885 = vunpack.c.l.b16 %v5503
        %v5886 = vunpack.c.h.b16 %v5503
        %v5887 = vunpack.c.l.b16 %v5504
        %v5888 = vunpack.c.h.b16 %v5504
        %v5889 = vunpack.c.l.b16 %v5505
        %v5890 = vunpack.c.h.b16 %v5505
        %v5891 = vpack.c.b16 %v5639, %v5635
        %v5892 = vpack.c.b16 %v5640, %v5636
        %v5893 = vpack.c.b16 %v5641, %v5637
        %v5894 = vpack.c.b16 %v5642, %v5638
        %v5895 = vpack.c.b16 %v5647, %v5643
        %v5896 = vpack.c.b16 %v5648, %v5644
        %v5897 = vpack.c.b16 %v5649, %v5645
        %v5898 = vpack.c.b16 %v5650, %v5646
        %v5899 = vpack.c.b16 %v5655, %v5651
        %v5900 = vpack.c.b16 %v5656, %v5652
        %v5901 = vpack.c.b16 %v5657, %v5653
        %v5902 = vpack.c.b16 %v5658, %v5654
        %v5903 = vpack.c.b16 %v5663, %v5659
        %v5904 = vpack.c.b16 %v5664, %v5660
        %v5905 = vpack.c.b16 %v5665, %v5661
        %v5906 = vpack.c.b16 %v5666, %v5662
        %v5907 = vpack.c.b16 %v5671, %v5667
        %v5908 = vpack.c.b16 %v5672, %v5668
        %v5909 = vpack.c.b16 %v5673, %v5669
        %v5910 = vpack.c.b16 %v5674, %v5670
        %v5911 = vpack.c.b16 %v5679, %v5675
        %v5912 = vpack.c.b16 %v5680, %v5676
        %v5913 = vpack.c.b16 %v5681, %v5677
        %v5914 = vpack.c.b16 %v5682, %v5678
        %v5915 = vpack.c.b16 %v5687, %v5683
        %v5916 = vpack.c.b16 %v5688, %v5684
        %v5917 = vpack.c.b16 %v5689, %v5685
        %v5918 = vpack.c.b16 %v5690, %v5686
        %v5919 = vpack.c.b16 %v5695, %v5691
        %v5920 = vpack.c.b16 %v5696, %v5692
        %v5921 = vpack.c.b16 %v5697, %v5693
        %v5922 = vpack.c.b16 %v5698, %v5694
        %v5923 = vpack.c.b16 %v5703, %v5699
        %v5924 = vpack.c.b16 %v5704, %v5700
        %v5925 = vpack.c.b16 %v5705, %v5701
        %v5926 = vpack.c.b16 %v5706, %v5702
        %v5927 = vpack.c.b16 %v5711, %v5707
        %v5928 = vpack.c.b16 %v5712, %v5708
        %v5929 = vpack.c.b16 %v5713, %v5709
        %v5930 = vpack.c.b16 %v5714, %v5710
        %v5931 = vpack.c.b16 %v5719, %v5715
        %v5932 = vpack.c.b16 %v5720, %v5716
        %v5933 = vpack.c.b16 %v5721, %v5717
        %v5934 = vpack.c.b16 %v5722, %v5718
        %v5935 = vpack.c.b16 %v5727, %v5723
        %v5936 = vpack.c.b16 %v5728, %v5724
        %v5937 = vpack.c.b16 %v5729, %v5725
        %v5938 = vpack.c.b16 %v5730, %v5726
        %v5939 = vpack.c.b16 %v5735, %v5731
        %v5940 = vpack.c.b16 %v5736, %v5732
        %v5941 = vpack.c.b16 %v5737, %v5733
        %v5942 = vpack.c.b16 %v5738, %v5734
        %v5943 = vpack.c.b16 %v5743, %v5739
        %v5944 = vpack.c.b16 %v5744, %v5740
        %v5945 = vpack.c.b16 %v5745, %v5741
        %v5946 = vpack.c.b16 %v5746, %v5742
        %v5947 = vpack.c.b16 %v5751, %v5747
        %v5948 = vpack.c.b16 %v5752, %v5748
        %v5949 = vpack.c.b16 %v5753, %v5749
        %v5950 = vpack.c.b16 %v5754, %v5750
        %v5951 = vpack.c.b16 %v5759, %v5755
        %v5952 = vpack.c.b16 %v5760, %v5756
        %v5953 = vpack.c.b16 %v5761, %v5757
        %v5954 = vpack.c.b16 %v5762, %v5758
        %v5955 = vpack.c.b16 %v5767, %v5763
        %v5956 = vpack.c.b16 %v5768, %v5764
        %v5957 = vpack.c.b16 %v5769, %v5765
        %v5958 = vpack.c.b16 %v5770, %v5766
        %v5959 = vpack.c.b16 %v5775, %v5771
        %v5960 = vpack.c.b16 %v5776, %v5772
        %v5961 = vpack.c.b16 %v5777, %v5773
        %v5962 = vpack.c.b16 %v5778, %v5774
        %v5963 = vpack.c.b16 %v5783, %v5779
        %v5964 = vpack.c.b16 %v5784, %v5780
        %v5965 = vpack.c.b16 %v5785, %v5781
        %v5966 = vpack.c.b16 %v5786, %v5782
        %v5967 = vpack.c.b16 %v5791, %v5787
        %v5968 = vpack.c.b16 %v5792, %v5788
        %v5969 = vpack.c.b16 %v5793, %v5789
        %v5970 = vpack.c.b16 %v5794, %v5790
        %v5971 = vpack.c.b16 %v5799, %v5795
        %v5972 = vpack.c.b16 %v5800, %v5796
        %v5973 = vpack.c.b16 %v5801, %v5797
        %v5974 = vpack.c.b16 %v5802, %v5798
        %v5975 = vpack.c.b16 %v5807, %v5803
        %v5976 = vpack.c.b16 %v5808, %v5804
        %v5977 = vpack.c.b16 %v5809, %v5805
        %v5978 = vpack.c.b16 %v5810, %v5806
        %v5979 = vpack.c.b16 %v5815, %v5811
        %v5980 = vpack.c.b16 %v5816, %v5812
        %v5981 = vpack.c.b16 %v5817, %v5813
        %v5982 = vpack.c.b16 %v5818, %v5814
        %v5983 = vpack.c.b16 %v5823, %v5819
        %v5984 = vpack.c.b16 %v5824, %v5820
        %v5985 = vpack.c.b16 %v5825, %v5821
        %v5986 = vpack.c.b16 %v5826, %v5822
        %v5987 = vpack.c.b16 %v5831, %v5827
        %v5988 = vpack.c.b16 %v5832, %v5828
        %v5989 = vpack.c.b16 %v5833, %v5829
        %v5990 = vpack.c.b16 %v5834, %v5830
        %v5991 = vpack.c.b16 %v5839, %v5835
        %v5992 = vpack.c.b16 %v5840, %v5836
        %v5993 = vpack.c.b16 %v5841, %v5837
        %v5994 = vpack.c.b16 %v5842, %v5838
        %v5995 = vpack.c.b16 %v5847, %v5843
        %v5996 = vpack.c.b16 %v5848, %v5844
        %v5997 = vpack.c.b16 %v5849, %v5845
        %v5998 = vpack.c.b16 %v5850, %v5846
        %v5999 = vpack.c.b16 %v5855, %v5851
        %v6000 = vpack.c.b16 %v5856, %v5852
        %v6001 = vpack.c.b16 %v5857, %v5853
        %v6002 = vpack.c.b16 %v5858, %v5854
        %v6003 = vpack.c.b16 %v5863, %v5859
        %v6004 = vpack.c.b16 %v5864, %v5860
        %v6005 = vpack.c.b16 %v5865, %v5861
        %v6006 = vpack.c.b16 %v5866, %v5862
        %v6007 = vpack.c.b16 %v5871, %v5867
        %v6008 = vpack.c.b16 %v5872, %v5868
        %v6009 = vpack.c.b16 %v5873, %v5869
        %v6010 = vpack.c.b16 %v5874, %v5870
        %v6011 = vpack.c.b16 %v5879, %v5875
        %v6012 = vpack.c.b16 %v5880, %v5876
        %v6013 = vpack.c.b16 %v5881, %v5877
        %v6014 = vpack.c.b16 %v5882, %v5878
        %v6015 = vpack.c.b16 %v5887, %v5883
        %v6016 = vpack.c.b16 %v5888, %v5884
        %v6017 = vpack.c.b16 %v5889, %v5885
        %v6018 = vpack.c.b16 %v5890, %v5886
        %v6148 = vlaneseq
        %v6149 = vshrl.u32 %v6148, 7
        %v6150 = vsub.s32 0, %v6149
        %v6151 = vrot.slane %v5506, %v6150
        %v6152 = vlaneseq
        %v6153 = vshrl.u32 %v6152, 7
        %v6154 = vsub.s32 1, %v6153
        %v6155 = vrot.slane %v5506, %v6154
        %v6156 = vlaneseq
        %v6157 = vshrl.u32 %v6156, 7
        %v6158 = vsub.s32 2, %v6157
        %v6159 = vrot.slane %v5506, %v6158
        %v6160 = vlaneseq
        %v6161 = vshrl.u32 %v6160, 7
        %v6162 = vsub.s32 3, %v6161
        %v6163 = vrot.slane %v5506, %v6162
        %6168 = vmatprep.subr.bf16.mxu0 %v5892
        %6169 = vmatpush1.bf16.msra.mxu0 %v5891
        %6170 = vmatprep.subr.bf16.mxu0 %v5896
        %6171 = vmatpush1.bf16.msra.mxu0 %v5895
        %6172 = vmatprep.subr.bf16.mxu0 %v5900
        %6173 = vmatpush1.bf16.msra.mxu0 %v5899
        %6174 = vmatprep.subr.bf16.mxu0 %v5904
        %6175 = vmatpush1.bf16.msra.mxu0 %v5903
        %6176 = vmatprep.subr.bf16.mxu0 %v5908
        %6177 = vmatpush1.bf16.msra.mxu0 %v5907
        %6178 = vmatprep.subr.bf16.mxu0 %v5912
        %6179 = vmatpush1.bf16.msra.mxu0 %v5911
        %6180 = vmatprep.subr.bf16.mxu0 %v5916
        %6181 = vmatpush1.bf16.msra.mxu0 %v5915
        %6182 = vmatprep.subr.bf16.mxu0 %v5920
        %6183 = vmatpush1.bf16.msra.mxu0 %v5919
        %6184 = vmatprep.subr.bf16.mxu0 %v5924
        %6185 = vmatpush1.bf16.msra.mxu0 %v5923
        %6186 = vmatprep.subr.bf16.mxu0 %v5928
        %6187 = vmatpush1.bf16.msra.mxu0 %v5927
        %6188 = vmatprep.subr.bf16.mxu0 %v5932
        %6189 = vmatpush1.bf16.msra.mxu0 %v5931
        %6190 = vmatprep.subr.bf16.mxu0 %v5936
        %6191 = vmatpush1.bf16.msra.mxu0 %v5935
        %6192 = vmatprep.subr.bf16.mxu0 %v5940
        %6193 = vmatpush1.bf16.msra.mxu0 %v5939
        %6194 = vmatprep.subr.bf16.mxu0 %v5944
        %6195 = vmatpush1.bf16.msra.mxu0 %v5943
        %6196 = vmatprep.subr.bf16.mxu0 %v5948
        %6197 = vmatpush1.bf16.msra.mxu0 %v5947
        %6198 = vmatprep.subr.bf16.mxu0 %v5952
        %6199 = vmatpush1.bf16.msra.mxu0 %v5951
        %6200 = vmatprep.mubr.bf16.mxu0 %v5375
        %6201 = vmatmul.mubr.bf16.gmra.mrb[0].mxu0 %v5374
        %v6202 = vpop.f32.mrb[0].mxu0
        %v6203 = vadd.f32 %v6151, %v6202
        %v6204 = vpop.f32.mrb[0].mxu0
        %v6205 = vadd.f32 %v6155, %v6204
        %v6206 = vpop.f32.mrb[0].mxu0
        %v6207 = vpop.f32.mrb[0].mxu0
        %6208 = vdwg.mxu0
        %6209 = vmatprep.subr.bf16.mxu0 %v5956
        %6210 = vmatpush1.bf16.msra.mxu0 %v5955
        %6211 = vmatprep.subr.bf16.mxu0 %v5960
        %6212 = vmatpush1.bf16.msra.mxu0 %v5959
        %6213 = vmatprep.subr.bf16.mxu0 %v5964
        %6214 = vmatpush1.bf16.msra.mxu0 %v5963
        %6215 = vmatprep.subr.bf16.mxu0 %v5968
        %6216 = vmatpush1.bf16.msra.mxu0 %v5967
        %6217 = vmatprep.subr.bf16.mxu0 %v5972
        %6218 = vmatpush1.bf16.msra.mxu0 %v5971
        %6219 = vmatprep.subr.bf16.mxu0 %v5976
        %6220 = vmatpush1.bf16.msra.mxu0 %v5975
        %6221 = vmatprep.subr.bf16.mxu0 %v5980
        %6222 = vmatpush1.bf16.msra.mxu0 %v5979
        %6223 = vmatprep.subr.bf16.mxu0 %v5984
        %6224 = vmatpush1.bf16.msra.mxu0 %v5983
        %6225 = vmatprep.subr.bf16.mxu0 %v5988
        %6226 = vmatpush1.bf16.msra.mxu0 %v5987
        %6227 = vmatprep.subr.bf16.mxu0 %v5992
        %6228 = vmatpush1.bf16.msra.mxu0 %v5991
        %6229 = vmatprep.subr.bf16.mxu0 %v5996
        %6230 = vmatpush1.bf16.msra.mxu0 %v5995
        %6231 = vmatprep.subr.bf16.mxu0 %v6000
        %6232 = vmatpush1.bf16.msra.mxu0 %v5999
        %6233 = vmatprep.subr.bf16.mxu0 %v6004
        %6234 = vmatpush1.bf16.msra.mxu0 %v6003
        %6235 = vmatprep.subr.bf16.mxu0 %v6008
        %6236 = vmatpush1.bf16.msra.mxu0 %v6007
        %6237 = vmatprep.subr.bf16.mxu0 %v6012
        %6238 = vmatpush1.bf16.msra.mxu0 %v6011
        %6239 = vmatprep.subr.bf16.mxu0 %v6016
        %6240 = vmatpush1.bf16.msra.mxu0 %v6015
        %6241 = vmatprep.mubr.bf16.mxu0 %v5377
        %6242 = vmatmul.mubr.bf16.gmra.mrb[0].mxu0 %v5376
        %v6243 = vpop.f32.mrb[0].mxu0
        %v6244 = vadd.f32 %v6203, %v6243
        %v6245 = vpop.f32.mrb[0].mxu0
        %v6246 = vadd.f32 %v6205, %v6245
        %v6247 = vpop.f32.mrb[0].mxu0
        %v6248 = vpop.f32.mrb[0].mxu0
        %6249 = vdwg.mxu0
        %6250 = vmatprep.subr.bf16.mxu0 %v5894
        %6251 = vmatpush1.bf16.msra.mxu0 %v5893
        %6252 = vmatprep.subr.bf16.mxu0 %v5898
        %6253 = vmatpush1.bf16.msra.mxu0 %v5897
        %6254 = vmatprep.subr.bf16.mxu0 %v5902
        %6255 = vmatpush1.bf16.msra.mxu0 %v5901
        %6256 = vmatprep.subr.bf16.mxu0 %v5906
        %6257 = vmatpush1.bf16.msra.mxu0 %v5905
        %6258 = vmatprep.subr.bf16.mxu0 %v5910
        %6259 = vmatpush1.bf16.msra.mxu0 %v5909
        %6260 = vmatprep.subr.bf16.mxu0 %v5914
        %6261 = vmatpush1.bf16.msra.mxu0 %v5913
        %6262 = vmatprep.subr.bf16.mxu0 %v5918
        %6263 = vmatpush1.bf16.msra.mxu0 %v5917
        %6264 = vmatprep.subr.bf16.mxu0 %v5922
        %6265 = vmatpush1.bf16.msra.mxu0 %v5921
        %6266 = vmatprep.subr.bf16.mxu0 %v5926
        %6267 = vmatpush1.bf16.msra.mxu0 %v5925
        %6268 = vmatprep.subr.bf16.mxu0 %v5930
        %6269 = vmatpush1.bf16.msra.mxu0 %v5929
        %6270 = vmatprep.subr.bf16.mxu0 %v5934
        %6271 = vmatpush1.bf16.msra.mxu0 %v5933
        %6272 = vmatprep.subr.bf16.mxu0 %v5938
        %6273 = vmatpush1.bf16.msra.mxu0 %v5937
        %6274 = vmatprep.subr.bf16.mxu0 %v5942
        %6275 = vmatpush1.bf16.msra.mxu0 %v5941
        %6276 = vmatprep.subr.bf16.mxu0 %v5946
        %6277 = vmatpush1.bf16.msra.mxu0 %v5945
        %6278 = vmatprep.subr.bf16.mxu0 %v5950
        %6279 = vmatpush1.bf16.msra.mxu0 %v5949
        %6280 = vmatprep.subr.bf16.mxu0 %v5954
        %6281 = vmatpush1.bf16.msra.mxu0 %v5953
        %6282 = vmatprep.mubr.bf16.mxu0 %v5375
        %6283 = vmatmul.mubr.bf16.gmra.mrb[0].mxu0 %v5374
        %v6284 = vpop.f32.mrb[0].mxu0
        %v6285 = vadd.f32 %v6159, %v6284
        %v6286 = vpop.f32.mrb[0].mxu0
        %v6287 = vadd.f32 %v6163, %v6286
        %v6288 = vpop.f32.mrb[0].mxu0
        %v6289 = vpop.f32.mrb[0].mxu0
        %6290 = vdwg.mxu0
        %6291 = vmatprep.subr.bf16.mxu0 %v5958
        %6292 = vmatpush1.bf16.msra.mxu0 %v5957
        %6293 = vmatprep.subr.bf16.mxu0 %v5962
        %6294 = vmatpush1.bf16.msra.mxu0 %v5961
        %6295 = vmatprep.subr.bf16.mxu0 %v5966
        %6296 = vmatpush1.bf16.msra.mxu0 %v5965
        %6297 = vmatprep.subr.bf16.mxu0 %v5970
        %6298 = vmatpush1.bf16.msra.mxu0 %v5969
        %6299 = vmatprep.subr.bf16.mxu0 %v5974
        %6300 = vmatpush1.bf16.msra.mxu0 %v5973
        %6301 = vmatprep.subr.bf16.mxu0 %v5978
        %6302 = vmatpush1.bf16.msra.mxu0 %v5977
        %6303 = vmatprep.subr.bf16.mxu0 %v5982
        %6304 = vmatpush1.bf16.msra.mxu0 %v5981
        %6305 = vmatprep.subr.bf16.mxu0 %v5986
        %6306 = vmatpush1.bf16.msra.mxu0 %v5985
        %6307 = vmatprep.subr.bf16.mxu0 %v5990
        %6308 = vmatpush1.bf16.msra.mxu0 %v5989
        %6309 = vmatprep.subr.bf16.mxu0 %v5994
        %6310 = vmatpush1.bf16.msra.mxu0 %v5993
        %6311 = vmatprep.subr.bf16.mxu0 %v5998
        %6312 = vmatpush1.bf16.msra.mxu0 %v5997
        %6313 = vmatprep.subr.bf16.mxu0 %v6002
        %6314 = vmatpush1.bf16.msra.mxu0 %v6001
        %6315 = vmatprep.subr.bf16.mxu0 %v6006
        %6316 = vmatpush1.bf16.msra.mxu0 %v6005
        %6317 = vmatprep.subr.bf16.mxu0 %v6010
        %6318 = vmatpush1.bf16.msra.mxu0 %v6009
        %6319 = vmatprep.subr.bf16.mxu0 %v6014
        %6320 = vmatpush1.bf16.msra.mxu0 %v6013
        %6321 = vmatprep.subr.bf16.mxu0 %v6018
        %6322 = vmatpush1.bf16.msra.mxu0 %v6017
        %6323 = vmatprep.mubr.bf16.mxu0 %v5377
        %6324 = vmatmul.mubr.bf16.gmra.mrb[0].mxu0 %v5376
        %v6325 = vpop.f32.mrb[0].mxu0
        %v6326 = vadd.f32 %v6285, %v6325
        %v6327 = vpop.f32.mrb[0].mxu0
        %v6328 = vadd.f32 %v6287, %v6327
        %v6329 = vpop.f32.mrb[0].mxu0
        %v6330 = vpop.f32.mrb[0].mxu0
        %6331 = vdwg.mxu0
        %v6336 = vcombine.low %v6244, %v6246
        %v6337 = vcombine.low %v6326, %v6328
        %v6339 = vunpack.c.l.s4 1966171168
        %v6340 = vunpack.c.0.s8 %v6339
        %v6341 = vlaneseq
        %v6342 = vshrl.u32 %v6341, 7
        %v6343 = vsub.s32 %v6340, %v6342
        %v6344 = vrot.slane %v6336, %v6343
        %v6346 = vunpack.c.l.s4 1966171168
        %v6347 = vunpack.c.0.s8 %v6346
        %v6348 = vlaneseq
        %v6349 = vshrl.u32 %v6348, 7
        %v6350 = vsub.s32 %v6347, %v6349
        %v6351 = vrot.slane %v6337, %v6350
        %v6352 = vcombine.low %v6344, %v6351
        %v6354 = vunpack.c.l.s4 1966171168
        %v6355 = vunpack.c.0.s8 %v6354
        %v6356 = vlaneseq
        %v6357 = vshrl.u32 %v6356, 7
        %v6358 = vsub.s32 %v6355, %v6357
        %v6359 = vrot.slane %v6352, %v6358
        %v6361 = vlaneseq
        %vm6362 = vcmp.ge.s32.totalorder %v6361, 0
        %vm6363 = vcmp.lt.s32.totalorder %v6361, 512
        %vm6364 = vmand %vm6362, %vm6363
        %6365 = vst.msk [vmem:[%s825] sm:$0xf] %vm6364, %v6359
        %p6366 = scmp.lt.s32.totalorder %s39, 1
        %s6367 = scalar_select %p6366, %s39, 1
        %s6368 = smul.addr %s6367, 4
        %s6369 = scalar_lea.vmem %s23, %s6368
        // Predicated region
        $region145: #{forward.1} parent=111 // pred_check
          %p6370 = pneg %p545
        $region146: #{forward.1} parent=111 // pred_check_branch
          %6372 = sbr.rel (%p6370) target = $region148
        $region147: #{forward.1} parent=111 // pred_region
          _
        $region148: #{forward.1} parent=111 // pred_fallthru
          _
      $region112: #{forward.1} parent=5 // pred_fallthru
        _
      %p6373 = scmp.le.s32.totalorder 2, %s34
      // Predicated region
      $region149: #{forward.1} parent=5 // pred_check
        %p6374 = pneg %p6373
      $region150: #{forward.1} parent=5 // pred_check_branch
        %6376 = sbr.rel (%p6374) target = $region152
      $region151: #{forward.1} parent=5 // pred_region
        %s6377 = ssub.s32 %s34, 2
        // Predicated region
        $region153: #{forward.1} parent=151 // pred_check
          %p6378 = pneg %p551
        $region154: #{forward.1} parent=151 // pred_check_branch
          %6380 = sbr.rel (%p6378) target = $region156
        $region155: #{forward.1} parent=151 // pred_region
          %p6381 = scmp.lt.s32.totalorder %s40, 1
          %s6382 = scalar_select %p6381, %s40, 1
          %s6383 = smul.addr %s6382, 4
          %s6384 = scalar_lea.vmem %s23, %s6383
        $region156: #{forward.1} parent=151 // pred_fallthru
          _
      $region152: #{forward.1} parent=5 // pred_fallthru
        _
    $region6: #{forward.1} parent=1 // loop_footer
      %s38 = sadd.s32 1, %s34
    $region7: #{forward.1} parent=1 // loop_footer_branch
      %33 = sbr.rel target = $region3
    $region8: #{forward.1} parent=1 // loop_exit
      _
    %6385 = vsyncpa [#allocation3], 1
    %s6386 = scalar_lea.sflag [#allocation3], 1
    %6387 = vsyncpa %s6386, 1
    %6388 = vsyncpa [#allocation5], 1
    %6389 = vsyncpa [#allocation8], 1
    %6390 = vsyncpa [#allocation11], 1
    %6391 = vsyncpa [#allocation14], 1

</llo_original>
